<compile_context>
chip_gen: v7x
topology: tpu7x:2x2x1
jax: 0.10.0
libtpu: 0.0.40
codegen_flags: <defaults>
</compile_context>

<pallas_src>
import functools

import jax
import jax.numpy as jnp
from jax import lax
from jax.experimental import pallas as pl
from jax.experimental.pallas import tpu as pltpu

_LANE = 128


def _round_up(n, m):
    return ((n + m - 1) // m) * m


# ----------------------------- Pallas kernel -------------------------------
def _fused_depth_regression_kernel(
        x_ref, w1_ref, w2_ref, w3_ref, w4_ref, w5_ref, so_ref, o_ref,
        buf0, buf1, *, s1, s2):
    """Five fused conv3x3 + affine (+LeakyReLU) layers for one batch element.

    Spatially-transposed layout: (s1, s2) == (W, H).

    x_ref  : (1, s1, s2, Ci)     input tile, channels zero-padded to Ci
    w*_ref : (9*Cin_l, Cout_l)   im2col weights (bf16), taps ordered (dy, dx, ci)
    so_ref : (5, 2, Cso)         per-layer [scale; offset] (f32), zero-padded
    o_ref  : (1, s1, s2, Cf)     final conv output (f32)
    buf0/1 : (s1+2, s2+2, Cbuf)  f32 ping-pong activation buffers ('same' border)
    """
    ci = x_ref.shape[-1]
    cm = w1_ref.shape[-1]
    cf = w5_ref.shape[-1]

    # Zero both padded buffers once per batch element: the untouched 1-pixel
    # border implements 'same' padding for every layer.
    buf0[...] = jnp.zeros_like(buf0)
    buf1[...] = jnp.zeros_like(buf1)
    # Place the input tile in the interior of buf0.
    buf0[pl.ds(1, s1), pl.ds(1, s2), pl.ds(0, ci)] = x_ref[0]

    def im2col(src_ref, c_in):
        # Build the (s1*s2, 9*c_in) patch matrix once per layer; tap order
        # (dy, dx, ci) matches the im2col weight reshape. bf16 MXU operand.
        cols = [
            src_ref[pl.ds(dy, s1), pl.ds(dx, s2), pl.ds(0, c_in)]
            .reshape(s1 * s2, c_in)
            for dy in range(3) for dx in range(3)
        ]
        return jnp.concatenate(cols, axis=-1).astype(jnp.bfloat16)

    def conv_layer(src_ref, w_ref, layer_idx, c_in, c_out, relu):
        patch = im2col(src_ref, c_in)                       # (s1*s2, 9*c_in) bf16
        acc = jnp.dot(patch, w_ref[...],
                      preferred_element_type=jnp.float32)   # (s1*s2, c_out) f32
        so = so_ref[layer_idx]                              # (2, Cso) f32
        y = acc * so[0:1, :c_out] + so[1:2, :c_out]         # folded BN + bias
        if relu:
            y = jnp.where(y > 0, y, 0.01 * y)               # LeakyReLU(0.01)
        return y

    srcs = (buf0, buf1, buf0, buf1)
    dsts = (buf1, buf0, buf1, buf0)
    w_refs = (w1_ref, w2_ref, w3_ref, w4_ref)
    c_ins = (ci, cm, cm, cm)
    for l in range(4):
        y = conv_layer(srcs[l], w_refs[l], l, c_ins[l], cm, relu=True)
        dsts[l][pl.ds(1, s1), pl.ds(1, s2), pl.ds(0, cm)] = (
            y.reshape(s1, s2, cm).astype(dsts[l].dtype))

    # Output conv: bias only (scale=1), no ReLU. Written lane-dense (Cf padded).
    y = conv_layer(buf0, w5_ref, 4, cm, cf, relu=False)
    o_ref[0] = y.reshape(s1, s2, cf).astype(o_ref.dtype)


# ----------------------------- wrapper / glue -------------------------------
def _prep_im2col_weight(w_hwio, c_in_p, c_out_p):
    """HWIO (3,3,ci,co) conv weight -> spatial-tap-swapped, zero-padded,
    im2col-reshaped (9*c_in_p, c_out_p) bf16 matrix."""
    _, _, ci, co = w_hwio.shape
    wt = jnp.transpose(w_hwio, (1, 0, 2, 3))       # swap taps for (W, H) layout
    wt = jnp.pad(wt, ((0, 0), (0, 0), (0, c_in_p - ci), (0, c_out_p - co)))
    return wt.reshape(9 * c_in_p, c_out_p).astype(jnp.bfloat16)


def _prep_scale_offset(scale, offset, c_pad):
    c = scale.shape[0]
    s = jnp.pad(scale.astype(jnp.float32), (0, c_pad - c))
    o = jnp.pad(offset.astype(jnp.float32), (0, c_pad - c))
    return jnp.stack([s, o], axis=0)               # (2, c_pad)


def depth_regression_forward(x_nchw, params, num_anchors, num_joints):
    B, c_in, H, W = x_nchw.shape
    c_mid = params[0]["w"].shape[-1]
    c_fin = num_anchors * num_joints
    assert params[4]["w"].shape[-1] == c_fin

    ci_p = _round_up(c_in, _LANE)
    cm_p = _round_up(c_mid, _LANE)
    cf_p = _round_up(c_fin, _LANE)
    cso = max(cm_p, cf_p)
    c_buf = max(ci_p, cm_p)
    s1, s2 = W, H                                  # spatially-transposed layout

    # NCHW -> (B, W, H, C): folds the module's final permute(0,3,2,1) into the
    # working layout. Channels zero-padded to lane-dense width.
    xt = jnp.transpose(x_nchw, (0, 3, 2, 1)).astype(jnp.float32)
    xt = jnp.pad(xt, ((0, 0), (0, 0), (0, 0), (0, ci_p - c_in)))

    w1 = _prep_im2col_weight(params[0]["w"], ci_p, cm_p)
    w2 = _prep_im2col_weight(params[1]["w"], cm_p, cm_p)
    w3 = _prep_im2col_weight(params[2]["w"], cm_p, cm_p)
    w4 = _prep_im2col_weight(params[3]["w"], cm_p, cm_p)
    w5 = _prep_im2col_weight(params[4]["w"], cm_p, cf_p)
    so = jnp.stack([_prep_scale_offset(p["scale"], p["offset"], cso)
                    for p in params], axis=0)      # (5, 2, cso)

    flops = 2 * B * s1 * s2 * 9 * (ci_p * cm_p + 3 * cm_p * cm_p + cm_p * cf_p)
    bytes_accessed = (xt.size * 4 + so.size * 4 + B * s1 * s2 * cf_p * 4
                      + 2 * (w1.size + w2.size + w3.size + w4.size + w5.size))

    kernel = functools.partial(_fused_depth_regression_kernel, s1=s1, s2=s2)
    out = pl.pallas_call(
        kernel,
        out_shape=jax.ShapeDtypeStruct((B, s1, s2, cf_p), jnp.float32),
        grid=(B,),
        in_specs=[
            pl.BlockSpec((1, s1, s2, ci_p), lambda b: (b, 0, 0, 0)),
            pl.BlockSpec((9 * ci_p, cm_p), lambda b: (0, 0)),
            pl.BlockSpec((9 * cm_p, cm_p), lambda b: (0, 0)),
            pl.BlockSpec((9 * cm_p, cm_p), lambda b: (0, 0)),
            pl.BlockSpec((9 * cm_p, cm_p), lambda b: (0, 0)),
            pl.BlockSpec((9 * cm_p, cf_p), lambda b: (0, 0)),
            pl.BlockSpec((5, 2, cso), lambda b: (0, 0, 0)),
        ],
        out_specs=pl.BlockSpec((1, s1, s2, cf_p), lambda b: (b, 0, 0, 0)),
        scratch_shapes=[
            pltpu.VMEM((s1 + 2, s2 + 2, c_buf), jnp.float32),
            pltpu.VMEM((s1 + 2, s2 + 2, c_buf), jnp.float32),
        ],
        compiler_params=pltpu.CompilerParams(
            dimension_semantics=("parallel",),     # batch axis -> megacore/2nd TC
            vmem_limit_bytes=48 * 1024 * 1024),
        cost_estimate=pl.CostEstimate(
            flops=flops, transcendentals=0, bytes_accessed=bytes_accessed),
    )(xt, w1, w2, w3, w4, w5, so)

    out = out[:, :, :, :c_fin]                     # drop lane padding: (B,W,H,A*J)
    return out.reshape(B, s1 * s2 * num_anchors, num_joints)


# ------------------------- parameter construction --------------------------
def _xavier_normal(key, cin, cout):
    fan_in, fan_out = cin * 9, cout * 9
    std = (2.0 / (fan_in + fan_out)) ** 0.5
    return std * jax.random.normal(key, (3, 3, cin, cout), jnp.float32)


def init_params(key, input_channels, output_channels, num_anchors, num_joints):
    ks = jax.random.split(key, 10)
    eps = 1e-5
    params = []
    cin = input_channels
    for i in range(4):                              # conv1..4 + BN + LeakyReLU
        w = _xavier_normal(ks[2 * i], cin, output_channels)
        b = 0.01 * jax.random.normal(ks[2 * i + 1], (output_channels,), jnp.float32)
        gamma = jnp.ones((output_channels,), jnp.float32)
        beta = jnp.zeros((output_channels,), jnp.float32)
        run_mean = jnp.zeros((output_channels,), jnp.float32)
        run_var = jnp.ones((output_channels,), jnp.float32)
        scale = gamma / jnp.sqrt(run_var + eps)     # fold inference BN + bias
        offset = (b - run_mean) * scale + beta
        params.append(dict(w=w, scale=scale, offset=offset, relu=True))
        cin = output_channels
    cfinal = num_anchors * num_joints               # output conv: bias, no BN/relu
    w = _xavier_normal(ks[8], output_channels, cfinal)
    b = 0.01 * jax.random.normal(ks[9], (cfinal,), jnp.float32)
    params.append(dict(w=w, scale=jnp.ones((cfinal,), jnp.float32),
                       offset=b, relu=False))
    return params


# --------------------------- pure-JAX reference -----------------------------
def depth_regression_reference(x_nchw, params, num_anchors, num_joints):
    # bf16-matmul / f32-accumulate reference (same rounding points as the kernel).
    x = jnp.transpose(x_nchw, (0, 2, 3, 1))         # NHWC
    for p in params:
        y = lax.conv_general_dilated(
            x.astype(jnp.bfloat16), p["w"].astype(jnp.bfloat16),
            window_strides=(1, 1), padding="SAME",
            dimension_numbers=("NHWC", "HWIO", "NHWC"),
            preferred_element_type=jnp.float32)
        y = y * p["scale"] + p["offset"]
        if p["relu"]:
            y = jnp.where(y > 0, y, 0.01 * y)
        x = y
    out = jnp.transpose(x, (0, 2, 1, 3))            # (B, W, H, C) = permute(0,3,2,1)
    B, Wd, Hd, _ = out.shape
    return out.reshape(B, Wd * Hd * num_anchors, num_joints)


# --------------------------------- main -------------------------------------
if __name__ == "__main__":
    import numpy as np

    # Small shapes consistent with the module (H != W exercises the final
    # permute(0, 3, 2, 1) / transposed-layout handling).
    B, Cin, H, W = 2, 4, 16, 8
    output_channels, num_anchors, num_joints = 32, 4, 6

    key = jax.random.PRNGKey(0)
    kx, kp = jax.random.split(key)
    x = jax.random.normal(kx, (B, Cin, H, W), jnp.float32)   # NCHW like PyTorch
    params = init_params(kp, Cin, output_channels, num_anchors, num_joints)

    fwd = jax.jit(functools.partial(depth_regression_forward,
                                    num_anchors=num_anchors,
                                    num_joints=num_joints))
    out = jax.block_until_ready(fwd(x, params))
    ref = jax.block_until_ready(
        depth_regression_reference(x, params, num_anchors, num_joints))

    assert out.shape == (B, W * H * num_anchors, num_joints), out.shape
    np.testing.assert_allclose(np.asarray(out), np.asarray(ref),
                               rtol=2e-2, atol=2e-2)
    print("KERNEL_OK")
</pallas_src>

<mosaic_0001>
module attributes {stable_mosaic.version = 11 : i64} {
  func.func @_fused_depth_regression_kernel(%arg0: i32, %arg1: memref<1x8x16x128xf32, #tpu.memory_space<vmem>>, %arg2: memref<1152x128xbf16, #tpu.memory_space<vmem>>, %arg3: memref<1152x128xbf16, #tpu.memory_space<vmem>>, %arg4: memref<1152x128xbf16, #tpu.memory_space<vmem>>, %arg5: memref<1152x128xbf16, #tpu.memory_space<vmem>>, %arg6: memref<1152x128xbf16, #tpu.memory_space<vmem>>, %arg7: memref<5x2x128xf32, #tpu.memory_space<vmem>>, %arg8: memref<1x8x16x128xf32, #tpu.memory_space<vmem>>, %arg9: memref<10x18x128xf32, #tpu.memory_space<vmem>>, %arg10: memref<10x18x128xf32, #tpu.memory_space<vmem>>) attributes {dimension_semantics = [#tpu.dimension_semantics<parallel>], iteration_bounds = array<i64: 2>, scalar_prefetch = 0 : i64, scratch_operands = 2 : i64, tpu.core_type = #tpu.core_type<tc>, window_params = [{transform_indices = @transform_0, window_bounds = array<i64: 1, 8, 16, 128>}, {pipeline_mode = #tpu.pipeline_mode<synchronous>, transform_indices = @transform_1, window_bounds = array<i64: 1152, 128>}, {pipeline_mode = #tpu.pipeline_mode<synchronous>, transform_indices = @transform_2, window_bounds = array<i64: 1152, 128>}, {pipeline_mode = #tpu.pipeline_mode<synchronous>, transform_indices = @transform_3, window_bounds = array<i64: 1152, 128>}, {pipeline_mode = #tpu.pipeline_mode<synchronous>, transform_indices = @transform_4, window_bounds = array<i64: 1152, 128>}, {pipeline_mode = #tpu.pipeline_mode<synchronous>, transform_indices = @transform_5, window_bounds = array<i64: 1152, 128>}, {pipeline_mode = #tpu.pipeline_mode<synchronous>, transform_indices = @transform_6, window_bounds = array<i64: 5, 2, 128>}, {transform_indices = @transform_7, window_bounds = array<i64: 1, 8, 16, 128>}]} {
    %cst = arith.constant 0.000000e+00 : f32
    %0 = vector.broadcast %cst : f32 to vector<10x18x128xf32>
    %c0 = arith.constant 0 : index
    %c0_0 = arith.constant 0 : index
    %c0_1 = arith.constant 0 : index
    %1 = vector.load %arg9[%c0, %c0_0, %c0_1] : memref<10x18x128xf32, #tpu.memory_space<vmem>>, vector<10x18x128xf32>
    tpu.vector_store %arg9[%c0, %c0_0, %c0_1], %0 {strides = array<i32>} : memref<10x18x128xf32, #tpu.memory_space<vmem>>, vector<10x18x128xf32>,
    %cst_2 = arith.constant 0.000000e+00 : f32
    %2 = vector.broadcast %cst_2 : f32 to vector<10x18x128xf32>
    %c0_3 = arith.constant 0 : index
    %c0_4 = arith.constant 0 : index
    %c0_5 = arith.constant 0 : index
    %3 = vector.load %arg10[%c0_3, %c0_4, %c0_5] : memref<10x18x128xf32, #tpu.memory_space<vmem>>, vector<10x18x128xf32>
    tpu.vector_store %arg10[%c0_3, %c0_4, %c0_5], %2 {strides = array<i32>} : memref<10x18x128xf32, #tpu.memory_space<vmem>>, vector<10x18x128xf32>,
    %c0_6 = arith.constant 0 : index
    %c0_7 = arith.constant 0 : index
    %c0_8 = arith.constant 0 : index
    %c0_9 = arith.constant 0 : index
    %4 = vector.load %arg1[%c0_6, %c0_7, %c0_8, %c0_9] : memref<1x8x16x128xf32, #tpu.memory_space<vmem>>, vector<1x8x16x128xf32>
    %5 = vector.shape_cast %4 : vector<1x8x16x128xf32> to vector<8x16x128xf32>
    %c1 = arith.constant 1 : index
    %c1_10 = arith.constant 1 : index
    %c0_11 = arith.constant 0 : index
    %6 = vector.load %arg9[%c1, %c1_10, %c0_11] : memref<10x18x128xf32, #tpu.memory_space<vmem>>, vector<8x16x128xf32>
    tpu.vector_store %arg9[%c1, %c1_10, %c0_11], %5 {strides = array<i32>} : memref<10x18x128xf32, #tpu.memory_space<vmem>>, vector<8x16x128xf32>,
    %c0_12 = arith.constant 0 : index
    %c0_13 = arith.constant 0 : index
    %c0_14 = arith.constant 0 : index
    %7 = vector.load %arg9[%c0_12, %c0_13, %c0_14] : memref<10x18x128xf32, #tpu.memory_space<vmem>>, vector<8x16x128xf32>
    %8 = vector.shape_cast %7 : vector<8x16x128xf32> to vector<128x128xf32>
    %c0_15 = arith.constant 0 : index
    %c1_16 = arith.constant 1 : index
    %c0_17 = arith.constant 0 : index
    %9 = vector.load %arg9[%c0_15, %c1_16, %c0_17] : memref<10x18x128xf32, #tpu.memory_space<vmem>>, vector<8x16x128xf32>
    %10 = vector.shape_cast %9 : vector<8x16x128xf32> to vector<128x128xf32>
    %c0_18 = arith.constant 0 : index
    %c2 = arith.constant 2 : index
    %c0_19 = arith.constant 0 : index
    %11 = vector.load %arg9[%c0_18, %c2, %c0_19] : memref<10x18x128xf32, #tpu.memory_space<vmem>>, vector<8x16x128xf32>
    %12 = vector.shape_cast %11 : vector<8x16x128xf32> to vector<128x128xf32>
    %c1_20 = arith.constant 1 : index
    %c0_21 = arith.constant 0 : index
    %c0_22 = arith.constant 0 : index
    %13 = vector.load %arg9[%c1_20, %c0_21, %c0_22] : memref<10x18x128xf32, #tpu.memory_space<vmem>>, vector<8x16x128xf32>
    %14 = vector.shape_cast %13 : vector<8x16x128xf32> to vector<128x128xf32>
    %c1_23 = arith.constant 1 : index
    %c1_24 = arith.constant 1 : index
    %c0_25 = arith.constant 0 : index
    %15 = vector.load %arg9[%c1_23, %c1_24, %c0_25] : memref<10x18x128xf32, #tpu.memory_space<vmem>>, vector<8x16x128xf32>
    %16 = vector.shape_cast %15 : vector<8x16x128xf32> to vector<128x128xf32>
    %c1_26 = arith.constant 1 : index
    %c2_27 = arith.constant 2 : index
    %c0_28 = arith.constant 0 : index
    %17 = vector.load %arg9[%c1_26, %c2_27, %c0_28] : memref<10x18x128xf32, #tpu.memory_space<vmem>>, vector<8x16x128xf32>
    %18 = vector.shape_cast %17 : vector<8x16x128xf32> to vector<128x128xf32>
    %c2_29 = arith.constant 2 : index
    %c0_30 = arith.constant 0 : index
    %c0_31 = arith.constant 0 : index
    %19 = vector.load %arg9[%c2_29, %c0_30, %c0_31] : memref<10x18x128xf32, #tpu.memory_space<vmem>>, vector<8x16x128xf32>
    %20 = vector.shape_cast %19 : vector<8x16x128xf32> to vector<128x128xf32>
    %c2_32 = arith.constant 2 : index
    %c1_33 = arith.constant 1 : index
    %c0_34 = arith.constant 0 : index
    %21 = vector.load %arg9[%c2_32, %c1_33, %c0_34] : memref<10x18x128xf32, #tpu.memory_space<vmem>>, vector<8x16x128xf32>
    %22 = vector.shape_cast %21 : vector<8x16x128xf32> to vector<128x128xf32>
    %c2_35 = arith.constant 2 : index
    %c2_36 = arith.constant 2 : index
    %c0_37 = arith.constant 0 : index
    %23 = vector.load %arg9[%c2_35, %c2_36, %c0_37] : memref<10x18x128xf32, #tpu.memory_space<vmem>>, vector<8x16x128xf32>
    %24 = vector.shape_cast %23 : vector<8x16x128xf32> to vector<128x128xf32>
    %25 = tpu.concatenate %8, %10, %12, %14, %16, %18, %20, %22, %24 in 1 : vector<128x128xf32>, vector<128x128xf32>, vector<128x128xf32>, vector<128x128xf32>, vector<128x128xf32>, vector<128x128xf32>, vector<128x128xf32>, vector<128x128xf32>, vector<128x128xf32> -> vector<128x1152xf32>
    %26 = arith.truncf %25 : vector<128x1152xf32> to vector<128x1152xbf16>
    %c0_38 = arith.constant 0 : index
    %c0_39 = arith.constant 0 : index
    %27 = vector.load %arg2[%c0_38, %c0_39] : memref<1152x128xbf16, #tpu.memory_space<vmem>>, vector<1152x128xbf16>
    %cst_40 = arith.constant dense<0.000000e+00> : vector<128x128xf32>
    %28 = tpu.matmul %26, %27, %cst_40 {dimension_numbers = #tpu.dot_dimension_numbers<[1], [0], [0], [1], [0, 0, 1, 1], [], []>} : vector<128x1152xbf16>, vector<1152x128xbf16>, vector<128x128xf32> -> vector<128x128xf32>
    %c0_41 = arith.constant 0 : index
    %c0_42 = arith.constant 0 : index
    %c0_43 = arith.constant 0 : index
    %29 = vector.load %arg7[%c0_41, %c0_42, %c0_43] : memref<5x2x128xf32, #tpu.memory_space<vmem>>, vector<1x2x128xf32>
    %30 = vector.shape_cast %29 : vector<1x2x128xf32> to vector<2x128xf32>
    %31 = vector.extract_strided_slice %30 {offsets = [0, 0], sizes = [1, 128], strides = [1, 1]} : vector<2x128xf32> to vector<1x128xf32>
    %32 = vector.broadcast %31 : vector<1x128xf32> to vector<128x128xf32>
    %33 = arith.mulf %28, %32 : vector<128x128xf32>
    %34 = vector.extract_strided_slice %30 {offsets = [1, 0], sizes = [1, 128], strides = [1, 1]} : vector<2x128xf32> to vector<1x128xf32>
    %35 = vector.broadcast %34 : vector<1x128xf32> to vector<128x128xf32>
    %36 = arith.addf %33, %35 : vector<128x128xf32>
    %cst_44 = arith.constant 0.000000e+00 : f32
    %37 = vector.broadcast %cst_44 : f32 to vector<128x128xf32>
    %38 = arith.cmpf ogt, %36, %37 : vector<128x128xf32>
    %cst_45 = arith.constant 0.00999999977 : f32
    %39 = vector.broadcast %cst_45 : f32 to vector<128x128xf32>
    %40 = arith.mulf %39, %36 : vector<128x128xf32>
    %41 = arith.select %38, %36, %40 : vector<128x128xi1>, vector<128x128xf32>
    %42 = vector.shape_cast %41 : vector<128x128xf32> to vector<8x16x128xf32>
    %c1_46 = arith.constant 1 : index
    %c1_47 = arith.constant 1 : index
    %c0_48 = arith.constant 0 : index
    %43 = vector.load %arg10[%c1_46, %c1_47, %c0_48] : memref<10x18x128xf32, #tpu.memory_space<vmem>>, vector<8x16x128xf32>
    tpu.vector_store %arg10[%c1_46, %c1_47, %c0_48], %42 {strides = array<i32>} : memref<10x18x128xf32, #tpu.memory_space<vmem>>, vector<8x16x128xf32>,
    %c0_49 = arith.constant 0 : index
    %c0_50 = arith.constant 0 : index
    %c0_51 = arith.constant 0 : index
    %44 = vector.load %arg10[%c0_49, %c0_50, %c0_51] : memref<10x18x128xf32, #tpu.memory_space<vmem>>, vector<8x16x128xf32>
    %45 = vector.shape_cast %44 : vector<8x16x128xf32> to vector<128x128xf32>
    %c0_52 = arith.constant 0 : index
    %c1_53 = arith.constant 1 : index
    %c0_54 = arith.constant 0 : index
    %46 = vector.load %arg10[%c0_52, %c1_53, %c0_54] : memref<10x18x128xf32, #tpu.memory_space<vmem>>, vector<8x16x128xf32>
    %47 = vector.shape_cast %46 : vector<8x16x128xf32> to vector<128x128xf32>
    %c0_55 = arith.constant 0 : index
    %c2_56 = arith.constant 2 : index
    %c0_57 = arith.constant 0 : index
    %48 = vector.load %arg10[%c0_55, %c2_56, %c0_57] : memref<10x18x128xf32, #tpu.memory_space<vmem>>, vector<8x16x128xf32>
    %49 = vector.shape_cast %48 : vector<8x16x128xf32> to vector<128x128xf32>
    %c1_58 = arith.constant 1 : index
    %c0_59 = arith.constant 0 : index
    %c0_60 = arith.constant 0 : index
    %50 = vector.load %arg10[%c1_58, %c0_59, %c0_60] : memref<10x18x128xf32, #tpu.memory_space<vmem>>, vector<8x16x128xf32>
    %51 = vector.shape_cast %50 : vector<8x16x128xf32> to vector<128x128xf32>
    %c1_61 = arith.constant 1 : index
    %c1_62 = arith.constant 1 : index
    %c0_63 = arith.constant 0 : index
    %52 = vector.load %arg10[%c1_61, %c1_62, %c0_63] : memref<10x18x128xf32, #tpu.memory_space<vmem>>, vector<8x16x128xf32>
    %53 = vector.shape_cast %52 : vector<8x16x128xf32> to vector<128x128xf32>
    %c1_64 = arith.constant 1 : index
    %c2_65 = arith.constant 2 : index
    %c0_66 = arith.constant 0 : index
    %54 = vector.load %arg10[%c1_64, %c2_65, %c0_66] : memref<10x18x128xf32, #tpu.memory_space<vmem>>, vector<8x16x128xf32>
    %55 = vector.shape_cast %54 : vector<8x16x128xf32> to vector<128x128xf32>
    %c2_67 = arith.constant 2 : index
    %c0_68 = arith.constant 0 : index
    %c0_69 = arith.constant 0 : index
    %56 = vector.load %arg10[%c2_67, %c0_68, %c0_69] : memref<10x18x128xf32, #tpu.memory_space<vmem>>, vector<8x16x128xf32>
    %57 = vector.shape_cast %56 : vector<8x16x128xf32> to vector<128x128xf32>
    %c2_70 = arith.constant 2 : index
    %c1_71 = arith.constant 1 : index
    %c0_72 = arith.constant 0 : index
    %58 = vector.load %arg10[%c2_70, %c1_71, %c0_72] : memref<10x18x128xf32, #tpu.memory_space<vmem>>, vector<8x16x128xf32>
    %59 = vector.shape_cast %58 : vector<8x16x128xf32> to vector<128x128xf32>
    %c2_73 = arith.constant 2 : index
    %c2_74 = arith.constant 2 : index
    %c0_75 = arith.constant 0 : index
    %60 = vector.load %arg10[%c2_73, %c2_74, %c0_75] : memref<10x18x128xf32, #tpu.memory_space<vmem>>, vector<8x16x128xf32>
    %61 = vector.shape_cast %60 : vector<8x16x128xf32> to vector<128x128xf32>
    %62 = tpu.concatenate %45, %47, %49, %51, %53, %55, %57, %59, %61 in 1 : vector<128x128xf32>, vector<128x128xf32>, vector<128x128xf32>, vector<128x128xf32>, vector<128x128xf32>, vector<128x128xf32>, vector<128x128xf32>, vector<128x128xf32>, vector<128x128xf32> -> vector<128x1152xf32>
    %63 = arith.truncf %62 : vector<128x1152xf32> to vector<128x1152xbf16>
    %c0_76 = arith.constant 0 : index
    %c0_77 = arith.constant 0 : index
    %64 = vector.load %arg3[%c0_76, %c0_77] : memref<1152x128xbf16, #tpu.memory_space<vmem>>, vector<1152x128xbf16>
    %cst_78 = arith.constant dense<0.000000e+00> : vector<128x128xf32>
    %65 = tpu.matmul %63, %64, %cst_78 {dimension_numbers = #tpu.dot_dimension_numbers<[1], [0], [0], [1], [0, 0, 1, 1], [], []>} : vector<128x1152xbf16>, vector<1152x128xbf16>, vector<128x128xf32> -> vector<128x128xf32>
    %c1_79 = arith.constant 1 : index
    %c0_80 = arith.constant 0 : index
    %c0_81 = arith.constant 0 : index
    %66 = vector.load %arg7[%c1_79, %c0_80, %c0_81] : memref<5x2x128xf32, #tpu.memory_space<vmem>>, vector<1x2x128xf32>
    %67 = vector.shape_cast %66 : vector<1x2x128xf32> to vector<2x128xf32>
    %68 = vector.extract_strided_slice %67 {offsets = [0, 0], sizes = [1, 128], strides = [1, 1]} : vector<2x128xf32> to vector<1x128xf32>
    %69 = vector.broadcast %68 : vector<1x128xf32> to vector<128x128xf32>
    %70 = arith.mulf %65, %69 : vector<128x128xf32>
    %71 = vector.extract_strided_slice %67 {offsets = [1, 0], sizes = [1, 128], strides = [1, 1]} : vector<2x128xf32> to vector<1x128xf32>
    %72 = vector.broadcast %71 : vector<1x128xf32> to vector<128x128xf32>
    %73 = arith.addf %70, %72 : vector<128x128xf32>
    %cst_82 = arith.constant 0.000000e+00 : f32
    %74 = vector.broadcast %cst_82 : f32 to vector<128x128xf32>
    %75 = arith.cmpf ogt, %73, %74 : vector<128x128xf32>
    %cst_83 = arith.constant 0.00999999977 : f32
    %76 = vector.broadcast %cst_83 : f32 to vector<128x128xf32>
    %77 = arith.mulf %76, %73 : vector<128x128xf32>
    %78 = arith.select %75, %73, %77 : vector<128x128xi1>, vector<128x128xf32>
    %79 = vector.shape_cast %78 : vector<128x128xf32> to vector<8x16x128xf32>
    %c1_84 = arith.constant 1 : index
    %c1_85 = arith.constant 1 : index
    %c0_86 = arith.constant 0 : index
    %80 = vector.load %arg9[%c1_84, %c1_85, %c0_86] : memref<10x18x128xf32, #tpu.memory_space<vmem>>, vector<8x16x128xf32>
    tpu.vector_store %arg9[%c1_84, %c1_85, %c0_86], %79 {strides = array<i32>} : memref<10x18x128xf32, #tpu.memory_space<vmem>>, vector<8x16x128xf32>,
    %c0_87 = arith.constant 0 : index
    %c0_88 = arith.constant 0 : index
    %c0_89 = arith.constant 0 : index
    %81 = vector.load %arg9[%c0_87, %c0_88, %c0_89] : memref<10x18x128xf32, #tpu.memory_space<vmem>>, vector<8x16x128xf32>
    %82 = vector.shape_cast %81 : vector<8x16x128xf32> to vector<128x128xf32>
    %c0_90 = arith.constant 0 : index
    %c1_91 = arith.constant 1 : index
    %c0_92 = arith.constant 0 : index
    %83 = vector.load %arg9[%c0_90, %c1_91, %c0_92] : memref<10x18x128xf32, #tpu.memory_space<vmem>>, vector<8x16x128xf32>
    %84 = vector.shape_cast %83 : vector<8x16x128xf32> to vector<128x128xf32>
    %c0_93 = arith.constant 0 : index
    %c2_94 = arith.constant 2 : index
    %c0_95 = arith.constant 0 : index
    %85 = vector.load %arg9[%c0_93, %c2_94, %c0_95] : memref<10x18x128xf32, #tpu.memory_space<vmem>>, vector<8x16x128xf32>
    %86 = vector.shape_cast %85 : vector<8x16x128xf32> to vector<128x128xf32>
    %c1_96 = arith.constant 1 : index
    %c0_97 = arith.constant 0 : index
    %c0_98 = arith.constant 0 : index
    %87 = vector.load %arg9[%c1_96, %c0_97, %c0_98] : memref<10x18x128xf32, #tpu.memory_space<vmem>>, vector<8x16x128xf32>
    %88 = vector.shape_cast %87 : vector<8x16x128xf32> to vector<128x128xf32>
    %c1_99 = arith.constant 1 : index
    %c1_100 = arith.constant 1 : index
    %c0_101 = arith.constant 0 : index
    %89 = vector.load %arg9[%c1_99, %c1_100, %c0_101] : memref<10x18x128xf32, #tpu.memory_space<vmem>>, vector<8x16x128xf32>
    %90 = vector.shape_cast %89 : vector<8x16x128xf32> to vector<128x128xf32>
    %c1_102 = arith.constant 1 : index
    %c2_103 = arith.constant 2 : index
    %c0_104 = arith.constant 0 : index
    %91 = vector.load %arg9[%c1_102, %c2_103, %c0_104] : memref<10x18x128xf32, #tpu.memory_space<vmem>>, vector<8x16x128xf32>
    %92 = vector.shape_cast %91 : vector<8x16x128xf32> to vector<128x128xf32>
    %c2_105 = arith.constant 2 : index
    %c0_106 = arith.constant 0 : index
    %c0_107 = arith.constant 0 : index
    %93 = vector.load %arg9[%c2_105, %c0_106, %c0_107] : memref<10x18x128xf32, #tpu.memory_space<vmem>>, vector<8x16x128xf32>
    %94 = vector.shape_cast %93 : vector<8x16x128xf32> to vector<128x128xf32>
    %c2_108 = arith.constant 2 : index
    %c1_109 = arith.constant 1 : index
    %c0_110 = arith.constant 0 : index
    %95 = vector.load %arg9[%c2_108, %c1_109, %c0_110] : memref<10x18x128xf32, #tpu.memory_space<vmem>>, vector<8x16x128xf32>
    %96 = vector.shape_cast %95 : vector<8x16x128xf32> to vector<128x128xf32>
    %c2_111 = arith.constant 2 : index
    %c2_112 = arith.constant 2 : index
    %c0_113 = arith.constant 0 : index
    %97 = vector.load %arg9[%c2_111, %c2_112, %c0_113] : memref<10x18x128xf32, #tpu.memory_space<vmem>>, vector<8x16x128xf32>
    %98 = vector.shape_cast %97 : vector<8x16x128xf32> to vector<128x128xf32>
    %99 = tpu.concatenate %82, %84, %86, %88, %90, %92, %94, %96, %98 in 1 : vector<128x128xf32>, vector<128x128xf32>, vector<128x128xf32>, vector<128x128xf32>, vector<128x128xf32>, vector<128x128xf32>, vector<128x128xf32>, vector<128x128xf32>, vector<128x128xf32> -> vector<128x1152xf32>
    %100 = arith.truncf %99 : vector<128x1152xf32> to vector<128x1152xbf16>
    %c0_114 = arith.constant 0 : index
    %c0_115 = arith.constant 0 : index
    %101 = vector.load %arg4[%c0_114, %c0_115] : memref<1152x128xbf16, #tpu.memory_space<vmem>>, vector<1152x128xbf16>
    %cst_116 = arith.constant dense<0.000000e+00> : vector<128x128xf32>
    %102 = tpu.matmul %100, %101, %cst_116 {dimension_numbers = #tpu.dot_dimension_numbers<[1], [0], [0], [1], [0, 0, 1, 1], [], []>} : vector<128x1152xbf16>, vector<1152x128xbf16>, vector<128x128xf32> -> vector<128x128xf32>
    %c2_117 = arith.constant 2 : index
    %c0_118 = arith.constant 0 : index
    %c0_119 = arith.constant 0 : index
    %103 = vector.load %arg7[%c2_117, %c0_118, %c0_119] : memref<5x2x128xf32, #tpu.memory_space<vmem>>, vector<1x2x128xf32>
    %104 = vector.shape_cast %103 : vector<1x2x128xf32> to vector<2x128xf32>
    %105 = vector.extract_strided_slice %104 {offsets = [0, 0], sizes = [1, 128], strides = [1, 1]} : vector<2x128xf32> to vector<1x128xf32>
    %106 = vector.broadcast %105 : vector<1x128xf32> to vector<128x128xf32>
    %107 = arith.mulf %102, %106 : vector<128x128xf32>
    %108 = vector.extract_strided_slice %104 {offsets = [1, 0], sizes = [1, 128], strides = [1, 1]} : vector<2x128xf32> to vector<1x128xf32>
    %109 = vector.broadcast %108 : vector<1x128xf32> to vector<128x128xf32>
    %110 = arith.addf %107, %109 : vector<128x128xf32>
    %cst_120 = arith.constant 0.000000e+00 : f32
    %111 = vector.broadcast %cst_120 : f32 to vector<128x128xf32>
    %112 = arith.cmpf ogt, %110, %111 : vector<128x128xf32>
    %cst_121 = arith.constant 0.00999999977 : f32
    %113 = vector.broadcast %cst_121 : f32 to vector<128x128xf32>
    %114 = arith.mulf %113, %110 : vector<128x128xf32>
    %115 = arith.select %112, %110, %114 : vector<128x128xi1>, vector<128x128xf32>
    %116 = vector.shape_cast %115 : vector<128x128xf32> to vector<8x16x128xf32>
    %c1_122 = arith.constant 1 : index
    %c1_123 = arith.constant 1 : index
    %c0_124 = arith.constant 0 : index
    %117 = vector.load %arg10[%c1_122, %c1_123, %c0_124] : memref<10x18x128xf32, #tpu.memory_space<vmem>>, vector<8x16x128xf32>
    tpu.vector_store %arg10[%c1_122, %c1_123, %c0_124], %116 {strides = array<i32>} : memref<10x18x128xf32, #tpu.memory_space<vmem>>, vector<8x16x128xf32>,
    %c0_125 = arith.constant 0 : index
    %c0_126 = arith.constant 0 : index
    %c0_127 = arith.constant 0 : index
    %118 = vector.load %arg10[%c0_125, %c0_126, %c0_127] : memref<10x18x128xf32, #tpu.memory_space<vmem>>, vector<8x16x128xf32>
    %119 = vector.shape_cast %118 : vector<8x16x128xf32> to vector<128x128xf32>
    %c0_128 = arith.constant 0 : index
    %c1_129 = arith.constant 1 : index
    %c0_130 = arith.constant 0 : index
    %120 = vector.load %arg10[%c0_128, %c1_129, %c0_130] : memref<10x18x128xf32, #tpu.memory_space<vmem>>, vector<8x16x128xf32>
    %121 = vector.shape_cast %120 : vector<8x16x128xf32> to vector<128x128xf32>
    %c0_131 = arith.constant 0 : index
    %c2_132 = arith.constant 2 : index
    %c0_133 = arith.constant 0 : index
    %122 = vector.load %arg10[%c0_131, %c2_132, %c0_133] : memref<10x18x128xf32, #tpu.memory_space<vmem>>, vector<8x16x128xf32>
    %123 = vector.shape_cast %122 : vector<8x16x128xf32> to vector<128x128xf32>
    %c1_134 = arith.constant 1 : index
    %c0_135 = arith.constant 0 : index
    %c0_136 = arith.constant 0 : index
    %124 = vector.load %arg10[%c1_134, %c0_135, %c0_136] : memref<10x18x128xf32, #tpu.memory_space<vmem>>, vector<8x16x128xf32>
    %125 = vector.shape_cast %124 : vector<8x16x128xf32> to vector<128x128xf32>
    %c1_137 = arith.constant 1 : index
    %c1_138 = arith.constant 1 : index
    %c0_139 = arith.constant 0 : index
    %126 = vector.load %arg10[%c1_137, %c1_138, %c0_139] : memref<10x18x128xf32, #tpu.memory_space<vmem>>, vector<8x16x128xf32>
    %127 = vector.shape_cast %126 : vector<8x16x128xf32> to vector<128x128xf32>
    %c1_140 = arith.constant 1 : index
    %c2_141 = arith.constant 2 : index
    %c0_142 = arith.constant 0 : index
    %128 = vector.load %arg10[%c1_140, %c2_141, %c0_142] : memref<10x18x128xf32, #tpu.memory_space<vmem>>, vector<8x16x128xf32>
    %129 = vector.shape_cast %128 : vector<8x16x128xf32> to vector<128x128xf32>
    %c2_143 = arith.constant 2 : index
    %c0_144 = arith.constant 0 : index
    %c0_145 = arith.constant 0 : index
    %130 = vector.load %arg10[%c2_143, %c0_144, %c0_145] : memref<10x18x128xf32, #tpu.memory_space<vmem>>, vector<8x16x128xf32>
    %131 = vector.shape_cast %130 : vector<8x16x128xf32> to vector<128x128xf32>
    %c2_146 = arith.constant 2 : index
    %c1_147 = arith.constant 1 : index
    %c0_148 = arith.constant 0 : index
    %132 = vector.load %arg10[%c2_146, %c1_147, %c0_148] : memref<10x18x128xf32, #tpu.memory_space<vmem>>, vector<8x16x128xf32>
    %133 = vector.shape_cast %132 : vector<8x16x128xf32> to vector<128x128xf32>
    %c2_149 = arith.constant 2 : index
    %c2_150 = arith.constant 2 : index
    %c0_151 = arith.constant 0 : index
    %134 = vector.load %arg10[%c2_149, %c2_150, %c0_151] : memref<10x18x128xf32, #tpu.memory_space<vmem>>, vector<8x16x128xf32>
    %135 = vector.shape_cast %134 : vector<8x16x128xf32> to vector<128x128xf32>
    %136 = tpu.concatenate %119, %121, %123, %125, %127, %129, %131, %133, %135 in 1 : vector<128x128xf32>, vector<128x128xf32>, vector<128x128xf32>, vector<128x128xf32>, vector<128x128xf32>, vector<128x128xf32>, vector<128x128xf32>, vector<128x128xf32>, vector<128x128xf32> -> vector<128x1152xf32>
    %137 = arith.truncf %136 : vector<128x1152xf32> to vector<128x1152xbf16>
    %c0_152 = arith.constant 0 : index
    %c0_153 = arith.constant 0 : index
    %138 = vector.load %arg5[%c0_152, %c0_153] : memref<1152x128xbf16, #tpu.memory_space<vmem>>, vector<1152x128xbf16>
    %cst_154 = arith.constant dense<0.000000e+00> : vector<128x128xf32>
    %139 = tpu.matmul %137, %138, %cst_154 {dimension_numbers = #tpu.dot_dimension_numbers<[1], [0], [0], [1], [0, 0, 1, 1], [], []>} : vector<128x1152xbf16>, vector<1152x128xbf16>, vector<128x128xf32> -> vector<128x128xf32>
    %c3 = arith.constant 3 : index
    %c0_155 = arith.constant 0 : index
    %c0_156 = arith.constant 0 : index
    %140 = vector.load %arg7[%c3, %c0_155, %c0_156] : memref<5x2x128xf32, #tpu.memory_space<vmem>>, vector<1x2x128xf32>
    %141 = vector.shape_cast %140 : vector<1x2x128xf32> to vector<2x128xf32>
    %142 = vector.extract_strided_slice %141 {offsets = [0, 0], sizes = [1, 128], strides = [1, 1]} : vector<2x128xf32> to vector<1x128xf32>
    %143 = vector.broadcast %142 : vector<1x128xf32> to vector<128x128xf32>
    %144 = arith.mulf %139, %143 : vector<128x128xf32>
    %145 = vector.extract_strided_slice %141 {offsets = [1, 0], sizes = [1, 128], strides = [1, 1]} : vector<2x128xf32> to vector<1x128xf32>
    %146 = vector.broadcast %145 : vector<1x128xf32> to vector<128x128xf32>
    %147 = arith.addf %144, %146 : vector<128x128xf32>
    %cst_157 = arith.constant 0.000000e+00 : f32
    %148 = vector.broadcast %cst_157 : f32 to vector<128x128xf32>
    %149 = arith.cmpf ogt, %147, %148 : vector<128x128xf32>
    %cst_158 = arith.constant 0.00999999977 : f32
    %150 = vector.broadcast %cst_158 : f32 to vector<128x128xf32>
    %151 = arith.mulf %150, %147 : vector<128x128xf32>
    %152 = arith.select %149, %147, %151 : vector<128x128xi1>, vector<128x128xf32>
    %153 = vector.shape_cast %152 : vector<128x128xf32> to vector<8x16x128xf32>
    %c1_159 = arith.constant 1 : index
    %c1_160 = arith.constant 1 : index
    %c0_161 = arith.constant 0 : index
    %154 = vector.load %arg9[%c1_159, %c1_160, %c0_161] : memref<10x18x128xf32, #tpu.memory_space<vmem>>, vector<8x16x128xf32>
    tpu.vector_store %arg9[%c1_159, %c1_160, %c0_161], %153 {strides = array<i32>} : memref<10x18x128xf32, #tpu.memory_space<vmem>>, vector<8x16x128xf32>,
    %c0_162 = arith.constant 0 : index
    %c0_163 = arith.constant 0 : index
    %c0_164 = arith.constant 0 : index
    %155 = vector.load %arg9[%c0_162, %c0_163, %c0_164] : memref<10x18x128xf32, #tpu.memory_space<vmem>>, vector<8x16x128xf32>
    %156 = vector.shape_cast %155 : vector<8x16x128xf32> to vector<128x128xf32>
    %c0_165 = arith.constant 0 : index
    %c1_166 = arith.constant 1 : index
    %c0_167 = arith.constant 0 : index
    %157 = vector.load %arg9[%c0_165, %c1_166, %c0_167] : memref<10x18x128xf32, #tpu.memory_space<vmem>>, vector<8x16x128xf32>
    %158 = vector.shape_cast %157 : vector<8x16x128xf32> to vector<128x128xf32>
    %c0_168 = arith.constant 0 : index
    %c2_169 = arith.constant 2 : index
    %c0_170 = arith.constant 0 : index
    %159 = vector.load %arg9[%c0_168, %c2_169, %c0_170] : memref<10x18x128xf32, #tpu.memory_space<vmem>>, vector<8x16x128xf32>
    %160 = vector.shape_cast %159 : vector<8x16x128xf32> to vector<128x128xf32>
    %c1_171 = arith.constant 1 : index
    %c0_172 = arith.constant 0 : index
    %c0_173 = arith.constant 0 : index
    %161 = vector.load %arg9[%c1_171, %c0_172, %c0_173] : memref<10x18x128xf32, #tpu.memory_space<vmem>>, vector<8x16x128xf32>
    %162 = vector.shape_cast %161 : vector<8x16x128xf32> to vector<128x128xf32>
    %c1_174 = arith.constant 1 : index
    %c1_175 = arith.constant 1 : index
    %c0_176 = arith.constant 0 : index
    %163 = vector.load %arg9[%c1_174, %c1_175, %c0_176] : memref<10x18x128xf32, #tpu.memory_space<vmem>>, vector<8x16x128xf32>
    %164 = vector.shape_cast %163 : vector<8x16x128xf32> to vector<128x128xf32>
    %c1_177 = arith.constant 1 : index
    %c2_178 = arith.constant 2 : index
    %c0_179 = arith.constant 0 : index
    %165 = vector.load %arg9[%c1_177, %c2_178, %c0_179] : memref<10x18x128xf32, #tpu.memory_space<vmem>>, vector<8x16x128xf32>
    %166 = vector.shape_cast %165 : vector<8x16x128xf32> to vector<128x128xf32>
    %c2_180 = arith.constant 2 : index
    %c0_181 = arith.constant 0 : index
    %c0_182 = arith.constant 0 : index
    %167 = vector.load %arg9[%c2_180, %c0_181, %c0_182] : memref<10x18x128xf32, #tpu.memory_space<vmem>>, vector<8x16x128xf32>
    %168 = vector.shape_cast %167 : vector<8x16x128xf32> to vector<128x128xf32>
    %c2_183 = arith.constant 2 : index
    %c1_184 = arith.constant 1 : index
    %c0_185 = arith.constant 0 : index
    %169 = vector.load %arg9[%c2_183, %c1_184, %c0_185] : memref<10x18x128xf32, #tpu.memory_space<vmem>>, vector<8x16x128xf32>
    %170 = vector.shape_cast %169 : vector<8x16x128xf32> to vector<128x128xf32>
    %c2_186 = arith.constant 2 : index
    %c2_187 = arith.constant 2 : index
    %c0_188 = arith.constant 0 : index
    %171 = vector.load %arg9[%c2_186, %c2_187, %c0_188] : memref<10x18x128xf32, #tpu.memory_space<vmem>>, vector<8x16x128xf32>
    %172 = vector.shape_cast %171 : vector<8x16x128xf32> to vector<128x128xf32>
    %173 = tpu.concatenate %156, %158, %160, %162, %164, %166, %168, %170, %172 in 1 : vector<128x128xf32>, vector<128x128xf32>, vector<128x128xf32>, vector<128x128xf32>, vector<128x128xf32>, vector<128x128xf32>, vector<128x128xf32>, vector<128x128xf32>, vector<128x128xf32> -> vector<128x1152xf32>
    %174 = arith.truncf %173 : vector<128x1152xf32> to vector<128x1152xbf16>
    %c0_189 = arith.constant 0 : index
    %c0_190 = arith.constant 0 : index
    %175 = vector.load %arg6[%c0_189, %c0_190] : memref<1152x128xbf16, #tpu.memory_space<vmem>>, vector<1152x128xbf16>
    %cst_191 = arith.constant dense<0.000000e+00> : vector<128x128xf32>
    %176 = tpu.matmul %174, %175, %cst_191 {dimension_numbers = #tpu.dot_dimension_numbers<[1], [0], [0], [1], [0, 0, 1, 1], [], []>} : vector<128x1152xbf16>, vector<1152x128xbf16>, vector<128x128xf32> -> vector<128x128xf32>
    %c4 = arith.constant 4 : index
    %c0_192 = arith.constant 0 : index
    %c0_193 = arith.constant 0 : index
    %177 = vector.load %arg7[%c4, %c0_192, %c0_193] : memref<5x2x128xf32, #tpu.memory_space<vmem>>, vector<1x2x128xf32>
    %178 = vector.shape_cast %177 : vector<1x2x128xf32> to vector<2x128xf32>
    %179 = vector.extract_strided_slice %178 {offsets = [0, 0], sizes = [1, 128], strides = [1, 1]} : vector<2x128xf32> to vector<1x128xf32>
    %180 = vector.broadcast %179 : vector<1x128xf32> to vector<128x128xf32>
    %181 = arith.mulf %176, %180 : vector<128x128xf32>
    %182 = vector.extract_strided_slice %178 {offsets = [1, 0], sizes = [1, 128], strides = [1, 1]} : vector<2x128xf32> to vector<1x128xf32>
    %183 = vector.broadcast %182 : vector<1x128xf32> to vector<128x128xf32>
    %184 = arith.addf %181, %183 : vector<128x128xf32>
    %185 = vector.shape_cast %184 : vector<128x128xf32> to vector<8x16x128xf32>
    %c0_194 = arith.constant 0 : index
    %c0_195 = arith.constant 0 : index
    %c0_196 = arith.constant 0 : index
    %c0_197 = arith.constant 0 : index
    %186 = vector.load %arg8[%c0_194, %c0_195, %c0_196, %c0_197] : memref<1x8x16x128xf32, #tpu.memory_space<vmem>>, vector<1x8x16x128xf32>
    %187 = vector.shape_cast %186 : vector<1x8x16x128xf32> to vector<8x16x128xf32>
    %188 = vector.shape_cast %185 : vector<8x16x128xf32> to vector<1x8x16x128xf32>
    tpu.vector_store %arg8[%c0_194, %c0_195, %c0_196, %c0_197], %188 {strides = array<i32>} : memref<1x8x16x128xf32, #tpu.memory_space<vmem>>, vector<1x8x16x128xf32>,
    return
  }
  func.func @transform_0(%arg0: i32) -> (i32, i32, i32, i32) {
    %c0_i32 = arith.constant 0 : i32
    %c0_i32_0 = arith.constant 0 : i32
    %c0_i32_1 = arith.constant 0 : i32
    %c0_i32_2 = arith.constant 0 : i32
    return %arg0, %c0_i32, %c0_i32_0, %c0_i32_1 : i32, i32, i32, i32
  }
  func.func @transform_1(%arg0: i32) -> (i32, i32) {
    %c0_i32 = arith.constant 0 : i32
    %c0_i32_0 = arith.constant 0 : i32
    %c0_i32_1 = arith.constant 0 : i32
    return %c0_i32, %c0_i32_0 : i32, i32
  }
  func.func @transform_2(%arg0: i32) -> (i32, i32) {
    %c0_i32 = arith.constant 0 : i32
    %c0_i32_0 = arith.constant 0 : i32
    %c0_i32_1 = arith.constant 0 : i32
    return %c0_i32, %c0_i32_0 : i32, i32
  }
  func.func @transform_3(%arg0: i32) -> (i32, i32) {
    %c0_i32 = arith.constant 0 : i32
    %c0_i32_0 = arith.constant 0 : i32
    %c0_i32_1 = arith.constant 0 : i32
    return %c0_i32, %c0_i32_0 : i32, i32
  }
  func.func @transform_4(%arg0: i32) -> (i32, i32) {
    %c0_i32 = arith.constant 0 : i32
    %c0_i32_0 = arith.constant 0 : i32
    %c0_i32_1 = arith.constant 0 : i32
    return %c0_i32, %c0_i32_0 : i32, i32
  }
  func.func @transform_5(%arg0: i32) -> (i32, i32) {
    %c0_i32 = arith.constant 0 : i32
    %c0_i32_0 = arith.constant 0 : i32
    %c0_i32_1 = arith.constant 0 : i32
    return %c0_i32, %c0_i32_0 : i32, i32
  }
  func.func @transform_6(%arg0: i32) -> (i32, i32, i32) {
    %c0_i32 = arith.constant 0 : i32
    %c0_i32_0 = arith.constant 0 : i32
    %c0_i32_1 = arith.constant 0 : i32
    %c0_i32_2 = arith.constant 0 : i32
    return %c0_i32, %c0_i32_0, %c0_i32_1 : i32, i32, i32
  }
  func.func @transform_7(%arg0: i32) -> (i32, i32, i32, i32) {
    %c0_i32 = arith.constant 0 : i32
    %c0_i32_0 = arith.constant 0 : i32
    %c0_i32_1 = arith.constant 0 : i32
    %c0_i32_2 = arith.constant 0 : i32
    return %arg0, %c0_i32, %c0_i32_0, %c0_i32_1 : i32, i32, i32, i32
  }
}

</mosaic_0001>

<llo_original>
// kernel: depth_regression_forward.1
$region0: #{depth_regression_forward.1}
  #allocation0 [shape = 'u32[]', space=smem, size = 0x4, offset = 0x4, fixed_abs, tag = 'smem constant byte address 0x4 - core index']
  #allocation1 [shape = 'u32[144,128]{1,0:T(1,128)}', space=vmem, size = 0x12000, scoped, tag = 'internal scratch']
  #allocation2 [shape = 'f32[10,18,128]{2,1,0:T(8,128)}', space=vmem, size = 0x1e000, scoped, tag = 'scratch operand']
  #allocation3 [shape = 'f32[10,18,128]{2,1,0:T(8,128)}', space=vmem, size = 0x1e000, scoped, tag = 'scratch operand']
  %s0 = inlined_call_operand.vmem [shape: f32[2,8,16,128], index: 0, kind: input, shape index: {}]
  %s1 = inlined_call_operand.vmem [shape: bf16[1152,128], index: 1, kind: input, shape index: {}]
  %s2 = inlined_call_operand.vmem [shape: bf16[1152,128], index: 2, kind: input, shape index: {}]
  %s3 = inlined_call_operand.vmem [shape: bf16[1152,128], index: 3, kind: input, shape index: {}]
  %s4 = inlined_call_operand.vmem [shape: bf16[1152,128], index: 4, kind: input, shape index: {}]
  %s5 = inlined_call_operand.vmem [shape: bf16[1152,128], index: 5, kind: input, shape index: {}]
  %s6 = inlined_call_operand.vmem [shape: f32[5,2,128], index: 6, kind: input, shape index: {}]
  %s7 = inlined_call_operand.vmem [shape: f32[2,8,16,128], index: 7, kind: output, shape index: {}]
  %s8 = sld [smem:[#allocation0]]
  $region61: #{depth_regression_forward.1} parent=0
    _
  %s10 = ssub.s32 1, %s8
  %s11 = scalar_select 0, %s10, %s8
  loop: start=0, step=1, limit=4
  $region2: #{depth_regression_forward.1} parent=0 // loop_pre_header
    _
  $region3: #{depth_regression_forward.1} parent=0 // loop_header
    %s13 = sphi 0, %s17
    %p14 = scmp.ge.s32.totalorder %s13, 4
    %s23 = sphi 0, %s25
    %s26 = sphi 0, %s23
    %s27 = sphi 0, %s26
    %s43 = sphi 0, %s27
    %s47 = sphi 0, %s47
    %s49 = sphi 0, %s47
    %s50 = sphi 0, %s49
    %s64 = sphi 0, %s50
    %s68 = sphi 0, %s68
    %s70 = sphi 0, %s68
    %s71 = sphi 0, %s70
    %s85 = sphi 0, %s71
    %s89 = sphi 0, %s89
    %s91 = sphi 0, %s89
    %s92 = sphi 0, %s91
    %s106 = sphi 0, %s92
    %s110 = sphi 0, %s110
    %s112 = sphi 0, %s110
    %s113 = sphi 0, %s112
    %s127 = sphi 0, %s113
    %s131 = sphi 0, %s131
    %s133 = sphi 0, %s131
    %s134 = sphi 0, %s133
    %s148 = sphi 0, %s134
    %s152 = sphi 0, %s152
    %s154 = sphi 0, %s152
    %s155 = sphi 0, %s154
    %s169 = sphi 0, %s155
    %s175 = sphi 0, %s177
    %s178 = sphi 0, %s175
    %s179 = sphi 0, %s178
    %s195 = sphi 0, %s179
  $region4: #{depth_regression_forward.1} parent=0 // loop_header_branch
    %16 = sbr.rel (%p14) target = $region8
  $region5: #{depth_regression_forward.1} parent=0 // loop_body
    %s18 = ssub.s32 %s13, 1
    %s19 = ssub.s32 %s13, 2
    %s20 = sadd.s32 %s13, 1
    %s21 = ssub.s32 %s13, %s20
    %p22 = scmp.eq.s32.totalorder %s21, 0
    %s24 = sadd.s32 %s23, 1
    %s25 = scalar_select %p22, %s23, %s24
    %p28 = pneg %p22
    %p29 = scmp.eq.s32.totalorder %s13, 1
    %p30 = por %p28, %p29
    %p31 = scmp.ne.s32.totalorder %s23, %s26
    %p32 = scmp.eq.s32.totalorder %s13, 0
    %p33 = por %p31, %p32
    %p34 = scmp.ne.s32.totalorder %s23, %s26
    %p35 = scmp.eq.s32.totalorder %s18, 1
    %p36 = por %p34, %p35
    %p37 = scmp.ne.s32.totalorder %s26, %s27
    %p38 = scmp.eq.s32.totalorder %s18, 0
    %p39 = por %p37, %p38
    %p40 = scmp.ne.s32.totalorder %s26, %s27
    %p41 = scmp.eq.s32.totalorder %s19, 1
    %p42 = por %p40, %p41
    %p44 = scmp.ne.s32.totalorder %s27, %s43
    %p45 = scmp.eq.s32.totalorder %s19, 0
    %p46 = por %p44, %p45
    %s48 = sadd.s32 %s47, 1
    %p51 = scmp.eq.s32.totalorder %s13, 1
    %p52 = scmp.ne.s32.totalorder %s47, %s49
    %p53 = scmp.eq.s32.totalorder %s13, 0
    %p54 = por %p52, %p53
    %p55 = scmp.ne.s32.totalorder %s47, %s49
    %p56 = scmp.eq.s32.totalorder %s18, 1
    %p57 = por %p55, %p56
    %p58 = scmp.ne.s32.totalorder %s49, %s50
    %p59 = scmp.eq.s32.totalorder %s18, 0
    %p60 = por %p58, %p59
    %p61 = scmp.ne.s32.totalorder %s49, %s50
    %p62 = scmp.eq.s32.totalorder %s19, 1
    %p63 = por %p61, %p62
    %p65 = scmp.ne.s32.totalorder %s50, %s64
    %p66 = scmp.eq.s32.totalorder %s19, 0
    %p67 = por %p65, %p66
    %s69 = sadd.s32 %s68, 1
    %p72 = scmp.eq.s32.totalorder %s13, 1
    %p73 = scmp.ne.s32.totalorder %s68, %s70
    %p74 = scmp.eq.s32.totalorder %s13, 0
    %p75 = por %p73, %p74
    %p76 = scmp.ne.s32.totalorder %s68, %s70
    %p77 = scmp.eq.s32.totalorder %s18, 1
    %p78 = por %p76, %p77
    %p79 = scmp.ne.s32.totalorder %s70, %s71
    %p80 = scmp.eq.s32.totalorder %s18, 0
    %p81 = por %p79, %p80
    %p82 = scmp.ne.s32.totalorder %s70, %s71
    %p83 = scmp.eq.s32.totalorder %s19, 1
    %p84 = por %p82, %p83
    %p86 = scmp.ne.s32.totalorder %s71, %s85
    %p87 = scmp.eq.s32.totalorder %s19, 0
    %p88 = por %p86, %p87
    %s90 = sadd.s32 %s89, 1
    %p93 = scmp.eq.s32.totalorder %s13, 1
    %p94 = scmp.ne.s32.totalorder %s89, %s91
    %p95 = scmp.eq.s32.totalorder %s13, 0
    %p96 = por %p94, %p95
    %p97 = scmp.ne.s32.totalorder %s89, %s91
    %p98 = scmp.eq.s32.totalorder %s18, 1
    %p99 = por %p97, %p98
    %p100 = scmp.ne.s32.totalorder %s91, %s92
    %p101 = scmp.eq.s32.totalorder %s18, 0
    %p102 = por %p100, %p101
    %p103 = scmp.ne.s32.totalorder %s91, %s92
    %p104 = scmp.eq.s32.totalorder %s19, 1
    %p105 = por %p103, %p104
    %p107 = scmp.ne.s32.totalorder %s92, %s106
    %p108 = scmp.eq.s32.totalorder %s19, 0
    %p109 = por %p107, %p108
    %s111 = sadd.s32 %s110, 1
    %p114 = scmp.eq.s32.totalorder %s13, 1
    %p115 = scmp.ne.s32.totalorder %s110, %s112
    %p116 = scmp.eq.s32.totalorder %s13, 0
    %p117 = por %p115, %p116
    %p118 = scmp.ne.s32.totalorder %s110, %s112
    %p119 = scmp.eq.s32.totalorder %s18, 1
    %p120 = por %p118, %p119
    %p121 = scmp.ne.s32.totalorder %s112, %s113
    %p122 = scmp.eq.s32.totalorder %s18, 0
    %p123 = por %p121, %p122
    %p124 = scmp.ne.s32.totalorder %s112, %s113
    %p125 = scmp.eq.s32.totalorder %s19, 1
    %p126 = por %p124, %p125
    %p128 = scmp.ne.s32.totalorder %s113, %s127
    %p129 = scmp.eq.s32.totalorder %s19, 0
    %p130 = por %p128, %p129
    %s132 = sadd.s32 %s131, 1
    %p135 = scmp.eq.s32.totalorder %s13, 1
    %p136 = scmp.ne.s32.totalorder %s131, %s133
    %p137 = scmp.eq.s32.totalorder %s13, 0
    %p138 = por %p136, %p137
    %p139 = scmp.ne.s32.totalorder %s131, %s133
    %p140 = scmp.eq.s32.totalorder %s18, 1
    %p141 = por %p139, %p140
    %p142 = scmp.ne.s32.totalorder %s133, %s134
    %p143 = scmp.eq.s32.totalorder %s18, 0
    %p144 = por %p142, %p143
    %p145 = scmp.ne.s32.totalorder %s133, %s134
    %p146 = scmp.eq.s32.totalorder %s19, 1
    %p147 = por %p145, %p146
    %p149 = scmp.ne.s32.totalorder %s134, %s148
    %p150 = scmp.eq.s32.totalorder %s19, 0
    %p151 = por %p149, %p150
    %s153 = sadd.s32 %s152, 1
    %p156 = scmp.eq.s32.totalorder %s13, 1
    %p157 = scmp.ne.s32.totalorder %s152, %s154
    %p158 = scmp.eq.s32.totalorder %s13, 0
    %p159 = por %p157, %p158
    %p160 = scmp.ne.s32.totalorder %s152, %s154
    %p161 = scmp.eq.s32.totalorder %s18, 1
    %p162 = por %p160, %p161
    %p163 = scmp.ne.s32.totalorder %s154, %s155
    %p164 = scmp.eq.s32.totalorder %s18, 0
    %p165 = por %p163, %p164
    %p166 = scmp.ne.s32.totalorder %s154, %s155
    %p167 = scmp.eq.s32.totalorder %s19, 1
    %p168 = por %p166, %p167
    %p170 = scmp.ne.s32.totalorder %s155, %s169
    %p171 = scmp.eq.s32.totalorder %s19, 0
    %p172 = por %p170, %p171
    %s173 = ssub.s32 %s13, %s20
    %p174 = scmp.eq.s32.totalorder %s173, 0
    %s176 = sadd.s32 %s175, 1
    %s177 = scalar_select %p174, %s175, %s176
    %p180 = pneg %p174
    %p181 = scmp.eq.s32.totalorder %s13, 1
    %p182 = por %p180, %p181
    %p183 = scmp.ne.s32.totalorder %s175, %s178
    %p184 = scmp.eq.s32.totalorder %s13, 0
    %p185 = por %p183, %p184
    %p186 = scmp.ne.s32.totalorder %s175, %s178
    %p187 = scmp.eq.s32.totalorder %s18, 1
    %p188 = por %p186, %p187
    %p189 = scmp.ne.s32.totalorder %s178, %s179
    %p190 = scmp.eq.s32.totalorder %s18, 0
    %p191 = por %p189, %p190
    %p192 = scmp.ne.s32.totalorder %s178, %s179
    %p193 = scmp.eq.s32.totalorder %s19, 1
    %p194 = por %p192, %p193
    %p196 = scmp.ne.s32.totalorder %s179, %s195
    %p197 = scmp.eq.s32.totalorder %s19, 0
    %p198 = por %p196, %p197
    %p199 = scmp.le.s32.totalorder 1, %s13
    %p200 = scmp.lt.s32.totalorder %s13, 3
    %p201 = pnand %p199, %p200
    %p202 = pneg %p201
    // Predicated region
    $region9: #{depth_regression_forward.1} parent=5 // pred_check
      _
    $region10: #{depth_regression_forward.1} parent=5 // pred_check_branch
      %204 = sbr.rel (%p201) target = $region12
    $region11: #{depth_regression_forward.1} parent=5 // pred_region
      %s205 = ssub.s32 %s13, 1
      // Predicated region
      $region13: #{depth_regression_forward.1} parent=11 // pred_check
        %p206 = pneg %p60
      $region14: #{depth_regression_forward.1} parent=11 // pred_check_branch
        %208 = sbr.rel (%p206) target = $region16
      $region15: #{depth_regression_forward.1} parent=11 // pred_region
        _
      $region16: #{depth_regression_forward.1} parent=11 // pred_fallthru
        _
      // Predicated region
      $region17: #{depth_regression_forward.1} parent=11 // pred_check
        %p209 = pneg %p81
      $region18: #{depth_regression_forward.1} parent=11 // pred_check_branch
        %211 = sbr.rel (%p209) target = $region20
      $region19: #{depth_regression_forward.1} parent=11 // pred_region
        _
      $region20: #{depth_regression_forward.1} parent=11 // pred_fallthru
        _
      // Predicated region
      $region21: #{depth_regression_forward.1} parent=11 // pred_check
        %p212 = pneg %p102
      $region22: #{depth_regression_forward.1} parent=11 // pred_check_branch
        %214 = sbr.rel (%p212) target = $region24
      $region23: #{depth_regression_forward.1} parent=11 // pred_region
        _
      $region24: #{depth_regression_forward.1} parent=11 // pred_fallthru
        _
      // Predicated region
      $region25: #{depth_regression_forward.1} parent=11 // pred_check
        %p215 = pneg %p123
      $region26: #{depth_regression_forward.1} parent=11 // pred_check_branch
        %217 = sbr.rel (%p215) target = $region28
      $region27: #{depth_regression_forward.1} parent=11 // pred_region
        _
      $region28: #{depth_regression_forward.1} parent=11 // pred_fallthru
        _
      // Predicated region
      $region29: #{depth_regression_forward.1} parent=11 // pred_check
        %p218 = pneg %p144
      $region30: #{depth_regression_forward.1} parent=11 // pred_check_branch
        %220 = sbr.rel (%p218) target = $region32
      $region31: #{depth_regression_forward.1} parent=11 // pred_region
        _
      $region32: #{depth_regression_forward.1} parent=11 // pred_fallthru
        _
      // Predicated region
      $region33: #{depth_regression_forward.1} parent=11 // pred_check
        %p221 = pneg %p165
      $region34: #{depth_regression_forward.1} parent=11 // pred_check_branch
        %223 = sbr.rel (%p221) target = $region36
      $region35: #{depth_regression_forward.1} parent=11 // pred_region
        _
      $region36: #{depth_regression_forward.1} parent=11 // pred_fallthru
        _
    $region12: #{depth_regression_forward.1} parent=5 // pred_fallthru
      _
    %p224 = scmp.lt.s32.totalorder %s13, 2
    // Predicated region
    $region37: #{depth_regression_forward.1} parent=5 // pred_check
      %p225 = pneg %p224
    $region38: #{depth_regression_forward.1} parent=5 // pred_check_branch
      %227 = sbr.rel (%p225) target = $region40
    $region39: #{depth_regression_forward.1} parent=5 // pred_region
      // Predicated region
      $region41: #{depth_regression_forward.1} parent=39 // pred_check
        %p228 = pneg %p33
      $region42: #{depth_regression_forward.1} parent=39 // pred_check_branch
        %230 = sbr.rel (%p228) target = $region44
      $region43: #{depth_regression_forward.1} parent=39 // pred_region
        %p231 = scmp.lt.s32.totalorder %s13, 1
        %s232 = scalar_select %p231, %s13, 1
        %s233 = smul.addr %s232, 16
        %s234 = smul.addr %s233, 8
        %s235 = scalar_lea.vmem %s0, %s234
      $region44: #{depth_regression_forward.1} parent=39 // pred_fallthru
        _
    $region40: #{depth_regression_forward.1} parent=5 // pred_fallthru
      _
    %p236 = scmp.le.s32.totalorder 1, %s13
    %p237 = scmp.lt.s32.totalorder %s13, 3
    %p238 = pnand %p236, %p237
    %p239 = pneg %p238
    // Predicated region
    $region45: #{depth_regression_forward.1} parent=5 // pred_check
      _
    $region46: #{depth_regression_forward.1} parent=5 // pred_check_branch
      %241 = sbr.rel (%p238) target = $region48
    $region47: #{depth_regression_forward.1} parent=5 // pred_region
      %s242 = ssub.s32 %s13, 1
      %p243 = scmp.lt.s32.totalorder %s18, 1
      %s244 = scalar_select %p243, %s18, 1
      %s245 = smul.addr %s244, 16
      %s246 = smul.addr %s245, 8
      %s247 = scalar_lea.vmem %s0, %s246
      %p248 = pneg %p39
      %p249 = pneg %p36
      %p250 = pneg %p60
      %p251 = pneg %p57
      %p252 = pneg %p81
      %p253 = pneg %p78
      %p254 = pneg %p102
      %p255 = pneg %p99
      %p256 = pneg %p123
      %p257 = pneg %p120
      %p258 = pneg %p144
      %p259 = pneg %p141
      %p260 = pneg %p165
      %p261 = pneg %p162
      %p262 = pneg %p191
      %p263 = pneg %p188
      %p264 = scmp.lt.s32.totalorder %s18, 1
      %s265 = scalar_select %p264, %s18, 1
      %s266 = smul.addr %s265, 16
      %s267 = smul.addr %s266, 8
      %s268 = scalar_lea.vmem %s7, %s267
      %p269 = scmp.lt.s32.totalorder %s18, 1
      %s270 = scalar_select %p269, %s18, 1
      %s271 = smul.addr %s270, 16
      %s272 = smul.addr %s271, 8
      %s273 = scalar_lea.vmem %s0, %s272
      %p274 = scmp.lt.s32.totalorder %s18, 1
      %s275 = scalar_select %p274, %s18, 1
      %s276 = smul.addr %s275, 16
      %s277 = smul.addr %s276, 8
      %s278 = scalar_lea.vmem %s7, %s277
      %280 = vst [vmem:[#allocation2] sm:$0xff] 0.0
      %281 = vst [vmem:[#allocation2 + $0x8] sm:$0xff] 0.0
      %282 = vst [vmem:[#allocation2 + $0x10] sm:$0x3] 0.0
      %283 = vst [vmem:[#allocation2 + $0x18] sm:$0xff] 0.0
      %284 = vst [vmem:[#allocation2 + $0x20] sm:$0xff] 0.0
      %285 = vst [vmem:[#allocation2 + $0x28] sm:$0x3] 0.0
      %286 = vst [vmem:[#allocation2 + $0x30] sm:$0xff] 0.0
      %287 = vst [vmem:[#allocation2 + $0x38] sm:$0xff] 0.0
      %288 = vst [vmem:[#allocation2 + $0x40] sm:$0x3] 0.0
      %289 = vst [vmem:[#allocation2 + $0x48] sm:$0xff] 0.0
      %290 = vst [vmem:[#allocation2 + $0x50] sm:$0xff] 0.0
      %291 = vst [vmem:[#allocation2 + $0x58] sm:$0x3] 0.0
      %292 = vst [vmem:[#allocation2 + $0x60] sm:$0xff] 0.0
      %293 = vst [vmem:[#allocation2 + $0x68] sm:$0xff] 0.0
      %294 = vst [vmem:[#allocation2 + $0x70] sm:$0x3] 0.0
      %295 = vst [vmem:[#allocation2 + $0x78] sm:$0xff] 0.0
      %296 = vst [vmem:[#allocation2 + $0x80] sm:$0xff] 0.0
      %297 = vst [vmem:[#allocation2 + $0x88] sm:$0x3] 0.0
      %298 = vst [vmem:[#allocation2 + $0x90] sm:$0xff] 0.0
      %299 = vst [vmem:[#allocation2 + $0x98] sm:$0xff] 0.0
      %300 = vst [vmem:[#allocation2 + $0xa0] sm:$0x3] 0.0
      %301 = vst [vmem:[#allocation2 + $0xa8] sm:$0xff] 0.0
      %302 = vst [vmem:[#allocation2 + $0xb0] sm:$0xff] 0.0
      %303 = vst [vmem:[#allocation2 + $0xb8] sm:$0x3] 0.0
      %304 = vst [vmem:[#allocation2 + $0xc0] sm:$0xff] 0.0
      %305 = vst [vmem:[#allocation2 + $0xc8] sm:$0xff] 0.0
      %306 = vst [vmem:[#allocation2 + $0xd0] sm:$0x3] 0.0
      %307 = vst [vmem:[#allocation2 + $0xd8] sm:$0xff] 0.0
      %308 = vst [vmem:[#allocation2 + $0xe0] sm:$0xff] 0.0
      %309 = vst [vmem:[#allocation2 + $0xe8] sm:$0x3] 0.0
      %310 = vst [vmem:[#allocation3] sm:$0xff] 0.0
      %311 = vst [vmem:[#allocation3 + $0x8] sm:$0xff] 0.0
      %312 = vst [vmem:[#allocation3 + $0x10] sm:$0x3] 0.0
      %313 = vst [vmem:[#allocation3 + $0x18] sm:$0xff] 0.0
      %314 = vst [vmem:[#allocation3 + $0x20] sm:$0xff] 0.0
      %315 = vst [vmem:[#allocation3 + $0x28] sm:$0x3] 0.0
      %316 = vst [vmem:[#allocation3 + $0x30] sm:$0xff] 0.0
      %317 = vst [vmem:[#allocation3 + $0x38] sm:$0xff] 0.0
      %318 = vst [vmem:[#allocation3 + $0x40] sm:$0x3] 0.0
      %319 = vst [vmem:[#allocation3 + $0x48] sm:$0xff] 0.0
      %320 = vst [vmem:[#allocation3 + $0x50] sm:$0xff] 0.0
      %321 = vst [vmem:[#allocation3 + $0x58] sm:$0x3] 0.0
      %322 = vst [vmem:[#allocation3 + $0x60] sm:$0xff] 0.0
      %323 = vst [vmem:[#allocation3 + $0x68] sm:$0xff] 0.0
      %324 = vst [vmem:[#allocation3 + $0x70] sm:$0x3] 0.0
      %325 = vst [vmem:[#allocation3 + $0x78] sm:$0xff] 0.0
      %326 = vst [vmem:[#allocation3 + $0x80] sm:$0xff] 0.0
      %327 = vst [vmem:[#allocation3 + $0x88] sm:$0x3] 0.0
      %328 = vst [vmem:[#allocation3 + $0x90] sm:$0xff] 0.0
      %329 = vst [vmem:[#allocation3 + $0x98] sm:$0xff] 0.0
      %330 = vst [vmem:[#allocation3 + $0xa0] sm:$0x3] 0.0
      %331 = vst [vmem:[#allocation3 + $0xa8] sm:$0xff] 0.0
      %332 = vst [vmem:[#allocation3 + $0xb0] sm:$0xff] 0.0
      %333 = vst [vmem:[#allocation3 + $0xb8] sm:$0x3] 0.0
      %334 = vst [vmem:[#allocation3 + $0xc0] sm:$0xff] 0.0
      %335 = vst [vmem:[#allocation3 + $0xc8] sm:$0xff] 0.0
      %336 = vst [vmem:[#allocation3 + $0xd0] sm:$0x3] 0.0
      %337 = vst [vmem:[#allocation3 + $0xd8] sm:$0xff] 0.0
      %338 = vst [vmem:[#allocation3 + $0xe0] sm:$0xff] 0.0
      %339 = vst [vmem:[#allocation3 + $0xe8] sm:$0x3] 0.0
      %v340 = vld [vmem:[%s273] sm:$0xff]
      %v341 = vld [vmem:[%s273 + $0x8] sm:$0xff]
      %v342 = vld [vmem:[%s273 + $0x10] sm:$0xff]
      %v343 = vld [vmem:[%s273 + $0x18] sm:$0xff]
      %v344 = vld [vmem:[%s273 + $0x20] sm:$0xff]
      %v345 = vld [vmem:[%s273 + $0x28] sm:$0xff]
      %v346 = vld [vmem:[%s273 + $0x30] sm:$0xff]
      %v347 = vld [vmem:[%s273 + $0x38] sm:$0xff]
      %v348 = vld [vmem:[%s273 + $0x40] sm:$0xff]
      %v349 = vld [vmem:[%s273 + $0x48] sm:$0xff]
      %v350 = vld [vmem:[%s273 + $0x50] sm:$0xff]
      %v351 = vld [vmem:[%s273 + $0x58] sm:$0xff]
      %v352 = vld [vmem:[%s273 + $0x60] sm:$0xff]
      %v353 = vld [vmem:[%s273 + $0x68] sm:$0xff]
      %v354 = vld [vmem:[%s273 + $0x70] sm:$0xff]
      %v355 = vld [vmem:[%s273 + $0x78] sm:$0xff]
      %s356 = scalar_lea.vmem [#allocation2], 24
      %357 = vst [vmem:[%s356 + $0x1] sm:$0xff] %v340
      %358 = vst [vmem:[%s356 + $0x9] sm:$0xff] %v341
      %359 = vst [vmem:[%s356 + $0x19] sm:$0xff] %v342
      %360 = vst [vmem:[%s356 + $0x21] sm:$0xff] %v343
      %361 = vst [vmem:[%s356 + $0x31] sm:$0xff] %v344
      %362 = vst [vmem:[%s356 + $0x39] sm:$0xff] %v345
      %363 = vst [vmem:[%s356 + $0x49] sm:$0xff] %v346
      %364 = vst [vmem:[%s356 + $0x51] sm:$0xff] %v347
      %365 = vst [vmem:[%s356 + $0x61] sm:$0xff] %v348
      %366 = vst [vmem:[%s356 + $0x69] sm:$0xff] %v349
      %367 = vst [vmem:[%s356 + $0x79] sm:$0xff] %v350
      %368 = vst [vmem:[%s356 + $0x81] sm:$0xff] %v351
      %369 = vst [vmem:[%s356 + $0x91] sm:$0xff] %v352
      %370 = vst [vmem:[%s356 + $0x99] sm:$0xff] %v353
      %371 = vst [vmem:[%s356 + $0xa9] sm:$0xff] %v354
      %372 = vst [vmem:[%s356 + $0xb1] sm:$0xff] %v355
      %v373 = vld [vmem:[#allocation2] sm:$0xff]
      %v374 = vld [vmem:[#allocation2 + $0x8] sm:$0xff]
      %v375 = vld [vmem:[#allocation2 + $0x18] sm:$0xff]
      %v376 = vld [vmem:[#allocation2 + $0x20] sm:$0xff]
      %v377 = vld [vmem:[#allocation2 + $0x30] sm:$0xff]
      %v378 = vld [vmem:[#allocation2 + $0x38] sm:$0xff]
      %v379 = vld [vmem:[#allocation2 + $0x48] sm:$0xff]
      %v380 = vld [vmem:[#allocation2 + $0x50] sm:$0xff]
      %v381 = vld [vmem:[#allocation2 + $0x60] sm:$0xff]
      %v382 = vld [vmem:[#allocation2 + $0x68] sm:$0xff]
      %v383 = vld [vmem:[#allocation2 + $0x78] sm:$0xff]
      %v384 = vld [vmem:[#allocation2 + $0x80] sm:$0xff]
      %v385 = vld [vmem:[#allocation2 + $0x90] sm:$0xff]
      %v386 = vld [vmem:[#allocation2 + $0x98] sm:$0xff]
      %v387 = vld [vmem:[#allocation2 + $0xa8] sm:$0xff]
      %v388 = vld [vmem:[#allocation2 + $0xb0] sm:$0xff]
      %v389 = vld [vmem:[#allocation2 + $0x1] sm:$0xff]
      %v390 = vld [vmem:[#allocation2 + $0x9] sm:$0xff]
      %v391 = vld [vmem:[#allocation2 + $0x19] sm:$0xff]
      %v392 = vld [vmem:[#allocation2 + $0x21] sm:$0xff]
      %v393 = vld [vmem:[#allocation2 + $0x31] sm:$0xff]
      %v394 = vld [vmem:[#allocation2 + $0x39] sm:$0xff]
      %v395 = vld [vmem:[#allocation2 + $0x49] sm:$0xff]
      %v396 = vld [vmem:[#allocation2 + $0x51] sm:$0xff]
      %v397 = vld [vmem:[#allocation2 + $0x61] sm:$0xff]
      %v398 = vld [vmem:[#allocation2 + $0x69] sm:$0xff]
      %v399 = vld [vmem:[#allocation2 + $0x79] sm:$0xff]
      %v400 = vld [vmem:[#allocation2 + $0x81] sm:$0xff]
      %v401 = vld [vmem:[#allocation2 + $0x91] sm:$0xff]
      %v402 = vld [vmem:[#allocation2 + $0x99] sm:$0xff]
      %v403 = vld [vmem:[#allocation2 + $0xa9] sm:$0xff]
      %v404 = vld [vmem:[#allocation2 + $0xb1] sm:$0xff]
      %v405 = vld [vmem:[#allocation2 + $0x2] sm:$0xff]
      %v406 = vld [vmem:[#allocation2 + $0xa] sm:$0xff]
      %v407 = vld [vmem:[#allocation2 + $0x1a] sm:$0xff]
      %v408 = vld [vmem:[#allocation2 + $0x22] sm:$0xff]
      %v409 = vld [vmem:[#allocation2 + $0x32] sm:$0xff]
      %v410 = vld [vmem:[#allocation2 + $0x3a] sm:$0xff]
      %v411 = vld [vmem:[#allocation2 + $0x4a] sm:$0xff]
      %v412 = vld [vmem:[#allocation2 + $0x52] sm:$0xff]
      %v413 = vld [vmem:[#allocation2 + $0x62] sm:$0xff]
      %v414 = vld [vmem:[#allocation2 + $0x6a] sm:$0xff]
      %v415 = vld [vmem:[#allocation2 + $0x7a] sm:$0xff]
      %v416 = vld [vmem:[#allocation2 + $0x82] sm:$0xff]
      %v417 = vld [vmem:[#allocation2 + $0x92] sm:$0xff]
      %v418 = vld [vmem:[#allocation2 + $0x9a] sm:$0xff]
      %v419 = vld [vmem:[#allocation2 + $0xaa] sm:$0xff]
      %v420 = vld [vmem:[#allocation2 + $0xb2] sm:$0xff]
      %v421 = vld [vmem:[%s356] sm:$0xff]
      %v422 = vld [vmem:[%s356 + $0x8] sm:$0xff]
      %v423 = vld [vmem:[%s356 + $0x18] sm:$0xff]
      %v424 = vld [vmem:[%s356 + $0x20] sm:$0xff]
      %v425 = vld [vmem:[%s356 + $0x30] sm:$0xff]
      %v426 = vld [vmem:[%s356 + $0x38] sm:$0xff]
      %v427 = vld [vmem:[%s356 + $0x48] sm:$0xff]
      %v428 = vld [vmem:[%s356 + $0x50] sm:$0xff]
      %v429 = vld [vmem:[%s356 + $0x60] sm:$0xff]
      %v430 = vld [vmem:[%s356 + $0x68] sm:$0xff]
      %v431 = vld [vmem:[%s356 + $0x78] sm:$0xff]
      %v432 = vld [vmem:[%s356 + $0x80] sm:$0xff]
      %v433 = vld [vmem:[%s356 + $0x90] sm:$0xff]
      %v434 = vld [vmem:[%s356 + $0x98] sm:$0xff]
      %v435 = vld [vmem:[%s356 + $0xa8] sm:$0xff]
      %v436 = vld [vmem:[%s356 + $0xb0] sm:$0xff]
      %v437 = vld [vmem:[%s356 + $0x1] sm:$0xff]
      %v438 = vld [vmem:[%s356 + $0x9] sm:$0xff]
      %v439 = vld [vmem:[%s356 + $0x19] sm:$0xff]
      %v440 = vld [vmem:[%s356 + $0x21] sm:$0xff]
      %v441 = vld [vmem:[%s356 + $0x31] sm:$0xff]
      %v442 = vld [vmem:[%s356 + $0x39] sm:$0xff]
      %v443 = vld [vmem:[%s356 + $0x49] sm:$0xff]
      %v444 = vld [vmem:[%s356 + $0x51] sm:$0xff]
      %v445 = vld [vmem:[%s356 + $0x61] sm:$0xff]
      %v446 = vld [vmem:[%s356 + $0x69] sm:$0xff]
      %v447 = vld [vmem:[%s356 + $0x79] sm:$0xff]
      %v448 = vld [vmem:[%s356 + $0x81] sm:$0xff]
      %v449 = vld [vmem:[%s356 + $0x91] sm:$0xff]
      %v450 = vld [vmem:[%s356 + $0x99] sm:$0xff]
      %v451 = vld [vmem:[%s356 + $0xa9] sm:$0xff]
      %v452 = vld [vmem:[%s356 + $0xb1] sm:$0xff]
      %v453 = vld [vmem:[%s356 + $0x2] sm:$0xff]
      %v454 = vld [vmem:[%s356 + $0xa] sm:$0xff]
      %v455 = vld [vmem:[%s356 + $0x1a] sm:$0xff]
      %v456 = vld [vmem:[%s356 + $0x22] sm:$0xff]
      %v457 = vld [vmem:[%s356 + $0x32] sm:$0xff]
      %v458 = vld [vmem:[%s356 + $0x3a] sm:$0xff]
      %v459 = vld [vmem:[%s356 + $0x4a] sm:$0xff]
      %v460 = vld [vmem:[%s356 + $0x52] sm:$0xff]
      %v461 = vld [vmem:[%s356 + $0x62] sm:$0xff]
      %v462 = vld [vmem:[%s356 + $0x6a] sm:$0xff]
      %v463 = vld [vmem:[%s356 + $0x7a] sm:$0xff]
      %v464 = vld [vmem:[%s356 + $0x82] sm:$0xff]
      %v465 = vld [vmem:[%s356 + $0x92] sm:$0xff]
      %v466 = vld [vmem:[%s356 + $0x9a] sm:$0xff]
      %v467 = vld [vmem:[%s356 + $0xaa] sm:$0xff]
      %v468 = vld [vmem:[%s356 + $0xb2] sm:$0xff]
      %s469 = scalar_lea.vmem [#allocation2], 48
      %v470 = vld [vmem:[%s469] sm:$0xff]
      %v471 = vld [vmem:[%s469 + $0x8] sm:$0xff]
      %v472 = vld [vmem:[%s469 + $0x18] sm:$0xff]
      %v473 = vld [vmem:[%s469 + $0x20] sm:$0xff]
      %v474 = vld [vmem:[%s469 + $0x30] sm:$0xff]
      %v475 = vld [vmem:[%s469 + $0x38] sm:$0xff]
      %v476 = vld [vmem:[%s469 + $0x48] sm:$0xff]
      %v477 = vld [vmem:[%s469 + $0x50] sm:$0xff]
      %v478 = vld [vmem:[%s469 + $0x60] sm:$0xff]
      %v479 = vld [vmem:[%s469 + $0x68] sm:$0xff]
      %v480 = vld [vmem:[%s469 + $0x78] sm:$0xff]
      %v481 = vld [vmem:[%s469 + $0x80] sm:$0xff]
      %v482 = vld [vmem:[%s469 + $0x90] sm:$0xff]
      %v483 = vld [vmem:[%s469 + $0x98] sm:$0xff]
      %v484 = vld [vmem:[%s469 + $0xa8] sm:$0xff]
      %v485 = vld [vmem:[%s469 + $0xb0] sm:$0xff]
      %v486 = vld [vmem:[%s469 + $0x1] sm:$0xff]
      %v487 = vld [vmem:[%s469 + $0x9] sm:$0xff]
      %v488 = vld [vmem:[%s469 + $0x19] sm:$0xff]
      %v489 = vld [vmem:[%s469 + $0x21] sm:$0xff]
      %v490 = vld [vmem:[%s469 + $0x31] sm:$0xff]
      %v491 = vld [vmem:[%s469 + $0x39] sm:$0xff]
      %v492 = vld [vmem:[%s469 + $0x49] sm:$0xff]
      %v493 = vld [vmem:[%s469 + $0x51] sm:$0xff]
      %v494 = vld [vmem:[%s469 + $0x61] sm:$0xff]
      %v495 = vld [vmem:[%s469 + $0x69] sm:$0xff]
      %v496 = vld [vmem:[%s469 + $0x79] sm:$0xff]
      %v497 = vld [vmem:[%s469 + $0x81] sm:$0xff]
      %v498 = vld [vmem:[%s469 + $0x91] sm:$0xff]
      %v499 = vld [vmem:[%s469 + $0x99] sm:$0xff]
      %v500 = vld [vmem:[%s469 + $0xa9] sm:$0xff]
      %v501 = vld [vmem:[%s469 + $0xb1] sm:$0xff]
      %v502 = vld [vmem:[%s469 + $0x2] sm:$0xff]
      %v503 = vld [vmem:[%s469 + $0xa] sm:$0xff]
      %v504 = vld [vmem:[%s469 + $0x1a] sm:$0xff]
      %v505 = vld [vmem:[%s469 + $0x22] sm:$0xff]
      %v506 = vld [vmem:[%s469 + $0x32] sm:$0xff]
      %v507 = vld [vmem:[%s469 + $0x3a] sm:$0xff]
      %v508 = vld [vmem:[%s469 + $0x4a] sm:$0xff]
      %v509 = vld [vmem:[%s469 + $0x52] sm:$0xff]
      %v510 = vld [vmem:[%s469 + $0x62] sm:$0xff]
      %v511 = vld [vmem:[%s469 + $0x6a] sm:$0xff]
      %v512 = vld [vmem:[%s469 + $0x7a] sm:$0xff]
      %v513 = vld [vmem:[%s469 + $0x82] sm:$0xff]
      %v514 = vld [vmem:[%s469 + $0x92] sm:$0xff]
      %v515 = vld [vmem:[%s469 + $0x9a] sm:$0xff]
      %v516 = vld [vmem:[%s469 + $0xaa] sm:$0xff]
      %v517 = vld [vmem:[%s469 + $0xb2] sm:$0xff]
      %v518 = vpack.c.bf16 %v374, %v373
      %v519 = vpack.c.bf16 %v390, %v389
      %v520 = vpack.c.bf16 %v406, %v405
      %v521 = vpack.c.bf16 %v422, %v421
      %v522 = vpack.c.bf16 %v438, %v437
      %v523 = vpack.c.bf16 %v454, %v453
      %v524 = vpack.c.bf16 %v471, %v470
      %v525 = vpack.c.bf16 %v487, %v486
      %v526 = vpack.c.bf16 %v503, %v502
      %v527 = vpack.c.bf16 %v376, %v375
      %v528 = vpack.c.bf16 %v392, %v391
      %v529 = vpack.c.bf16 %v408, %v407
      %v530 = vpack.c.bf16 %v424, %v423
      %v531 = vpack.c.bf16 %v440, %v439
      %v532 = vpack.c.bf16 %v456, %v455
      %v533 = vpack.c.bf16 %v473, %v472
      %v534 = vpack.c.bf16 %v489, %v488
      %v535 = vpack.c.bf16 %v505, %v504
      %v536 = vpack.c.bf16 %v378, %v377
      %v537 = vpack.c.bf16 %v394, %v393
      %v538 = vpack.c.bf16 %v410, %v409
      %v539 = vpack.c.bf16 %v426, %v425
      %v540 = vpack.c.bf16 %v442, %v441
      %v541 = vpack.c.bf16 %v458, %v457
      %v542 = vpack.c.bf16 %v475, %v474
      %v543 = vpack.c.bf16 %v491, %v490
      %v544 = vpack.c.bf16 %v507, %v506
      %v545 = vpack.c.bf16 %v380, %v379
      %v546 = vpack.c.bf16 %v396, %v395
      %v547 = vpack.c.bf16 %v412, %v411
      %v548 = vpack.c.bf16 %v428, %v427
      %v549 = vpack.c.bf16 %v444, %v443
      %v550 = vpack.c.bf16 %v460, %v459
      %v551 = vpack.c.bf16 %v477, %v476
      %v552 = vpack.c.bf16 %v493, %v492
      %v553 = vpack.c.bf16 %v509, %v508
      %v554 = vpack.c.bf16 %v382, %v381
      %v555 = vpack.c.bf16 %v398, %v397
      %v556 = vpack.c.bf16 %v414, %v413
      %v557 = vpack.c.bf16 %v430, %v429
      %v558 = vpack.c.bf16 %v446, %v445
      %v559 = vpack.c.bf16 %v462, %v461
      %v560 = vpack.c.bf16 %v479, %v478
      %v561 = vpack.c.bf16 %v495, %v494
      %v562 = vpack.c.bf16 %v511, %v510
      %v563 = vpack.c.bf16 %v384, %v383
      %v564 = vpack.c.bf16 %v400, %v399
      %v565 = vpack.c.bf16 %v416, %v415
      %v566 = vpack.c.bf16 %v432, %v431
      %v567 = vpack.c.bf16 %v448, %v447
      %v568 = vpack.c.bf16 %v464, %v463
      %v569 = vpack.c.bf16 %v481, %v480
      %v570 = vpack.c.bf16 %v497, %v496
      %v571 = vpack.c.bf16 %v513, %v512
      %v572 = vpack.c.bf16 %v386, %v385
      %v573 = vpack.c.bf16 %v402, %v401
      %v574 = vpack.c.bf16 %v418, %v417
      %v575 = vpack.c.bf16 %v434, %v433
      %v576 = vpack.c.bf16 %v450, %v449
      %v577 = vpack.c.bf16 %v466, %v465
      %v578 = vpack.c.bf16 %v483, %v482
      %v579 = vpack.c.bf16 %v499, %v498
      %v580 = vpack.c.bf16 %v515, %v514
      %v581 = vpack.c.bf16 %v388, %v387
      %v582 = vpack.c.bf16 %v404, %v403
      %v583 = vpack.c.bf16 %v420, %v419
      %v584 = vpack.c.bf16 %v436, %v435
      %v585 = vpack.c.bf16 %v452, %v451
      %v586 = vpack.c.bf16 %v468, %v467
      %v587 = vpack.c.bf16 %v485, %v484
      %v588 = vpack.c.bf16 %v501, %v500
      %v589 = vpack.c.bf16 %v517, %v516
      %v590 = vld [vmem:[%s1] sm:$0xf]
      %v591 = vld [vmem:[%s1 + $0x4] sm:$0xf]
      %v592 = vld [vmem:[%s1 + $0x8] sm:$0xf]
      %v593 = vld [vmem:[%s1 + $0xc] sm:$0xf]
      %v594 = vld [vmem:[%s1 + $0x10] sm:$0xf]
      %v595 = vld [vmem:[%s1 + $0x14] sm:$0xf]
      %v596 = vld [vmem:[%s1 + $0x18] sm:$0xf]
      %v597 = vld [vmem:[%s1 + $0x1c] sm:$0xf]
      %v598 = vld [vmem:[%s1 + $0x20] sm:$0xf]
      %v599 = vld [vmem:[%s1 + $0x24] sm:$0xf]
      %v600 = vld [vmem:[%s1 + $0x28] sm:$0xf]
      %v601 = vld [vmem:[%s1 + $0x2c] sm:$0xf]
      %v602 = vld [vmem:[%s1 + $0x30] sm:$0xf]
      %v603 = vld [vmem:[%s1 + $0x34] sm:$0xf]
      %v604 = vld [vmem:[%s1 + $0x38] sm:$0xf]
      %v605 = vld [vmem:[%s1 + $0x3c] sm:$0xf]
      %v606 = vld [vmem:[%s1 + $0x40] sm:$0xf]
      %v607 = vld [vmem:[%s1 + $0x44] sm:$0xf]
      %v608 = vld [vmem:[%s1 + $0x48] sm:$0xf]
      %v609 = vld [vmem:[%s1 + $0x4c] sm:$0xf]
      %v610 = vld [vmem:[%s1 + $0x50] sm:$0xf]
      %v611 = vld [vmem:[%s1 + $0x54] sm:$0xf]
      %v612 = vld [vmem:[%s1 + $0x58] sm:$0xf]
      %v613 = vld [vmem:[%s1 + $0x5c] sm:$0xf]
      %v614 = vld [vmem:[%s1 + $0x60] sm:$0xf]
      %v615 = vld [vmem:[%s1 + $0x64] sm:$0xf]
      %v616 = vld [vmem:[%s1 + $0x68] sm:$0xf]
      %v617 = vld [vmem:[%s1 + $0x6c] sm:$0xf]
      %v618 = vld [vmem:[%s1 + $0x70] sm:$0xf]
      %v619 = vld [vmem:[%s1 + $0x74] sm:$0xf]
      %v620 = vld [vmem:[%s1 + $0x78] sm:$0xf]
      %v621 = vld [vmem:[%s1 + $0x7c] sm:$0xf]
      %v622 = vld [vmem:[%s1 + $0x80] sm:$0xf]
      %v623 = vld [vmem:[%s1 + $0x84] sm:$0xf]
      %v624 = vld [vmem:[%s1 + $0x88] sm:$0xf]
      %v625 = vld [vmem:[%s1 + $0x8c] sm:$0xf]
      %v626 = vld [vmem:[%s1 + $0x90] sm:$0xf]
      %v627 = vld [vmem:[%s1 + $0x94] sm:$0xf]
      %v628 = vld [vmem:[%s1 + $0x98] sm:$0xf]
      %v629 = vld [vmem:[%s1 + $0x9c] sm:$0xf]
      %v630 = vld [vmem:[%s1 + $0xa0] sm:$0xf]
      %v631 = vld [vmem:[%s1 + $0xa4] sm:$0xf]
      %v632 = vld [vmem:[%s1 + $0xa8] sm:$0xf]
      %v633 = vld [vmem:[%s1 + $0xac] sm:$0xf]
      %v634 = vld [vmem:[%s1 + $0xb0] sm:$0xf]
      %v635 = vld [vmem:[%s1 + $0xb4] sm:$0xf]
      %v636 = vld [vmem:[%s1 + $0xb8] sm:$0xf]
      %v637 = vld [vmem:[%s1 + $0xbc] sm:$0xf]
      %v638 = vld [vmem:[%s1 + $0xc0] sm:$0xf]
      %v639 = vld [vmem:[%s1 + $0xc4] sm:$0xf]
      %v640 = vld [vmem:[%s1 + $0xc8] sm:$0xf]
      %v641 = vld [vmem:[%s1 + $0xcc] sm:$0xf]
      %v642 = vld [vmem:[%s1 + $0xd0] sm:$0xf]
      %v643 = vld [vmem:[%s1 + $0xd4] sm:$0xf]
      %v644 = vld [vmem:[%s1 + $0xd8] sm:$0xf]
      %v645 = vld [vmem:[%s1 + $0xdc] sm:$0xf]
      %v646 = vld [vmem:[%s1 + $0xe0] sm:$0xf]
      %v647 = vld [vmem:[%s1 + $0xe4] sm:$0xf]
      %v648 = vld [vmem:[%s1 + $0xe8] sm:$0xf]
      %v649 = vld [vmem:[%s1 + $0xec] sm:$0xf]
      %v650 = vld [vmem:[%s1 + $0xf0] sm:$0xf]
      %v651 = vld [vmem:[%s1 + $0xf4] sm:$0xf]
      %v652 = vld [vmem:[%s1 + $0xf8] sm:$0xf]
      %v653 = vld [vmem:[%s1 + $0xfc] sm:$0xf]
      %v654 = vld [vmem:[%s1 + $0x100] sm:$0xf]
      %v655 = vld [vmem:[%s1 + $0x104] sm:$0xf]
      %v656 = vld [vmem:[%s1 + $0x108] sm:$0xf]
      %v657 = vld [vmem:[%s1 + $0x10c] sm:$0xf]
      %v658 = vld [vmem:[%s1 + $0x110] sm:$0xf]
      %v659 = vld [vmem:[%s1 + $0x114] sm:$0xf]
      %v660 = vld [vmem:[%s1 + $0x118] sm:$0xf]
      %v661 = vld [vmem:[%s1 + $0x11c] sm:$0xf]
      %v662 = vld [vmem:[%s1 + $0x120] sm:$0xf]
      %v663 = vld [vmem:[%s1 + $0x124] sm:$0xf]
      %v664 = vld [vmem:[%s1 + $0x128] sm:$0xf]
      %v665 = vld [vmem:[%s1 + $0x12c] sm:$0xf]
      %v666 = vld [vmem:[%s1 + $0x130] sm:$0xf]
      %v667 = vld [vmem:[%s1 + $0x134] sm:$0xf]
      %v668 = vld [vmem:[%s1 + $0x138] sm:$0xf]
      %v669 = vld [vmem:[%s1 + $0x13c] sm:$0xf]
      %v670 = vld [vmem:[%s1 + $0x140] sm:$0xf]
      %v671 = vld [vmem:[%s1 + $0x144] sm:$0xf]
      %v672 = vld [vmem:[%s1 + $0x148] sm:$0xf]
      %v673 = vld [vmem:[%s1 + $0x14c] sm:$0xf]
      %v674 = vld [vmem:[%s1 + $0x150] sm:$0xf]
      %v675 = vld [vmem:[%s1 + $0x154] sm:$0xf]
      %v676 = vld [vmem:[%s1 + $0x158] sm:$0xf]
      %v677 = vld [vmem:[%s1 + $0x15c] sm:$0xf]
      %v678 = vld [vmem:[%s1 + $0x160] sm:$0xf]
      %v679 = vld [vmem:[%s1 + $0x164] sm:$0xf]
      %v680 = vld [vmem:[%s1 + $0x168] sm:$0xf]
      %v681 = vld [vmem:[%s1 + $0x16c] sm:$0xf]
      %v682 = vld [vmem:[%s1 + $0x170] sm:$0xf]
      %v683 = vld [vmem:[%s1 + $0x174] sm:$0xf]
      %v684 = vld [vmem:[%s1 + $0x178] sm:$0xf]
      %v685 = vld [vmem:[%s1 + $0x17c] sm:$0xf]
      %v686 = vld [vmem:[%s1 + $0x180] sm:$0xf]
      %v687 = vld [vmem:[%s1 + $0x184] sm:$0xf]
      %v688 = vld [vmem:[%s1 + $0x188] sm:$0xf]
      %v689 = vld [vmem:[%s1 + $0x18c] sm:$0xf]
      %v690 = vld [vmem:[%s1 + $0x190] sm:$0xf]
      %v691 = vld [vmem:[%s1 + $0x194] sm:$0xf]
      %v692 = vld [vmem:[%s1 + $0x198] sm:$0xf]
      %v693 = vld [vmem:[%s1 + $0x19c] sm:$0xf]
      %v694 = vld [vmem:[%s1 + $0x1a0] sm:$0xf]
      %v695 = vld [vmem:[%s1 + $0x1a4] sm:$0xf]
      %v696 = vld [vmem:[%s1 + $0x1a8] sm:$0xf]
      %v697 = vld [vmem:[%s1 + $0x1ac] sm:$0xf]
      %v698 = vld [vmem:[%s1 + $0x1b0] sm:$0xf]
      %v699 = vld [vmem:[%s1 + $0x1b4] sm:$0xf]
      %v700 = vld [vmem:[%s1 + $0x1b8] sm:$0xf]
      %v701 = vld [vmem:[%s1 + $0x1bc] sm:$0xf]
      %v702 = vld [vmem:[%s1 + $0x1c0] sm:$0xf]
      %v703 = vld [vmem:[%s1 + $0x1c4] sm:$0xf]
      %v704 = vld [vmem:[%s1 + $0x1c8] sm:$0xf]
      %v705 = vld [vmem:[%s1 + $0x1cc] sm:$0xf]
      %v706 = vld [vmem:[%s1 + $0x1d0] sm:$0xf]
      %v707 = vld [vmem:[%s1 + $0x1d4] sm:$0xf]
      %v708 = vld [vmem:[%s1 + $0x1d8] sm:$0xf]
      %v709 = vld [vmem:[%s1 + $0x1dc] sm:$0xf]
      %v710 = vld [vmem:[%s1 + $0x1e0] sm:$0xf]
      %v711 = vld [vmem:[%s1 + $0x1e4] sm:$0xf]
      %v712 = vld [vmem:[%s1 + $0x1e8] sm:$0xf]
      %v713 = vld [vmem:[%s1 + $0x1ec] sm:$0xf]
      %v714 = vld [vmem:[%s1 + $0x1f0] sm:$0xf]
      %v715 = vld [vmem:[%s1 + $0x1f4] sm:$0xf]
      %v716 = vld [vmem:[%s1 + $0x1f8] sm:$0xf]
      %v717 = vld [vmem:[%s1 + $0x1fc] sm:$0xf]
      %v718 = vld [vmem:[%s1 + $0x200] sm:$0xf]
      %v719 = vld [vmem:[%s1 + $0x204] sm:$0xf]
      %v720 = vld [vmem:[%s1 + $0x208] sm:$0xf]
      %v721 = vld [vmem:[%s1 + $0x20c] sm:$0xf]
      %v722 = vld [vmem:[%s1 + $0x210] sm:$0xf]
      %v723 = vld [vmem:[%s1 + $0x214] sm:$0xf]
      %v724 = vld [vmem:[%s1 + $0x218] sm:$0xf]
      %v725 = vld [vmem:[%s1 + $0x21c] sm:$0xf]
      %v726 = vld [vmem:[%s1 + $0x220] sm:$0xf]
      %v727 = vld [vmem:[%s1 + $0x224] sm:$0xf]
      %v728 = vld [vmem:[%s1 + $0x228] sm:$0xf]
      %v729 = vld [vmem:[%s1 + $0x22c] sm:$0xf]
      %v730 = vld [vmem:[%s1 + $0x230] sm:$0xf]
      %v731 = vld [vmem:[%s1 + $0x234] sm:$0xf]
      %v732 = vld [vmem:[%s1 + $0x238] sm:$0xf]
      %v733 = vld [vmem:[%s1 + $0x23c] sm:$0xf]
      %v878 = vunpack.c.l.b16 %v590
      %v879 = vunpack.c.l.b16 %v591
      %v880 = vunpack.c.l.b16 %v592
      %v881 = vunpack.c.l.b16 %v593
      %v882 = vunpack.c.l.b16 %v594
      %v883 = vunpack.c.l.b16 %v595
      %v884 = vunpack.c.l.b16 %v596
      %v885 = vunpack.c.l.b16 %v597
      %v886 = vunpack.c.l.b16 %v598
      %v887 = vunpack.c.l.b16 %v599
      %v888 = vunpack.c.l.b16 %v600
      %v889 = vunpack.c.l.b16 %v601
      %v890 = vunpack.c.l.b16 %v602
      %v891 = vunpack.c.l.b16 %v603
      %v892 = vunpack.c.l.b16 %v604
      %v893 = vunpack.c.l.b16 %v605
      %v894 = vunpack.c.l.b16 %v606
      %v895 = vunpack.c.l.b16 %v607
      %v896 = vunpack.c.l.b16 %v608
      %v897 = vunpack.c.l.b16 %v609
      %v898 = vunpack.c.l.b16 %v610
      %v899 = vunpack.c.l.b16 %v611
      %v900 = vunpack.c.l.b16 %v612
      %v901 = vunpack.c.l.b16 %v613
      %v902 = vunpack.c.l.b16 %v614
      %v903 = vunpack.c.l.b16 %v615
      %v904 = vunpack.c.l.b16 %v616
      %v905 = vunpack.c.l.b16 %v617
      %v906 = vunpack.c.l.b16 %v618
      %v907 = vunpack.c.l.b16 %v619
      %v908 = vunpack.c.l.b16 %v620
      %v909 = vunpack.c.l.b16 %v621
      %v910 = vunpack.c.l.b16 %v622
      %v911 = vunpack.c.l.b16 %v623
      %v912 = vunpack.c.l.b16 %v624
      %v913 = vunpack.c.l.b16 %v625
      %v914 = vunpack.c.l.b16 %v626
      %v915 = vunpack.c.l.b16 %v627
      %v916 = vunpack.c.l.b16 %v628
      %v917 = vunpack.c.l.b16 %v629
      %v918 = vunpack.c.l.b16 %v630
      %v919 = vunpack.c.l.b16 %v631
      %v920 = vunpack.c.l.b16 %v632
      %v921 = vunpack.c.l.b16 %v633
      %v922 = vunpack.c.l.b16 %v634
      %v923 = vunpack.c.l.b16 %v635
      %v924 = vunpack.c.l.b16 %v636
      %v925 = vunpack.c.l.b16 %v637
      %v926 = vunpack.c.l.b16 %v638
      %v927 = vunpack.c.l.b16 %v639
      %v928 = vunpack.c.l.b16 %v640
      %v929 = vunpack.c.l.b16 %v641
      %v930 = vunpack.c.l.b16 %v642
      %v931 = vunpack.c.l.b16 %v643
      %v932 = vunpack.c.l.b16 %v644
      %v933 = vunpack.c.l.b16 %v645
      %v934 = vunpack.c.l.b16 %v646
      %v935 = vunpack.c.l.b16 %v647
      %v936 = vunpack.c.l.b16 %v648
      %v937 = vunpack.c.l.b16 %v649
      %v938 = vunpack.c.l.b16 %v650
      %v939 = vunpack.c.l.b16 %v651
      %v940 = vunpack.c.l.b16 %v652
      %v941 = vunpack.c.l.b16 %v653
      %v942 = vunpack.c.l.b16 %v654
      %v943 = vunpack.c.l.b16 %v655
      %v944 = vunpack.c.l.b16 %v656
      %v945 = vunpack.c.l.b16 %v657
      %v946 = vunpack.c.l.b16 %v658
      %v947 = vunpack.c.l.b16 %v659
      %v948 = vunpack.c.l.b16 %v660
      %v949 = vunpack.c.l.b16 %v661
      %v950 = vunpack.c.l.b16 %v662
      %v951 = vunpack.c.l.b16 %v663
      %v952 = vunpack.c.l.b16 %v664
      %v953 = vunpack.c.l.b16 %v665
      %v954 = vunpack.c.l.b16 %v666
      %v955 = vunpack.c.l.b16 %v667
      %v956 = vunpack.c.l.b16 %v668
      %v957 = vunpack.c.l.b16 %v669
      %v958 = vunpack.c.l.b16 %v670
      %v959 = vunpack.c.l.b16 %v671
      %v960 = vunpack.c.l.b16 %v672
      %v961 = vunpack.c.l.b16 %v673
      %v962 = vunpack.c.l.b16 %v674
      %v963 = vunpack.c.l.b16 %v675
      %v964 = vunpack.c.l.b16 %v676
      %v965 = vunpack.c.l.b16 %v677
      %v966 = vunpack.c.l.b16 %v678
      %v967 = vunpack.c.l.b16 %v679
      %v968 = vunpack.c.l.b16 %v680
      %v969 = vunpack.c.l.b16 %v681
      %v970 = vunpack.c.l.b16 %v682
      %v971 = vunpack.c.l.b16 %v683
      %v972 = vunpack.c.l.b16 %v684
      %v973 = vunpack.c.l.b16 %v685
      %v974 = vunpack.c.l.b16 %v686
      %v975 = vunpack.c.l.b16 %v687
      %v976 = vunpack.c.l.b16 %v688
      %v977 = vunpack.c.l.b16 %v689
      %v978 = vunpack.c.l.b16 %v690
      %v979 = vunpack.c.l.b16 %v691
      %v980 = vunpack.c.l.b16 %v692
      %v981 = vunpack.c.l.b16 %v693
      %v982 = vunpack.c.l.b16 %v694
      %v983 = vunpack.c.l.b16 %v695
      %v984 = vunpack.c.l.b16 %v696
      %v985 = vunpack.c.l.b16 %v697
      %v986 = vunpack.c.l.b16 %v698
      %v987 = vunpack.c.l.b16 %v699
      %v988 = vunpack.c.l.b16 %v700
      %v989 = vunpack.c.l.b16 %v701
      %v990 = vunpack.c.l.b16 %v702
      %v991 = vunpack.c.l.b16 %v703
      %v992 = vunpack.c.l.b16 %v704
      %v993 = vunpack.c.l.b16 %v705
      %v994 = vunpack.c.l.b16 %v706
      %v995 = vunpack.c.l.b16 %v707
      %v996 = vunpack.c.l.b16 %v708
      %v997 = vunpack.c.l.b16 %v709
      %v998 = vunpack.c.l.b16 %v710
      %v999 = vunpack.c.l.b16 %v711
      %v1000 = vunpack.c.l.b16 %v712
      %v1001 = vunpack.c.l.b16 %v713
      %v1002 = vunpack.c.l.b16 %v714
      %v1003 = vunpack.c.l.b16 %v715
      %v1004 = vunpack.c.l.b16 %v716
      %v1005 = vunpack.c.l.b16 %v717
      %v1006 = vunpack.c.l.b16 %v718
      %v1007 = vunpack.c.l.b16 %v719
      %v1008 = vunpack.c.l.b16 %v720
      %v1009 = vunpack.c.l.b16 %v721
      %v1010 = vunpack.c.l.b16 %v722
      %v1011 = vunpack.c.l.b16 %v723
      %v1012 = vunpack.c.l.b16 %v724
      %v1013 = vunpack.c.l.b16 %v725
      %v1014 = vunpack.c.l.b16 %v726
      %v1015 = vunpack.c.l.b16 %v727
      %v1016 = vunpack.c.l.b16 %v728
      %v1017 = vunpack.c.l.b16 %v729
      %v1018 = vunpack.c.l.b16 %v730
      %v1019 = vunpack.c.l.b16 %v731
      %v1020 = vunpack.c.l.b16 %v732
      %v1021 = vunpack.c.l.b16 %v733
      %v1022 = vpack.c.b16 %v879, %v878
      %v1023 = vpack.c.b16 %v881, %v880
      %v1024 = vpack.c.b16 %v883, %v882
      %v1025 = vpack.c.b16 %v885, %v884
      %v1026 = vpack.c.b16 %v887, %v886
      %v1027 = vpack.c.b16 %v889, %v888
      %v1028 = vpack.c.b16 %v891, %v890
      %v1029 = vpack.c.b16 %v893, %v892
      %v1030 = vpack.c.b16 %v895, %v894
      %v1031 = vpack.c.b16 %v897, %v896
      %v1032 = vpack.c.b16 %v899, %v898
      %v1033 = vpack.c.b16 %v901, %v900
      %v1034 = vpack.c.b16 %v903, %v902
      %v1035 = vpack.c.b16 %v905, %v904
      %v1036 = vpack.c.b16 %v907, %v906
      %v1037 = vpack.c.b16 %v909, %v908
      %v1038 = vpack.c.b16 %v911, %v910
      %v1039 = vpack.c.b16 %v913, %v912
      %v1040 = vpack.c.b16 %v915, %v914
      %v1041 = vpack.c.b16 %v917, %v916
      %v1042 = vpack.c.b16 %v919, %v918
      %v1043 = vpack.c.b16 %v921, %v920
      %v1044 = vpack.c.b16 %v923, %v922
      %v1045 = vpack.c.b16 %v925, %v924
      %v1046 = vpack.c.b16 %v927, %v926
      %v1047 = vpack.c.b16 %v929, %v928
      %v1048 = vpack.c.b16 %v931, %v930
      %v1049 = vpack.c.b16 %v933, %v932
      %v1050 = vpack.c.b16 %v935, %v934
      %v1051 = vpack.c.b16 %v937, %v936
      %v1052 = vpack.c.b16 %v939, %v938
      %v1053 = vpack.c.b16 %v941, %v940
      %v1054 = vpack.c.b16 %v943, %v942
      %v1055 = vpack.c.b16 %v945, %v944
      %v1056 = vpack.c.b16 %v947, %v946
      %v1057 = vpack.c.b16 %v949, %v948
      %v1058 = vpack.c.b16 %v951, %v950
      %v1059 = vpack.c.b16 %v953, %v952
      %v1060 = vpack.c.b16 %v955, %v954
      %v1061 = vpack.c.b16 %v957, %v956
      %v1062 = vpack.c.b16 %v959, %v958
      %v1063 = vpack.c.b16 %v961, %v960
      %v1064 = vpack.c.b16 %v963, %v962
      %v1065 = vpack.c.b16 %v965, %v964
      %v1066 = vpack.c.b16 %v967, %v966
      %v1067 = vpack.c.b16 %v969, %v968
      %v1068 = vpack.c.b16 %v971, %v970
      %v1069 = vpack.c.b16 %v973, %v972
      %v1070 = vpack.c.b16 %v975, %v974
      %v1071 = vpack.c.b16 %v977, %v976
      %v1072 = vpack.c.b16 %v979, %v978
      %v1073 = vpack.c.b16 %v981, %v980
      %v1074 = vpack.c.b16 %v983, %v982
      %v1075 = vpack.c.b16 %v985, %v984
      %v1076 = vpack.c.b16 %v987, %v986
      %v1077 = vpack.c.b16 %v989, %v988
      %v1078 = vpack.c.b16 %v991, %v990
      %v1079 = vpack.c.b16 %v993, %v992
      %v1080 = vpack.c.b16 %v995, %v994
      %v1081 = vpack.c.b16 %v997, %v996
      %v1082 = vpack.c.b16 %v999, %v998
      %v1083 = vpack.c.b16 %v1001, %v1000
      %v1084 = vpack.c.b16 %v1003, %v1002
      %v1085 = vpack.c.b16 %v1005, %v1004
      %v1086 = vpack.c.b16 %v1007, %v1006
      %v1087 = vpack.c.b16 %v1009, %v1008
      %v1088 = vpack.c.b16 %v1011, %v1010
      %v1089 = vpack.c.b16 %v1013, %v1012
      %v1090 = vpack.c.b16 %v1015, %v1014
      %v1091 = vpack.c.b16 %v1017, %v1016
      %v1092 = vpack.c.b16 %v1019, %v1018
      %v1093 = vpack.c.b16 %v1021, %v1020
      %1166 = vmatprep.subr.bf16.mxu0 0
      %1167 = vmatpush1.bf16.msra.mxu0 %v1022
      %1168 = vmatprep.subr.bf16.mxu0 0
      %1169 = vmatpush1.bf16.msra.mxu0 %v1023
      %1170 = vmatprep.subr.bf16.mxu0 0
      %1171 = vmatpush1.bf16.msra.mxu0 %v1024
      %1172 = vmatprep.subr.bf16.mxu0 0
      %1173 = vmatpush1.bf16.msra.mxu0 %v1025
      %1174 = vmatprep.subr.bf16.mxu0 0
      %1175 = vmatpush1.bf16.msra.mxu0 %v1026
      %1176 = vmatprep.subr.bf16.mxu0 0
      %1177 = vmatpush1.bf16.msra.mxu0 %v1027
      %1178 = vmatprep.subr.bf16.mxu0 0
      %1179 = vmatpush1.bf16.msra.mxu0 %v1028
      %1180 = vmatprep.subr.bf16.mxu0 0
      %1181 = vmatpush1.bf16.msra.mxu0 %v1029
      %1182 = vmatprep.subr.bf16.mxu0 0
      %1183 = vmatpush1.bf16.msra.mxu0 %v1030
      %1184 = vmatprep.subr.bf16.mxu0 0
      %1185 = vmatpush1.bf16.msra.mxu0 %v1031
      %1186 = vmatprep.subr.bf16.mxu0 0
      %1187 = vmatpush1.bf16.msra.mxu0 %v1032
      %1188 = vmatprep.subr.bf16.mxu0 0
      %1189 = vmatpush1.bf16.msra.mxu0 %v1033
      %1190 = vmatprep.subr.bf16.mxu0 0
      %1191 = vmatpush1.bf16.msra.mxu0 %v1034
      %1192 = vmatprep.subr.bf16.mxu0 0
      %1193 = vmatpush1.bf16.msra.mxu0 %v1035
      %1194 = vmatprep.subr.bf16.mxu0 0
      %1195 = vmatpush1.bf16.msra.mxu0 %v1036
      %1196 = vmatprep.subr.bf16.mxu0 0
      %1197 = vmatpush1.bf16.msra.mxu0 %v1037
      %1198 = vmatprep.mubr.bf16.mxu0 %v519
      %1199 = vmatmul.mubr.bf16.gmra.mrb[0].mxu0 %v518
      %v1200 = vpop.f32.mrb[0].mxu0
      %v1201 = vadd.f32 0.0, %v1200
      %v1202 = vpop.f32.mrb[0].mxu0
      %v1203 = vpop.f32.mrb[0].mxu0
      %v1204 = vadd.f32 0.0, %v1203
      %v1205 = vpop.f32.mrb[0].mxu0
      %1206 = vmatprep.mubr.bf16.mxu0 %v528
      %1207 = vmatmul.mubr.bf16.gmra.mrb[0].mxu0 %v527
      %v1208 = vpop.f32.mrb[0].mxu0
      %v1209 = vadd.f32 0.0, %v1208
      %v1210 = vpop.f32.mrb[0].mxu0
      %v1211 = vpop.f32.mrb[0].mxu0
      %v1212 = vadd.f32 0.0, %v1211
      %v1213 = vpop.f32.mrb[0].mxu0
      %1214 = vmatprep.mubr.bf16.mxu0 %v537
      %1215 = vmatmul.mubr.bf16.gmra.mrb[0].mxu0 %v536
      %v1216 = vpop.f32.mrb[0].mxu0
      %v1217 = vadd.f32 0.0, %v1216
      %v1218 = vpop.f32.mrb[0].mxu0
      %v1219 = vpop.f32.mrb[0].mxu0
      %v1220 = vadd.f32 0.0, %v1219
      %v1221 = vpop.f32.mrb[0].mxu0
      %1222 = vmatprep.mubr.bf16.mxu0 %v546
      %1223 = vmatmul.mubr.bf16.gmra.mrb[0].mxu0 %v545
      %v1224 = vpop.f32.mrb[0].mxu0
      %v1225 = vadd.f32 0.0, %v1224
      %v1226 = vpop.f32.mrb[0].mxu0
      %v1227 = vpop.f32.mrb[0].mxu0
      %v1228 = vadd.f32 0.0, %v1227
      %v1229 = vpop.f32.mrb[0].mxu0
      %1230 = vmatprep.mubr.bf16.mxu0 %v555
      %1231 = vmatmul.mubr.bf16.gmra.mrb[0].mxu0 %v554
      %v1232 = vpop.f32.mrb[0].mxu0
      %v1233 = vadd.f32 0.0, %v1232
      %v1234 = vpop.f32.mrb[0].mxu0
      %v1235 = vpop.f32.mrb[0].mxu0
      %v1236 = vadd.f32 0.0, %v1235
      %v1237 = vpop.f32.mrb[0].mxu0
      %1238 = vmatprep.mubr.bf16.mxu0 %v564
      %1239 = vmatmul.mubr.bf16.gmra.mrb[0].mxu0 %v563
      %v1240 = vpop.f32.mrb[0].mxu0
      %v1241 = vadd.f32 0.0, %v1240
      %v1242 = vpop.f32.mrb[0].mxu0
      %v1243 = vpop.f32.mrb[0].mxu0
      %v1244 = vadd.f32 0.0, %v1243
      %v1245 = vpop.f32.mrb[0].mxu0
      %1246 = vmatprep.mubr.bf16.mxu0 %v573
      %1247 = vmatmul.mubr.bf16.gmra.mrb[0].mxu0 %v572
      %v1248 = vpop.f32.mrb[0].mxu0
      %v1249 = vadd.f32 0.0, %v1248
      %v1250 = vpop.f32.mrb[0].mxu0
      %v1251 = vpop.f32.mrb[0].mxu0
      %v1252 = vadd.f32 0.0, %v1251
      %v1253 = vpop.f32.mrb[0].mxu0
      %1254 = vmatprep.mubr.bf16.mxu0 %v582
      %1255 = vmatmul.mubr.bf16.gmra.mrb[0].mxu0 %v581
      %v1256 = vpop.f32.mrb[0].mxu0
      %v1257 = vadd.f32 0.0, %v1256
      %v1258 = vpop.f32.mrb[0].mxu0
      %v1259 = vpop.f32.mrb[0].mxu0
      %v1260 = vadd.f32 0.0, %v1259
      %v1261 = vpop.f32.mrb[0].mxu0
      %1262 = vdwg.mxu0
      %1263 = vmatprep.subr.bf16.mxu0 0
      %1264 = vmatpush1.bf16.msra.mxu0 %v1038
      %1265 = vmatprep.subr.bf16.mxu0 0
      %1266 = vmatpush1.bf16.msra.mxu0 %v1039
      %1267 = vmatprep.subr.bf16.mxu0 0
      %1268 = vmatpush1.bf16.msra.mxu0 %v1040
      %1269 = vmatprep.subr.bf16.mxu0 0
      %1270 = vmatpush1.bf16.msra.mxu0 %v1041
      %1271 = vmatprep.subr.bf16.mxu0 0
      %1272 = vmatpush1.bf16.msra.mxu0 %v1042
      %1273 = vmatprep.subr.bf16.mxu0 0
      %1274 = vmatpush1.bf16.msra.mxu0 %v1043
      %1275 = vmatprep.subr.bf16.mxu0 0
      %1276 = vmatpush1.bf16.msra.mxu0 %v1044
      %1277 = vmatprep.subr.bf16.mxu0 0
      %1278 = vmatpush1.bf16.msra.mxu0 %v1045
      %1279 = vmatprep.subr.bf16.mxu0 0
      %1280 = vmatpush1.bf16.msra.mxu0 %v1046
      %1281 = vmatprep.subr.bf16.mxu0 0
      %1282 = vmatpush1.bf16.msra.mxu0 %v1047
      %1283 = vmatprep.subr.bf16.mxu0 0
      %1284 = vmatpush1.bf16.msra.mxu0 %v1048
      %1285 = vmatprep.subr.bf16.mxu0 0
      %1286 = vmatpush1.bf16.msra.mxu0 %v1049
      %1287 = vmatprep.subr.bf16.mxu0 0
      %1288 = vmatpush1.bf16.msra.mxu0 %v1050
      %1289 = vmatprep.subr.bf16.mxu0 0
      %1290 = vmatpush1.bf16.msra.mxu0 %v1051
      %1291 = vmatprep.subr.bf16.mxu0 0
      %1292 = vmatpush1.bf16.msra.mxu0 %v1052
      %1293 = vmatprep.subr.bf16.mxu0 0
      %1294 = vmatpush1.bf16.msra.mxu0 %v1053
      %1295 = vmatprep.mubr.bf16.mxu0 %v521
      %1296 = vmatmul.mubr.bf16.gmra.mrb[0].mxu0 %v520
      %v1297 = vpop.f32.mrb[0].mxu0
      %v1298 = vadd.f32 %v1201, %v1297
      %v1299 = vpop.f32.mrb[0].mxu0
      %v1300 = vpop.f32.mrb[0].mxu0
      %v1301 = vadd.f32 %v1204, %v1300
      %v1302 = vpop.f32.mrb[0].mxu0
      %1303 = vmatprep.mubr.bf16.mxu0 %v530
      %1304 = vmatmul.mubr.bf16.gmra.mrb[0].mxu0 %v529
      %v1305 = vpop.f32.mrb[0].mxu0
      %v1306 = vadd.f32 %v1209, %v1305
      %v1307 = vpop.f32.mrb[0].mxu0
      %v1308 = vpop.f32.mrb[0].mxu0
      %v1309 = vadd.f32 %v1212, %v1308
      %v1310 = vpop.f32.mrb[0].mxu0
      %1311 = vmatprep.mubr.bf16.mxu0 %v539
      %1312 = vmatmul.mubr.bf16.gmra.mrb[0].mxu0 %v538
      %v1313 = vpop.f32.mrb[0].mxu0
      %v1314 = vadd.f32 %v1217, %v1313
      %v1315 = vpop.f32.mrb[0].mxu0
      %v1316 = vpop.f32.mrb[0].mxu0
      %v1317 = vadd.f32 %v1220, %v1316
      %v1318 = vpop.f32.mrb[0].mxu0
      %1319 = vmatprep.mubr.bf16.mxu0 %v548
      %1320 = vmatmul.mubr.bf16.gmra.mrb[0].mxu0 %v547
      %v1321 = vpop.f32.mrb[0].mxu0
      %v1322 = vadd.f32 %v1225, %v1321
      %v1323 = vpop.f32.mrb[0].mxu0
      %v1324 = vpop.f32.mrb[0].mxu0
      %v1325 = vadd.f32 %v1228, %v1324
      %v1326 = vpop.f32.mrb[0].mxu0
      %1327 = vmatprep.mubr.bf16.mxu0 %v557
      %1328 = vmatmul.mubr.bf16.gmra.mrb[0].mxu0 %v556
      %v1329 = vpop.f32.mrb[0].mxu0
      %v1330 = vadd.f32 %v1233, %v1329
      %v1331 = vpop.f32.mrb[0].mxu0
      %v1332 = vpop.f32.mrb[0].mxu0
      %v1333 = vadd.f32 %v1236, %v1332
      %v1334 = vpop.f32.mrb[0].mxu0
      %1335 = vmatprep.mubr.bf16.mxu0 %v566
      %1336 = vmatmul.mubr.bf16.gmra.mrb[0].mxu0 %v565
      %v1337 = vpop.f32.mrb[0].mxu0
      %v1338 = vadd.f32 %v1241, %v1337
      %v1339 = vpop.f32.mrb[0].mxu0
      %v1340 = vpop.f32.mrb[0].mxu0
      %v1341 = vadd.f32 %v1244, %v1340
      %v1342 = vpop.f32.mrb[0].mxu0
      %1343 = vmatprep.mubr.bf16.mxu0 %v575
      %1344 = vmatmul.mubr.bf16.gmra.mrb[0].mxu0 %v574
      %v1345 = vpop.f32.mrb[0].mxu0
      %v1346 = vadd.f32 %v1249, %v1345
      %v1347 = vpop.f32.mrb[0].mxu0
      %v1348 = vpop.f32.mrb[0].mxu0
      %v1349 = vadd.f32 %v1252, %v1348
      %v1350 = vpop.f32.mrb[0].mxu0
      %1351 = vmatprep.mubr.bf16.mxu0 %v584
      %1352 = vmatmul.mubr.bf16.gmra.mrb[0].mxu0 %v583
      %v1353 = vpop.f32.mrb[0].mxu0
      %v1354 = vadd.f32 %v1257, %v1353
      %v1355 = vpop.f32.mrb[0].mxu0
      %v1356 = vpop.f32.mrb[0].mxu0
      %v1357 = vadd.f32 %v1260, %v1356
      %v1358 = vpop.f32.mrb[0].mxu0
      %1359 = vdwg.mxu0
      %1360 = vmatprep.subr.bf16.mxu0 0
      %1361 = vmatpush1.bf16.msra.mxu0 %v1054
      %1362 = vmatprep.subr.bf16.mxu0 0
      %1363 = vmatpush1.bf16.msra.mxu0 %v1055
      %1364 = vmatprep.subr.bf16.mxu0 0
      %1365 = vmatpush1.bf16.msra.mxu0 %v1056
      %1366 = vmatprep.subr.bf16.mxu0 0
      %1367 = vmatpush1.bf16.msra.mxu0 %v1057
      %1368 = vmatprep.subr.bf16.mxu0 0
      %1369 = vmatpush1.bf16.msra.mxu0 %v1058
      %1370 = vmatprep.subr.bf16.mxu0 0
      %1371 = vmatpush1.bf16.msra.mxu0 %v1059
      %1372 = vmatprep.subr.bf16.mxu0 0
      %1373 = vmatpush1.bf16.msra.mxu0 %v1060
      %1374 = vmatprep.subr.bf16.mxu0 0
      %1375 = vmatpush1.bf16.msra.mxu0 %v1061
      %1376 = vmatprep.subr.bf16.mxu0 0
      %1377 = vmatpush1.bf16.msra.mxu0 %v1062
      %1378 = vmatprep.subr.bf16.mxu0 0
      %1379 = vmatpush1.bf16.msra.mxu0 %v1063
      %1380 = vmatprep.subr.bf16.mxu0 0
      %1381 = vmatpush1.bf16.msra.mxu0 %v1064
      %1382 = vmatprep.subr.bf16.mxu0 0
      %1383 = vmatpush1.bf16.msra.mxu0 %v1065
      %1384 = vmatprep.subr.bf16.mxu0 0
      %1385 = vmatpush1.bf16.msra.mxu0 %v1066
      %1386 = vmatprep.subr.bf16.mxu0 0
      %1387 = vmatpush1.bf16.msra.mxu0 %v1067
      %1388 = vmatprep.subr.bf16.mxu0 0
      %1389 = vmatpush1.bf16.msra.mxu0 %v1068
      %1390 = vmatprep.subr.bf16.mxu0 0
      %1391 = vmatpush1.bf16.msra.mxu0 %v1069
      %1392 = vmatprep.mubr.bf16.mxu0 %v523
      %1393 = vmatmul.mubr.bf16.gmra.mrb[0].mxu0 %v522
      %v1394 = vpop.f32.mrb[0].mxu0
      %v1395 = vadd.f32 %v1298, %v1394
      %v1396 = vpop.f32.mrb[0].mxu0
      %v1397 = vpop.f32.mrb[0].mxu0
      %v1398 = vadd.f32 %v1301, %v1397
      %v1399 = vpop.f32.mrb[0].mxu0
      %1400 = vmatprep.mubr.bf16.mxu0 %v532
      %1401 = vmatmul.mubr.bf16.gmra.mrb[0].mxu0 %v531
      %v1402 = vpop.f32.mrb[0].mxu0
      %v1403 = vadd.f32 %v1306, %v1402
      %v1404 = vpop.f32.mrb[0].mxu0
      %v1405 = vpop.f32.mrb[0].mxu0
      %v1406 = vadd.f32 %v1309, %v1405
      %v1407 = vpop.f32.mrb[0].mxu0
      %1408 = vmatprep.mubr.bf16.mxu0 %v541
      %1409 = vmatmul.mubr.bf16.gmra.mrb[0].mxu0 %v540
      %v1410 = vpop.f32.mrb[0].mxu0
      %v1411 = vadd.f32 %v1314, %v1410
      %v1412 = vpop.f32.mrb[0].mxu0
      %v1413 = vpop.f32.mrb[0].mxu0
      %v1414 = vadd.f32 %v1317, %v1413
      %v1415 = vpop.f32.mrb[0].mxu0
      %1416 = vmatprep.mubr.bf16.mxu0 %v550
      %1417 = vmatmul.mubr.bf16.gmra.mrb[0].mxu0 %v549
      %v1418 = vpop.f32.mrb[0].mxu0
      %v1419 = vadd.f32 %v1322, %v1418
      %v1420 = vpop.f32.mrb[0].mxu0
      %v1421 = vpop.f32.mrb[0].mxu0
      %v1422 = vadd.f32 %v1325, %v1421
      %v1423 = vpop.f32.mrb[0].mxu0
      %1424 = vmatprep.mubr.bf16.mxu0 %v559
      %1425 = vmatmul.mubr.bf16.gmra.mrb[0].mxu0 %v558
      %v1426 = vpop.f32.mrb[0].mxu0
      %v1427 = vadd.f32 %v1330, %v1426
      %v1428 = vpop.f32.mrb[0].mxu0
      %v1429 = vpop.f32.mrb[0].mxu0
      %v1430 = vadd.f32 %v1333, %v1429
      %v1431 = vpop.f32.mrb[0].mxu0
      %1432 = vmatprep.mubr.bf16.mxu0 %v568
      %1433 = vmatmul.mubr.bf16.gmra.mrb[0].mxu0 %v567
      %v1434 = vpop.f32.mrb[0].mxu0
      %v1435 = vadd.f32 %v1338, %v1434
      %v1436 = vpop.f32.mrb[0].mxu0
      %v1437 = vpop.f32.mrb[0].mxu0
      %v1438 = vadd.f32 %v1341, %v1437
      %v1439 = vpop.f32.mrb[0].mxu0
      %1440 = vmatprep.mubr.bf16.mxu0 %v577
      %1441 = vmatmul.mubr.bf16.gmra.mrb[0].mxu0 %v576
      %v1442 = vpop.f32.mrb[0].mxu0
      %v1443 = vadd.f32 %v1346, %v1442
      %v1444 = vpop.f32.mrb[0].mxu0
      %v1445 = vpop.f32.mrb[0].mxu0
      %v1446 = vadd.f32 %v1349, %v1445
      %v1447 = vpop.f32.mrb[0].mxu0
      %1448 = vmatprep.mubr.bf16.mxu0 %v586
      %1449 = vmatmul.mubr.bf16.gmra.mrb[0].mxu0 %v585
      %v1450 = vpop.f32.mrb[0].mxu0
      %v1451 = vadd.f32 %v1354, %v1450
      %v1452 = vpop.f32.mrb[0].mxu0
      %v1453 = vpop.f32.mrb[0].mxu0
      %v1454 = vadd.f32 %v1357, %v1453
      %v1455 = vpop.f32.mrb[0].mxu0
      %1456 = vdwg.mxu0
      %1457 = vmatprep.subr.bf16.mxu0 0
      %1458 = vmatpush1.bf16.msra.mxu0 %v1070
      %1459 = vmatprep.subr.bf16.mxu0 0
      %1460 = vmatpush1.bf16.msra.mxu0 %v1071
      %1461 = vmatprep.subr.bf16.mxu0 0
      %1462 = vmatpush1.bf16.msra.mxu0 %v1072
      %1463 = vmatprep.subr.bf16.mxu0 0
      %1464 = vmatpush1.bf16.msra.mxu0 %v1073
      %1465 = vmatprep.subr.bf16.mxu0 0
      %1466 = vmatpush1.bf16.msra.mxu0 %v1074
      %1467 = vmatprep.subr.bf16.mxu0 0
      %1468 = vmatpush1.bf16.msra.mxu0 %v1075
      %1469 = vmatprep.subr.bf16.mxu0 0
      %1470 = vmatpush1.bf16.msra.mxu0 %v1076
      %1471 = vmatprep.subr.bf16.mxu0 0
      %1472 = vmatpush1.bf16.msra.mxu0 %v1077
      %1473 = vmatprep.subr.bf16.mxu0 0
      %1474 = vmatpush1.bf16.msra.mxu0 %v1078
      %1475 = vmatprep.subr.bf16.mxu0 0
      %1476 = vmatpush1.bf16.msra.mxu0 %v1079
      %1477 = vmatprep.subr.bf16.mxu0 0
      %1478 = vmatpush1.bf16.msra.mxu0 %v1080
      %1479 = vmatprep.subr.bf16.mxu0 0
      %1480 = vmatpush1.bf16.msra.mxu0 %v1081
      %1481 = vmatprep.subr.bf16.mxu0 0
      %1482 = vmatpush1.bf16.msra.mxu0 %v1082
      %1483 = vmatprep.subr.bf16.mxu0 0
      %1484 = vmatpush1.bf16.msra.mxu0 %v1083
      %1485 = vmatprep.subr.bf16.mxu0 0
      %1486 = vmatpush1.bf16.msra.mxu0 %v1084
      %1487 = vmatprep.subr.bf16.mxu0 0
      %1488 = vmatpush1.bf16.msra.mxu0 %v1085
      %1489 = vmatprep.mubr.bf16.mxu0 %v525
      %1490 = vmatmul.mubr.bf16.gmra.mrb[0].mxu0 %v524
      %v1491 = vpop.f32.mrb[0].mxu0
      %v1492 = vadd.f32 %v1395, %v1491
      %v1493 = vpop.f32.mrb[0].mxu0
      %v1494 = vpop.f32.mrb[0].mxu0
      %v1495 = vadd.f32 %v1398, %v1494
      %v1496 = vpop.f32.mrb[0].mxu0
      %1497 = vmatprep.mubr.bf16.mxu0 %v534
      %1498 = vmatmul.mubr.bf16.gmra.mrb[0].mxu0 %v533
      %v1499 = vpop.f32.mrb[0].mxu0
      %v1500 = vadd.f32 %v1403, %v1499
      %v1501 = vpop.f32.mrb[0].mxu0
      %v1502 = vpop.f32.mrb[0].mxu0
      %v1503 = vadd.f32 %v1406, %v1502
      %v1504 = vpop.f32.mrb[0].mxu0
      %1505 = vmatprep.mubr.bf16.mxu0 %v543
      %1506 = vmatmul.mubr.bf16.gmra.mrb[0].mxu0 %v542
      %v1507 = vpop.f32.mrb[0].mxu0
      %v1508 = vadd.f32 %v1411, %v1507
      %v1509 = vpop.f32.mrb[0].mxu0
      %v1510 = vpop.f32.mrb[0].mxu0
      %v1511 = vadd.f32 %v1414, %v1510
      %v1512 = vpop.f32.mrb[0].mxu0
      %1513 = vmatprep.mubr.bf16.mxu0 %v552
      %1514 = vmatmul.mubr.bf16.gmra.mrb[0].mxu0 %v551
      %v1515 = vpop.f32.mrb[0].mxu0
      %v1516 = vadd.f32 %v1419, %v1515
      %v1517 = vpop.f32.mrb[0].mxu0
      %v1518 = vpop.f32.mrb[0].mxu0
      %v1519 = vadd.f32 %v1422, %v1518
      %v1520 = vpop.f32.mrb[0].mxu0
      %1521 = vmatprep.mubr.bf16.mxu0 %v561
      %1522 = vmatmul.mubr.bf16.gmra.mrb[0].mxu0 %v560
      %v1523 = vpop.f32.mrb[0].mxu0
      %v1524 = vadd.f32 %v1427, %v1523
      %v1525 = vpop.f32.mrb[0].mxu0
      %v1526 = vpop.f32.mrb[0].mxu0
      %v1527 = vadd.f32 %v1430, %v1526
      %v1528 = vpop.f32.mrb[0].mxu0
      %1529 = vmatprep.mubr.bf16.mxu0 %v570
      %1530 = vmatmul.mubr.bf16.gmra.mrb[0].mxu0 %v569
      %v1531 = vpop.f32.mrb[0].mxu0
      %v1532 = vadd.f32 %v1435, %v1531
      %v1533 = vpop.f32.mrb[0].mxu0
      %v1534 = vpop.f32.mrb[0].mxu0
      %v1535 = vadd.f32 %v1438, %v1534
      %v1536 = vpop.f32.mrb[0].mxu0
      %1537 = vmatprep.mubr.bf16.mxu0 %v579
      %1538 = vmatmul.mubr.bf16.gmra.mrb[0].mxu0 %v578
      %v1539 = vpop.f32.mrb[0].mxu0
      %v1540 = vadd.f32 %v1443, %v1539
      %v1541 = vpop.f32.mrb[0].mxu0
      %v1542 = vpop.f32.mrb[0].mxu0
      %v1543 = vadd.f32 %v1446, %v1542
      %v1544 = vpop.f32.mrb[0].mxu0
      %1545 = vmatprep.mubr.bf16.mxu0 %v588
      %1546 = vmatmul.mubr.bf16.gmra.mrb[0].mxu0 %v587
      %v1547 = vpop.f32.mrb[0].mxu0
      %v1548 = vadd.f32 %v1451, %v1547
      %v1549 = vpop.f32.mrb[0].mxu0
      %v1550 = vpop.f32.mrb[0].mxu0
      %v1551 = vadd.f32 %v1454, %v1550
      %v1552 = vpop.f32.mrb[0].mxu0
      %1553 = vdwg.mxu0
      %1554 = vmatprep.subr.bf16.mxu0 0
      %1555 = vmatpush1.bf16.msra.mxu0 %v1086
      %1556 = vmatprep.subr.bf16.mxu0 0
      %1557 = vmatpush1.bf16.msra.mxu0 %v1087
      %1558 = vmatprep.subr.bf16.mxu0 0
      %1559 = vmatpush1.bf16.msra.mxu0 %v1088
      %1560 = vmatprep.subr.bf16.mxu0 0
      %1561 = vmatpush1.bf16.msra.mxu0 %v1089
      %1562 = vmatprep.subr.bf16.mxu0 0
      %1563 = vmatpush1.bf16.msra.mxu0 %v1090
      %1564 = vmatprep.subr.bf16.mxu0 0
      %1565 = vmatpush1.bf16.msra.mxu0 %v1091
      %1566 = vmatprep.subr.bf16.mxu0 0
      %1567 = vmatpush1.bf16.msra.mxu0 %v1092
      %1568 = vmatprep.subr.bf16.mxu0 0
      %1569 = vmatpush1.bf16.msra.mxu0 %v1093
      %1570 = vmatprep.subr.bf16.mxu0 0
      %1571 = vmatpush1.bf16.msra.mxu0 0
      %1572 = vmatprep.subr.bf16.mxu0 0
      %1573 = vmatpush1.bf16.msra.mxu0 0
      %1574 = vmatprep.subr.bf16.mxu0 0
      %1575 = vmatpush1.bf16.msra.mxu0 0
      %1576 = vmatprep.subr.bf16.mxu0 0
      %1577 = vmatpush1.bf16.msra.mxu0 0
      %1578 = vmatprep.subr.bf16.mxu0 0
      %1579 = vmatpush1.bf16.msra.mxu0 0
      %1580 = vmatprep.subr.bf16.mxu0 0
      %1581 = vmatpush1.bf16.msra.mxu0 0
      %1582 = vmatprep.subr.bf16.mxu0 0
      %1583 = vmatpush1.bf16.msra.mxu0 0
      %1584 = vmatprep.subr.bf16.mxu0 0
      %1585 = vmatpush1.bf16.msra.mxu0 0
      %1586 = vmatprep.mubr.bf16.mxu0 0
      %1587 = vmatmul.mubr.bf16.gmra.mrb[0].mxu0 %v526
      %v1588 = vpop.f32.mrb[0].mxu0
      %v1589 = vadd.f32 %v1492, %v1588
      %v1590 = vpop.f32.mrb[0].mxu0
      %v1591 = vpop.f32.mrb[0].mxu0
      %v1592 = vadd.f32 %v1495, %v1591
      %v1593 = vpop.f32.mrb[0].mxu0
      %1594 = vmatprep.mubr.bf16.mxu0 0
      %1595 = vmatmul.mubr.bf16.gmra.mrb[0].mxu0 %v535
      %v1596 = vpop.f32.mrb[0].mxu0
      %v1597 = vadd.f32 %v1500, %v1596
      %v1598 = vpop.f32.mrb[0].mxu0
      %v1599 = vpop.f32.mrb[0].mxu0
      %v1600 = vadd.f32 %v1503, %v1599
      %v1601 = vpop.f32.mrb[0].mxu0
      %1602 = vmatprep.mubr.bf16.mxu0 0
      %1603 = vmatmul.mubr.bf16.gmra.mrb[0].mxu0 %v544
      %v1604 = vpop.f32.mrb[0].mxu0
      %v1605 = vadd.f32 %v1508, %v1604
      %v1606 = vpop.f32.mrb[0].mxu0
      %v1607 = vpop.f32.mrb[0].mxu0
      %v1608 = vadd.f32 %v1511, %v1607
      %v1609 = vpop.f32.mrb[0].mxu0
      %1610 = vmatprep.mubr.bf16.mxu0 0
      %1611 = vmatmul.mubr.bf16.gmra.mrb[0].mxu0 %v553
      %v1612 = vpop.f32.mrb[0].mxu0
      %v1613 = vadd.f32 %v1516, %v1612
      %v1614 = vpop.f32.mrb[0].mxu0
      %v1615 = vpop.f32.mrb[0].mxu0
      %v1616 = vadd.f32 %v1519, %v1615
      %v1617 = vpop.f32.mrb[0].mxu0
      %1618 = vmatprep.mubr.bf16.mxu0 0
      %1619 = vmatmul.mubr.bf16.gmra.mrb[0].mxu0 %v562
      %v1620 = vpop.f32.mrb[0].mxu0
      %v1621 = vadd.f32 %v1524, %v1620
      %v1622 = vpop.f32.mrb[0].mxu0
      %v1623 = vpop.f32.mrb[0].mxu0
      %v1624 = vadd.f32 %v1527, %v1623
      %v1625 = vpop.f32.mrb[0].mxu0
      %1626 = vmatprep.mubr.bf16.mxu0 0
      %1627 = vmatmul.mubr.bf16.gmra.mrb[0].mxu0 %v571
      %v1628 = vpop.f32.mrb[0].mxu0
      %v1629 = vadd.f32 %v1532, %v1628
      %v1630 = vpop.f32.mrb[0].mxu0
      %v1631 = vpop.f32.mrb[0].mxu0
      %v1632 = vadd.f32 %v1535, %v1631
      %v1633 = vpop.f32.mrb[0].mxu0
      %1634 = vmatprep.mubr.bf16.mxu0 0
      %1635 = vmatmul.mubr.bf16.gmra.mrb[0].mxu0 %v580
      %v1636 = vpop.f32.mrb[0].mxu0
      %v1637 = vadd.f32 %v1540, %v1636
      %v1638 = vpop.f32.mrb[0].mxu0
      %v1639 = vpop.f32.mrb[0].mxu0
      %v1640 = vadd.f32 %v1543, %v1639
      %v1641 = vpop.f32.mrb[0].mxu0
      %1642 = vmatprep.mubr.bf16.mxu0 0
      %1643 = vmatmul.mubr.bf16.gmra.mrb[0].mxu0 %v589
      %v1644 = vpop.f32.mrb[0].mxu0
      %v1645 = vadd.f32 %v1548, %v1644
      %v1646 = vpop.f32.mrb[0].mxu0
      %v1647 = vpop.f32.mrb[0].mxu0
      %v1648 = vadd.f32 %v1551, %v1647
      %v1649 = vpop.f32.mrb[0].mxu0
      %1650 = vdwg.mxu0
      %v1651 = vld [vmem:[%s6] sm:$0x3]
      %v1652 = vlaneseq
      %v1653 = vshrl.u32 %v1652, 7
      %v1654 = vsub.s32 0, %v1653
      %v1655 = vrot.slane %v1651, %v1654
      %v1656 = vmul.f32 %v1589, %v1655
      %v1657 = vmul.f32 %v1592, %v1655
      %v1658 = vmul.f32 %v1597, %v1655
      %v1659 = vmul.f32 %v1600, %v1655
      %v1660 = vmul.f32 %v1605, %v1655
      %v1661 = vmul.f32 %v1608, %v1655
      %v1662 = vmul.f32 %v1613, %v1655
      %v1663 = vmul.f32 %v1616, %v1655
      %v1664 = vmul.f32 %v1621, %v1655
      %v1665 = vmul.f32 %v1624, %v1655
      %v1666 = vmul.f32 %v1629, %v1655
      %v1667 = vmul.f32 %v1632, %v1655
      %v1668 = vmul.f32 %v1637, %v1655
      %v1669 = vmul.f32 %v1640, %v1655
      %v1670 = vmul.f32 %v1645, %v1655
      %v1671 = vmul.f32 %v1648, %v1655
      %v1672 = vlaneseq
      %v1673 = vshrl.u32 %v1672, 7
      %v1674 = vsub.s32 1, %v1673
      %v1675 = vrot.slane %v1651, %v1674
      %v1676 = vadd.f32 %v1656, %v1675
      %v1677 = vadd.f32 %v1657, %v1675
      %v1678 = vadd.f32 %v1658, %v1675
      %v1679 = vadd.f32 %v1659, %v1675
      %v1680 = vadd.f32 %v1660, %v1675
      %v1681 = vadd.f32 %v1661, %v1675
      %v1682 = vadd.f32 %v1662, %v1675
      %v1683 = vadd.f32 %v1663, %v1675
      %v1684 = vadd.f32 %v1664, %v1675
      %v1685 = vadd.f32 %v1665, %v1675
      %v1686 = vadd.f32 %v1666, %v1675
      %v1687 = vadd.f32 %v1667, %v1675
      %v1688 = vadd.f32 %v1668, %v1675
      %v1689 = vadd.f32 %v1669, %v1675
      %v1690 = vadd.f32 %v1670, %v1675
      %v1691 = vadd.f32 %v1671, %v1675
      %vm1692 = vcmp.gt.f32.partialorder %v1676, 0.0
      %vm1693 = vcmp.gt.f32.partialorder %v1677, 0.0
      %vm1694 = vcmp.gt.f32.partialorder %v1678, 0.0
      %vm1695 = vcmp.gt.f32.partialorder %v1679, 0.0
      %vm1696 = vcmp.gt.f32.partialorder %v1680, 0.0
      %vm1697 = vcmp.gt.f32.partialorder %v1681, 0.0
      %vm1698 = vcmp.gt.f32.partialorder %v1682, 0.0
      %vm1699 = vcmp.gt.f32.partialorder %v1683, 0.0
      %vm1700 = vcmp.gt.f32.partialorder %v1684, 0.0
      %vm1701 = vcmp.gt.f32.partialorder %v1685, 0.0
      %vm1702 = vcmp.gt.f32.partialorder %v1686, 0.0
      %vm1703 = vcmp.gt.f32.partialorder %v1687, 0.0
      %vm1704 = vcmp.gt.f32.partialorder %v1688, 0.0
      %vm1705 = vcmp.gt.f32.partialorder %v1689, 0.0
      %vm1706 = vcmp.gt.f32.partialorder %v1690, 0.0
      %vm1707 = vcmp.gt.f32.partialorder %v1691, 0.0
      %v1708 = vmul.f32 %v1676, 0.01
      %v1709 = vmul.f32 %v1677, 0.01
      %v1710 = vmul.f32 %v1678, 0.01
      %v1711 = vmul.f32 %v1679, 0.01
      %v1712 = vmul.f32 %v1680, 0.01
      %v1713 = vmul.f32 %v1681, 0.01
      %v1714 = vmul.f32 %v1682, 0.01
      %v1715 = vmul.f32 %v1683, 0.01
      %v1716 = vmul.f32 %v1684, 0.01
      %v1717 = vmul.f32 %v1685, 0.01
      %v1718 = vmul.f32 %v1686, 0.01
      %v1719 = vmul.f32 %v1687, 0.01
      %v1720 = vmul.f32 %v1688, 0.01
      %v1721 = vmul.f32 %v1689, 0.01
      %v1722 = vmul.f32 %v1690, 0.01
      %v1723 = vmul.f32 %v1691, 0.01
      %v1724 = vsel %vm1692, %v1676, %v1708
      %v1725 = vsel %vm1693, %v1677, %v1709
      %v1726 = vsel %vm1694, %v1678, %v1710
      %v1727 = vsel %vm1695, %v1679, %v1711
      %v1728 = vsel %vm1696, %v1680, %v1712
      %v1729 = vsel %vm1697, %v1681, %v1713
      %v1730 = vsel %vm1698, %v1682, %v1714
      %v1731 = vsel %vm1699, %v1683, %v1715
      %v1732 = vsel %vm1700, %v1684, %v1716
      %v1733 = vsel %vm1701, %v1685, %v1717
      %v1734 = vsel %vm1702, %v1686, %v1718
      %v1735 = vsel %vm1703, %v1687, %v1719
      %v1736 = vsel %vm1704, %v1688, %v1720
      %v1737 = vsel %vm1705, %v1689, %v1721
      %v1738 = vsel %vm1706, %v1690, %v1722
      %v1739 = vsel %vm1707, %v1691, %v1723
      %s1740 = scalar_lea.vmem [#allocation3], 24
      %1741 = vst [vmem:[%s1740 + $0x1] sm:$0xff] %v1724
      %1742 = vst [vmem:[%s1740 + $0x9] sm:$0xff] %v1725
      %1743 = vst [vmem:[%s1740 + $0x19] sm:$0xff] %v1726
      %1744 = vst [vmem:[%s1740 + $0x21] sm:$0xff] %v1727
      %1745 = vst [vmem:[%s1740 + $0x31] sm:$0xff] %v1728
      %1746 = vst [vmem:[%s1740 + $0x39] sm:$0xff] %v1729
      %1747 = vst [vmem:[%s1740 + $0x49] sm:$0xff] %v1730
      %1748 = vst [vmem:[%s1740 + $0x51] sm:$0xff] %v1731
      %1749 = vst [vmem:[%s1740 + $0x61] sm:$0xff] %v1732
      %1750 = vst [vmem:[%s1740 + $0x69] sm:$0xff] %v1733
      %1751 = vst [vmem:[%s1740 + $0x79] sm:$0xff] %v1734
      %1752 = vst [vmem:[%s1740 + $0x81] sm:$0xff] %v1735
      %1753 = vst [vmem:[%s1740 + $0x91] sm:$0xff] %v1736
      %1754 = vst [vmem:[%s1740 + $0x99] sm:$0xff] %v1737
      %1755 = vst [vmem:[%s1740 + $0xa9] sm:$0xff] %v1738
      %1756 = vst [vmem:[%s1740 + $0xb1] sm:$0xff] %v1739
      %v1757 = vld [vmem:[#allocation3] sm:$0xff]
      %v1758 = vld [vmem:[#allocation3 + $0x8] sm:$0xff]
      %v1759 = vld [vmem:[#allocation3 + $0x18] sm:$0xff]
      %v1760 = vld [vmem:[#allocation3 + $0x20] sm:$0xff]
      %v1761 = vld [vmem:[#allocation3 + $0x30] sm:$0xff]
      %v1762 = vld [vmem:[#allocation3 + $0x38] sm:$0xff]
      %v1763 = vld [vmem:[#allocation3 + $0x48] sm:$0xff]
      %v1764 = vld [vmem:[#allocation3 + $0x50] sm:$0xff]
      %v1765 = vld [vmem:[#allocation3 + $0x60] sm:$0xff]
      %v1766 = vld [vmem:[#allocation3 + $0x68] sm:$0xff]
      %v1767 = vld [vmem:[#allocation3 + $0x78] sm:$0xff]
      %v1768 = vld [vmem:[#allocation3 + $0x80] sm:$0xff]
      %v1769 = vld [vmem:[#allocation3 + $0x90] sm:$0xff]
      %v1770 = vld [vmem:[#allocation3 + $0x98] sm:$0xff]
      %v1771 = vld [vmem:[#allocation3 + $0xa8] sm:$0xff]
      %v1772 = vld [vmem:[#allocation3 + $0xb0] sm:$0xff]
      %v1773 = vld [vmem:[#allocation3 + $0x1] sm:$0xff]
      %v1774 = vld [vmem:[#allocation3 + $0x9] sm:$0xff]
      %v1775 = vld [vmem:[#allocation3 + $0x19] sm:$0xff]
      %v1776 = vld [vmem:[#allocation3 + $0x21] sm:$0xff]
      %v1777 = vld [vmem:[#allocation3 + $0x31] sm:$0xff]
      %v1778 = vld [vmem:[#allocation3 + $0x39] sm:$0xff]
      %v1779 = vld [vmem:[#allocation3 + $0x49] sm:$0xff]
      %v1780 = vld [vmem:[#allocation3 + $0x51] sm:$0xff]
      %v1781 = vld [vmem:[#allocation3 + $0x61] sm:$0xff]
      %v1782 = vld [vmem:[#allocation3 + $0x69] sm:$0xff]
      %v1783 = vld [vmem:[#allocation3 + $0x79] sm:$0xff]
      %v1784 = vld [vmem:[#allocation3 + $0x81] sm:$0xff]
      %v1785 = vld [vmem:[#allocation3 + $0x91] sm:$0xff]
      %v1786 = vld [vmem:[#allocation3 + $0x99] sm:$0xff]
      %v1787 = vld [vmem:[#allocation3 + $0xa9] sm:$0xff]
      %v1788 = vld [vmem:[#allocation3 + $0xb1] sm:$0xff]
      %v1789 = vld [vmem:[#allocation3 + $0x2] sm:$0xff]
      %v1790 = vld [vmem:[#allocation3 + $0xa] sm:$0xff]
      %v1791 = vld [vmem:[#allocation3 + $0x1a] sm:$0xff]
      %v1792 = vld [vmem:[#allocation3 + $0x22] sm:$0xff]
      %v1793 = vld [vmem:[#allocation3 + $0x32] sm:$0xff]
      %v1794 = vld [vmem:[#allocation3 + $0x3a] sm:$0xff]
      %v1795 = vld [vmem:[#allocation3 + $0x4a] sm:$0xff]
      %v1796 = vld [vmem:[#allocation3 + $0x52] sm:$0xff]
      %v1797 = vld [vmem:[#allocation3 + $0x62] sm:$0xff]
      %v1798 = vld [vmem:[#allocation3 + $0x6a] sm:$0xff]
      %v1799 = vld [vmem:[#allocation3 + $0x7a] sm:$0xff]
      %v1800 = vld [vmem:[#allocation3 + $0x82] sm:$0xff]
      %v1801 = vld [vmem:[#allocation3 + $0x92] sm:$0xff]
      %v1802 = vld [vmem:[#allocation3 + $0x9a] sm:$0xff]
      %v1803 = vld [vmem:[#allocation3 + $0xaa] sm:$0xff]
      %v1804 = vld [vmem:[#allocation3 + $0xb2] sm:$0xff]
      %v1805 = vld [vmem:[%s1740] sm:$0xff]
      %v1806 = vld [vmem:[%s1740 + $0x8] sm:$0xff]
      %v1807 = vld [vmem:[%s1740 + $0x18] sm:$0xff]
      %v1808 = vld [vmem:[%s1740 + $0x20] sm:$0xff]
      %v1809 = vld [vmem:[%s1740 + $0x30] sm:$0xff]
      %v1810 = vld [vmem:[%s1740 + $0x38] sm:$0xff]
      %v1811 = vld [vmem:[%s1740 + $0x48] sm:$0xff]
      %v1812 = vld [vmem:[%s1740 + $0x50] sm:$0xff]
      %v1813 = vld [vmem:[%s1740 + $0x60] sm:$0xff]
      %v1814 = vld [vmem:[%s1740 + $0x68] sm:$0xff]
      %v1815 = vld [vmem:[%s1740 + $0x78] sm:$0xff]
      %v1816 = vld [vmem:[%s1740 + $0x80] sm:$0xff]
      %v1817 = vld [vmem:[%s1740 + $0x90] sm:$0xff]
      %v1818 = vld [vmem:[%s1740 + $0x98] sm:$0xff]
      %v1819 = vld [vmem:[%s1740 + $0xa8] sm:$0xff]
      %v1820 = vld [vmem:[%s1740 + $0xb0] sm:$0xff]
      %v1821 = vld [vmem:[%s1740 + $0x1] sm:$0xff]
      %v1822 = vld [vmem:[%s1740 + $0x9] sm:$0xff]
      %v1823 = vld [vmem:[%s1740 + $0x19] sm:$0xff]
      %v1824 = vld [vmem:[%s1740 + $0x21] sm:$0xff]
      %v1825 = vld [vmem:[%s1740 + $0x31] sm:$0xff]
      %v1826 = vld [vmem:[%s1740 + $0x39] sm:$0xff]
      %v1827 = vld [vmem:[%s1740 + $0x49] sm:$0xff]
      %v1828 = vld [vmem:[%s1740 + $0x51] sm:$0xff]
      %v1829 = vld [vmem:[%s1740 + $0x61] sm:$0xff]
      %v1830 = vld [vmem:[%s1740 + $0x69] sm:$0xff]
      %v1831 = vld [vmem:[%s1740 + $0x79] sm:$0xff]
      %v1832 = vld [vmem:[%s1740 + $0x81] sm:$0xff]
      %v1833 = vld [vmem:[%s1740 + $0x91] sm:$0xff]
      %v1834 = vld [vmem:[%s1740 + $0x99] sm:$0xff]
      %v1835 = vld [vmem:[%s1740 + $0xa9] sm:$0xff]
      %v1836 = vld [vmem:[%s1740 + $0xb1] sm:$0xff]
      %v1837 = vld [vmem:[%s1740 + $0x2] sm:$0xff]
      %v1838 = vld [vmem:[%s1740 + $0xa] sm:$0xff]
      %v1839 = vld [vmem:[%s1740 + $0x1a] sm:$0xff]
      %v1840 = vld [vmem:[%s1740 + $0x22] sm:$0xff]
      %v1841 = vld [vmem:[%s1740 + $0x32] sm:$0xff]
      %v1842 = vld [vmem:[%s1740 + $0x3a] sm:$0xff]
      %v1843 = vld [vmem:[%s1740 + $0x4a] sm:$0xff]
      %v1844 = vld [vmem:[%s1740 + $0x52] sm:$0xff]
      %v1845 = vld [vmem:[%s1740 + $0x62] sm:$0xff]
      %v1846 = vld [vmem:[%s1740 + $0x6a] sm:$0xff]
      %v1847 = vld [vmem:[%s1740 + $0x7a] sm:$0xff]
      %v1848 = vld [vmem:[%s1740 + $0x82] sm:$0xff]
      %v1849 = vld [vmem:[%s1740 + $0x92] sm:$0xff]
      %v1850 = vld [vmem:[%s1740 + $0x9a] sm:$0xff]
      %v1851 = vld [vmem:[%s1740 + $0xaa] sm:$0xff]
      %v1852 = vld [vmem:[%s1740 + $0xb2] sm:$0xff]
      %s1853 = scalar_lea.vmem [#allocation3], 48
      %v1854 = vld [vmem:[%s1853] sm:$0xff]
      %v1855 = vld [vmem:[%s1853 + $0x8] sm:$0xff]
      %v1856 = vld [vmem:[%s1853 + $0x18] sm:$0xff]
      %v1857 = vld [vmem:[%s1853 + $0x20] sm:$0xff]
      %v1858 = vld [vmem:[%s1853 + $0x30] sm:$0xff]
      %v1859 = vld [vmem:[%s1853 + $0x38] sm:$0xff]
      %v1860 = vld [vmem:[%s1853 + $0x48] sm:$0xff]
      %v1861 = vld [vmem:[%s1853 + $0x50] sm:$0xff]
      %v1862 = vld [vmem:[%s1853 + $0x60] sm:$0xff]
      %v1863 = vld [vmem:[%s1853 + $0x68] sm:$0xff]
      %v1864 = vld [vmem:[%s1853 + $0x78] sm:$0xff]
      %v1865 = vld [vmem:[%s1853 + $0x80] sm:$0xff]
      %v1866 = vld [vmem:[%s1853 + $0x90] sm:$0xff]
      %v1867 = vld [vmem:[%s1853 + $0x98] sm:$0xff]
      %v1868 = vld [vmem:[%s1853 + $0xa8] sm:$0xff]
      %v1869 = vld [vmem:[%s1853 + $0xb0] sm:$0xff]
      %v1870 = vld [vmem:[%s1853 + $0x1] sm:$0xff]
      %v1871 = vld [vmem:[%s1853 + $0x9] sm:$0xff]
      %v1872 = vld [vmem:[%s1853 + $0x19] sm:$0xff]
      %v1873 = vld [vmem:[%s1853 + $0x21] sm:$0xff]
      %v1874 = vld [vmem:[%s1853 + $0x31] sm:$0xff]
      %v1875 = vld [vmem:[%s1853 + $0x39] sm:$0xff]
      %v1876 = vld [vmem:[%s1853 + $0x49] sm:$0xff]
      %v1877 = vld [vmem:[%s1853 + $0x51] sm:$0xff]
      %v1878 = vld [vmem:[%s1853 + $0x61] sm:$0xff]
      %v1879 = vld [vmem:[%s1853 + $0x69] sm:$0xff]
      %v1880 = vld [vmem:[%s1853 + $0x79] sm:$0xff]
      %v1881 = vld [vmem:[%s1853 + $0x81] sm:$0xff]
      %v1882 = vld [vmem:[%s1853 + $0x91] sm:$0xff]
      %v1883 = vld [vmem:[%s1853 + $0x99] sm:$0xff]
      %v1884 = vld [vmem:[%s1853 + $0xa9] sm:$0xff]
      %v1885 = vld [vmem:[%s1853 + $0xb1] sm:$0xff]
      %v1886 = vld [vmem:[%s1853 + $0x2] sm:$0xff]
      %v1887 = vld [vmem:[%s1853 + $0xa] sm:$0xff]
      %v1888 = vld [vmem:[%s1853 + $0x1a] sm:$0xff]
      %v1889 = vld [vmem:[%s1853 + $0x22] sm:$0xff]
      %v1890 = vld [vmem:[%s1853 + $0x32] sm:$0xff]
      %v1891 = vld [vmem:[%s1853 + $0x3a] sm:$0xff]
      %v1892 = vld [vmem:[%s1853 + $0x4a] sm:$0xff]
      %v1893 = vld [vmem:[%s1853 + $0x52] sm:$0xff]
      %v1894 = vld [vmem:[%s1853 + $0x62] sm:$0xff]
      %v1895 = vld [vmem:[%s1853 + $0x6a] sm:$0xff]
      %v1896 = vld [vmem:[%s1853 + $0x7a] sm:$0xff]
      %v1897 = vld [vmem:[%s1853 + $0x82] sm:$0xff]
      %v1898 = vld [vmem:[%s1853 + $0x92] sm:$0xff]
      %v1899 = vld [vmem:[%s1853 + $0x9a] sm:$0xff]
      %v1900 = vld [vmem:[%s1853 + $0xaa] sm:$0xff]
      %v1901 = vld [vmem:[%s1853 + $0xb2] sm:$0xff]
      %v1902 = vpack.c.bf16 %v1758, %v1757
      %v1903 = vpack.c.bf16 %v1774, %v1773
      %v1904 = vpack.c.bf16 %v1790, %v1789
      %v1905 = vpack.c.bf16 %v1806, %v1805
      %v1906 = vpack.c.bf16 %v1822, %v1821
      %v1907 = vpack.c.bf16 %v1838, %v1837
      %v1908 = vpack.c.bf16 %v1855, %v1854
      %v1909 = vpack.c.bf16 %v1871, %v1870
      %v1910 = vpack.c.bf16 %v1887, %v1886
      %v1911 = vpack.c.bf16 %v1760, %v1759
      %v1912 = vpack.c.bf16 %v1776, %v1775
      %v1913 = vpack.c.bf16 %v1792, %v1791
      %v1914 = vpack.c.bf16 %v1808, %v1807
      %v1915 = vpack.c.bf16 %v1824, %v1823
      %v1916 = vpack.c.bf16 %v1840, %v1839
      %v1917 = vpack.c.bf16 %v1857, %v1856
      %v1918 = vpack.c.bf16 %v1873, %v1872
      %v1919 = vpack.c.bf16 %v1889, %v1888
      %v1920 = vpack.c.bf16 %v1762, %v1761
      %v1921 = vpack.c.bf16 %v1778, %v1777
      %v1922 = vpack.c.bf16 %v1794, %v1793
      %v1923 = vpack.c.bf16 %v1810, %v1809
      %v1924 = vpack.c.bf16 %v1826, %v1825
      %v1925 = vpack.c.bf16 %v1842, %v1841
      %v1926 = vpack.c.bf16 %v1859, %v1858
      %v1927 = vpack.c.bf16 %v1875, %v1874
      %v1928 = vpack.c.bf16 %v1891, %v1890
      %v1929 = vpack.c.bf16 %v1764, %v1763
      %v1930 = vpack.c.bf16 %v1780, %v1779
      %v1931 = vpack.c.bf16 %v1796, %v1795
      %v1932 = vpack.c.bf16 %v1812, %v1811
      %v1933 = vpack.c.bf16 %v1828, %v1827
      %v1934 = vpack.c.bf16 %v1844, %v1843
      %v1935 = vpack.c.bf16 %v1861, %v1860
      %v1936 = vpack.c.bf16 %v1877, %v1876
      %v1937 = vpack.c.bf16 %v1893, %v1892
      %v1938 = vpack.c.bf16 %v1766, %v1765
      %v1939 = vpack.c.bf16 %v1782, %v1781
      %v1940 = vpack.c.bf16 %v1798, %v1797
      %v1941 = vpack.c.bf16 %v1814, %v1813
      %v1942 = vpack.c.bf16 %v1830, %v1829
      %v1943 = vpack.c.bf16 %v1846, %v1845
      %v1944 = vpack.c.bf16 %v1863, %v1862
      %v1945 = vpack.c.bf16 %v1879, %v1878
      %v1946 = vpack.c.bf16 %v1895, %v1894
      %v1947 = vpack.c.bf16 %v1768, %v1767
      %v1948 = vpack.c.bf16 %v1784, %v1783
      %v1949 = vpack.c.bf16 %v1800, %v1799
      %v1950 = vpack.c.bf16 %v1816, %v1815
      %v1951 = vpack.c.bf16 %v1832, %v1831
      %v1952 = vpack.c.bf16 %v1848, %v1847
      %v1953 = vpack.c.bf16 %v1865, %v1864
      %v1954 = vpack.c.bf16 %v1881, %v1880
      %v1955 = vpack.c.bf16 %v1897, %v1896
      %v1956 = vpack.c.bf16 %v1770, %v1769
      %v1957 = vpack.c.bf16 %v1786, %v1785
      %v1958 = vpack.c.bf16 %v1802, %v1801
      %v1959 = vpack.c.bf16 %v1818, %v1817
      %v1960 = vpack.c.bf16 %v1834, %v1833
      %v1961 = vpack.c.bf16 %v1850, %v1849
      %v1962 = vpack.c.bf16 %v1867, %v1866
      %v1963 = vpack.c.bf16 %v1883, %v1882
      %v1964 = vpack.c.bf16 %v1899, %v1898
      %v1965 = vpack.c.bf16 %v1772, %v1771
      %v1966 = vpack.c.bf16 %v1788, %v1787
      %v1967 = vpack.c.bf16 %v1804, %v1803
      %v1968 = vpack.c.bf16 %v1820, %v1819
      %v1969 = vpack.c.bf16 %v1836, %v1835
      %v1970 = vpack.c.bf16 %v1852, %v1851
      %v1971 = vpack.c.bf16 %v1869, %v1868
      %v1972 = vpack.c.bf16 %v1885, %v1884
      %v1973 = vpack.c.bf16 %v1901, %v1900
      %v1974 = vld [vmem:[%s2] sm:$0xf]
      %v1975 = vld [vmem:[%s2 + $0x4] sm:$0xf]
      %v1976 = vld [vmem:[%s2 + $0x8] sm:$0xf]
      %v1977 = vld [vmem:[%s2 + $0xc] sm:$0xf]
      %v1978 = vld [vmem:[%s2 + $0x10] sm:$0xf]
      %v1979 = vld [vmem:[%s2 + $0x14] sm:$0xf]
      %v1980 = vld [vmem:[%s2 + $0x18] sm:$0xf]
      %v1981 = vld [vmem:[%s2 + $0x1c] sm:$0xf]
      %v1982 = vld [vmem:[%s2 + $0x20] sm:$0xf]
      %v1983 = vld [vmem:[%s2 + $0x24] sm:$0xf]
      %v1984 = vld [vmem:[%s2 + $0x28] sm:$0xf]
      %v1985 = vld [vmem:[%s2 + $0x2c] sm:$0xf]
      %v1986 = vld [vmem:[%s2 + $0x30] sm:$0xf]
      %v1987 = vld [vmem:[%s2 + $0x34] sm:$0xf]
      %v1988 = vld [vmem:[%s2 + $0x38] sm:$0xf]
      %v1989 = vld [vmem:[%s2 + $0x3c] sm:$0xf]
      %v1990 = vld [vmem:[%s2 + $0x40] sm:$0xf]
      %v1991 = vld [vmem:[%s2 + $0x44] sm:$0xf]
      %v1992 = vld [vmem:[%s2 + $0x48] sm:$0xf]
      %v1993 = vld [vmem:[%s2 + $0x4c] sm:$0xf]
      %v1994 = vld [vmem:[%s2 + $0x50] sm:$0xf]
      %v1995 = vld [vmem:[%s2 + $0x54] sm:$0xf]
      %v1996 = vld [vmem:[%s2 + $0x58] sm:$0xf]
      %v1997 = vld [vmem:[%s2 + $0x5c] sm:$0xf]
      %v1998 = vld [vmem:[%s2 + $0x60] sm:$0xf]
      %v1999 = vld [vmem:[%s2 + $0x64] sm:$0xf]
      %v2000 = vld [vmem:[%s2 + $0x68] sm:$0xf]
      %v2001 = vld [vmem:[%s2 + $0x6c] sm:$0xf]
      %v2002 = vld [vmem:[%s2 + $0x70] sm:$0xf]
      %v2003 = vld [vmem:[%s2 + $0x74] sm:$0xf]
      %v2004 = vld [vmem:[%s2 + $0x78] sm:$0xf]
      %v2005 = vld [vmem:[%s2 + $0x7c] sm:$0xf]
      %v2006 = vld [vmem:[%s2 + $0x80] sm:$0xf]
      %v2007 = vld [vmem:[%s2 + $0x84] sm:$0xf]
      %v2008 = vld [vmem:[%s2 + $0x88] sm:$0xf]
      %v2009 = vld [vmem:[%s2 + $0x8c] sm:$0xf]
      %v2010 = vld [vmem:[%s2 + $0x90] sm:$0xf]
      %v2011 = vld [vmem:[%s2 + $0x94] sm:$0xf]
      %v2012 = vld [vmem:[%s2 + $0x98] sm:$0xf]
      %v2013 = vld [vmem:[%s2 + $0x9c] sm:$0xf]
      %v2014 = vld [vmem:[%s2 + $0xa0] sm:$0xf]
      %v2015 = vld [vmem:[%s2 + $0xa4] sm:$0xf]
      %v2016 = vld [vmem:[%s2 + $0xa8] sm:$0xf]
      %v2017 = vld [vmem:[%s2 + $0xac] sm:$0xf]
      %v2018 = vld [vmem:[%s2 + $0xb0] sm:$0xf]
      %v2019 = vld [vmem:[%s2 + $0xb4] sm:$0xf]
      %v2020 = vld [vmem:[%s2 + $0xb8] sm:$0xf]
      %v2021 = vld [vmem:[%s2 + $0xbc] sm:$0xf]
      %v2022 = vld [vmem:[%s2 + $0xc0] sm:$0xf]
      %v2023 = vld [vmem:[%s2 + $0xc4] sm:$0xf]
      %v2024 = vld [vmem:[%s2 + $0xc8] sm:$0xf]
      %v2025 = vld [vmem:[%s2 + $0xcc] sm:$0xf]
      %v2026 = vld [vmem:[%s2 + $0xd0] sm:$0xf]
      %v2027 = vld [vmem:[%s2 + $0xd4] sm:$0xf]
      %v2028 = vld [vmem:[%s2 + $0xd8] sm:$0xf]
      %v2029 = vld [vmem:[%s2 + $0xdc] sm:$0xf]
      %v2030 = vld [vmem:[%s2 + $0xe0] sm:$0xf]
      %v2031 = vld [vmem:[%s2 + $0xe4] sm:$0xf]
      %v2032 = vld [vmem:[%s2 + $0xe8] sm:$0xf]
      %v2033 = vld [vmem:[%s2 + $0xec] sm:$0xf]
      %v2034 = vld [vmem:[%s2 + $0xf0] sm:$0xf]
      %v2035 = vld [vmem:[%s2 + $0xf4] sm:$0xf]
      %v2036 = vld [vmem:[%s2 + $0xf8] sm:$0xf]
      %v2037 = vld [vmem:[%s2 + $0xfc] sm:$0xf]
      %v2038 = vld [vmem:[%s2 + $0x100] sm:$0xf]
      %v2039 = vld [vmem:[%s2 + $0x104] sm:$0xf]
      %v2040 = vld [vmem:[%s2 + $0x108] sm:$0xf]
      %v2041 = vld [vmem:[%s2 + $0x10c] sm:$0xf]
      %v2042 = vld [vmem:[%s2 + $0x110] sm:$0xf]
      %v2043 = vld [vmem:[%s2 + $0x114] sm:$0xf]
      %v2044 = vld [vmem:[%s2 + $0x118] sm:$0xf]
      %v2045 = vld [vmem:[%s2 + $0x11c] sm:$0xf]
      %v2046 = vld [vmem:[%s2 + $0x120] sm:$0xf]
      %v2047 = vld [vmem:[%s2 + $0x124] sm:$0xf]
      %v2048 = vld [vmem:[%s2 + $0x128] sm:$0xf]
      %v2049 = vld [vmem:[%s2 + $0x12c] sm:$0xf]
      %v2050 = vld [vmem:[%s2 + $0x130] sm:$0xf]
      %v2051 = vld [vmem:[%s2 + $0x134] sm:$0xf]
      %v2052 = vld [vmem:[%s2 + $0x138] sm:$0xf]
      %v2053 = vld [vmem:[%s2 + $0x13c] sm:$0xf]
      %v2054 = vld [vmem:[%s2 + $0x140] sm:$0xf]
      %v2055 = vld [vmem:[%s2 + $0x144] sm:$0xf]
      %v2056 = vld [vmem:[%s2 + $0x148] sm:$0xf]
      %v2057 = vld [vmem:[%s2 + $0x14c] sm:$0xf]
      %v2058 = vld [vmem:[%s2 + $0x150] sm:$0xf]
      %v2059 = vld [vmem:[%s2 + $0x154] sm:$0xf]
      %v2060 = vld [vmem:[%s2 + $0x158] sm:$0xf]
      %v2061 = vld [vmem:[%s2 + $0x15c] sm:$0xf]
      %v2062 = vld [vmem:[%s2 + $0x160] sm:$0xf]
      %v2063 = vld [vmem:[%s2 + $0x164] sm:$0xf]
      %v2064 = vld [vmem:[%s2 + $0x168] sm:$0xf]
      %v2065 = vld [vmem:[%s2 + $0x16c] sm:$0xf]
      %v2066 = vld [vmem:[%s2 + $0x170] sm:$0xf]
      %v2067 = vld [vmem:[%s2 + $0x174] sm:$0xf]
      %v2068 = vld [vmem:[%s2 + $0x178] sm:$0xf]
      %v2069 = vld [vmem:[%s2 + $0x17c] sm:$0xf]
      %v2070 = vld [vmem:[%s2 + $0x180] sm:$0xf]
      %v2071 = vld [vmem:[%s2 + $0x184] sm:$0xf]
      %v2072 = vld [vmem:[%s2 + $0x188] sm:$0xf]
      %v2073 = vld [vmem:[%s2 + $0x18c] sm:$0xf]
      %v2074 = vld [vmem:[%s2 + $0x190] sm:$0xf]
      %v2075 = vld [vmem:[%s2 + $0x194] sm:$0xf]
      %v2076 = vld [vmem:[%s2 + $0x198] sm:$0xf]
      %v2077 = vld [vmem:[%s2 + $0x19c] sm:$0xf]
      %v2078 = vld [vmem:[%s2 + $0x1a0] sm:$0xf]
      %v2079 = vld [vmem:[%s2 + $0x1a4] sm:$0xf]
      %v2080 = vld [vmem:[%s2 + $0x1a8] sm:$0xf]
      %v2081 = vld [vmem:[%s2 + $0x1ac] sm:$0xf]
      %v2082 = vld [vmem:[%s2 + $0x1b0] sm:$0xf]
      %v2083 = vld [vmem:[%s2 + $0x1b4] sm:$0xf]
      %v2084 = vld [vmem:[%s2 + $0x1b8] sm:$0xf]
      %v2085 = vld [vmem:[%s2 + $0x1bc] sm:$0xf]
      %v2086 = vld [vmem:[%s2 + $0x1c0] sm:$0xf]
      %v2087 = vld [vmem:[%s2 + $0x1c4] sm:$0xf]
      %v2088 = vld [vmem:[%s2 + $0x1c8] sm:$0xf]
      %v2089 = vld [vmem:[%s2 + $0x1cc] sm:$0xf]
      %v2090 = vld [vmem:[%s2 + $0x1d0] sm:$0xf]
      %v2091 = vld [vmem:[%s2 + $0x1d4] sm:$0xf]
      %v2092 = vld [vmem:[%s2 + $0x1d8] sm:$0xf]
      %v2093 = vld [vmem:[%s2 + $0x1dc] sm:$0xf]
      %v2094 = vld [vmem:[%s2 + $0x1e0] sm:$0xf]
      %v2095 = vld [vmem:[%s2 + $0x1e4] sm:$0xf]
      %v2096 = vld [vmem:[%s2 + $0x1e8] sm:$0xf]
      %v2097 = vld [vmem:[%s2 + $0x1ec] sm:$0xf]
      %v2098 = vld [vmem:[%s2 + $0x1f0] sm:$0xf]
      %v2099 = vld [vmem:[%s2 + $0x1f4] sm:$0xf]
      %v2100 = vld [vmem:[%s2 + $0x1f8] sm:$0xf]
      %v2101 = vld [vmem:[%s2 + $0x1fc] sm:$0xf]
      %v2102 = vld [vmem:[%s2 + $0x200] sm:$0xf]
      %v2103 = vld [vmem:[%s2 + $0x204] sm:$0xf]
      %v2104 = vld [vmem:[%s2 + $0x208] sm:$0xf]
      %v2105 = vld [vmem:[%s2 + $0x20c] sm:$0xf]
      %v2106 = vld [vmem:[%s2 + $0x210] sm:$0xf]
      %v2107 = vld [vmem:[%s2 + $0x214] sm:$0xf]
      %v2108 = vld [vmem:[%s2 + $0x218] sm:$0xf]
      %v2109 = vld [vmem:[%s2 + $0x21c] sm:$0xf]
      %v2110 = vld [vmem:[%s2 + $0x220] sm:$0xf]
      %v2111 = vld [vmem:[%s2 + $0x224] sm:$0xf]
      %v2112 = vld [vmem:[%s2 + $0x228] sm:$0xf]
      %v2113 = vld [vmem:[%s2 + $0x22c] sm:$0xf]
      %v2114 = vld [vmem:[%s2 + $0x230] sm:$0xf]
      %v2115 = vld [vmem:[%s2 + $0x234] sm:$0xf]
      %v2116 = vld [vmem:[%s2 + $0x238] sm:$0xf]
      %v2117 = vld [vmem:[%s2 + $0x23c] sm:$0xf]
      %v2262 = vunpack.c.l.b16 %v1974
      %v2263 = vunpack.c.l.b16 %v1975
      %v2264 = vunpack.c.l.b16 %v1976
      %v2265 = vunpack.c.l.b16 %v1977
      %v2266 = vunpack.c.l.b16 %v1978
      %v2267 = vunpack.c.l.b16 %v1979
      %v2268 = vunpack.c.l.b16 %v1980
      %v2269 = vunpack.c.l.b16 %v1981
      %v2270 = vunpack.c.l.b16 %v1982
      %v2271 = vunpack.c.l.b16 %v1983
      %v2272 = vunpack.c.l.b16 %v1984
      %v2273 = vunpack.c.l.b16 %v1985
      %v2274 = vunpack.c.l.b16 %v1986
      %v2275 = vunpack.c.l.b16 %v1987
      %v2276 = vunpack.c.l.b16 %v1988
      %v2277 = vunpack.c.l.b16 %v1989
      %v2278 = vunpack.c.l.b16 %v1990
      %v2279 = vunpack.c.l.b16 %v1991
      %v2280 = vunpack.c.l.b16 %v1992
      %v2281 = vunpack.c.l.b16 %v1993
      %v2282 = vunpack.c.l.b16 %v1994
      %v2283 = vunpack.c.l.b16 %v1995
      %v2284 = vunpack.c.l.b16 %v1996
      %v2285 = vunpack.c.l.b16 %v1997
      %v2286 = vunpack.c.l.b16 %v1998
      %v2287 = vunpack.c.l.b16 %v1999
      %v2288 = vunpack.c.l.b16 %v2000
      %v2289 = vunpack.c.l.b16 %v2001
      %v2290 = vunpack.c.l.b16 %v2002
      %v2291 = vunpack.c.l.b16 %v2003
      %v2292 = vunpack.c.l.b16 %v2004
      %v2293 = vunpack.c.l.b16 %v2005
      %v2294 = vunpack.c.l.b16 %v2006
      %v2295 = vunpack.c.l.b16 %v2007
      %v2296 = vunpack.c.l.b16 %v2008
      %v2297 = vunpack.c.l.b16 %v2009
      %v2298 = vunpack.c.l.b16 %v2010
      %v2299 = vunpack.c.l.b16 %v2011
      %v2300 = vunpack.c.l.b16 %v2012
      %v2301 = vunpack.c.l.b16 %v2013
      %v2302 = vunpack.c.l.b16 %v2014
      %v2303 = vunpack.c.l.b16 %v2015
      %v2304 = vunpack.c.l.b16 %v2016
      %v2305 = vunpack.c.l.b16 %v2017
      %v2306 = vunpack.c.l.b16 %v2018
      %v2307 = vunpack.c.l.b16 %v2019
      %v2308 = vunpack.c.l.b16 %v2020
      %v2309 = vunpack.c.l.b16 %v2021
      %v2310 = vunpack.c.l.b16 %v2022
      %v2311 = vunpack.c.l.b16 %v2023
      %v2312 = vunpack.c.l.b16 %v2024
      %v2313 = vunpack.c.l.b16 %v2025
      %v2314 = vunpack.c.l.b16 %v2026
      %v2315 = vunpack.c.l.b16 %v2027
      %v2316 = vunpack.c.l.b16 %v2028
      %v2317 = vunpack.c.l.b16 %v2029
      %v2318 = vunpack.c.l.b16 %v2030
      %v2319 = vunpack.c.l.b16 %v2031
      %v2320 = vunpack.c.l.b16 %v2032
      %v2321 = vunpack.c.l.b16 %v2033
      %v2322 = vunpack.c.l.b16 %v2034
      %v2323 = vunpack.c.l.b16 %v2035
      %v2324 = vunpack.c.l.b16 %v2036
      %v2325 = vunpack.c.l.b16 %v2037
      %v2326 = vunpack.c.l.b16 %v2038
      %v2327 = vunpack.c.l.b16 %v2039
      %v2328 = vunpack.c.l.b16 %v2040
      %v2329 = vunpack.c.l.b16 %v2041
      %v2330 = vunpack.c.l.b16 %v2042
      %v2331 = vunpack.c.l.b16 %v2043
      %v2332 = vunpack.c.l.b16 %v2044
      %v2333 = vunpack.c.l.b16 %v2045
      %v2334 = vunpack.c.l.b16 %v2046
      %v2335 = vunpack.c.l.b16 %v2047
      %v2336 = vunpack.c.l.b16 %v2048
      %v2337 = vunpack.c.l.b16 %v2049
      %v2338 = vunpack.c.l.b16 %v2050
      %v2339 = vunpack.c.l.b16 %v2051
      %v2340 = vunpack.c.l.b16 %v2052
      %v2341 = vunpack.c.l.b16 %v2053
      %v2342 = vunpack.c.l.b16 %v2054
      %v2343 = vunpack.c.l.b16 %v2055
      %v2344 = vunpack.c.l.b16 %v2056
      %v2345 = vunpack.c.l.b16 %v2057
      %v2346 = vunpack.c.l.b16 %v2058
      %v2347 = vunpack.c.l.b16 %v2059
      %v2348 = vunpack.c.l.b16 %v2060
      %v2349 = vunpack.c.l.b16 %v2061
      %v2350 = vunpack.c.l.b16 %v2062
      %v2351 = vunpack.c.l.b16 %v2063
      %v2352 = vunpack.c.l.b16 %v2064
      %v2353 = vunpack.c.l.b16 %v2065
      %v2354 = vunpack.c.l.b16 %v2066
      %v2355 = vunpack.c.l.b16 %v2067
      %v2356 = vunpack.c.l.b16 %v2068
      %v2357 = vunpack.c.l.b16 %v2069
      %v2358 = vunpack.c.l.b16 %v2070
      %v2359 = vunpack.c.l.b16 %v2071
      %v2360 = vunpack.c.l.b16 %v2072
      %v2361 = vunpack.c.l.b16 %v2073
      %v2362 = vunpack.c.l.b16 %v2074
      %v2363 = vunpack.c.l.b16 %v2075
      %v2364 = vunpack.c.l.b16 %v2076
      %v2365 = vunpack.c.l.b16 %v2077
      %v2366 = vunpack.c.l.b16 %v2078
      %v2367 = vunpack.c.l.b16 %v2079
      %v2368 = vunpack.c.l.b16 %v2080
      %v2369 = vunpack.c.l.b16 %v2081
      %v2370 = vunpack.c.l.b16 %v2082
      %v2371 = vunpack.c.l.b16 %v2083
      %v2372 = vunpack.c.l.b16 %v2084
      %v2373 = vunpack.c.l.b16 %v2085
      %v2374 = vunpack.c.l.b16 %v2086
      %v2375 = vunpack.c.l.b16 %v2087
      %v2376 = vunpack.c.l.b16 %v2088
      %v2377 = vunpack.c.l.b16 %v2089
      %v2378 = vunpack.c.l.b16 %v2090
      %v2379 = vunpack.c.l.b16 %v2091
      %v2380 = vunpack.c.l.b16 %v2092
      %v2381 = vunpack.c.l.b16 %v2093
      %v2382 = vunpack.c.l.b16 %v2094
      %v2383 = vunpack.c.l.b16 %v2095
      %v2384 = vunpack.c.l.b16 %v2096
      %v2385 = vunpack.c.l.b16 %v2097
      %v2386 = vunpack.c.l.b16 %v2098
      %v2387 = vunpack.c.l.b16 %v2099
      %v2388 = vunpack.c.l.b16 %v2100
      %v2389 = vunpack.c.l.b16 %v2101
      %v2390 = vunpack.c.l.b16 %v2102
      %v2391 = vunpack.c.l.b16 %v2103
      %v2392 = vunpack.c.l.b16 %v2104
      %v2393 = vunpack.c.l.b16 %v2105
      %v2394 = vunpack.c.l.b16 %v2106
      %v2395 = vunpack.c.l.b16 %v2107
      %v2396 = vunpack.c.l.b16 %v2108
      %v2397 = vunpack.c.l.b16 %v2109
      %v2398 = vunpack.c.l.b16 %v2110
      %v2399 = vunpack.c.l.b16 %v2111
      %v2400 = vunpack.c.l.b16 %v2112
      %v2401 = vunpack.c.l.b16 %v2113
      %v2402 = vunpack.c.l.b16 %v2114
      %v2403 = vunpack.c.l.b16 %v2115
      %v2404 = vunpack.c.l.b16 %v2116
      %v2405 = vunpack.c.l.b16 %v2117
      %v2406 = vpack.c.b16 %v2263, %v2262
      %v2407 = vpack.c.b16 %v2265, %v2264
      %v2408 = vpack.c.b16 %v2267, %v2266
      %v2409 = vpack.c.b16 %v2269, %v2268
      %v2410 = vpack.c.b16 %v2271, %v2270
      %v2411 = vpack.c.b16 %v2273, %v2272
      %v2412 = vpack.c.b16 %v2275, %v2274
      %v2413 = vpack.c.b16 %v2277, %v2276
      %v2414 = vpack.c.b16 %v2279, %v2278
      %v2415 = vpack.c.b16 %v2281, %v2280
      %v2416 = vpack.c.b16 %v2283, %v2282
      %v2417 = vpack.c.b16 %v2285, %v2284
      %v2418 = vpack.c.b16 %v2287, %v2286
      %v2419 = vpack.c.b16 %v2289, %v2288
      %v2420 = vpack.c.b16 %v2291, %v2290
      %v2421 = vpack.c.b16 %v2293, %v2292
      %v2422 = vpack.c.b16 %v2295, %v2294
      %v2423 = vpack.c.b16 %v2297, %v2296
      %v2424 = vpack.c.b16 %v2299, %v2298
      %v2425 = vpack.c.b16 %v2301, %v2300
      %v2426 = vpack.c.b16 %v2303, %v2302
      %v2427 = vpack.c.b16 %v2305, %v2304
      %v2428 = vpack.c.b16 %v2307, %v2306
      %v2429 = vpack.c.b16 %v2309, %v2308
      %v2430 = vpack.c.b16 %v2311, %v2310
      %v2431 = vpack.c.b16 %v2313, %v2312
      %v2432 = vpack.c.b16 %v2315, %v2314
      %v2433 = vpack.c.b16 %v2317, %v2316
      %v2434 = vpack.c.b16 %v2319, %v2318
      %v2435 = vpack.c.b16 %v2321, %v2320
      %v2436 = vpack.c.b16 %v2323, %v2322
      %v2437 = vpack.c.b16 %v2325, %v2324
      %v2438 = vpack.c.b16 %v2327, %v2326
      %v2439 = vpack.c.b16 %v2329, %v2328
      %v2440 = vpack.c.b16 %v2331, %v2330
      %v2441 = vpack.c.b16 %v2333, %v2332
      %v2442 = vpack.c.b16 %v2335, %v2334
      %v2443 = vpack.c.b16 %v2337, %v2336
      %v2444 = vpack.c.b16 %v2339, %v2338
      %v2445 = vpack.c.b16 %v2341, %v2340
      %v2446 = vpack.c.b16 %v2343, %v2342
      %v2447 = vpack.c.b16 %v2345, %v2344
      %v2448 = vpack.c.b16 %v2347, %v2346
      %v2449 = vpack.c.b16 %v2349, %v2348
      %v2450 = vpack.c.b16 %v2351, %v2350
      %v2451 = vpack.c.b16 %v2353, %v2352
      %v2452 = vpack.c.b16 %v2355, %v2354
      %v2453 = vpack.c.b16 %v2357, %v2356
      %v2454 = vpack.c.b16 %v2359, %v2358
      %v2455 = vpack.c.b16 %v2361, %v2360
      %v2456 = vpack.c.b16 %v2363, %v2362
      %v2457 = vpack.c.b16 %v2365, %v2364
      %v2458 = vpack.c.b16 %v2367, %v2366
      %v2459 = vpack.c.b16 %v2369, %v2368
      %v2460 = vpack.c.b16 %v2371, %v2370
      %v2461 = vpack.c.b16 %v2373, %v2372
      %v2462 = vpack.c.b16 %v2375, %v2374
      %v2463 = vpack.c.b16 %v2377, %v2376
      %v2464 = vpack.c.b16 %v2379, %v2378
      %v2465 = vpack.c.b16 %v2381, %v2380
      %v2466 = vpack.c.b16 %v2383, %v2382
      %v2467 = vpack.c.b16 %v2385, %v2384
      %v2468 = vpack.c.b16 %v2387, %v2386
      %v2469 = vpack.c.b16 %v2389, %v2388
      %v2470 = vpack.c.b16 %v2391, %v2390
      %v2471 = vpack.c.b16 %v2393, %v2392
      %v2472 = vpack.c.b16 %v2395, %v2394
      %v2473 = vpack.c.b16 %v2397, %v2396
      %v2474 = vpack.c.b16 %v2399, %v2398
      %v2475 = vpack.c.b16 %v2401, %v2400
      %v2476 = vpack.c.b16 %v2403, %v2402
      %v2477 = vpack.c.b16 %v2405, %v2404
      %2550 = vmatprep.subr.bf16.mxu0 0
      %2551 = vmatpush1.bf16.msra.mxu0 %v2406
      %2552 = vmatprep.subr.bf16.mxu0 0
      %2553 = vmatpush1.bf16.msra.mxu0 %v2407
      %2554 = vmatprep.subr.bf16.mxu0 0
      %2555 = vmatpush1.bf16.msra.mxu0 %v2408
      %2556 = vmatprep.subr.bf16.mxu0 0
      %2557 = vmatpush1.bf16.msra.mxu0 %v2409
      %2558 = vmatprep.subr.bf16.mxu0 0
      %2559 = vmatpush1.bf16.msra.mxu0 %v2410
      %2560 = vmatprep.subr.bf16.mxu0 0
      %2561 = vmatpush1.bf16.msra.mxu0 %v2411
      %2562 = vmatprep.subr.bf16.mxu0 0
      %2563 = vmatpush1.bf16.msra.mxu0 %v2412
      %2564 = vmatprep.subr.bf16.mxu0 0
      %2565 = vmatpush1.bf16.msra.mxu0 %v2413
      %2566 = vmatprep.subr.bf16.mxu0 0
      %2567 = vmatpush1.bf16.msra.mxu0 %v2414
      %2568 = vmatprep.subr.bf16.mxu0 0
      %2569 = vmatpush1.bf16.msra.mxu0 %v2415
      %2570 = vmatprep.subr.bf16.mxu0 0
      %2571 = vmatpush1.bf16.msra.mxu0 %v2416
      %2572 = vmatprep.subr.bf16.mxu0 0
      %2573 = vmatpush1.bf16.msra.mxu0 %v2417
      %2574 = vmatprep.subr.bf16.mxu0 0
      %2575 = vmatpush1.bf16.msra.mxu0 %v2418
      %2576 = vmatprep.subr.bf16.mxu0 0
      %2577 = vmatpush1.bf16.msra.mxu0 %v2419
      %2578 = vmatprep.subr.bf16.mxu0 0
      %2579 = vmatpush1.bf16.msra.mxu0 %v2420
      %2580 = vmatprep.subr.bf16.mxu0 0
      %2581 = vmatpush1.bf16.msra.mxu0 %v2421
      %2582 = vmatprep.mubr.bf16.mxu0 %v1903
      %2583 = vmatmul.mubr.bf16.gmra.mrb[0].mxu0 %v1902
      %v2584 = vpop.f32.mrb[0].mxu0
      %v2585 = vadd.f32 0.0, %v2584
      %v2586 = vpop.f32.mrb[0].mxu0
      %v2587 = vpop.f32.mrb[0].mxu0
      %v2588 = vadd.f32 0.0, %v2587
      %v2589 = vpop.f32.mrb[0].mxu0
      %2590 = vmatprep.mubr.bf16.mxu0 %v1912
      %2591 = vmatmul.mubr.bf16.gmra.mrb[0].mxu0 %v1911
      %v2592 = vpop.f32.mrb[0].mxu0
      %v2593 = vadd.f32 0.0, %v2592
      %v2594 = vpop.f32.mrb[0].mxu0
      %v2595 = vpop.f32.mrb[0].mxu0
      %v2596 = vadd.f32 0.0, %v2595
      %v2597 = vpop.f32.mrb[0].mxu0
      %2598 = vmatprep.mubr.bf16.mxu0 %v1921
      %2599 = vmatmul.mubr.bf16.gmra.mrb[0].mxu0 %v1920
      %v2600 = vpop.f32.mrb[0].mxu0
      %v2601 = vadd.f32 0.0, %v2600
      %v2602 = vpop.f32.mrb[0].mxu0
      %v2603 = vpop.f32.mrb[0].mxu0
      %v2604 = vadd.f32 0.0, %v2603
      %v2605 = vpop.f32.mrb[0].mxu0
      %2606 = vmatprep.mubr.bf16.mxu0 %v1930
      %2607 = vmatmul.mubr.bf16.gmra.mrb[0].mxu0 %v1929
      %v2608 = vpop.f32.mrb[0].mxu0
      %v2609 = vadd.f32 0.0, %v2608
      %v2610 = vpop.f32.mrb[0].mxu0
      %v2611 = vpop.f32.mrb[0].mxu0
      %v2612 = vadd.f32 0.0, %v2611
      %v2613 = vpop.f32.mrb[0].mxu0
      %2614 = vmatprep.mubr.bf16.mxu0 %v1939
      %2615 = vmatmul.mubr.bf16.gmra.mrb[0].mxu0 %v1938
      %v2616 = vpop.f32.mrb[0].mxu0
      %v2617 = vadd.f32 0.0, %v2616
      %v2618 = vpop.f32.mrb[0].mxu0
      %v2619 = vpop.f32.mrb[0].mxu0
      %v2620 = vadd.f32 0.0, %v2619
      %v2621 = vpop.f32.mrb[0].mxu0
      %2622 = vmatprep.mubr.bf16.mxu0 %v1948
      %2623 = vmatmul.mubr.bf16.gmra.mrb[0].mxu0 %v1947
      %v2624 = vpop.f32.mrb[0].mxu0
      %v2625 = vadd.f32 0.0, %v2624
      %v2626 = vpop.f32.mrb[0].mxu0
      %v2627 = vpop.f32.mrb[0].mxu0
      %v2628 = vadd.f32 0.0, %v2627
      %v2629 = vpop.f32.mrb[0].mxu0
      %2630 = vmatprep.mubr.bf16.mxu0 %v1957
      %2631 = vmatmul.mubr.bf16.gmra.mrb[0].mxu0 %v1956
      %v2632 = vpop.f32.mrb[0].mxu0
      %v2633 = vadd.f32 0.0, %v2632
      %v2634 = vpop.f32.mrb[0].mxu0
      %v2635 = vpop.f32.mrb[0].mxu0
      %v2636 = vadd.f32 0.0, %v2635
      %v2637 = vpop.f32.mrb[0].mxu0
      %2638 = vmatprep.mubr.bf16.mxu0 %v1966
      %2639 = vmatmul.mubr.bf16.gmra.mrb[0].mxu0 %v1965
      %v2640 = vpop.f32.mrb[0].mxu0
      %v2641 = vadd.f32 0.0, %v2640
      %v2642 = vpop.f32.mrb[0].mxu0
      %v2643 = vpop.f32.mrb[0].mxu0
      %v2644 = vadd.f32 0.0, %v2643
      %v2645 = vpop.f32.mrb[0].mxu0
      %2646 = vdwg.mxu0
      %2647 = vmatprep.subr.bf16.mxu0 0
      %2648 = vmatpush1.bf16.msra.mxu0 %v2422
      %2649 = vmatprep.subr.bf16.mxu0 0
      %2650 = vmatpush1.bf16.msra.mxu0 %v2423
      %2651 = vmatprep.subr.bf16.mxu0 0
      %2652 = vmatpush1.bf16.msra.mxu0 %v2424
      %2653 = vmatprep.subr.bf16.mxu0 0
      %2654 = vmatpush1.bf16.msra.mxu0 %v2425
      %2655 = vmatprep.subr.bf16.mxu0 0
      %2656 = vmatpush1.bf16.msra.mxu0 %v2426
      %2657 = vmatprep.subr.bf16.mxu0 0
      %2658 = vmatpush1.bf16.msra.mxu0 %v2427
      %2659 = vmatprep.subr.bf16.mxu0 0
      %2660 = vmatpush1.bf16.msra.mxu0 %v2428
      %2661 = vmatprep.subr.bf16.mxu0 0
      %2662 = vmatpush1.bf16.msra.mxu0 %v2429
      %2663 = vmatprep.subr.bf16.mxu0 0
      %2664 = vmatpush1.bf16.msra.mxu0 %v2430
      %2665 = vmatprep.subr.bf16.mxu0 0
      %2666 = vmatpush1.bf16.msra.mxu0 %v2431
      %2667 = vmatprep.subr.bf16.mxu0 0
      %2668 = vmatpush1.bf16.msra.mxu0 %v2432
      %2669 = vmatprep.subr.bf16.mxu0 0
      %2670 = vmatpush1.bf16.msra.mxu0 %v2433
      %2671 = vmatprep.subr.bf16.mxu0 0
      %2672 = vmatpush1.bf16.msra.mxu0 %v2434
      %2673 = vmatprep.subr.bf16.mxu0 0
      %2674 = vmatpush1.bf16.msra.mxu0 %v2435
      %2675 = vmatprep.subr.bf16.mxu0 0
      %2676 = vmatpush1.bf16.msra.mxu0 %v2436
      %2677 = vmatprep.subr.bf16.mxu0 0
      %2678 = vmatpush1.bf16.msra.mxu0 %v2437
      %2679 = vmatprep.mubr.bf16.mxu0 %v1905
      %2680 = vmatmul.mubr.bf16.gmra.mrb[0].mxu0 %v1904
      %v2681 = vpop.f32.mrb[0].mxu0
      %v2682 = vadd.f32 %v2585, %v2681
      %v2683 = vpop.f32.mrb[0].mxu0
      %v2684 = vpop.f32.mrb[0].mxu0
      %v2685 = vadd.f32 %v2588, %v2684
      %v2686 = vpop.f32.mrb[0].mxu0
      %2687 = vmatprep.mubr.bf16.mxu0 %v1914
      %2688 = vmatmul.mubr.bf16.gmra.mrb[0].mxu0 %v1913
      %v2689 = vpop.f32.mrb[0].mxu0
      %v2690 = vadd.f32 %v2593, %v2689
      %v2691 = vpop.f32.mrb[0].mxu0
      %v2692 = vpop.f32.mrb[0].mxu0
      %v2693 = vadd.f32 %v2596, %v2692
      %v2694 = vpop.f32.mrb[0].mxu0
      %2695 = vmatprep.mubr.bf16.mxu0 %v1923
      %2696 = vmatmul.mubr.bf16.gmra.mrb[0].mxu0 %v1922
      %v2697 = vpop.f32.mrb[0].mxu0
      %v2698 = vadd.f32 %v2601, %v2697
      %v2699 = vpop.f32.mrb[0].mxu0
      %v2700 = vpop.f32.mrb[0].mxu0
      %v2701 = vadd.f32 %v2604, %v2700
      %v2702 = vpop.f32.mrb[0].mxu0
      %2703 = vmatprep.mubr.bf16.mxu0 %v1932
      %2704 = vmatmul.mubr.bf16.gmra.mrb[0].mxu0 %v1931
      %v2705 = vpop.f32.mrb[0].mxu0
      %v2706 = vadd.f32 %v2609, %v2705
      %v2707 = vpop.f32.mrb[0].mxu0
      %v2708 = vpop.f32.mrb[0].mxu0
      %v2709 = vadd.f32 %v2612, %v2708
      %v2710 = vpop.f32.mrb[0].mxu0
      %2711 = vmatprep.mubr.bf16.mxu0 %v1941
      %2712 = vmatmul.mubr.bf16.gmra.mrb[0].mxu0 %v1940
      %v2713 = vpop.f32.mrb[0].mxu0
      %v2714 = vadd.f32 %v2617, %v2713
      %v2715 = vpop.f32.mrb[0].mxu0
      %v2716 = vpop.f32.mrb[0].mxu0
      %v2717 = vadd.f32 %v2620, %v2716
      %v2718 = vpop.f32.mrb[0].mxu0
      %2719 = vmatprep.mubr.bf16.mxu0 %v1950
      %2720 = vmatmul.mubr.bf16.gmra.mrb[0].mxu0 %v1949
      %v2721 = vpop.f32.mrb[0].mxu0
      %v2722 = vadd.f32 %v2625, %v2721
      %v2723 = vpop.f32.mrb[0].mxu0
      %v2724 = vpop.f32.mrb[0].mxu0
      %v2725 = vadd.f32 %v2628, %v2724
      %v2726 = vpop.f32.mrb[0].mxu0
      %2727 = vmatprep.mubr.bf16.mxu0 %v1959
      %2728 = vmatmul.mubr.bf16.gmra.mrb[0].mxu0 %v1958
      %v2729 = vpop.f32.mrb[0].mxu0
      %v2730 = vadd.f32 %v2633, %v2729
      %v2731 = vpop.f32.mrb[0].mxu0
      %v2732 = vpop.f32.mrb[0].mxu0
      %v2733 = vadd.f32 %v2636, %v2732
      %v2734 = vpop.f32.mrb[0].mxu0
      %2735 = vmatprep.mubr.bf16.mxu0 %v1968
      %2736 = vmatmul.mubr.bf16.gmra.mrb[0].mxu0 %v1967
      %v2737 = vpop.f32.mrb[0].mxu0
      %v2738 = vadd.f32 %v2641, %v2737
      %v2739 = vpop.f32.mrb[0].mxu0
      %v2740 = vpop.f32.mrb[0].mxu0
      %v2741 = vadd.f32 %v2644, %v2740
      %v2742 = vpop.f32.mrb[0].mxu0
      %2743 = vdwg.mxu0
      %2744 = vmatprep.subr.bf16.mxu0 0
      %2745 = vmatpush1.bf16.msra.mxu0 %v2438
      %2746 = vmatprep.subr.bf16.mxu0 0
      %2747 = vmatpush1.bf16.msra.mxu0 %v2439
      %2748 = vmatprep.subr.bf16.mxu0 0
      %2749 = vmatpush1.bf16.msra.mxu0 %v2440
      %2750 = vmatprep.subr.bf16.mxu0 0
      %2751 = vmatpush1.bf16.msra.mxu0 %v2441
      %2752 = vmatprep.subr.bf16.mxu0 0
      %2753 = vmatpush1.bf16.msra.mxu0 %v2442
      %2754 = vmatprep.subr.bf16.mxu0 0
      %2755 = vmatpush1.bf16.msra.mxu0 %v2443
      %2756 = vmatprep.subr.bf16.mxu0 0
      %2757 = vmatpush1.bf16.msra.mxu0 %v2444
      %2758 = vmatprep.subr.bf16.mxu0 0
      %2759 = vmatpush1.bf16.msra.mxu0 %v2445
      %2760 = vmatprep.subr.bf16.mxu0 0
      %2761 = vmatpush1.bf16.msra.mxu0 %v2446
      %2762 = vmatprep.subr.bf16.mxu0 0
      %2763 = vmatpush1.bf16.msra.mxu0 %v2447
      %2764 = vmatprep.subr.bf16.mxu0 0
      %2765 = vmatpush1.bf16.msra.mxu0 %v2448
      %2766 = vmatprep.subr.bf16.mxu0 0
      %2767 = vmatpush1.bf16.msra.mxu0 %v2449
      %2768 = vmatprep.subr.bf16.mxu0 0
      %2769 = vmatpush1.bf16.msra.mxu0 %v2450
      %2770 = vmatprep.subr.bf16.mxu0 0
      %2771 = vmatpush1.bf16.msra.mxu0 %v2451
      %2772 = vmatprep.subr.bf16.mxu0 0
      %2773 = vmatpush1.bf16.msra.mxu0 %v2452
      %2774 = vmatprep.subr.bf16.mxu0 0
      %2775 = vmatpush1.bf16.msra.mxu0 %v2453
      %2776 = vmatprep.mubr.bf16.mxu0 %v1907
      %2777 = vmatmul.mubr.bf16.gmra.mrb[0].mxu0 %v1906
      %v2778 = vpop.f32.mrb[0].mxu0
      %v2779 = vadd.f32 %v2682, %v2778
      %v2780 = vpop.f32.mrb[0].mxu0
      %v2781 = vpop.f32.mrb[0].mxu0
      %v2782 = vadd.f32 %v2685, %v2781
      %v2783 = vpop.f32.mrb[0].mxu0
      %2784 = vmatprep.mubr.bf16.mxu0 %v1916
      %2785 = vmatmul.mubr.bf16.gmra.mrb[0].mxu0 %v1915
      %v2786 = vpop.f32.mrb[0].mxu0
      %v2787 = vadd.f32 %v2690, %v2786
      %v2788 = vpop.f32.mrb[0].mxu0
      %v2789 = vpop.f32.mrb[0].mxu0
      %v2790 = vadd.f32 %v2693, %v2789
      %v2791 = vpop.f32.mrb[0].mxu0
      %2792 = vmatprep.mubr.bf16.mxu0 %v1925
      %2793 = vmatmul.mubr.bf16.gmra.mrb[0].mxu0 %v1924
      %v2794 = vpop.f32.mrb[0].mxu0
      %v2795 = vadd.f32 %v2698, %v2794
      %v2796 = vpop.f32.mrb[0].mxu0
      %v2797 = vpop.f32.mrb[0].mxu0
      %v2798 = vadd.f32 %v2701, %v2797
      %v2799 = vpop.f32.mrb[0].mxu0
      %2800 = vmatprep.mubr.bf16.mxu0 %v1934
      %2801 = vmatmul.mubr.bf16.gmra.mrb[0].mxu0 %v1933
      %v2802 = vpop.f32.mrb[0].mxu0
      %v2803 = vadd.f32 %v2706, %v2802
      %v2804 = vpop.f32.mrb[0].mxu0
      %v2805 = vpop.f32.mrb[0].mxu0
      %v2806 = vadd.f32 %v2709, %v2805
      %v2807 = vpop.f32.mrb[0].mxu0
      %2808 = vmatprep.mubr.bf16.mxu0 %v1943
      %2809 = vmatmul.mubr.bf16.gmra.mrb[0].mxu0 %v1942
      %v2810 = vpop.f32.mrb[0].mxu0
      %v2811 = vadd.f32 %v2714, %v2810
      %v2812 = vpop.f32.mrb[0].mxu0
      %v2813 = vpop.f32.mrb[0].mxu0
      %v2814 = vadd.f32 %v2717, %v2813
      %v2815 = vpop.f32.mrb[0].mxu0
      %2816 = vmatprep.mubr.bf16.mxu0 %v1952
      %2817 = vmatmul.mubr.bf16.gmra.mrb[0].mxu0 %v1951
      %v2818 = vpop.f32.mrb[0].mxu0
      %v2819 = vadd.f32 %v2722, %v2818
      %v2820 = vpop.f32.mrb[0].mxu0
      %v2821 = vpop.f32.mrb[0].mxu0
      %v2822 = vadd.f32 %v2725, %v2821
      %v2823 = vpop.f32.mrb[0].mxu0
      %2824 = vmatprep.mubr.bf16.mxu0 %v1961
      %2825 = vmatmul.mubr.bf16.gmra.mrb[0].mxu0 %v1960
      %v2826 = vpop.f32.mrb[0].mxu0
      %v2827 = vadd.f32 %v2730, %v2826
      %v2828 = vpop.f32.mrb[0].mxu0
      %v2829 = vpop.f32.mrb[0].mxu0
      %v2830 = vadd.f32 %v2733, %v2829
      %v2831 = vpop.f32.mrb[0].mxu0
      %2832 = vmatprep.mubr.bf16.mxu0 %v1970
      %2833 = vmatmul.mubr.bf16.gmra.mrb[0].mxu0 %v1969
      %v2834 = vpop.f32.mrb[0].mxu0
      %v2835 = vadd.f32 %v2738, %v2834
      %v2836 = vpop.f32.mrb[0].mxu0
      %v2837 = vpop.f32.mrb[0].mxu0
      %v2838 = vadd.f32 %v2741, %v2837
      %v2839 = vpop.f32.mrb[0].mxu0
      %2840 = vdwg.mxu0
      %2841 = vmatprep.subr.bf16.mxu0 0
      %2842 = vmatpush1.bf16.msra.mxu0 %v2454
      %2843 = vmatprep.subr.bf16.mxu0 0
      %2844 = vmatpush1.bf16.msra.mxu0 %v2455
      %2845 = vmatprep.subr.bf16.mxu0 0
      %2846 = vmatpush1.bf16.msra.mxu0 %v2456
      %2847 = vmatprep.subr.bf16.mxu0 0
      %2848 = vmatpush1.bf16.msra.mxu0 %v2457
      %2849 = vmatprep.subr.bf16.mxu0 0
      %2850 = vmatpush1.bf16.msra.mxu0 %v2458
      %2851 = vmatprep.subr.bf16.mxu0 0
      %2852 = vmatpush1.bf16.msra.mxu0 %v2459
      %2853 = vmatprep.subr.bf16.mxu0 0
      %2854 = vmatpush1.bf16.msra.mxu0 %v2460
      %2855 = vmatprep.subr.bf16.mxu0 0
      %2856 = vmatpush1.bf16.msra.mxu0 %v2461
      %2857 = vmatprep.subr.bf16.mxu0 0
      %2858 = vmatpush1.bf16.msra.mxu0 %v2462
      %2859 = vmatprep.subr.bf16.mxu0 0
      %2860 = vmatpush1.bf16.msra.mxu0 %v2463
      %2861 = vmatprep.subr.bf16.mxu0 0
      %2862 = vmatpush1.bf16.msra.mxu0 %v2464
      %2863 = vmatprep.subr.bf16.mxu0 0
      %2864 = vmatpush1.bf16.msra.mxu0 %v2465
      %2865 = vmatprep.subr.bf16.mxu0 0
      %2866 = vmatpush1.bf16.msra.mxu0 %v2466
      %2867 = vmatprep.subr.bf16.mxu0 0
      %2868 = vmatpush1.bf16.msra.mxu0 %v2467
      %2869 = vmatprep.subr.bf16.mxu0 0
      %2870 = vmatpush1.bf16.msra.mxu0 %v2468
      %2871 = vmatprep.subr.bf16.mxu0 0
      %2872 = vmatpush1.bf16.msra.mxu0 %v2469
      %2873 = vmatprep.mubr.bf16.mxu0 %v1909
      %2874 = vmatmul.mubr.bf16.gmra.mrb[0].mxu0 %v1908
      %v2875 = vpop.f32.mrb[0].mxu0
      %v2876 = vadd.f32 %v2779, %v2875
      %v2877 = vpop.f32.mrb[0].mxu0
      %v2878 = vpop.f32.mrb[0].mxu0
      %v2879 = vadd.f32 %v2782, %v2878
      %v2880 = vpop.f32.mrb[0].mxu0
      %2881 = vmatprep.mubr.bf16.mxu0 %v1918
      %2882 = vmatmul.mubr.bf16.gmra.mrb[0].mxu0 %v1917
      %v2883 = vpop.f32.mrb[0].mxu0
      %v2884 = vadd.f32 %v2787, %v2883
      %v2885 = vpop.f32.mrb[0].mxu0
      %v2886 = vpop.f32.mrb[0].mxu0
      %v2887 = vadd.f32 %v2790, %v2886
      %v2888 = vpop.f32.mrb[0].mxu0
      %2889 = vmatprep.mubr.bf16.mxu0 %v1927
      %2890 = vmatmul.mubr.bf16.gmra.mrb[0].mxu0 %v1926
      %v2891 = vpop.f32.mrb[0].mxu0
      %v2892 = vadd.f32 %v2795, %v2891
      %v2893 = vpop.f32.mrb[0].mxu0
      %v2894 = vpop.f32.mrb[0].mxu0
      %v2895 = vadd.f32 %v2798, %v2894
      %v2896 = vpop.f32.mrb[0].mxu0
      %2897 = vmatprep.mubr.bf16.mxu0 %v1936
      %2898 = vmatmul.mubr.bf16.gmra.mrb[0].mxu0 %v1935
      %v2899 = vpop.f32.mrb[0].mxu0
      %v2900 = vadd.f32 %v2803, %v2899
      %v2901 = vpop.f32.mrb[0].mxu0
      %v2902 = vpop.f32.mrb[0].mxu0
      %v2903 = vadd.f32 %v2806, %v2902
      %v2904 = vpop.f32.mrb[0].mxu0
      %2905 = vmatprep.mubr.bf16.mxu0 %v1945
      %2906 = vmatmul.mubr.bf16.gmra.mrb[0].mxu0 %v1944
      %v2907 = vpop.f32.mrb[0].mxu0
      %v2908 = vadd.f32 %v2811, %v2907
      %v2909 = vpop.f32.mrb[0].mxu0
      %v2910 = vpop.f32.mrb[0].mxu0
      %v2911 = vadd.f32 %v2814, %v2910
      %v2912 = vpop.f32.mrb[0].mxu0
      %2913 = vmatprep.mubr.bf16.mxu0 %v1954
      %2914 = vmatmul.mubr.bf16.gmra.mrb[0].mxu0 %v1953
      %v2915 = vpop.f32.mrb[0].mxu0
      %v2916 = vadd.f32 %v2819, %v2915
      %v2917 = vpop.f32.mrb[0].mxu0
      %v2918 = vpop.f32.mrb[0].mxu0
      %v2919 = vadd.f32 %v2822, %v2918
      %v2920 = vpop.f32.mrb[0].mxu0
      %2921 = vmatprep.mubr.bf16.mxu0 %v1963
      %2922 = vmatmul.mubr.bf16.gmra.mrb[0].mxu0 %v1962
      %v2923 = vpop.f32.mrb[0].mxu0
      %v2924 = vadd.f32 %v2827, %v2923
      %v2925 = vpop.f32.mrb[0].mxu0
      %v2926 = vpop.f32.mrb[0].mxu0
      %v2927 = vadd.f32 %v2830, %v2926
      %v2928 = vpop.f32.mrb[0].mxu0
      %2929 = vmatprep.mubr.bf16.mxu0 %v1972
      %2930 = vmatmul.mubr.bf16.gmra.mrb[0].mxu0 %v1971
      %v2931 = vpop.f32.mrb[0].mxu0
      %v2932 = vadd.f32 %v2835, %v2931
      %v2933 = vpop.f32.mrb[0].mxu0
      %v2934 = vpop.f32.mrb[0].mxu0
      %v2935 = vadd.f32 %v2838, %v2934
      %v2936 = vpop.f32.mrb[0].mxu0
      %2937 = vdwg.mxu0
      %2938 = vmatprep.subr.bf16.mxu0 0
      %2939 = vmatpush1.bf16.msra.mxu0 %v2470
      %2940 = vmatprep.subr.bf16.mxu0 0
      %2941 = vmatpush1.bf16.msra.mxu0 %v2471
      %2942 = vmatprep.subr.bf16.mxu0 0
      %2943 = vmatpush1.bf16.msra.mxu0 %v2472
      %2944 = vmatprep.subr.bf16.mxu0 0
      %2945 = vmatpush1.bf16.msra.mxu0 %v2473
      %2946 = vmatprep.subr.bf16.mxu0 0
      %2947 = vmatpush1.bf16.msra.mxu0 %v2474
      %2948 = vmatprep.subr.bf16.mxu0 0
      %2949 = vmatpush1.bf16.msra.mxu0 %v2475
      %2950 = vmatprep.subr.bf16.mxu0 0
      %2951 = vmatpush1.bf16.msra.mxu0 %v2476
      %2952 = vmatprep.subr.bf16.mxu0 0
      %2953 = vmatpush1.bf16.msra.mxu0 %v2477
      %2954 = vmatprep.subr.bf16.mxu0 0
      %2955 = vmatpush1.bf16.msra.mxu0 0
      %2956 = vmatprep.subr.bf16.mxu0 0
      %2957 = vmatpush1.bf16.msra.mxu0 0
      %2958 = vmatprep.subr.bf16.mxu0 0
      %2959 = vmatpush1.bf16.msra.mxu0 0
      %2960 = vmatprep.subr.bf16.mxu0 0
      %2961 = vmatpush1.bf16.msra.mxu0 0
      %2962 = vmatprep.subr.bf16.mxu0 0
      %2963 = vmatpush1.bf16.msra.mxu0 0
      %2964 = vmatprep.subr.bf16.mxu0 0
      %2965 = vmatpush1.bf16.msra.mxu0 0
      %2966 = vmatprep.subr.bf16.mxu0 0
      %2967 = vmatpush1.bf16.msra.mxu0 0
      %2968 = vmatprep.subr.bf16.mxu0 0
      %2969 = vmatpush1.bf16.msra.mxu0 0
      %2970 = vmatprep.mubr.bf16.mxu0 0
      %2971 = vmatmul.mubr.bf16.gmra.mrb[0].mxu0 %v1910
      %v2972 = vpop.f32.mrb[0].mxu0
      %v2973 = vadd.f32 %v2876, %v2972
      %v2974 = vpop.f32.mrb[0].mxu0
      %v2975 = vpop.f32.mrb[0].mxu0
      %v2976 = vadd.f32 %v2879, %v2975
      %v2977 = vpop.f32.mrb[0].mxu0
      %2978 = vmatprep.mubr.bf16.mxu0 0
      %2979 = vmatmul.mubr.bf16.gmra.mrb[0].mxu0 %v1919
      %v2980 = vpop.f32.mrb[0].mxu0
      %v2981 = vadd.f32 %v2884, %v2980
      %v2982 = vpop.f32.mrb[0].mxu0
      %v2983 = vpop.f32.mrb[0].mxu0
      %v2984 = vadd.f32 %v2887, %v2983
      %v2985 = vpop.f32.mrb[0].mxu0
      %2986 = vmatprep.mubr.bf16.mxu0 0
      %2987 = vmatmul.mubr.bf16.gmra.mrb[0].mxu0 %v1928
      %v2988 = vpop.f32.mrb[0].mxu0
      %v2989 = vadd.f32 %v2892, %v2988
      %v2990 = vpop.f32.mrb[0].mxu0
      %v2991 = vpop.f32.mrb[0].mxu0
      %v2992 = vadd.f32 %v2895, %v2991
      %v2993 = vpop.f32.mrb[0].mxu0
      %2994 = vmatprep.mubr.bf16.mxu0 0
      %2995 = vmatmul.mubr.bf16.gmra.mrb[0].mxu0 %v1937
      %v2996 = vpop.f32.mrb[0].mxu0
      %v2997 = vadd.f32 %v2900, %v2996
      %v2998 = vpop.f32.mrb[0].mxu0
      %v2999 = vpop.f32.mrb[0].mxu0
      %v3000 = vadd.f32 %v2903, %v2999
      %v3001 = vpop.f32.mrb[0].mxu0
      %3002 = vmatprep.mubr.bf16.mxu0 0
      %3003 = vmatmul.mubr.bf16.gmra.mrb[0].mxu0 %v1946
      %v3004 = vpop.f32.mrb[0].mxu0
      %v3005 = vadd.f32 %v2908, %v3004
      %v3006 = vpop.f32.mrb[0].mxu0
      %v3007 = vpop.f32.mrb[0].mxu0
      %v3008 = vadd.f32 %v2911, %v3007
      %v3009 = vpop.f32.mrb[0].mxu0
      %3010 = vmatprep.mubr.bf16.mxu0 0
      %3011 = vmatmul.mubr.bf16.gmra.mrb[0].mxu0 %v1955
      %v3012 = vpop.f32.mrb[0].mxu0
      %v3013 = vadd.f32 %v2916, %v3012
      %v3014 = vpop.f32.mrb[0].mxu0
      %v3015 = vpop.f32.mrb[0].mxu0
      %v3016 = vadd.f32 %v2919, %v3015
      %v3017 = vpop.f32.mrb[0].mxu0
      %3018 = vmatprep.mubr.bf16.mxu0 0
      %3019 = vmatmul.mubr.bf16.gmra.mrb[0].mxu0 %v1964
      %v3020 = vpop.f32.mrb[0].mxu0
      %v3021 = vadd.f32 %v2924, %v3020
      %v3022 = vpop.f32.mrb[0].mxu0
      %v3023 = vpop.f32.mrb[0].mxu0
      %v3024 = vadd.f32 %v2927, %v3023
      %v3025 = vpop.f32.mrb[0].mxu0
      %3026 = vmatprep.mubr.bf16.mxu0 0
      %3027 = vmatmul.mubr.bf16.gmra.mrb[0].mxu0 %v1973
      %v3028 = vpop.f32.mrb[0].mxu0
      %v3029 = vadd.f32 %v2932, %v3028
      %v3030 = vpop.f32.mrb[0].mxu0
      %v3031 = vpop.f32.mrb[0].mxu0
      %v3032 = vadd.f32 %v2935, %v3031
      %v3033 = vpop.f32.mrb[0].mxu0
      %3034 = vdwg.mxu0
      %s3035 = scalar_lea.vmem %s6, 2
      %v3036 = vld [vmem:[%s3035] sm:$0x3]
      %v3037 = vlaneseq
      %v3038 = vshrl.u32 %v3037, 7
      %v3039 = vsub.s32 0, %v3038
      %v3040 = vrot.slane %v3036, %v3039
      %v3041 = vmul.f32 %v2973, %v3040
      %v3042 = vmul.f32 %v2976, %v3040
      %v3043 = vmul.f32 %v2981, %v3040
      %v3044 = vmul.f32 %v2984, %v3040
      %v3045 = vmul.f32 %v2989, %v3040
      %v3046 = vmul.f32 %v2992, %v3040
      %v3047 = vmul.f32 %v2997, %v3040
      %v3048 = vmul.f32 %v3000, %v3040
      %v3049 = vmul.f32 %v3005, %v3040
      %v3050 = vmul.f32 %v3008, %v3040
      %v3051 = vmul.f32 %v3013, %v3040
      %v3052 = vmul.f32 %v3016, %v3040
      %v3053 = vmul.f32 %v3021, %v3040
      %v3054 = vmul.f32 %v3024, %v3040
      %v3055 = vmul.f32 %v3029, %v3040
      %v3056 = vmul.f32 %v3032, %v3040
      %v3057 = vlaneseq
      %v3058 = vshrl.u32 %v3057, 7
      %v3059 = vsub.s32 1, %v3058
      %v3060 = vrot.slane %v3036, %v3059
      %v3061 = vadd.f32 %v3041, %v3060
      %v3062 = vadd.f32 %v3042, %v3060
      %v3063 = vadd.f32 %v3043, %v3060
      %v3064 = vadd.f32 %v3044, %v3060
      %v3065 = vadd.f32 %v3045, %v3060
      %v3066 = vadd.f32 %v3046, %v3060
      %v3067 = vadd.f32 %v3047, %v3060
      %v3068 = vadd.f32 %v3048, %v3060
      %v3069 = vadd.f32 %v3049, %v3060
      %v3070 = vadd.f32 %v3050, %v3060
      %v3071 = vadd.f32 %v3051, %v3060
      %v3072 = vadd.f32 %v3052, %v3060
      %v3073 = vadd.f32 %v3053, %v3060
      %v3074 = vadd.f32 %v3054, %v3060
      %v3075 = vadd.f32 %v3055, %v3060
      %v3076 = vadd.f32 %v3056, %v3060
      %vm3077 = vcmp.gt.f32.partialorder %v3061, 0.0
      %vm3078 = vcmp.gt.f32.partialorder %v3062, 0.0
      %vm3079 = vcmp.gt.f32.partialorder %v3063, 0.0
      %vm3080 = vcmp.gt.f32.partialorder %v3064, 0.0
      %vm3081 = vcmp.gt.f32.partialorder %v3065, 0.0
      %vm3082 = vcmp.gt.f32.partialorder %v3066, 0.0
      %vm3083 = vcmp.gt.f32.partialorder %v3067, 0.0
      %vm3084 = vcmp.gt.f32.partialorder %v3068, 0.0
      %vm3085 = vcmp.gt.f32.partialorder %v3069, 0.0
      %vm3086 = vcmp.gt.f32.partialorder %v3070, 0.0
      %vm3087 = vcmp.gt.f32.partialorder %v3071, 0.0
      %vm3088 = vcmp.gt.f32.partialorder %v3072, 0.0
      %vm3089 = vcmp.gt.f32.partialorder %v3073, 0.0
      %vm3090 = vcmp.gt.f32.partialorder %v3074, 0.0
      %vm3091 = vcmp.gt.f32.partialorder %v3075, 0.0
      %vm3092 = vcmp.gt.f32.partialorder %v3076, 0.0
      %v3093 = vmul.f32 %v3061, 0.01
      %v3094 = vmul.f32 %v3062, 0.01
      %v3095 = vmul.f32 %v3063, 0.01
      %v3096 = vmul.f32 %v3064, 0.01
      %v3097 = vmul.f32 %v3065, 0.01
      %v3098 = vmul.f32 %v3066, 0.01
      %v3099 = vmul.f32 %v3067, 0.01
      %v3100 = vmul.f32 %v3068, 0.01
      %v3101 = vmul.f32 %v3069, 0.01
      %v3102 = vmul.f32 %v3070, 0.01
      %v3103 = vmul.f32 %v3071, 0.01
      %v3104 = vmul.f32 %v3072, 0.01
      %v3105 = vmul.f32 %v3073, 0.01
      %v3106 = vmul.f32 %v3074, 0.01
      %v3107 = vmul.f32 %v3075, 0.01
      %v3108 = vmul.f32 %v3076, 0.01
      %v3109 = vsel %vm3077, %v3061, %v3093
      %v3110 = vsel %vm3078, %v3062, %v3094
      %v3111 = vsel %vm3079, %v3063, %v3095
      %v3112 = vsel %vm3080, %v3064, %v3096
      %v3113 = vsel %vm3081, %v3065, %v3097
      %v3114 = vsel %vm3082, %v3066, %v3098
      %v3115 = vsel %vm3083, %v3067, %v3099
      %v3116 = vsel %vm3084, %v3068, %v3100
      %v3117 = vsel %vm3085, %v3069, %v3101
      %v3118 = vsel %vm3086, %v3070, %v3102
      %v3119 = vsel %vm3087, %v3071, %v3103
      %v3120 = vsel %vm3088, %v3072, %v3104
      %v3121 = vsel %vm3089, %v3073, %v3105
      %v3122 = vsel %vm3090, %v3074, %v3106
      %v3123 = vsel %vm3091, %v3075, %v3107
      %v3124 = vsel %vm3092, %v3076, %v3108
      %3125 = vst [vmem:[%s356 + $0x1] sm:$0xff] %v3109
      %3126 = vst [vmem:[%s356 + $0x9] sm:$0xff] %v3110
      %3127 = vst [vmem:[%s356 + $0x19] sm:$0xff] %v3111
      %3128 = vst [vmem:[%s356 + $0x21] sm:$0xff] %v3112
      %3129 = vst [vmem:[%s356 + $0x31] sm:$0xff] %v3113
      %3130 = vst [vmem:[%s356 + $0x39] sm:$0xff] %v3114
      %3131 = vst [vmem:[%s356 + $0x49] sm:$0xff] %v3115
      %3132 = vst [vmem:[%s356 + $0x51] sm:$0xff] %v3116
      %3133 = vst [vmem:[%s356 + $0x61] sm:$0xff] %v3117
      %3134 = vst [vmem:[%s356 + $0x69] sm:$0xff] %v3118
      %3135 = vst [vmem:[%s356 + $0x79] sm:$0xff] %v3119
      %3136 = vst [vmem:[%s356 + $0x81] sm:$0xff] %v3120
      %3137 = vst [vmem:[%s356 + $0x91] sm:$0xff] %v3121
      %3138 = vst [vmem:[%s356 + $0x99] sm:$0xff] %v3122
      %3139 = vst [vmem:[%s356 + $0xa9] sm:$0xff] %v3123
      %3140 = vst [vmem:[%s356 + $0xb1] sm:$0xff] %v3124
      %v3141 = vld [vmem:[#allocation2] sm:$0xff]
      %v3142 = vld [vmem:[#allocation2 + $0x8] sm:$0xff]
      %v3143 = vld [vmem:[#allocation2 + $0x18] sm:$0xff]
      %v3144 = vld [vmem:[#allocation2 + $0x20] sm:$0xff]
      %v3145 = vld [vmem:[#allocation2 + $0x30] sm:$0xff]
      %v3146 = vld [vmem:[#allocation2 + $0x38] sm:$0xff]
      %v3147 = vld [vmem:[#allocation2 + $0x48] sm:$0xff]
      %v3148 = vld [vmem:[#allocation2 + $0x50] sm:$0xff]
      %v3149 = vld [vmem:[#allocation2 + $0x60] sm:$0xff]
      %v3150 = vld [vmem:[#allocation2 + $0x68] sm:$0xff]
      %v3151 = vld [vmem:[#allocation2 + $0x78] sm:$0xff]
      %v3152 = vld [vmem:[#allocation2 + $0x80] sm:$0xff]
      %v3153 = vld [vmem:[#allocation2 + $0x90] sm:$0xff]
      %v3154 = vld [vmem:[#allocation2 + $0x98] sm:$0xff]
      %v3155 = vld [vmem:[#allocation2 + $0xa8] sm:$0xff]
      %v3156 = vld [vmem:[#allocation2 + $0xb0] sm:$0xff]
      %v3157 = vld [vmem:[#allocation2 + $0x1] sm:$0xff]
      %v3158 = vld [vmem:[#allocation2 + $0x9] sm:$0xff]
      %v3159 = vld [vmem:[#allocation2 + $0x19] sm:$0xff]
      %v3160 = vld [vmem:[#allocation2 + $0x21] sm:$0xff]
      %v3161 = vld [vmem:[#allocation2 + $0x31] sm:$0xff]
      %v3162 = vld [vmem:[#allocation2 + $0x39] sm:$0xff]
      %v3163 = vld [vmem:[#allocation2 + $0x49] sm:$0xff]
      %v3164 = vld [vmem:[#allocation2 + $0x51] sm:$0xff]
      %v3165 = vld [vmem:[#allocation2 + $0x61] sm:$0xff]
      %v3166 = vld [vmem:[#allocation2 + $0x69] sm:$0xff]
      %v3167 = vld [vmem:[#allocation2 + $0x79] sm:$0xff]
      %v3168 = vld [vmem:[#allocation2 + $0x81] sm:$0xff]
      %v3169 = vld [vmem:[#allocation2 + $0x91] sm:$0xff]
      %v3170 = vld [vmem:[#allocation2 + $0x99] sm:$0xff]
      %v3171 = vld [vmem:[#allocation2 + $0xa9] sm:$0xff]
      %v3172 = vld [vmem:[#allocation2 + $0xb1] sm:$0xff]
      %v3173 = vld [vmem:[#allocation2 + $0x2] sm:$0xff]
      %v3174 = vld [vmem:[#allocation2 + $0xa] sm:$0xff]
      %v3175 = vld [vmem:[#allocation2 + $0x1a] sm:$0xff]
      %v3176 = vld [vmem:[#allocation2 + $0x22] sm:$0xff]
      %v3177 = vld [vmem:[#allocation2 + $0x32] sm:$0xff]
      %v3178 = vld [vmem:[#allocation2 + $0x3a] sm:$0xff]
      %v3179 = vld [vmem:[#allocation2 + $0x4a] sm:$0xff]
      %v3180 = vld [vmem:[#allocation2 + $0x52] sm:$0xff]
      %v3181 = vld [vmem:[#allocation2 + $0x62] sm:$0xff]
      %v3182 = vld [vmem:[#allocation2 + $0x6a] sm:$0xff]
      %v3183 = vld [vmem:[#allocation2 + $0x7a] sm:$0xff]
      %v3184 = vld [vmem:[#allocation2 + $0x82] sm:$0xff]
      %v3185 = vld [vmem:[#allocation2 + $0x92] sm:$0xff]
      %v3186 = vld [vmem:[#allocation2 + $0x9a] sm:$0xff]
      %v3187 = vld [vmem:[#allocation2 + $0xaa] sm:$0xff]
      %v3188 = vld [vmem:[#allocation2 + $0xb2] sm:$0xff]
      %v3189 = vld [vmem:[%s356] sm:$0xff]
      %v3190 = vld [vmem:[%s356 + $0x8] sm:$0xff]
      %v3191 = vld [vmem:[%s356 + $0x18] sm:$0xff]
      %v3192 = vld [vmem:[%s356 + $0x20] sm:$0xff]
      %v3193 = vld [vmem:[%s356 + $0x30] sm:$0xff]
      %v3194 = vld [vmem:[%s356 + $0x38] sm:$0xff]
      %v3195 = vld [vmem:[%s356 + $0x48] sm:$0xff]
      %v3196 = vld [vmem:[%s356 + $0x50] sm:$0xff]
      %v3197 = vld [vmem:[%s356 + $0x60] sm:$0xff]
      %v3198 = vld [vmem:[%s356 + $0x68] sm:$0xff]
      %v3199 = vld [vmem:[%s356 + $0x78] sm:$0xff]
      %v3200 = vld [vmem:[%s356 + $0x80] sm:$0xff]
      %v3201 = vld [vmem:[%s356 + $0x90] sm:$0xff]
      %v3202 = vld [vmem:[%s356 + $0x98] sm:$0xff]
      %v3203 = vld [vmem:[%s356 + $0xa8] sm:$0xff]
      %v3204 = vld [vmem:[%s356 + $0xb0] sm:$0xff]
      %v3205 = vld [vmem:[%s356 + $0x1] sm:$0xff]
      %v3206 = vld [vmem:[%s356 + $0x9] sm:$0xff]
      %v3207 = vld [vmem:[%s356 + $0x19] sm:$0xff]
      %v3208 = vld [vmem:[%s356 + $0x21] sm:$0xff]
      %v3209 = vld [vmem:[%s356 + $0x31] sm:$0xff]
      %v3210 = vld [vmem:[%s356 + $0x39] sm:$0xff]
      %v3211 = vld [vmem:[%s356 + $0x49] sm:$0xff]
      %v3212 = vld [vmem:[%s356 + $0x51] sm:$0xff]
      %v3213 = vld [vmem:[%s356 + $0x61] sm:$0xff]
      %v3214 = vld [vmem:[%s356 + $0x69] sm:$0xff]
      %v3215 = vld [vmem:[%s356 + $0x79] sm:$0xff]
      %v3216 = vld [vmem:[%s356 + $0x81] sm:$0xff]
      %v3217 = vld [vmem:[%s356 + $0x91] sm:$0xff]
      %v3218 = vld [vmem:[%s356 + $0x99] sm:$0xff]
      %v3219 = vld [vmem:[%s356 + $0xa9] sm:$0xff]
      %v3220 = vld [vmem:[%s356 + $0xb1] sm:$0xff]
      %v3221 = vld [vmem:[%s356 + $0x2] sm:$0xff]
      %v3222 = vld [vmem:[%s356 + $0xa] sm:$0xff]
      %v3223 = vld [vmem:[%s356 + $0x1a] sm:$0xff]
      %v3224 = vld [vmem:[%s356 + $0x22] sm:$0xff]
      %v3225 = vld [vmem:[%s356 + $0x32] sm:$0xff]
      %v3226 = vld [vmem:[%s356 + $0x3a] sm:$0xff]
      %v3227 = vld [vmem:[%s356 + $0x4a] sm:$0xff]
      %v3228 = vld [vmem:[%s356 + $0x52] sm:$0xff]
      %v3229 = vld [vmem:[%s356 + $0x62] sm:$0xff]
      %v3230 = vld [vmem:[%s356 + $0x6a] sm:$0xff]
      %v3231 = vld [vmem:[%s356 + $0x7a] sm:$0xff]
      %v3232 = vld [vmem:[%s356 + $0x82] sm:$0xff]
      %v3233 = vld [vmem:[%s356 + $0x92] sm:$0xff]
      %v3234 = vld [vmem:[%s356 + $0x9a] sm:$0xff]
      %v3235 = vld [vmem:[%s356 + $0xaa] sm:$0xff]
      %v3236 = vld [vmem:[%s356 + $0xb2] sm:$0xff]
      %v3237 = vld [vmem:[%s469] sm:$0xff]
      %v3238 = vld [vmem:[%s469 + $0x8] sm:$0xff]
      %v3239 = vld [vmem:[%s469 + $0x18] sm:$0xff]
      %v3240 = vld [vmem:[%s469 + $0x20] sm:$0xff]
      %v3241 = vld [vmem:[%s469 + $0x30] sm:$0xff]
      %v3242 = vld [vmem:[%s469 + $0x38] sm:$0xff]
      %v3243 = vld [vmem:[%s469 + $0x48] sm:$0xff]
      %v3244 = vld [vmem:[%s469 + $0x50] sm:$0xff]
      %v3245 = vld [vmem:[%s469 + $0x60] sm:$0xff]
      %v3246 = vld [vmem:[%s469 + $0x68] sm:$0xff]
      %v3247 = vld [vmem:[%s469 + $0x78] sm:$0xff]
      %v3248 = vld [vmem:[%s469 + $0x80] sm:$0xff]
      %v3249 = vld [vmem:[%s469 + $0x90] sm:$0xff]
      %v3250 = vld [vmem:[%s469 + $0x98] sm:$0xff]
      %v3251 = vld [vmem:[%s469 + $0xa8] sm:$0xff]
      %v3252 = vld [vmem:[%s469 + $0xb0] sm:$0xff]
      %v3253 = vld [vmem:[%s469 + $0x1] sm:$0xff]
      %v3254 = vld [vmem:[%s469 + $0x9] sm:$0xff]
      %v3255 = vld [vmem:[%s469 + $0x19] sm:$0xff]
      %v3256 = vld [vmem:[%s469 + $0x21] sm:$0xff]
      %v3257 = vld [vmem:[%s469 + $0x31] sm:$0xff]
      %v3258 = vld [vmem:[%s469 + $0x39] sm:$0xff]
      %v3259 = vld [vmem:[%s469 + $0x49] sm:$0xff]
      %v3260 = vld [vmem:[%s469 + $0x51] sm:$0xff]
      %v3261 = vld [vmem:[%s469 + $0x61] sm:$0xff]
      %v3262 = vld [vmem:[%s469 + $0x69] sm:$0xff]
      %v3263 = vld [vmem:[%s469 + $0x79] sm:$0xff]
      %v3264 = vld [vmem:[%s469 + $0x81] sm:$0xff]
      %v3265 = vld [vmem:[%s469 + $0x91] sm:$0xff]
      %v3266 = vld [vmem:[%s469 + $0x99] sm:$0xff]
      %v3267 = vld [vmem:[%s469 + $0xa9] sm:$0xff]
      %v3268 = vld [vmem:[%s469 + $0xb1] sm:$0xff]
      %v3269 = vld [vmem:[%s469 + $0x2] sm:$0xff]
      %v3270 = vld [vmem:[%s469 + $0xa] sm:$0xff]
      %v3271 = vld [vmem:[%s469 + $0x1a] sm:$0xff]
      %v3272 = vld [vmem:[%s469 + $0x22] sm:$0xff]
      %v3273 = vld [vmem:[%s469 + $0x32] sm:$0xff]
      %v3274 = vld [vmem:[%s469 + $0x3a] sm:$0xff]
      %v3275 = vld [vmem:[%s469 + $0x4a] sm:$0xff]
      %v3276 = vld [vmem:[%s469 + $0x52] sm:$0xff]
      %v3277 = vld [vmem:[%s469 + $0x62] sm:$0xff]
      %v3278 = vld [vmem:[%s469 + $0x6a] sm:$0xff]
      %v3279 = vld [vmem:[%s469 + $0x7a] sm:$0xff]
      %v3280 = vld [vmem:[%s469 + $0x82] sm:$0xff]
      %v3281 = vld [vmem:[%s469 + $0x92] sm:$0xff]
      %v3282 = vld [vmem:[%s469 + $0x9a] sm:$0xff]
      %v3283 = vld [vmem:[%s469 + $0xaa] sm:$0xff]
      %v3284 = vld [vmem:[%s469 + $0xb2] sm:$0xff]
      %v3285 = vpack.c.bf16 %v3142, %v3141
      %v3286 = vpack.c.bf16 %v3158, %v3157
      %v3287 = vpack.c.bf16 %v3174, %v3173
      %v3288 = vpack.c.bf16 %v3190, %v3189
      %v3289 = vpack.c.bf16 %v3206, %v3205
      %v3290 = vpack.c.bf16 %v3222, %v3221
      %v3291 = vpack.c.bf16 %v3238, %v3237
      %v3292 = vpack.c.bf16 %v3254, %v3253
      %v3293 = vpack.c.bf16 %v3270, %v3269
      %v3294 = vpack.c.bf16 %v3144, %v3143
      %v3295 = vpack.c.bf16 %v3160, %v3159
      %v3296 = vpack.c.bf16 %v3176, %v3175
      %v3297 = vpack.c.bf16 %v3192, %v3191
      %v3298 = vpack.c.bf16 %v3208, %v3207
      %v3299 = vpack.c.bf16 %v3224, %v3223
      %v3300 = vpack.c.bf16 %v3240, %v3239
      %v3301 = vpack.c.bf16 %v3256, %v3255
      %v3302 = vpack.c.bf16 %v3272, %v3271
      %v3303 = vpack.c.bf16 %v3146, %v3145
      %v3304 = vpack.c.bf16 %v3162, %v3161
      %v3305 = vpack.c.bf16 %v3178, %v3177
      %v3306 = vpack.c.bf16 %v3194, %v3193
      %v3307 = vpack.c.bf16 %v3210, %v3209
      %v3308 = vpack.c.bf16 %v3226, %v3225
      %v3309 = vpack.c.bf16 %v3242, %v3241
      %v3310 = vpack.c.bf16 %v3258, %v3257
      %v3311 = vpack.c.bf16 %v3274, %v3273
      %v3312 = vpack.c.bf16 %v3148, %v3147
      %v3313 = vpack.c.bf16 %v3164, %v3163
      %v3314 = vpack.c.bf16 %v3180, %v3179
      %v3315 = vpack.c.bf16 %v3196, %v3195
      %v3316 = vpack.c.bf16 %v3212, %v3211
      %v3317 = vpack.c.bf16 %v3228, %v3227
      %v3318 = vpack.c.bf16 %v3244, %v3243
      %v3319 = vpack.c.bf16 %v3260, %v3259
      %v3320 = vpack.c.bf16 %v3276, %v3275
      %v3321 = vpack.c.bf16 %v3150, %v3149
      %v3322 = vpack.c.bf16 %v3166, %v3165
      %v3323 = vpack.c.bf16 %v3182, %v3181
      %v3324 = vpack.c.bf16 %v3198, %v3197
      %v3325 = vpack.c.bf16 %v3214, %v3213
      %v3326 = vpack.c.bf16 %v3230, %v3229
      %v3327 = vpack.c.bf16 %v3246, %v3245
      %v3328 = vpack.c.bf16 %v3262, %v3261
      %v3329 = vpack.c.bf16 %v3278, %v3277
      %v3330 = vpack.c.bf16 %v3152, %v3151
      %v3331 = vpack.c.bf16 %v3168, %v3167
      %v3332 = vpack.c.bf16 %v3184, %v3183
      %v3333 = vpack.c.bf16 %v3200, %v3199
      %v3334 = vpack.c.bf16 %v3216, %v3215
      %v3335 = vpack.c.bf16 %v3232, %v3231
      %v3336 = vpack.c.bf16 %v3248, %v3247
      %v3337 = vpack.c.bf16 %v3264, %v3263
      %v3338 = vpack.c.bf16 %v3280, %v3279
      %v3339 = vpack.c.bf16 %v3154, %v3153
      %v3340 = vpack.c.bf16 %v3170, %v3169
      %v3341 = vpack.c.bf16 %v3186, %v3185
      %v3342 = vpack.c.bf16 %v3202, %v3201
      %v3343 = vpack.c.bf16 %v3218, %v3217
      %v3344 = vpack.c.bf16 %v3234, %v3233
      %v3345 = vpack.c.bf16 %v3250, %v3249
      %v3346 = vpack.c.bf16 %v3266, %v3265
      %v3347 = vpack.c.bf16 %v3282, %v3281
      %v3348 = vpack.c.bf16 %v3156, %v3155
      %v3349 = vpack.c.bf16 %v3172, %v3171
      %v3350 = vpack.c.bf16 %v3188, %v3187
      %v3351 = vpack.c.bf16 %v3204, %v3203
      %v3352 = vpack.c.bf16 %v3220, %v3219
      %v3353 = vpack.c.bf16 %v3236, %v3235
      %v3354 = vpack.c.bf16 %v3252, %v3251
      %v3355 = vpack.c.bf16 %v3268, %v3267
      %v3356 = vpack.c.bf16 %v3284, %v3283
      %v3357 = vld [vmem:[%s3] sm:$0xf]
      %v3358 = vld [vmem:[%s3 + $0x4] sm:$0xf]
      %v3359 = vld [vmem:[%s3 + $0x8] sm:$0xf]
      %v3360 = vld [vmem:[%s3 + $0xc] sm:$0xf]
      %v3361 = vld [vmem:[%s3 + $0x10] sm:$0xf]
      %v3362 = vld [vmem:[%s3 + $0x14] sm:$0xf]
      %v3363 = vld [vmem:[%s3 + $0x18] sm:$0xf]
      %v3364 = vld [vmem:[%s3 + $0x1c] sm:$0xf]
      %v3365 = vld [vmem:[%s3 + $0x20] sm:$0xf]
      %v3366 = vld [vmem:[%s3 + $0x24] sm:$0xf]
      %v3367 = vld [vmem:[%s3 + $0x28] sm:$0xf]
      %v3368 = vld [vmem:[%s3 + $0x2c] sm:$0xf]
      %v3369 = vld [vmem:[%s3 + $0x30] sm:$0xf]
      %v3370 = vld [vmem:[%s3 + $0x34] sm:$0xf]
      %v3371 = vld [vmem:[%s3 + $0x38] sm:$0xf]
      %v3372 = vld [vmem:[%s3 + $0x3c] sm:$0xf]
      %v3373 = vld [vmem:[%s3 + $0x40] sm:$0xf]
      %v3374 = vld [vmem:[%s3 + $0x44] sm:$0xf]
      %v3375 = vld [vmem:[%s3 + $0x48] sm:$0xf]
      %v3376 = vld [vmem:[%s3 + $0x4c] sm:$0xf]
      %v3377 = vld [vmem:[%s3 + $0x50] sm:$0xf]
      %v3378 = vld [vmem:[%s3 + $0x54] sm:$0xf]
      %v3379 = vld [vmem:[%s3 + $0x58] sm:$0xf]
      %v3380 = vld [vmem:[%s3 + $0x5c] sm:$0xf]
      %v3381 = vld [vmem:[%s3 + $0x60] sm:$0xf]
      %v3382 = vld [vmem:[%s3 + $0x64] sm:$0xf]
      %v3383 = vld [vmem:[%s3 + $0x68] sm:$0xf]
      %v3384 = vld [vmem:[%s3 + $0x6c] sm:$0xf]
      %v3385 = vld [vmem:[%s3 + $0x70] sm:$0xf]
      %v3386 = vld [vmem:[%s3 + $0x74] sm:$0xf]
      %v3387 = vld [vmem:[%s3 + $0x78] sm:$0xf]
      %v3388 = vld [vmem:[%s3 + $0x7c] sm:$0xf]
      %v3389 = vld [vmem:[%s3 + $0x80] sm:$0xf]
      %v3390 = vld [vmem:[%s3 + $0x84] sm:$0xf]
      %v3391 = vld [vmem:[%s3 + $0x88] sm:$0xf]
      %v3392 = vld [vmem:[%s3 + $0x8c] sm:$0xf]
      %v3393 = vld [vmem:[%s3 + $0x90] sm:$0xf]
      %v3394 = vld [vmem:[%s3 + $0x94] sm:$0xf]
      %v3395 = vld [vmem:[%s3 + $0x98] sm:$0xf]
      %v3396 = vld [vmem:[%s3 + $0x9c] sm:$0xf]
      %v3397 = vld [vmem:[%s3 + $0xa0] sm:$0xf]
      %v3398 = vld [vmem:[%s3 + $0xa4] sm:$0xf]
      %v3399 = vld [vmem:[%s3 + $0xa8] sm:$0xf]
      %v3400 = vld [vmem:[%s3 + $0xac] sm:$0xf]
      %v3401 = vld [vmem:[%s3 + $0xb0] sm:$0xf]
      %v3402 = vld [vmem:[%s3 + $0xb4] sm:$0xf]
      %v3403 = vld [vmem:[%s3 + $0xb8] sm:$0xf]
      %v3404 = vld [vmem:[%s3 + $0xbc] sm:$0xf]
      %v3405 = vld [vmem:[%s3 + $0xc0] sm:$0xf]
      %v3406 = vld [vmem:[%s3 + $0xc4] sm:$0xf]
      %v3407 = vld [vmem:[%s3 + $0xc8] sm:$0xf]
      %v3408 = vld [vmem:[%s3 + $0xcc] sm:$0xf]
      %v3409 = vld [vmem:[%s3 + $0xd0] sm:$0xf]
      %v3410 = vld [vmem:[%s3 + $0xd4] sm:$0xf]
      %v3411 = vld [vmem:[%s3 + $0xd8] sm:$0xf]
      %v3412 = vld [vmem:[%s3 + $0xdc] sm:$0xf]
      %v3413 = vld [vmem:[%s3 + $0xe0] sm:$0xf]
      %v3414 = vld [vmem:[%s3 + $0xe4] sm:$0xf]
      %v3415 = vld [vmem:[%s3 + $0xe8] sm:$0xf]
      %v3416 = vld [vmem:[%s3 + $0xec] sm:$0xf]
      %v3417 = vld [vmem:[%s3 + $0xf0] sm:$0xf]
      %v3418 = vld [vmem:[%s3 + $0xf4] sm:$0xf]
      %v3419 = vld [vmem:[%s3 + $0xf8] sm:$0xf]
      %v3420 = vld [vmem:[%s3 + $0xfc] sm:$0xf]
      %v3421 = vld [vmem:[%s3 + $0x100] sm:$0xf]
      %v3422 = vld [vmem:[%s3 + $0x104] sm:$0xf]
      %v3423 = vld [vmem:[%s3 + $0x108] sm:$0xf]
      %v3424 = vld [vmem:[%s3 + $0x10c] sm:$0xf]
      %v3425 = vld [vmem:[%s3 + $0x110] sm:$0xf]
      %v3426 = vld [vmem:[%s3 + $0x114] sm:$0xf]
      %v3427 = vld [vmem:[%s3 + $0x118] sm:$0xf]
      %v3428 = vld [vmem:[%s3 + $0x11c] sm:$0xf]
      %v3429 = vld [vmem:[%s3 + $0x120] sm:$0xf]
      %v3430 = vld [vmem:[%s3 + $0x124] sm:$0xf]
      %v3431 = vld [vmem:[%s3 + $0x128] sm:$0xf]
      %v3432 = vld [vmem:[%s3 + $0x12c] sm:$0xf]
      %v3433 = vld [vmem:[%s3 + $0x130] sm:$0xf]
      %v3434 = vld [vmem:[%s3 + $0x134] sm:$0xf]
      %v3435 = vld [vmem:[%s3 + $0x138] sm:$0xf]
      %v3436 = vld [vmem:[%s3 + $0x13c] sm:$0xf]
      %v3437 = vld [vmem:[%s3 + $0x140] sm:$0xf]
      %v3438 = vld [vmem:[%s3 + $0x144] sm:$0xf]
      %v3439 = vld [vmem:[%s3 + $0x148] sm:$0xf]
      %v3440 = vld [vmem:[%s3 + $0x14c] sm:$0xf]
      %v3441 = vld [vmem:[%s3 + $0x150] sm:$0xf]
      %v3442 = vld [vmem:[%s3 + $0x154] sm:$0xf]
      %v3443 = vld [vmem:[%s3 + $0x158] sm:$0xf]
      %v3444 = vld [vmem:[%s3 + $0x15c] sm:$0xf]
      %v3445 = vld [vmem:[%s3 + $0x160] sm:$0xf]
      %v3446 = vld [vmem:[%s3 + $0x164] sm:$0xf]
      %v3447 = vld [vmem:[%s3 + $0x168] sm:$0xf]
      %v3448 = vld [vmem:[%s3 + $0x16c] sm:$0xf]
      %v3449 = vld [vmem:[%s3 + $0x170] sm:$0xf]
      %v3450 = vld [vmem:[%s3 + $0x174] sm:$0xf]
      %v3451 = vld [vmem:[%s3 + $0x178] sm:$0xf]
      %v3452 = vld [vmem:[%s3 + $0x17c] sm:$0xf]
      %v3453 = vld [vmem:[%s3 + $0x180] sm:$0xf]
      %v3454 = vld [vmem:[%s3 + $0x184] sm:$0xf]
      %v3455 = vld [vmem:[%s3 + $0x188] sm:$0xf]
      %v3456 = vld [vmem:[%s3 + $0x18c] sm:$0xf]
      %v3457 = vld [vmem:[%s3 + $0x190] sm:$0xf]
      %v3458 = vld [vmem:[%s3 + $0x194] sm:$0xf]
      %v3459 = vld [vmem:[%s3 + $0x198] sm:$0xf]
      %v3460 = vld [vmem:[%s3 + $0x19c] sm:$0xf]
      %v3461 = vld [vmem:[%s3 + $0x1a0] sm:$0xf]
      %v3462 = vld [vmem:[%s3 + $0x1a4] sm:$0xf]
      %v3463 = vld [vmem:[%s3 + $0x1a8] sm:$0xf]
      %v3464 = vld [vmem:[%s3 + $0x1ac] sm:$0xf]
      %v3465 = vld [vmem:[%s3 + $0x1b0] sm:$0xf]
      %v3466 = vld [vmem:[%s3 + $0x1b4] sm:$0xf]
      %v3467 = vld [vmem:[%s3 + $0x1b8] sm:$0xf]
      %v3468 = vld [vmem:[%s3 + $0x1bc] sm:$0xf]
      %v3469 = vld [vmem:[%s3 + $0x1c0] sm:$0xf]
      %v3470 = vld [vmem:[%s3 + $0x1c4] sm:$0xf]
      %v3471 = vld [vmem:[%s3 + $0x1c8] sm:$0xf]
      %v3472 = vld [vmem:[%s3 + $0x1cc] sm:$0xf]
      %v3473 = vld [vmem:[%s3 + $0x1d0] sm:$0xf]
      %v3474 = vld [vmem:[%s3 + $0x1d4] sm:$0xf]
      %v3475 = vld [vmem:[%s3 + $0x1d8] sm:$0xf]
      %v3476 = vld [vmem:[%s3 + $0x1dc] sm:$0xf]
      %v3477 = vld [vmem:[%s3 + $0x1e0] sm:$0xf]
      %v3478 = vld [vmem:[%s3 + $0x1e4] sm:$0xf]
      %v3479 = vld [vmem:[%s3 + $0x1e8] sm:$0xf]
      %v3480 = vld [vmem:[%s3 + $0x1ec] sm:$0xf]
      %v3481 = vld [vmem:[%s3 + $0x1f0] sm:$0xf]
      %v3482 = vld [vmem:[%s3 + $0x1f4] sm:$0xf]
      %v3483 = vld [vmem:[%s3 + $0x1f8] sm:$0xf]
      %v3484 = vld [vmem:[%s3 + $0x1fc] sm:$0xf]
      %v3485 = vld [vmem:[%s3 + $0x200] sm:$0xf]
      %v3486 = vld [vmem:[%s3 + $0x204] sm:$0xf]
      %v3487 = vld [vmem:[%s3 + $0x208] sm:$0xf]
      %v3488 = vld [vmem:[%s3 + $0x20c] sm:$0xf]
      %v3489 = vld [vmem:[%s3 + $0x210] sm:$0xf]
      %v3490 = vld [vmem:[%s3 + $0x214] sm:$0xf]
      %v3491 = vld [vmem:[%s3 + $0x218] sm:$0xf]
      %v3492 = vld [vmem:[%s3 + $0x21c] sm:$0xf]
      %v3493 = vld [vmem:[%s3 + $0x220] sm:$0xf]
      %v3494 = vld [vmem:[%s3 + $0x224] sm:$0xf]
      %v3495 = vld [vmem:[%s3 + $0x228] sm:$0xf]
      %v3496 = vld [vmem:[%s3 + $0x22c] sm:$0xf]
      %v3497 = vld [vmem:[%s3 + $0x230] sm:$0xf]
      %v3498 = vld [vmem:[%s3 + $0x234] sm:$0xf]
      %v3499 = vld [vmem:[%s3 + $0x238] sm:$0xf]
      %v3500 = vld [vmem:[%s3 + $0x23c] sm:$0xf]
      %v3645 = vunpack.c.l.b16 %v3357
      %v3646 = vunpack.c.l.b16 %v3358
      %v3647 = vunpack.c.l.b16 %v3359
      %v3648 = vunpack.c.l.b16 %v3360
      %v3649 = vunpack.c.l.b16 %v3361
      %v3650 = vunpack.c.l.b16 %v3362
      %v3651 = vunpack.c.l.b16 %v3363
      %v3652 = vunpack.c.l.b16 %v3364
      %v3653 = vunpack.c.l.b16 %v3365
      %v3654 = vunpack.c.l.b16 %v3366
      %v3655 = vunpack.c.l.b16 %v3367
      %v3656 = vunpack.c.l.b16 %v3368
      %v3657 = vunpack.c.l.b16 %v3369
      %v3658 = vunpack.c.l.b16 %v3370
      %v3659 = vunpack.c.l.b16 %v3371
      %v3660 = vunpack.c.l.b16 %v3372
      %v3661 = vunpack.c.l.b16 %v3373
      %v3662 = vunpack.c.l.b16 %v3374
      %v3663 = vunpack.c.l.b16 %v3375
      %v3664 = vunpack.c.l.b16 %v3376
      %v3665 = vunpack.c.l.b16 %v3377
      %v3666 = vunpack.c.l.b16 %v3378
      %v3667 = vunpack.c.l.b16 %v3379
      %v3668 = vunpack.c.l.b16 %v3380
      %v3669 = vunpack.c.l.b16 %v3381
      %v3670 = vunpack.c.l.b16 %v3382
      %v3671 = vunpack.c.l.b16 %v3383
      %v3672 = vunpack.c.l.b16 %v3384
      %v3673 = vunpack.c.l.b16 %v3385
      %v3674 = vunpack.c.l.b16 %v3386
      %v3675 = vunpack.c.l.b16 %v3387
      %v3676 = vunpack.c.l.b16 %v3388
      %v3677 = vunpack.c.l.b16 %v3389
      %v3678 = vunpack.c.l.b16 %v3390
      %v3679 = vunpack.c.l.b16 %v3391
      %v3680 = vunpack.c.l.b16 %v3392
      %v3681 = vunpack.c.l.b16 %v3393
      %v3682 = vunpack.c.l.b16 %v3394
      %v3683 = vunpack.c.l.b16 %v3395
      %v3684 = vunpack.c.l.b16 %v3396
      %v3685 = vunpack.c.l.b16 %v3397
      %v3686 = vunpack.c.l.b16 %v3398
      %v3687 = vunpack.c.l.b16 %v3399
      %v3688 = vunpack.c.l.b16 %v3400
      %v3689 = vunpack.c.l.b16 %v3401
      %v3690 = vunpack.c.l.b16 %v3402
      %v3691 = vunpack.c.l.b16 %v3403
      %v3692 = vunpack.c.l.b16 %v3404
      %v3693 = vunpack.c.l.b16 %v3405
      %v3694 = vunpack.c.l.b16 %v3406
      %v3695 = vunpack.c.l.b16 %v3407
      %v3696 = vunpack.c.l.b16 %v3408
      %v3697 = vunpack.c.l.b16 %v3409
      %v3698 = vunpack.c.l.b16 %v3410
      %v3699 = vunpack.c.l.b16 %v3411
      %v3700 = vunpack.c.l.b16 %v3412
      %v3701 = vunpack.c.l.b16 %v3413
      %v3702 = vunpack.c.l.b16 %v3414
      %v3703 = vunpack.c.l.b16 %v3415
      %v3704 = vunpack.c.l.b16 %v3416
      %v3705 = vunpack.c.l.b16 %v3417
      %v3706 = vunpack.c.l.b16 %v3418
      %v3707 = vunpack.c.l.b16 %v3419
      %v3708 = vunpack.c.l.b16 %v3420
      %v3709 = vunpack.c.l.b16 %v3421
      %v3710 = vunpack.c.l.b16 %v3422
      %v3711 = vunpack.c.l.b16 %v3423
      %v3712 = vunpack.c.l.b16 %v3424
      %v3713 = vunpack.c.l.b16 %v3425
      %v3714 = vunpack.c.l.b16 %v3426
      %v3715 = vunpack.c.l.b16 %v3427
      %v3716 = vunpack.c.l.b16 %v3428
      %v3717 = vunpack.c.l.b16 %v3429
      %v3718 = vunpack.c.l.b16 %v3430
      %v3719 = vunpack.c.l.b16 %v3431
      %v3720 = vunpack.c.l.b16 %v3432
      %v3721 = vunpack.c.l.b16 %v3433
      %v3722 = vunpack.c.l.b16 %v3434
      %v3723 = vunpack.c.l.b16 %v3435
      %v3724 = vunpack.c.l.b16 %v3436
      %v3725 = vunpack.c.l.b16 %v3437
      %v3726 = vunpack.c.l.b16 %v3438
      %v3727 = vunpack.c.l.b16 %v3439
      %v3728 = vunpack.c.l.b16 %v3440
      %v3729 = vunpack.c.l.b16 %v3441
      %v3730 = vunpack.c.l.b16 %v3442
      %v3731 = vunpack.c.l.b16 %v3443
      %v3732 = vunpack.c.l.b16 %v3444
      %v3733 = vunpack.c.l.b16 %v3445
      %v3734 = vunpack.c.l.b16 %v3446
      %v3735 = vunpack.c.l.b16 %v3447
      %v3736 = vunpack.c.l.b16 %v3448
      %v3737 = vunpack.c.l.b16 %v3449
      %v3738 = vunpack.c.l.b16 %v3450
      %v3739 = vunpack.c.l.b16 %v3451
      %v3740 = vunpack.c.l.b16 %v3452
      %v3741 = vunpack.c.l.b16 %v3453
      %v3742 = vunpack.c.l.b16 %v3454
      %v3743 = vunpack.c.l.b16 %v3455
      %v3744 = vunpack.c.l.b16 %v3456
      %v3745 = vunpack.c.l.b16 %v3457
      %v3746 = vunpack.c.l.b16 %v3458
      %v3747 = vunpack.c.l.b16 %v3459
      %v3748 = vunpack.c.l.b16 %v3460
      %v3749 = vunpack.c.l.b16 %v3461
      %v3750 = vunpack.c.l.b16 %v3462
      %v3751 = vunpack.c.l.b16 %v3463
      %v3752 = vunpack.c.l.b16 %v3464
      %v3753 = vunpack.c.l.b16 %v3465
      %v3754 = vunpack.c.l.b16 %v3466
      %v3755 = vunpack.c.l.b16 %v3467
      %v3756 = vunpack.c.l.b16 %v3468
      %v3757 = vunpack.c.l.b16 %v3469
      %v3758 = vunpack.c.l.b16 %v3470
      %v3759 = vunpack.c.l.b16 %v3471
      %v3760 = vunpack.c.l.b16 %v3472
      %v3761 = vunpack.c.l.b16 %v3473
      %v3762 = vunpack.c.l.b16 %v3474
      %v3763 = vunpack.c.l.b16 %v3475
      %v3764 = vunpack.c.l.b16 %v3476
      %v3765 = vunpack.c.l.b16 %v3477
      %v3766 = vunpack.c.l.b16 %v3478
      %v3767 = vunpack.c.l.b16 %v3479
      %v3768 = vunpack.c.l.b16 %v3480
      %v3769 = vunpack.c.l.b16 %v3481
      %v3770 = vunpack.c.l.b16 %v3482
      %v3771 = vunpack.c.l.b16 %v3483
      %v3772 = vunpack.c.l.b16 %v3484
      %v3773 = vunpack.c.l.b16 %v3485
      %v3774 = vunpack.c.l.b16 %v3486
      %v3775 = vunpack.c.l.b16 %v3487
      %v3776 = vunpack.c.l.b16 %v3488
      %v3777 = vunpack.c.l.b16 %v3489
      %v3778 = vunpack.c.l.b16 %v3490
      %v3779 = vunpack.c.l.b16 %v3491
      %v3780 = vunpack.c.l.b16 %v3492
      %v3781 = vunpack.c.l.b16 %v3493
      %v3782 = vunpack.c.l.b16 %v3494
      %v3783 = vunpack.c.l.b16 %v3495
      %v3784 = vunpack.c.l.b16 %v3496
      %v3785 = vunpack.c.l.b16 %v3497
      %v3786 = vunpack.c.l.b16 %v3498
      %v3787 = vunpack.c.l.b16 %v3499
      %v3788 = vunpack.c.l.b16 %v3500
      %v3789 = vpack.c.b16 %v3646, %v3645
      %v3790 = vpack.c.b16 %v3648, %v3647
      %v3791 = vpack.c.b16 %v3650, %v3649
      %v3792 = vpack.c.b16 %v3652, %v3651
      %v3793 = vpack.c.b16 %v3654, %v3653
      %v3794 = vpack.c.b16 %v3656, %v3655
      %v3795 = vpack.c.b16 %v3658, %v3657
      %v3796 = vpack.c.b16 %v3660, %v3659
      %v3797 = vpack.c.b16 %v3662, %v3661
      %v3798 = vpack.c.b16 %v3664, %v3663
      %v3799 = vpack.c.b16 %v3666, %v3665
      %v3800 = vpack.c.b16 %v3668, %v3667
      %v3801 = vpack.c.b16 %v3670, %v3669
      %v3802 = vpack.c.b16 %v3672, %v3671
      %v3803 = vpack.c.b16 %v3674, %v3673
      %v3804 = vpack.c.b16 %v3676, %v3675
      %v3805 = vpack.c.b16 %v3678, %v3677
      %v3806 = vpack.c.b16 %v3680, %v3679
      %v3807 = vpack.c.b16 %v3682, %v3681
      %v3808 = vpack.c.b16 %v3684, %v3683
      %v3809 = vpack.c.b16 %v3686, %v3685
      %v3810 = vpack.c.b16 %v3688, %v3687
      %v3811 = vpack.c.b16 %v3690, %v3689
      %v3812 = vpack.c.b16 %v3692, %v3691
      %v3813 = vpack.c.b16 %v3694, %v3693
      %v3814 = vpack.c.b16 %v3696, %v3695
      %v3815 = vpack.c.b16 %v3698, %v3697
      %v3816 = vpack.c.b16 %v3700, %v3699
      %v3817 = vpack.c.b16 %v3702, %v3701
      %v3818 = vpack.c.b16 %v3704, %v3703
      %v3819 = vpack.c.b16 %v3706, %v3705
      %v3820 = vpack.c.b16 %v3708, %v3707
      %v3821 = vpack.c.b16 %v3710, %v3709
      %v3822 = vpack.c.b16 %v3712, %v3711
      %v3823 = vpack.c.b16 %v3714, %v3713
      %v3824 = vpack.c.b16 %v3716, %v3715
      %v3825 = vpack.c.b16 %v3718, %v3717
      %v3826 = vpack.c.b16 %v3720, %v3719
      %v3827 = vpack.c.b16 %v3722, %v3721
      %v3828 = vpack.c.b16 %v3724, %v3723
      %v3829 = vpack.c.b16 %v3726, %v3725
      %v3830 = vpack.c.b16 %v3728, %v3727
      %v3831 = vpack.c.b16 %v3730, %v3729
      %v3832 = vpack.c.b16 %v3732, %v3731
      %v3833 = vpack.c.b16 %v3734, %v3733
      %v3834 = vpack.c.b16 %v3736, %v3735
      %v3835 = vpack.c.b16 %v3738, %v3737
      %v3836 = vpack.c.b16 %v3740, %v3739
      %v3837 = vpack.c.b16 %v3742, %v3741
      %v3838 = vpack.c.b16 %v3744, %v3743
      %v3839 = vpack.c.b16 %v3746, %v3745
      %v3840 = vpack.c.b16 %v3748, %v3747
      %v3841 = vpack.c.b16 %v3750, %v3749
      %v3842 = vpack.c.b16 %v3752, %v3751
      %v3843 = vpack.c.b16 %v3754, %v3753
      %v3844 = vpack.c.b16 %v3756, %v3755
      %v3845 = vpack.c.b16 %v3758, %v3757
      %v3846 = vpack.c.b16 %v3760, %v3759
      %v3847 = vpack.c.b16 %v3762, %v3761
      %v3848 = vpack.c.b16 %v3764, %v3763
      %v3849 = vpack.c.b16 %v3766, %v3765
      %v3850 = vpack.c.b16 %v3768, %v3767
      %v3851 = vpack.c.b16 %v3770, %v3769
      %v3852 = vpack.c.b16 %v3772, %v3771
      %v3853 = vpack.c.b16 %v3774, %v3773
      %v3854 = vpack.c.b16 %v3776, %v3775
      %v3855 = vpack.c.b16 %v3778, %v3777
      %v3856 = vpack.c.b16 %v3780, %v3779
      %v3857 = vpack.c.b16 %v3782, %v3781
      %v3858 = vpack.c.b16 %v3784, %v3783
      %v3859 = vpack.c.b16 %v3786, %v3785
      %v3860 = vpack.c.b16 %v3788, %v3787
      %3933 = vmatprep.subr.bf16.mxu0 0
      %3934 = vmatpush1.bf16.msra.mxu0 %v3789
      %3935 = vmatprep.subr.bf16.mxu0 0
      %3936 = vmatpush1.bf16.msra.mxu0 %v3790
      %3937 = vmatprep.subr.bf16.mxu0 0
      %3938 = vmatpush1.bf16.msra.mxu0 %v3791
      %3939 = vmatprep.subr.bf16.mxu0 0
      %3940 = vmatpush1.bf16.msra.mxu0 %v3792
      %3941 = vmatprep.subr.bf16.mxu0 0
      %3942 = vmatpush1.bf16.msra.mxu0 %v3793
      %3943 = vmatprep.subr.bf16.mxu0 0
      %3944 = vmatpush1.bf16.msra.mxu0 %v3794
      %3945 = vmatprep.subr.bf16.mxu0 0
      %3946 = vmatpush1.bf16.msra.mxu0 %v3795
      %3947 = vmatprep.subr.bf16.mxu0 0
      %3948 = vmatpush1.bf16.msra.mxu0 %v3796
      %3949 = vmatprep.subr.bf16.mxu0 0
      %3950 = vmatpush1.bf16.msra.mxu0 %v3797
      %3951 = vmatprep.subr.bf16.mxu0 0
      %3952 = vmatpush1.bf16.msra.mxu0 %v3798
      %3953 = vmatprep.subr.bf16.mxu0 0
      %3954 = vmatpush1.bf16.msra.mxu0 %v3799
      %3955 = vmatprep.subr.bf16.mxu0 0
      %3956 = vmatpush1.bf16.msra.mxu0 %v3800
      %3957 = vmatprep.subr.bf16.mxu0 0
      %3958 = vmatpush1.bf16.msra.mxu0 %v3801
      %3959 = vmatprep.subr.bf16.mxu0 0
      %3960 = vmatpush1.bf16.msra.mxu0 %v3802
      %3961 = vmatprep.subr.bf16.mxu0 0
      %3962 = vmatpush1.bf16.msra.mxu0 %v3803
      %3963 = vmatprep.subr.bf16.mxu0 0
      %3964 = vmatpush1.bf16.msra.mxu0 %v3804
      %3965 = vmatprep.mubr.bf16.mxu0 %v3286
      %3966 = vmatmul.mubr.bf16.gmra.mrb[0].mxu0 %v3285
      %v3967 = vpop.f32.mrb[0].mxu0
      %v3968 = vadd.f32 0.0, %v3967
      %v3969 = vpop.f32.mrb[0].mxu0
      %v3970 = vpop.f32.mrb[0].mxu0
      %v3971 = vadd.f32 0.0, %v3970
      %v3972 = vpop.f32.mrb[0].mxu0
      %3973 = vmatprep.mubr.bf16.mxu0 %v3295
      %3974 = vmatmul.mubr.bf16.gmra.mrb[0].mxu0 %v3294
      %v3975 = vpop.f32.mrb[0].mxu0
      %v3976 = vadd.f32 0.0, %v3975
      %v3977 = vpop.f32.mrb[0].mxu0
      %v3978 = vpop.f32.mrb[0].mxu0
      %v3979 = vadd.f32 0.0, %v3978
      %v3980 = vpop.f32.mrb[0].mxu0
      %3981 = vmatprep.mubr.bf16.mxu0 %v3304
      %3982 = vmatmul.mubr.bf16.gmra.mrb[0].mxu0 %v3303
      %v3983 = vpop.f32.mrb[0].mxu0
      %v3984 = vadd.f32 0.0, %v3983
      %v3985 = vpop.f32.mrb[0].mxu0
      %v3986 = vpop.f32.mrb[0].mxu0
      %v3987 = vadd.f32 0.0, %v3986
      %v3988 = vpop.f32.mrb[0].mxu0
      %3989 = vmatprep.mubr.bf16.mxu0 %v3313
      %3990 = vmatmul.mubr.bf16.gmra.mrb[0].mxu0 %v3312
      %v3991 = vpop.f32.mrb[0].mxu0
      %v3992 = vadd.f32 0.0, %v3991
      %v3993 = vpop.f32.mrb[0].mxu0
      %v3994 = vpop.f32.mrb[0].mxu0
      %v3995 = vadd.f32 0.0, %v3994
      %v3996 = vpop.f32.mrb[0].mxu0
      %3997 = vmatprep.mubr.bf16.mxu0 %v3322
      %3998 = vmatmul.mubr.bf16.gmra.mrb[0].mxu0 %v3321
      %v3999 = vpop.f32.mrb[0].mxu0
      %v4000 = vadd.f32 0.0, %v3999
      %v4001 = vpop.f32.mrb[0].mxu0
      %v4002 = vpop.f32.mrb[0].mxu0
      %v4003 = vadd.f32 0.0, %v4002
      %v4004 = vpop.f32.mrb[0].mxu0
      %4005 = vmatprep.mubr.bf16.mxu0 %v3331
      %4006 = vmatmul.mubr.bf16.gmra.mrb[0].mxu0 %v3330
      %v4007 = vpop.f32.mrb[0].mxu0
      %v4008 = vadd.f32 0.0, %v4007
      %v4009 = vpop.f32.mrb[0].mxu0
      %v4010 = vpop.f32.mrb[0].mxu0
      %v4011 = vadd.f32 0.0, %v4010
      %v4012 = vpop.f32.mrb[0].mxu0
      %4013 = vmatprep.mubr.bf16.mxu0 %v3340
      %4014 = vmatmul.mubr.bf16.gmra.mrb[0].mxu0 %v3339
      %v4015 = vpop.f32.mrb[0].mxu0
      %v4016 = vadd.f32 0.0, %v4015
      %v4017 = vpop.f32.mrb[0].mxu0
      %v4018 = vpop.f32.mrb[0].mxu0
      %v4019 = vadd.f32 0.0, %v4018
      %v4020 = vpop.f32.mrb[0].mxu0
      %4021 = vmatprep.mubr.bf16.mxu0 %v3349
      %4022 = vmatmul.mubr.bf16.gmra.mrb[0].mxu0 %v3348
      %v4023 = vpop.f32.mrb[0].mxu0
      %v4024 = vadd.f32 0.0, %v4023
      %v4025 = vpop.f32.mrb[0].mxu0
      %v4026 = vpop.f32.mrb[0].mxu0
      %v4027 = vadd.f32 0.0, %v4026
      %v4028 = vpop.f32.mrb[0].mxu0
      %4029 = vdwg.mxu0
      %4030 = vmatprep.subr.bf16.mxu0 0
      %4031 = vmatpush1.bf16.msra.mxu0 %v3805
      %4032 = vmatprep.subr.bf16.mxu0 0
      %4033 = vmatpush1.bf16.msra.mxu0 %v3806
      %4034 = vmatprep.subr.bf16.mxu0 0
      %4035 = vmatpush1.bf16.msra.mxu0 %v3807
      %4036 = vmatprep.subr.bf16.mxu0 0
      %4037 = vmatpush1.bf16.msra.mxu0 %v3808
      %4038 = vmatprep.subr.bf16.mxu0 0
      %4039 = vmatpush1.bf16.msra.mxu0 %v3809
      %4040 = vmatprep.subr.bf16.mxu0 0
      %4041 = vmatpush1.bf16.msra.mxu0 %v3810
      %4042 = vmatprep.subr.bf16.mxu0 0
      %4043 = vmatpush1.bf16.msra.mxu0 %v3811
      %4044 = vmatprep.subr.bf16.mxu0 0
      %4045 = vmatpush1.bf16.msra.mxu0 %v3812
      %4046 = vmatprep.subr.bf16.mxu0 0
      %4047 = vmatpush1.bf16.msra.mxu0 %v3813
      %4048 = vmatprep.subr.bf16.mxu0 0
      %4049 = vmatpush1.bf16.msra.mxu0 %v3814
      %4050 = vmatprep.subr.bf16.mxu0 0
      %4051 = vmatpush1.bf16.msra.mxu0 %v3815
      %4052 = vmatprep.subr.bf16.mxu0 0
      %4053 = vmatpush1.bf16.msra.mxu0 %v3816
      %4054 = vmatprep.subr.bf16.mxu0 0
      %4055 = vmatpush1.bf16.msra.mxu0 %v3817
      %4056 = vmatprep.subr.bf16.mxu0 0
      %4057 = vmatpush1.bf16.msra.mxu0 %v3818
      %4058 = vmatprep.subr.bf16.mxu0 0
      %4059 = vmatpush1.bf16.msra.mxu0 %v3819
      %4060 = vmatprep.subr.bf16.mxu0 0
      %4061 = vmatpush1.bf16.msra.mxu0 %v3820
      %4062 = vmatprep.mubr.bf16.mxu0 %v3288
      %4063 = vmatmul.mubr.bf16.gmra.mrb[0].mxu0 %v3287
      %v4064 = vpop.f32.mrb[0].mxu0
      %v4065 = vadd.f32 %v3968, %v4064
      %v4066 = vpop.f32.mrb[0].mxu0
      %v4067 = vpop.f32.mrb[0].mxu0
      %v4068 = vadd.f32 %v3971, %v4067
      %v4069 = vpop.f32.mrb[0].mxu0
      %4070 = vmatprep.mubr.bf16.mxu0 %v3297
      %4071 = vmatmul.mubr.bf16.gmra.mrb[0].mxu0 %v3296
      %v4072 = vpop.f32.mrb[0].mxu0
      %v4073 = vadd.f32 %v3976, %v4072
      %v4074 = vpop.f32.mrb[0].mxu0
      %v4075 = vpop.f32.mrb[0].mxu0
      %v4076 = vadd.f32 %v3979, %v4075
      %v4077 = vpop.f32.mrb[0].mxu0
      %4078 = vmatprep.mubr.bf16.mxu0 %v3306
      %4079 = vmatmul.mubr.bf16.gmra.mrb[0].mxu0 %v3305
      %v4080 = vpop.f32.mrb[0].mxu0
      %v4081 = vadd.f32 %v3984, %v4080
      %v4082 = vpop.f32.mrb[0].mxu0
      %v4083 = vpop.f32.mrb[0].mxu0
      %v4084 = vadd.f32 %v3987, %v4083
      %v4085 = vpop.f32.mrb[0].mxu0
      %4086 = vmatprep.mubr.bf16.mxu0 %v3315
      %4087 = vmatmul.mubr.bf16.gmra.mrb[0].mxu0 %v3314
      %v4088 = vpop.f32.mrb[0].mxu0
      %v4089 = vadd.f32 %v3992, %v4088
      %v4090 = vpop.f32.mrb[0].mxu0
      %v4091 = vpop.f32.mrb[0].mxu0
      %v4092 = vadd.f32 %v3995, %v4091
      %v4093 = vpop.f32.mrb[0].mxu0
      %4094 = vmatprep.mubr.bf16.mxu0 %v3324
      %4095 = vmatmul.mubr.bf16.gmra.mrb[0].mxu0 %v3323
      %v4096 = vpop.f32.mrb[0].mxu0
      %v4097 = vadd.f32 %v4000, %v4096
      %v4098 = vpop.f32.mrb[0].mxu0
      %v4099 = vpop.f32.mrb[0].mxu0
      %v4100 = vadd.f32 %v4003, %v4099
      %v4101 = vpop.f32.mrb[0].mxu0
      %4102 = vmatprep.mubr.bf16.mxu0 %v3333
      %4103 = vmatmul.mubr.bf16.gmra.mrb[0].mxu0 %v3332
      %v4104 = vpop.f32.mrb[0].mxu0
      %v4105 = vadd.f32 %v4008, %v4104
      %v4106 = vpop.f32.mrb[0].mxu0
      %v4107 = vpop.f32.mrb[0].mxu0
      %v4108 = vadd.f32 %v4011, %v4107
      %v4109 = vpop.f32.mrb[0].mxu0
      %4110 = vmatprep.mubr.bf16.mxu0 %v3342
      %4111 = vmatmul.mubr.bf16.gmra.mrb[0].mxu0 %v3341
      %v4112 = vpop.f32.mrb[0].mxu0
      %v4113 = vadd.f32 %v4016, %v4112
      %v4114 = vpop.f32.mrb[0].mxu0
      %v4115 = vpop.f32.mrb[0].mxu0
      %v4116 = vadd.f32 %v4019, %v4115
      %v4117 = vpop.f32.mrb[0].mxu0
      %4118 = vmatprep.mubr.bf16.mxu0 %v3351
      %4119 = vmatmul.mubr.bf16.gmra.mrb[0].mxu0 %v3350
      %v4120 = vpop.f32.mrb[0].mxu0
      %v4121 = vadd.f32 %v4024, %v4120
      %v4122 = vpop.f32.mrb[0].mxu0
      %v4123 = vpop.f32.mrb[0].mxu0
      %v4124 = vadd.f32 %v4027, %v4123
      %v4125 = vpop.f32.mrb[0].mxu0
      %4126 = vdwg.mxu0
      %4127 = vmatprep.subr.bf16.mxu0 0
      %4128 = vmatpush1.bf16.msra.mxu0 %v3821
      %4129 = vmatprep.subr.bf16.mxu0 0
      %4130 = vmatpush1.bf16.msra.mxu0 %v3822
      %4131 = vmatprep.subr.bf16.mxu0 0
      %4132 = vmatpush1.bf16.msra.mxu0 %v3823
      %4133 = vmatprep.subr.bf16.mxu0 0
      %4134 = vmatpush1.bf16.msra.mxu0 %v3824
      %4135 = vmatprep.subr.bf16.mxu0 0
      %4136 = vmatpush1.bf16.msra.mxu0 %v3825
      %4137 = vmatprep.subr.bf16.mxu0 0
      %4138 = vmatpush1.bf16.msra.mxu0 %v3826
      %4139 = vmatprep.subr.bf16.mxu0 0
      %4140 = vmatpush1.bf16.msra.mxu0 %v3827
      %4141 = vmatprep.subr.bf16.mxu0 0
      %4142 = vmatpush1.bf16.msra.mxu0 %v3828
      %4143 = vmatprep.subr.bf16.mxu0 0
      %4144 = vmatpush1.bf16.msra.mxu0 %v3829
      %4145 = vmatprep.subr.bf16.mxu0 0
      %4146 = vmatpush1.bf16.msra.mxu0 %v3830
      %4147 = vmatprep.subr.bf16.mxu0 0
      %4148 = vmatpush1.bf16.msra.mxu0 %v3831
      %4149 = vmatprep.subr.bf16.mxu0 0
      %4150 = vmatpush1.bf16.msra.mxu0 %v3832
      %4151 = vmatprep.subr.bf16.mxu0 0
      %4152 = vmatpush1.bf16.msra.mxu0 %v3833
      %4153 = vmatprep.subr.bf16.mxu0 0
      %4154 = vmatpush1.bf16.msra.mxu0 %v3834
      %4155 = vmatprep.subr.bf16.mxu0 0
      %4156 = vmatpush1.bf16.msra.mxu0 %v3835
      %4157 = vmatprep.subr.bf16.mxu0 0
      %4158 = vmatpush1.bf16.msra.mxu0 %v3836
      %4159 = vmatprep.mubr.bf16.mxu0 %v3290
      %4160 = vmatmul.mubr.bf16.gmra.mrb[0].mxu0 %v3289
      %v4161 = vpop.f32.mrb[0].mxu0
      %v4162 = vadd.f32 %v4065, %v4161
      %v4163 = vpop.f32.mrb[0].mxu0
      %v4164 = vpop.f32.mrb[0].mxu0
      %v4165 = vadd.f32 %v4068, %v4164
      %v4166 = vpop.f32.mrb[0].mxu0
      %4167 = vmatprep.mubr.bf16.mxu0 %v3299
      %4168 = vmatmul.mubr.bf16.gmra.mrb[0].mxu0 %v3298
      %v4169 = vpop.f32.mrb[0].mxu0
      %v4170 = vadd.f32 %v4073, %v4169
      %v4171 = vpop.f32.mrb[0].mxu0
      %v4172 = vpop.f32.mrb[0].mxu0
      %v4173 = vadd.f32 %v4076, %v4172
      %v4174 = vpop.f32.mrb[0].mxu0
      %4175 = vmatprep.mubr.bf16.mxu0 %v3308
      %4176 = vmatmul.mubr.bf16.gmra.mrb[0].mxu0 %v3307
      %v4177 = vpop.f32.mrb[0].mxu0
      %v4178 = vadd.f32 %v4081, %v4177
      %v4179 = vpop.f32.mrb[0].mxu0
      %v4180 = vpop.f32.mrb[0].mxu0
      %v4181 = vadd.f32 %v4084, %v4180
      %v4182 = vpop.f32.mrb[0].mxu0
      %4183 = vmatprep.mubr.bf16.mxu0 %v3317
      %4184 = vmatmul.mubr.bf16.gmra.mrb[0].mxu0 %v3316
      %v4185 = vpop.f32.mrb[0].mxu0
      %v4186 = vadd.f32 %v4089, %v4185
      %v4187 = vpop.f32.mrb[0].mxu0
      %v4188 = vpop.f32.mrb[0].mxu0
      %v4189 = vadd.f32 %v4092, %v4188
      %v4190 = vpop.f32.mrb[0].mxu0
      %4191 = vmatprep.mubr.bf16.mxu0 %v3326
      %4192 = vmatmul.mubr.bf16.gmra.mrb[0].mxu0 %v3325
      %v4193 = vpop.f32.mrb[0].mxu0
      %v4194 = vadd.f32 %v4097, %v4193
      %v4195 = vpop.f32.mrb[0].mxu0
      %v4196 = vpop.f32.mrb[0].mxu0
      %v4197 = vadd.f32 %v4100, %v4196
      %v4198 = vpop.f32.mrb[0].mxu0
      %4199 = vmatprep.mubr.bf16.mxu0 %v3335
      %4200 = vmatmul.mubr.bf16.gmra.mrb[0].mxu0 %v3334
      %v4201 = vpop.f32.mrb[0].mxu0
      %v4202 = vadd.f32 %v4105, %v4201
      %v4203 = vpop.f32.mrb[0].mxu0
      %v4204 = vpop.f32.mrb[0].mxu0
      %v4205 = vadd.f32 %v4108, %v4204
      %v4206 = vpop.f32.mrb[0].mxu0
      %4207 = vmatprep.mubr.bf16.mxu0 %v3344
      %4208 = vmatmul.mubr.bf16.gmra.mrb[0].mxu0 %v3343
      %v4209 = vpop.f32.mrb[0].mxu0
      %v4210 = vadd.f32 %v4113, %v4209
      %v4211 = vpop.f32.mrb[0].mxu0
      %v4212 = vpop.f32.mrb[0].mxu0
      %v4213 = vadd.f32 %v4116, %v4212
      %v4214 = vpop.f32.mrb[0].mxu0
      %4215 = vmatprep.mubr.bf16.mxu0 %v3353
      %4216 = vmatmul.mubr.bf16.gmra.mrb[0].mxu0 %v3352
      %v4217 = vpop.f32.mrb[0].mxu0
      %v4218 = vadd.f32 %v4121, %v4217
      %v4219 = vpop.f32.mrb[0].mxu0
      %v4220 = vpop.f32.mrb[0].mxu0
      %v4221 = vadd.f32 %v4124, %v4220
      %v4222 = vpop.f32.mrb[0].mxu0
      %4223 = vdwg.mxu0
      %4224 = vmatprep.subr.bf16.mxu0 0
      %4225 = vmatpush1.bf16.msra.mxu0 %v3837
      %4226 = vmatprep.subr.bf16.mxu0 0
      %4227 = vmatpush1.bf16.msra.mxu0 %v3838
      %4228 = vmatprep.subr.bf16.mxu0 0
      %4229 = vmatpush1.bf16.msra.mxu0 %v3839
      %4230 = vmatprep.subr.bf16.mxu0 0
      %4231 = vmatpush1.bf16.msra.mxu0 %v3840
      %4232 = vmatprep.subr.bf16.mxu0 0
      %4233 = vmatpush1.bf16.msra.mxu0 %v3841
      %4234 = vmatprep.subr.bf16.mxu0 0
      %4235 = vmatpush1.bf16.msra.mxu0 %v3842
      %4236 = vmatprep.subr.bf16.mxu0 0
      %4237 = vmatpush1.bf16.msra.mxu0 %v3843
      %4238 = vmatprep.subr.bf16.mxu0 0
      %4239 = vmatpush1.bf16.msra.mxu0 %v3844
      %4240 = vmatprep.subr.bf16.mxu0 0
      %4241 = vmatpush1.bf16.msra.mxu0 %v3845
      %4242 = vmatprep.subr.bf16.mxu0 0
      %4243 = vmatpush1.bf16.msra.mxu0 %v3846
      %4244 = vmatprep.subr.bf16.mxu0 0
      %4245 = vmatpush1.bf16.msra.mxu0 %v3847
      %4246 = vmatprep.subr.bf16.mxu0 0
      %4247 = vmatpush1.bf16.msra.mxu0 %v3848
      %4248 = vmatprep.subr.bf16.mxu0 0
      %4249 = vmatpush1.bf16.msra.mxu0 %v3849
      %4250 = vmatprep.subr.bf16.mxu0 0
      %4251 = vmatpush1.bf16.msra.mxu0 %v3850
      %4252 = vmatprep.subr.bf16.mxu0 0
      %4253 = vmatpush1.bf16.msra.mxu0 %v3851
      %4254 = vmatprep.subr.bf16.mxu0 0
      %4255 = vmatpush1.bf16.msra.mxu0 %v3852
      %4256 = vmatprep.mubr.bf16.mxu0 %v3292
      %4257 = vmatmul.mubr.bf16.gmra.mrb[0].mxu0 %v3291
      %v4258 = vpop.f32.mrb[0].mxu0
      %v4259 = vadd.f32 %v4162, %v4258
      %v4260 = vpop.f32.mrb[0].mxu0
      %v4261 = vpop.f32.mrb[0].mxu0
      %v4262 = vadd.f32 %v4165, %v4261
      %v4263 = vpop.f32.mrb[0].mxu0
      %4264 = vmatprep.mubr.bf16.mxu0 %v3301
      %4265 = vmatmul.mubr.bf16.gmra.mrb[0].mxu0 %v3300
      %v4266 = vpop.f32.mrb[0].mxu0
      %v4267 = vadd.f32 %v4170, %v4266
      %v4268 = vpop.f32.mrb[0].mxu0
      %v4269 = vpop.f32.mrb[0].mxu0
      %v4270 = vadd.f32 %v4173, %v4269
      %v4271 = vpop.f32.mrb[0].mxu0
      %4272 = vmatprep.mubr.bf16.mxu0 %v3310
      %4273 = vmatmul.mubr.bf16.gmra.mrb[0].mxu0 %v3309
      %v4274 = vpop.f32.mrb[0].mxu0
      %v4275 = vadd.f32 %v4178, %v4274
      %v4276 = vpop.f32.mrb[0].mxu0
      %v4277 = vpop.f32.mrb[0].mxu0
      %v4278 = vadd.f32 %v4181, %v4277
      %v4279 = vpop.f32.mrb[0].mxu0
      %4280 = vmatprep.mubr.bf16.mxu0 %v3319
      %4281 = vmatmul.mubr.bf16.gmra.mrb[0].mxu0 %v3318
      %v4282 = vpop.f32.mrb[0].mxu0
      %v4283 = vadd.f32 %v4186, %v4282
      %v4284 = vpop.f32.mrb[0].mxu0
      %v4285 = vpop.f32.mrb[0].mxu0
      %v4286 = vadd.f32 %v4189, %v4285
      %v4287 = vpop.f32.mrb[0].mxu0
      %4288 = vmatprep.mubr.bf16.mxu0 %v3328
      %4289 = vmatmul.mubr.bf16.gmra.mrb[0].mxu0 %v3327
      %v4290 = vpop.f32.mrb[0].mxu0
      %v4291 = vadd.f32 %v4194, %v4290
      %v4292 = vpop.f32.mrb[0].mxu0
      %v4293 = vpop.f32.mrb[0].mxu0
      %v4294 = vadd.f32 %v4197, %v4293
      %v4295 = vpop.f32.mrb[0].mxu0
      %4296 = vmatprep.mubr.bf16.mxu0 %v3337
      %4297 = vmatmul.mubr.bf16.gmra.mrb[0].mxu0 %v3336
      %v4298 = vpop.f32.mrb[0].mxu0
      %v4299 = vadd.f32 %v4202, %v4298
      %v4300 = vpop.f32.mrb[0].mxu0
      %v4301 = vpop.f32.mrb[0].mxu0
      %v4302 = vadd.f32 %v4205, %v4301
      %v4303 = vpop.f32.mrb[0].mxu0
      %4304 = vmatprep.mubr.bf16.mxu0 %v3346
      %4305 = vmatmul.mubr.bf16.gmra.mrb[0].mxu0 %v3345
      %v4306 = vpop.f32.mrb[0].mxu0
      %v4307 = vadd.f32 %v4210, %v4306
      %v4308 = vpop.f32.mrb[0].mxu0
      %v4309 = vpop.f32.mrb[0].mxu0
      %v4310 = vadd.f32 %v4213, %v4309
      %v4311 = vpop.f32.mrb[0].mxu0
      %4312 = vmatprep.mubr.bf16.mxu0 %v3355
      %4313 = vmatmul.mubr.bf16.gmra.mrb[0].mxu0 %v3354
      %v4314 = vpop.f32.mrb[0].mxu0
      %v4315 = vadd.f32 %v4218, %v4314
      %v4316 = vpop.f32.mrb[0].mxu0
      %v4317 = vpop.f32.mrb[0].mxu0
      %v4318 = vadd.f32 %v4221, %v4317
      %v4319 = vpop.f32.mrb[0].mxu0
      %4320 = vdwg.mxu0
      %4321 = vmatprep.subr.bf16.mxu0 0
      %4322 = vmatpush1.bf16.msra.mxu0 %v3853
      %4323 = vmatprep.subr.bf16.mxu0 0
      %4324 = vmatpush1.bf16.msra.mxu0 %v3854
      %4325 = vmatprep.subr.bf16.mxu0 0
      %4326 = vmatpush1.bf16.msra.mxu0 %v3855
      %4327 = vmatprep.subr.bf16.mxu0 0
      %4328 = vmatpush1.bf16.msra.mxu0 %v3856
      %4329 = vmatprep.subr.bf16.mxu0 0
      %4330 = vmatpush1.bf16.msra.mxu0 %v3857
      %4331 = vmatprep.subr.bf16.mxu0 0
      %4332 = vmatpush1.bf16.msra.mxu0 %v3858
      %4333 = vmatprep.subr.bf16.mxu0 0
      %4334 = vmatpush1.bf16.msra.mxu0 %v3859
      %4335 = vmatprep.subr.bf16.mxu0 0
      %4336 = vmatpush1.bf16.msra.mxu0 %v3860
      %4337 = vmatprep.subr.bf16.mxu0 0
      %4338 = vmatpush1.bf16.msra.mxu0 0
      %4339 = vmatprep.subr.bf16.mxu0 0
      %4340 = vmatpush1.bf16.msra.mxu0 0
      %4341 = vmatprep.subr.bf16.mxu0 0
      %4342 = vmatpush1.bf16.msra.mxu0 0
      %4343 = vmatprep.subr.bf16.mxu0 0
      %4344 = vmatpush1.bf16.msra.mxu0 0
      %4345 = vmatprep.subr.bf16.mxu0 0
      %4346 = vmatpush1.bf16.msra.mxu0 0
      %4347 = vmatprep.subr.bf16.mxu0 0
      %4348 = vmatpush1.bf16.msra.mxu0 0
      %4349 = vmatprep.subr.bf16.mxu0 0
      %4350 = vmatpush1.bf16.msra.mxu0 0
      %4351 = vmatprep.subr.bf16.mxu0 0
      %4352 = vmatpush1.bf16.msra.mxu0 0
      %4353 = vmatprep.mubr.bf16.mxu0 0
      %4354 = vmatmul.mubr.bf16.gmra.mrb[0].mxu0 %v3293
      %v4355 = vpop.f32.mrb[0].mxu0
      %v4356 = vadd.f32 %v4259, %v4355
      %v4357 = vpop.f32.mrb[0].mxu0
      %v4358 = vpop.f32.mrb[0].mxu0
      %v4359 = vadd.f32 %v4262, %v4358
      %v4360 = vpop.f32.mrb[0].mxu0
      %4361 = vmatprep.mubr.bf16.mxu0 0
      %4362 = vmatmul.mubr.bf16.gmra.mrb[0].mxu0 %v3302
      %v4363 = vpop.f32.mrb[0].mxu0
      %v4364 = vadd.f32 %v4267, %v4363
      %v4365 = vpop.f32.mrb[0].mxu0
      %v4366 = vpop.f32.mrb[0].mxu0
      %v4367 = vadd.f32 %v4270, %v4366
      %v4368 = vpop.f32.mrb[0].mxu0
      %4369 = vmatprep.mubr.bf16.mxu0 0
      %4370 = vmatmul.mubr.bf16.gmra.mrb[0].mxu0 %v3311
      %v4371 = vpop.f32.mrb[0].mxu0
      %v4372 = vadd.f32 %v4275, %v4371
      %v4373 = vpop.f32.mrb[0].mxu0
      %v4374 = vpop.f32.mrb[0].mxu0
      %v4375 = vadd.f32 %v4278, %v4374
      %v4376 = vpop.f32.mrb[0].mxu0
      %4377 = vmatprep.mubr.bf16.mxu0 0
      %4378 = vmatmul.mubr.bf16.gmra.mrb[0].mxu0 %v3320
      %v4379 = vpop.f32.mrb[0].mxu0
      %v4380 = vadd.f32 %v4283, %v4379
      %v4381 = vpop.f32.mrb[0].mxu0
      %v4382 = vpop.f32.mrb[0].mxu0
      %v4383 = vadd.f32 %v4286, %v4382
      %v4384 = vpop.f32.mrb[0].mxu0
      %4385 = vmatprep.mubr.bf16.mxu0 0
      %4386 = vmatmul.mubr.bf16.gmra.mrb[0].mxu0 %v3329
      %v4387 = vpop.f32.mrb[0].mxu0
      %v4388 = vadd.f32 %v4291, %v4387
      %v4389 = vpop.f32.mrb[0].mxu0
      %v4390 = vpop.f32.mrb[0].mxu0
      %v4391 = vadd.f32 %v4294, %v4390
      %v4392 = vpop.f32.mrb[0].mxu0
      %4393 = vmatprep.mubr.bf16.mxu0 0
      %4394 = vmatmul.mubr.bf16.gmra.mrb[0].mxu0 %v3338
      %v4395 = vpop.f32.mrb[0].mxu0
      %v4396 = vadd.f32 %v4299, %v4395
      %v4397 = vpop.f32.mrb[0].mxu0
      %v4398 = vpop.f32.mrb[0].mxu0
      %v4399 = vadd.f32 %v4302, %v4398
      %v4400 = vpop.f32.mrb[0].mxu0
      %4401 = vmatprep.mubr.bf16.mxu0 0
      %4402 = vmatmul.mubr.bf16.gmra.mrb[0].mxu0 %v3347
      %v4403 = vpop.f32.mrb[0].mxu0
      %v4404 = vadd.f32 %v4307, %v4403
      %v4405 = vpop.f32.mrb[0].mxu0
      %v4406 = vpop.f32.mrb[0].mxu0
      %v4407 = vadd.f32 %v4310, %v4406
      %v4408 = vpop.f32.mrb[0].mxu0
      %4409 = vmatprep.mubr.bf16.mxu0 0
      %4410 = vmatmul.mubr.bf16.gmra.mrb[0].mxu0 %v3356
      %v4411 = vpop.f32.mrb[0].mxu0
      %v4412 = vadd.f32 %v4315, %v4411
      %v4413 = vpop.f32.mrb[0].mxu0
      %v4414 = vpop.f32.mrb[0].mxu0
      %v4415 = vadd.f32 %v4318, %v4414
      %v4416 = vpop.f32.mrb[0].mxu0
      %4417 = vdwg.mxu0
      %s4418 = scalar_lea.vmem %s6, 4
      %v4419 = vld [vmem:[%s4418] sm:$0x3]
      %v4420 = vlaneseq
      %v4421 = vshrl.u32 %v4420, 7
      %v4422 = vsub.s32 0, %v4421
      %v4423 = vrot.slane %v4419, %v4422
      %v4424 = vmul.f32 %v4356, %v4423
      %v4425 = vmul.f32 %v4359, %v4423
      %v4426 = vmul.f32 %v4364, %v4423
      %v4427 = vmul.f32 %v4367, %v4423
      %v4428 = vmul.f32 %v4372, %v4423
      %v4429 = vmul.f32 %v4375, %v4423
      %v4430 = vmul.f32 %v4380, %v4423
      %v4431 = vmul.f32 %v4383, %v4423
      %v4432 = vmul.f32 %v4388, %v4423
      %v4433 = vmul.f32 %v4391, %v4423
      %v4434 = vmul.f32 %v4396, %v4423
      %v4435 = vmul.f32 %v4399, %v4423
      %v4436 = vmul.f32 %v4404, %v4423
      %v4437 = vmul.f32 %v4407, %v4423
      %v4438 = vmul.f32 %v4412, %v4423
      %v4439 = vmul.f32 %v4415, %v4423
      %v4440 = vlaneseq
      %v4441 = vshrl.u32 %v4440, 7
      %v4442 = vsub.s32 1, %v4441
      %v4443 = vrot.slane %v4419, %v4442
      %v4444 = vadd.f32 %v4424, %v4443
      %v4445 = vadd.f32 %v4425, %v4443
      %v4446 = vadd.f32 %v4426, %v4443
      %v4447 = vadd.f32 %v4427, %v4443
      %v4448 = vadd.f32 %v4428, %v4443
      %v4449 = vadd.f32 %v4429, %v4443
      %v4450 = vadd.f32 %v4430, %v4443
      %v4451 = vadd.f32 %v4431, %v4443
      %v4452 = vadd.f32 %v4432, %v4443
      %v4453 = vadd.f32 %v4433, %v4443
      %v4454 = vadd.f32 %v4434, %v4443
      %v4455 = vadd.f32 %v4435, %v4443
      %v4456 = vadd.f32 %v4436, %v4443
      %v4457 = vadd.f32 %v4437, %v4443
      %v4458 = vadd.f32 %v4438, %v4443
      %v4459 = vadd.f32 %v4439, %v4443
      %vm4460 = vcmp.gt.f32.partialorder %v4444, 0.0
      %vm4461 = vcmp.gt.f32.partialorder %v4445, 0.0
      %vm4462 = vcmp.gt.f32.partialorder %v4446, 0.0
      %vm4463 = vcmp.gt.f32.partialorder %v4447, 0.0
      %vm4464 = vcmp.gt.f32.partialorder %v4448, 0.0
      %vm4465 = vcmp.gt.f32.partialorder %v4449, 0.0
      %vm4466 = vcmp.gt.f32.partialorder %v4450, 0.0
      %vm4467 = vcmp.gt.f32.partialorder %v4451, 0.0
      %vm4468 = vcmp.gt.f32.partialorder %v4452, 0.0
      %vm4469 = vcmp.gt.f32.partialorder %v4453, 0.0
      %vm4470 = vcmp.gt.f32.partialorder %v4454, 0.0
      %vm4471 = vcmp.gt.f32.partialorder %v4455, 0.0
      %vm4472 = vcmp.gt.f32.partialorder %v4456, 0.0
      %vm4473 = vcmp.gt.f32.partialorder %v4457, 0.0
      %vm4474 = vcmp.gt.f32.partialorder %v4458, 0.0
      %vm4475 = vcmp.gt.f32.partialorder %v4459, 0.0
      %v4476 = vmul.f32 %v4444, 0.01
      %v4477 = vmul.f32 %v4445, 0.01
      %v4478 = vmul.f32 %v4446, 0.01
      %v4479 = vmul.f32 %v4447, 0.01
      %v4480 = vmul.f32 %v4448, 0.01
      %v4481 = vmul.f32 %v4449, 0.01
      %v4482 = vmul.f32 %v4450, 0.01
      %v4483 = vmul.f32 %v4451, 0.01
      %v4484 = vmul.f32 %v4452, 0.01
      %v4485 = vmul.f32 %v4453, 0.01
      %v4486 = vmul.f32 %v4454, 0.01
      %v4487 = vmul.f32 %v4455, 0.01
      %v4488 = vmul.f32 %v4456, 0.01
      %v4489 = vmul.f32 %v4457, 0.01
      %v4490 = vmul.f32 %v4458, 0.01
      %v4491 = vmul.f32 %v4459, 0.01
      %v4492 = vsel %vm4460, %v4444, %v4476
      %v4493 = vsel %vm4461, %v4445, %v4477
      %v4494 = vsel %vm4462, %v4446, %v4478
      %v4495 = vsel %vm4463, %v4447, %v4479
      %v4496 = vsel %vm4464, %v4448, %v4480
      %v4497 = vsel %vm4465, %v4449, %v4481
      %v4498 = vsel %vm4466, %v4450, %v4482
      %v4499 = vsel %vm4467, %v4451, %v4483
      %v4500 = vsel %vm4468, %v4452, %v4484
      %v4501 = vsel %vm4469, %v4453, %v4485
      %v4502 = vsel %vm4470, %v4454, %v4486
      %v4503 = vsel %vm4471, %v4455, %v4487
      %v4504 = vsel %vm4472, %v4456, %v4488
      %v4505 = vsel %vm4473, %v4457, %v4489
      %v4506 = vsel %vm4474, %v4458, %v4490
      %v4507 = vsel %vm4475, %v4459, %v4491
      %4508 = vst [vmem:[%s1740 + $0x1] sm:$0xff] %v4492
      %4509 = vst [vmem:[%s1740 + $0x9] sm:$0xff] %v4493
      %4510 = vst [vmem:[%s1740 + $0x19] sm:$0xff] %v4494
      %4511 = vst [vmem:[%s1740 + $0x21] sm:$0xff] %v4495
      %4512 = vst [vmem:[%s1740 + $0x31] sm:$0xff] %v4496
      %4513 = vst [vmem:[%s1740 + $0x39] sm:$0xff] %v4497
      %4514 = vst [vmem:[%s1740 + $0x49] sm:$0xff] %v4498
      %4515 = vst [vmem:[%s1740 + $0x51] sm:$0xff] %v4499
      %4516 = vst [vmem:[%s1740 + $0x61] sm:$0xff] %v4500
      %4517 = vst [vmem:[%s1740 + $0x69] sm:$0xff] %v4501
      %4518 = vst [vmem:[%s1740 + $0x79] sm:$0xff] %v4502
      %4519 = vst [vmem:[%s1740 + $0x81] sm:$0xff] %v4503
      %4520 = vst [vmem:[%s1740 + $0x91] sm:$0xff] %v4504
      %4521 = vst [vmem:[%s1740 + $0x99] sm:$0xff] %v4505
      %4522 = vst [vmem:[%s1740 + $0xa9] sm:$0xff] %v4506
      %4523 = vst [vmem:[%s1740 + $0xb1] sm:$0xff] %v4507
      %v4524 = vld [vmem:[#allocation3] sm:$0xff]
      %v4525 = vld [vmem:[#allocation3 + $0x8] sm:$0xff]
      %v4526 = vld [vmem:[#allocation3 + $0x18] sm:$0xff]
      %v4527 = vld [vmem:[#allocation3 + $0x20] sm:$0xff]
      %v4528 = vld [vmem:[#allocation3 + $0x30] sm:$0xff]
      %v4529 = vld [vmem:[#allocation3 + $0x38] sm:$0xff]
      %v4530 = vld [vmem:[#allocation3 + $0x48] sm:$0xff]
      %v4531 = vld [vmem:[#allocation3 + $0x50] sm:$0xff]
      %v4532 = vld [vmem:[#allocation3 + $0x60] sm:$0xff]
      %v4533 = vld [vmem:[#allocation3 + $0x68] sm:$0xff]
      %v4534 = vld [vmem:[#allocation3 + $0x78] sm:$0xff]
      %v4535 = vld [vmem:[#allocation3 + $0x80] sm:$0xff]
      %v4536 = vld [vmem:[#allocation3 + $0x90] sm:$0xff]
      %v4537 = vld [vmem:[#allocation3 + $0x98] sm:$0xff]
      %v4538 = vld [vmem:[#allocation3 + $0xa8] sm:$0xff]
      %v4539 = vld [vmem:[#allocation3 + $0xb0] sm:$0xff]
      %v4540 = vld [vmem:[#allocation3 + $0x1] sm:$0xff]
      %v4541 = vld [vmem:[#allocation3 + $0x9] sm:$0xff]
      %v4542 = vld [vmem:[#allocation3 + $0x19] sm:$0xff]
      %v4543 = vld [vmem:[#allocation3 + $0x21] sm:$0xff]
      %v4544 = vld [vmem:[#allocation3 + $0x31] sm:$0xff]
      %v4545 = vld [vmem:[#allocation3 + $0x39] sm:$0xff]
      %v4546 = vld [vmem:[#allocation3 + $0x49] sm:$0xff]
      %v4547 = vld [vmem:[#allocation3 + $0x51] sm:$0xff]
      %v4548 = vld [vmem:[#allocation3 + $0x61] sm:$0xff]
      %v4549 = vld [vmem:[#allocation3 + $0x69] sm:$0xff]
      %v4550 = vld [vmem:[#allocation3 + $0x79] sm:$0xff]
      %v4551 = vld [vmem:[#allocation3 + $0x81] sm:$0xff]
      %v4552 = vld [vmem:[#allocation3 + $0x91] sm:$0xff]
      %v4553 = vld [vmem:[#allocation3 + $0x99] sm:$0xff]
      %v4554 = vld [vmem:[#allocation3 + $0xa9] sm:$0xff]
      %v4555 = vld [vmem:[#allocation3 + $0xb1] sm:$0xff]
      %v4556 = vld [vmem:[#allocation3 + $0x2] sm:$0xff]
      %v4557 = vld [vmem:[#allocation3 + $0xa] sm:$0xff]
      %v4558 = vld [vmem:[#allocation3 + $0x1a] sm:$0xff]
      %v4559 = vld [vmem:[#allocation3 + $0x22] sm:$0xff]
      %v4560 = vld [vmem:[#allocation3 + $0x32] sm:$0xff]
      %v4561 = vld [vmem:[#allocation3 + $0x3a] sm:$0xff]
      %v4562 = vld [vmem:[#allocation3 + $0x4a] sm:$0xff]
      %v4563 = vld [vmem:[#allocation3 + $0x52] sm:$0xff]
      %v4564 = vld [vmem:[#allocation3 + $0x62] sm:$0xff]
      %v4565 = vld [vmem:[#allocation3 + $0x6a] sm:$0xff]
      %v4566 = vld [vmem:[#allocation3 + $0x7a] sm:$0xff]
      %v4567 = vld [vmem:[#allocation3 + $0x82] sm:$0xff]
      %v4568 = vld [vmem:[#allocation3 + $0x92] sm:$0xff]
      %v4569 = vld [vmem:[#allocation3 + $0x9a] sm:$0xff]
      %v4570 = vld [vmem:[#allocation3 + $0xaa] sm:$0xff]
      %v4571 = vld [vmem:[#allocation3 + $0xb2] sm:$0xff]
      %v4572 = vld [vmem:[%s1740] sm:$0xff]
      %v4573 = vld [vmem:[%s1740 + $0x8] sm:$0xff]
      %v4574 = vld [vmem:[%s1740 + $0x18] sm:$0xff]
      %v4575 = vld [vmem:[%s1740 + $0x20] sm:$0xff]
      %v4576 = vld [vmem:[%s1740 + $0x30] sm:$0xff]
      %v4577 = vld [vmem:[%s1740 + $0x38] sm:$0xff]
      %v4578 = vld [vmem:[%s1740 + $0x48] sm:$0xff]
      %v4579 = vld [vmem:[%s1740 + $0x50] sm:$0xff]
      %v4580 = vld [vmem:[%s1740 + $0x60] sm:$0xff]
      %v4581 = vld [vmem:[%s1740 + $0x68] sm:$0xff]
      %v4582 = vld [vmem:[%s1740 + $0x78] sm:$0xff]
      %v4583 = vld [vmem:[%s1740 + $0x80] sm:$0xff]
      %v4584 = vld [vmem:[%s1740 + $0x90] sm:$0xff]
      %v4585 = vld [vmem:[%s1740 + $0x98] sm:$0xff]
      %v4586 = vld [vmem:[%s1740 + $0xa8] sm:$0xff]
      %v4587 = vld [vmem:[%s1740 + $0xb0] sm:$0xff]
      %v4588 = vld [vmem:[%s1740 + $0x1] sm:$0xff]
      %v4589 = vld [vmem:[%s1740 + $0x9] sm:$0xff]
      %v4590 = vld [vmem:[%s1740 + $0x19] sm:$0xff]
      %v4591 = vld [vmem:[%s1740 + $0x21] sm:$0xff]
      %v4592 = vld [vmem:[%s1740 + $0x31] sm:$0xff]
      %v4593 = vld [vmem:[%s1740 + $0x39] sm:$0xff]
      %v4594 = vld [vmem:[%s1740 + $0x49] sm:$0xff]
      %v4595 = vld [vmem:[%s1740 + $0x51] sm:$0xff]
      %v4596 = vld [vmem:[%s1740 + $0x61] sm:$0xff]
      %v4597 = vld [vmem:[%s1740 + $0x69] sm:$0xff]
      %v4598 = vld [vmem:[%s1740 + $0x79] sm:$0xff]
      %v4599 = vld [vmem:[%s1740 + $0x81] sm:$0xff]
      %v4600 = vld [vmem:[%s1740 + $0x91] sm:$0xff]
      %v4601 = vld [vmem:[%s1740 + $0x99] sm:$0xff]
      %v4602 = vld [vmem:[%s1740 + $0xa9] sm:$0xff]
      %v4603 = vld [vmem:[%s1740 + $0xb1] sm:$0xff]
      %v4604 = vld [vmem:[%s1740 + $0x2] sm:$0xff]
      %v4605 = vld [vmem:[%s1740 + $0xa] sm:$0xff]
      %v4606 = vld [vmem:[%s1740 + $0x1a] sm:$0xff]
      %v4607 = vld [vmem:[%s1740 + $0x22] sm:$0xff]
      %v4608 = vld [vmem:[%s1740 + $0x32] sm:$0xff]
      %v4609 = vld [vmem:[%s1740 + $0x3a] sm:$0xff]
      %v4610 = vld [vmem:[%s1740 + $0x4a] sm:$0xff]
      %v4611 = vld [vmem:[%s1740 + $0x52] sm:$0xff]
      %v4612 = vld [vmem:[%s1740 + $0x62] sm:$0xff]
      %v4613 = vld [vmem:[%s1740 + $0x6a] sm:$0xff]
      %v4614 = vld [vmem:[%s1740 + $0x7a] sm:$0xff]
      %v4615 = vld [vmem:[%s1740 + $0x82] sm:$0xff]
      %v4616 = vld [vmem:[%s1740 + $0x92] sm:$0xff]
      %v4617 = vld [vmem:[%s1740 + $0x9a] sm:$0xff]
      %v4618 = vld [vmem:[%s1740 + $0xaa] sm:$0xff]
      %v4619 = vld [vmem:[%s1740 + $0xb2] sm:$0xff]
      %v4620 = vld [vmem:[%s1853] sm:$0xff]
      %v4621 = vld [vmem:[%s1853 + $0x8] sm:$0xff]
      %v4622 = vld [vmem:[%s1853 + $0x18] sm:$0xff]
      %v4623 = vld [vmem:[%s1853 + $0x20] sm:$0xff]
      %v4624 = vld [vmem:[%s1853 + $0x30] sm:$0xff]
      %v4625 = vld [vmem:[%s1853 + $0x38] sm:$0xff]
      %v4626 = vld [vmem:[%s1853 + $0x48] sm:$0xff]
      %v4627 = vld [vmem:[%s1853 + $0x50] sm:$0xff]
      %v4628 = vld [vmem:[%s1853 + $0x60] sm:$0xff]
      %v4629 = vld [vmem:[%s1853 + $0x68] sm:$0xff]
      %v4630 = vld [vmem:[%s1853 + $0x78] sm:$0xff]
      %v4631 = vld [vmem:[%s1853 + $0x80] sm:$0xff]
      %v4632 = vld [vmem:[%s1853 + $0x90] sm:$0xff]
      %v4633 = vld [vmem:[%s1853 + $0x98] sm:$0xff]
      %v4634 = vld [vmem:[%s1853 + $0xa8] sm:$0xff]
      %v4635 = vld [vmem:[%s1853 + $0xb0] sm:$0xff]
      %v4636 = vld [vmem:[%s1853 + $0x1] sm:$0xff]
      %v4637 = vld [vmem:[%s1853 + $0x9] sm:$0xff]
      %v4638 = vld [vmem:[%s1853 + $0x19] sm:$0xff]
      %v4639 = vld [vmem:[%s1853 + $0x21] sm:$0xff]
      %v4640 = vld [vmem:[%s1853 + $0x31] sm:$0xff]
      %v4641 = vld [vmem:[%s1853 + $0x39] sm:$0xff]
      %v4642 = vld [vmem:[%s1853 + $0x49] sm:$0xff]
      %v4643 = vld [vmem:[%s1853 + $0x51] sm:$0xff]
      %v4644 = vld [vmem:[%s1853 + $0x61] sm:$0xff]
      %v4645 = vld [vmem:[%s1853 + $0x69] sm:$0xff]
      %v4646 = vld [vmem:[%s1853 + $0x79] sm:$0xff]
      %v4647 = vld [vmem:[%s1853 + $0x81] sm:$0xff]
      %v4648 = vld [vmem:[%s1853 + $0x91] sm:$0xff]
      %v4649 = vld [vmem:[%s1853 + $0x99] sm:$0xff]
      %v4650 = vld [vmem:[%s1853 + $0xa9] sm:$0xff]
      %v4651 = vld [vmem:[%s1853 + $0xb1] sm:$0xff]
      %v4652 = vld [vmem:[%s1853 + $0x2] sm:$0xff]
      %v4653 = vld [vmem:[%s1853 + $0xa] sm:$0xff]
      %v4654 = vld [vmem:[%s1853 + $0x1a] sm:$0xff]
      %v4655 = vld [vmem:[%s1853 + $0x22] sm:$0xff]
      %v4656 = vld [vmem:[%s1853 + $0x32] sm:$0xff]
      %v4657 = vld [vmem:[%s1853 + $0x3a] sm:$0xff]
      %v4658 = vld [vmem:[%s1853 + $0x4a] sm:$0xff]
      %v4659 = vld [vmem:[%s1853 + $0x52] sm:$0xff]
      %v4660 = vld [vmem:[%s1853 + $0x62] sm:$0xff]
      %v4661 = vld [vmem:[%s1853 + $0x6a] sm:$0xff]
      %v4662 = vld [vmem:[%s1853 + $0x7a] sm:$0xff]
      %v4663 = vld [vmem:[%s1853 + $0x82] sm:$0xff]
      %v4664 = vld [vmem:[%s1853 + $0x92] sm:$0xff]
      %v4665 = vld [vmem:[%s1853 + $0x9a] sm:$0xff]
      %v4666 = vld [vmem:[%s1853 + $0xaa] sm:$0xff]
      %v4667 = vld [vmem:[%s1853 + $0xb2] sm:$0xff]
      %v4668 = vpack.c.bf16 %v4525, %v4524
      %v4669 = vpack.c.bf16 %v4541, %v4540
      %v4670 = vpack.c.bf16 %v4557, %v4556
      %v4671 = vpack.c.bf16 %v4573, %v4572
      %v4672 = vpack.c.bf16 %v4589, %v4588
      %v4673 = vpack.c.bf16 %v4605, %v4604
      %v4674 = vpack.c.bf16 %v4621, %v4620
      %v4675 = vpack.c.bf16 %v4637, %v4636
      %v4676 = vpack.c.bf16 %v4653, %v4652
      %v4677 = vpack.c.bf16 %v4527, %v4526
      %v4678 = vpack.c.bf16 %v4543, %v4542
      %v4679 = vpack.c.bf16 %v4559, %v4558
      %v4680 = vpack.c.bf16 %v4575, %v4574
      %v4681 = vpack.c.bf16 %v4591, %v4590
      %v4682 = vpack.c.bf16 %v4607, %v4606
      %v4683 = vpack.c.bf16 %v4623, %v4622
      %v4684 = vpack.c.bf16 %v4639, %v4638
      %v4685 = vpack.c.bf16 %v4655, %v4654
      %v4686 = vpack.c.bf16 %v4529, %v4528
      %v4687 = vpack.c.bf16 %v4545, %v4544
      %v4688 = vpack.c.bf16 %v4561, %v4560
      %v4689 = vpack.c.bf16 %v4577, %v4576
      %v4690 = vpack.c.bf16 %v4593, %v4592
      %v4691 = vpack.c.bf16 %v4609, %v4608
      %v4692 = vpack.c.bf16 %v4625, %v4624
      %v4693 = vpack.c.bf16 %v4641, %v4640
      %v4694 = vpack.c.bf16 %v4657, %v4656
      %v4695 = vpack.c.bf16 %v4531, %v4530
      %v4696 = vpack.c.bf16 %v4547, %v4546
      %v4697 = vpack.c.bf16 %v4563, %v4562
      %v4698 = vpack.c.bf16 %v4579, %v4578
      %v4699 = vpack.c.bf16 %v4595, %v4594
      %v4700 = vpack.c.bf16 %v4611, %v4610
      %v4701 = vpack.c.bf16 %v4627, %v4626
      %v4702 = vpack.c.bf16 %v4643, %v4642
      %v4703 = vpack.c.bf16 %v4659, %v4658
      %v4704 = vpack.c.bf16 %v4533, %v4532
      %v4705 = vpack.c.bf16 %v4549, %v4548
      %v4706 = vpack.c.bf16 %v4565, %v4564
      %v4707 = vpack.c.bf16 %v4581, %v4580
      %v4708 = vpack.c.bf16 %v4597, %v4596
      %v4709 = vpack.c.bf16 %v4613, %v4612
      %v4710 = vpack.c.bf16 %v4629, %v4628
      %v4711 = vpack.c.bf16 %v4645, %v4644
      %v4712 = vpack.c.bf16 %v4661, %v4660
      %v4713 = vpack.c.bf16 %v4535, %v4534
      %v4714 = vpack.c.bf16 %v4551, %v4550
      %v4715 = vpack.c.bf16 %v4567, %v4566
      %v4716 = vpack.c.bf16 %v4583, %v4582
      %v4717 = vpack.c.bf16 %v4599, %v4598
      %v4718 = vpack.c.bf16 %v4615, %v4614
      %v4719 = vpack.c.bf16 %v4631, %v4630
      %v4720 = vpack.c.bf16 %v4647, %v4646
      %v4721 = vpack.c.bf16 %v4663, %v4662
      %v4722 = vpack.c.bf16 %v4537, %v4536
      %v4723 = vpack.c.bf16 %v4553, %v4552
      %v4724 = vpack.c.bf16 %v4569, %v4568
      %v4725 = vpack.c.bf16 %v4585, %v4584
      %v4726 = vpack.c.bf16 %v4601, %v4600
      %v4727 = vpack.c.bf16 %v4617, %v4616
      %v4728 = vpack.c.bf16 %v4633, %v4632
      %v4729 = vpack.c.bf16 %v4649, %v4648
      %v4730 = vpack.c.bf16 %v4665, %v4664
      %v4731 = vpack.c.bf16 %v4539, %v4538
      %v4732 = vpack.c.bf16 %v4555, %v4554
      %v4733 = vpack.c.bf16 %v4571, %v4570
      %v4734 = vpack.c.bf16 %v4587, %v4586
      %v4735 = vpack.c.bf16 %v4603, %v4602
      %v4736 = vpack.c.bf16 %v4619, %v4618
      %v4737 = vpack.c.bf16 %v4635, %v4634
      %v4738 = vpack.c.bf16 %v4651, %v4650
      %v4739 = vpack.c.bf16 %v4667, %v4666
      %v4740 = vld [vmem:[%s4] sm:$0xf]
      %v4741 = vld [vmem:[%s4 + $0x4] sm:$0xf]
      %v4742 = vld [vmem:[%s4 + $0x8] sm:$0xf]
      %v4743 = vld [vmem:[%s4 + $0xc] sm:$0xf]
      %v4744 = vld [vmem:[%s4 + $0x10] sm:$0xf]
      %v4745 = vld [vmem:[%s4 + $0x14] sm:$0xf]
      %v4746 = vld [vmem:[%s4 + $0x18] sm:$0xf]
      %v4747 = vld [vmem:[%s4 + $0x1c] sm:$0xf]
      %v4748 = vld [vmem:[%s4 + $0x20] sm:$0xf]
      %v4749 = vld [vmem:[%s4 + $0x24] sm:$0xf]
      %v4750 = vld [vmem:[%s4 + $0x28] sm:$0xf]
      %v4751 = vld [vmem:[%s4 + $0x2c] sm:$0xf]
      %v4752 = vld [vmem:[%s4 + $0x30] sm:$0xf]
      %v4753 = vld [vmem:[%s4 + $0x34] sm:$0xf]
      %v4754 = vld [vmem:[%s4 + $0x38] sm:$0xf]
      %v4755 = vld [vmem:[%s4 + $0x3c] sm:$0xf]
      %v4756 = vld [vmem:[%s4 + $0x40] sm:$0xf]
      %v4757 = vld [vmem:[%s4 + $0x44] sm:$0xf]
      %v4758 = vld [vmem:[%s4 + $0x48] sm:$0xf]
      %v4759 = vld [vmem:[%s4 + $0x4c] sm:$0xf]
      %v4760 = vld [vmem:[%s4 + $0x50] sm:$0xf]
      %v4761 = vld [vmem:[%s4 + $0x54] sm:$0xf]
      %v4762 = vld [vmem:[%s4 + $0x58] sm:$0xf]
      %v4763 = vld [vmem:[%s4 + $0x5c] sm:$0xf]
      %v4764 = vld [vmem:[%s4 + $0x60] sm:$0xf]
      %v4765 = vld [vmem:[%s4 + $0x64] sm:$0xf]
      %v4766 = vld [vmem:[%s4 + $0x68] sm:$0xf]
      %v4767 = vld [vmem:[%s4 + $0x6c] sm:$0xf]
      %v4768 = vld [vmem:[%s4 + $0x70] sm:$0xf]
      %v4769 = vld [vmem:[%s4 + $0x74] sm:$0xf]
      %v4770 = vld [vmem:[%s4 + $0x78] sm:$0xf]
      %v4771 = vld [vmem:[%s4 + $0x7c] sm:$0xf]
      %v4772 = vld [vmem:[%s4 + $0x80] sm:$0xf]
      %v4773 = vld [vmem:[%s4 + $0x84] sm:$0xf]
      %v4774 = vld [vmem:[%s4 + $0x88] sm:$0xf]
      %v4775 = vld [vmem:[%s4 + $0x8c] sm:$0xf]
      %v4776 = vld [vmem:[%s4 + $0x90] sm:$0xf]
      %v4777 = vld [vmem:[%s4 + $0x94] sm:$0xf]
      %v4778 = vld [vmem:[%s4 + $0x98] sm:$0xf]
      %v4779 = vld [vmem:[%s4 + $0x9c] sm:$0xf]
      %v4780 = vld [vmem:[%s4 + $0xa0] sm:$0xf]
      %v4781 = vld [vmem:[%s4 + $0xa4] sm:$0xf]
      %v4782 = vld [vmem:[%s4 + $0xa8] sm:$0xf]
      %v4783 = vld [vmem:[%s4 + $0xac] sm:$0xf]
      %v4784 = vld [vmem:[%s4 + $0xb0] sm:$0xf]
      %v4785 = vld [vmem:[%s4 + $0xb4] sm:$0xf]
      %v4786 = vld [vmem:[%s4 + $0xb8] sm:$0xf]
      %v4787 = vld [vmem:[%s4 + $0xbc] sm:$0xf]
      %v4788 = vld [vmem:[%s4 + $0xc0] sm:$0xf]
      %v4789 = vld [vmem:[%s4 + $0xc4] sm:$0xf]
      %v4790 = vld [vmem:[%s4 + $0xc8] sm:$0xf]
      %v4791 = vld [vmem:[%s4 + $0xcc] sm:$0xf]
      %v4792 = vld [vmem:[%s4 + $0xd0] sm:$0xf]
      %v4793 = vld [vmem:[%s4 + $0xd4] sm:$0xf]
      %v4794 = vld [vmem:[%s4 + $0xd8] sm:$0xf]
      %v4795 = vld [vmem:[%s4 + $0xdc] sm:$0xf]
      %v4796 = vld [vmem:[%s4 + $0xe0] sm:$0xf]
      %v4797 = vld [vmem:[%s4 + $0xe4] sm:$0xf]
      %v4798 = vld [vmem:[%s4 + $0xe8] sm:$0xf]
      %v4799 = vld [vmem:[%s4 + $0xec] sm:$0xf]
      %v4800 = vld [vmem:[%s4 + $0xf0] sm:$0xf]
      %v4801 = vld [vmem:[%s4 + $0xf4] sm:$0xf]
      %v4802 = vld [vmem:[%s4 + $0xf8] sm:$0xf]
      %v4803 = vld [vmem:[%s4 + $0xfc] sm:$0xf]
      %v4804 = vld [vmem:[%s4 + $0x100] sm:$0xf]
      %v4805 = vld [vmem:[%s4 + $0x104] sm:$0xf]
      %v4806 = vld [vmem:[%s4 + $0x108] sm:$0xf]
      %v4807 = vld [vmem:[%s4 + $0x10c] sm:$0xf]
      %v4808 = vld [vmem:[%s4 + $0x110] sm:$0xf]
      %v4809 = vld [vmem:[%s4 + $0x114] sm:$0xf]
      %v4810 = vld [vmem:[%s4 + $0x118] sm:$0xf]
      %v4811 = vld [vmem:[%s4 + $0x11c] sm:$0xf]
      %v4812 = vld [vmem:[%s4 + $0x120] sm:$0xf]
      %v4813 = vld [vmem:[%s4 + $0x124] sm:$0xf]
      %v4814 = vld [vmem:[%s4 + $0x128] sm:$0xf]
      %v4815 = vld [vmem:[%s4 + $0x12c] sm:$0xf]
      %v4816 = vld [vmem:[%s4 + $0x130] sm:$0xf]
      %v4817 = vld [vmem:[%s4 + $0x134] sm:$0xf]
      %v4818 = vld [vmem:[%s4 + $0x138] sm:$0xf]
      %v4819 = vld [vmem:[%s4 + $0x13c] sm:$0xf]
      %v4820 = vld [vmem:[%s4 + $0x140] sm:$0xf]
      %v4821 = vld [vmem:[%s4 + $0x144] sm:$0xf]
      %v4822 = vld [vmem:[%s4 + $0x148] sm:$0xf]
      %v4823 = vld [vmem:[%s4 + $0x14c] sm:$0xf]
      %v4824 = vld [vmem:[%s4 + $0x150] sm:$0xf]
      %v4825 = vld [vmem:[%s4 + $0x154] sm:$0xf]
      %v4826 = vld [vmem:[%s4 + $0x158] sm:$0xf]
      %v4827 = vld [vmem:[%s4 + $0x15c] sm:$0xf]
      %v4828 = vld [vmem:[%s4 + $0x160] sm:$0xf]
      %v4829 = vld [vmem:[%s4 + $0x164] sm:$0xf]
      %v4830 = vld [vmem:[%s4 + $0x168] sm:$0xf]
      %v4831 = vld [vmem:[%s4 + $0x16c] sm:$0xf]
      %v4832 = vld [vmem:[%s4 + $0x170] sm:$0xf]
      %v4833 = vld [vmem:[%s4 + $0x174] sm:$0xf]
      %v4834 = vld [vmem:[%s4 + $0x178] sm:$0xf]
      %v4835 = vld [vmem:[%s4 + $0x17c] sm:$0xf]
      %v4836 = vld [vmem:[%s4 + $0x180] sm:$0xf]
      %v4837 = vld [vmem:[%s4 + $0x184] sm:$0xf]
      %v4838 = vld [vmem:[%s4 + $0x188] sm:$0xf]
      %v4839 = vld [vmem:[%s4 + $0x18c] sm:$0xf]
      %v4840 = vld [vmem:[%s4 + $0x190] sm:$0xf]
      %v4841 = vld [vmem:[%s4 + $0x194] sm:$0xf]
      %v4842 = vld [vmem:[%s4 + $0x198] sm:$0xf]
      %v4843 = vld [vmem:[%s4 + $0x19c] sm:$0xf]
      %v4844 = vld [vmem:[%s4 + $0x1a0] sm:$0xf]
      %v4845 = vld [vmem:[%s4 + $0x1a4] sm:$0xf]
      %v4846 = vld [vmem:[%s4 + $0x1a8] sm:$0xf]
      %v4847 = vld [vmem:[%s4 + $0x1ac] sm:$0xf]
      %v4848 = vld [vmem:[%s4 + $0x1b0] sm:$0xf]
      %v4849 = vld [vmem:[%s4 + $0x1b4] sm:$0xf]
      %v4850 = vld [vmem:[%s4 + $0x1b8] sm:$0xf]
      %v4851 = vld [vmem:[%s4 + $0x1bc] sm:$0xf]
      %v4852 = vld [vmem:[%s4 + $0x1c0] sm:$0xf]
      %v4853 = vld [vmem:[%s4 + $0x1c4] sm:$0xf]
      %v4854 = vld [vmem:[%s4 + $0x1c8] sm:$0xf]
      %v4855 = vld [vmem:[%s4 + $0x1cc] sm:$0xf]
      %v4856 = vld [vmem:[%s4 + $0x1d0] sm:$0xf]
      %v4857 = vld [vmem:[%s4 + $0x1d4] sm:$0xf]
      %v4858 = vld [vmem:[%s4 + $0x1d8] sm:$0xf]
      %v4859 = vld [vmem:[%s4 + $0x1dc] sm:$0xf]
      %v4860 = vld [vmem:[%s4 + $0x1e0] sm:$0xf]
      %v4861 = vld [vmem:[%s4 + $0x1e4] sm:$0xf]
      %v4862 = vld [vmem:[%s4 + $0x1e8] sm:$0xf]
      %v4863 = vld [vmem:[%s4 + $0x1ec] sm:$0xf]
      %v4864 = vld [vmem:[%s4 + $0x1f0] sm:$0xf]
      %v4865 = vld [vmem:[%s4 + $0x1f4] sm:$0xf]
      %v4866 = vld [vmem:[%s4 + $0x1f8] sm:$0xf]
      %v4867 = vld [vmem:[%s4 + $0x1fc] sm:$0xf]
      %v4868 = vld [vmem:[%s4 + $0x200] sm:$0xf]
      %v4869 = vld [vmem:[%s4 + $0x204] sm:$0xf]
      %v4870 = vld [vmem:[%s4 + $0x208] sm:$0xf]
      %v4871 = vld [vmem:[%s4 + $0x20c] sm:$0xf]
      %v4872 = vld [vmem:[%s4 + $0x210] sm:$0xf]
      %v4873 = vld [vmem:[%s4 + $0x214] sm:$0xf]
      %v4874 = vld [vmem:[%s4 + $0x218] sm:$0xf]
      %v4875 = vld [vmem:[%s4 + $0x21c] sm:$0xf]
      %v4876 = vld [vmem:[%s4 + $0x220] sm:$0xf]
      %v4877 = vld [vmem:[%s4 + $0x224] sm:$0xf]
      %v4878 = vld [vmem:[%s4 + $0x228] sm:$0xf]
      %v4879 = vld [vmem:[%s4 + $0x22c] sm:$0xf]
      %v4880 = vld [vmem:[%s4 + $0x230] sm:$0xf]
      %v4881 = vld [vmem:[%s4 + $0x234] sm:$0xf]
      %v4882 = vld [vmem:[%s4 + $0x238] sm:$0xf]
      %v4883 = vld [vmem:[%s4 + $0x23c] sm:$0xf]
      %v5028 = vunpack.c.l.b16 %v4740
      %v5029 = vunpack.c.l.b16 %v4741
      %v5030 = vunpack.c.l.b16 %v4742
      %v5031 = vunpack.c.l.b16 %v4743
      %v5032 = vunpack.c.l.b16 %v4744
      %v5033 = vunpack.c.l.b16 %v4745
      %v5034 = vunpack.c.l.b16 %v4746
      %v5035 = vunpack.c.l.b16 %v4747
      %v5036 = vunpack.c.l.b16 %v4748
      %v5037 = vunpack.c.l.b16 %v4749
      %v5038 = vunpack.c.l.b16 %v4750
      %v5039 = vunpack.c.l.b16 %v4751
      %v5040 = vunpack.c.l.b16 %v4752
      %v5041 = vunpack.c.l.b16 %v4753
      %v5042 = vunpack.c.l.b16 %v4754
      %v5043 = vunpack.c.l.b16 %v4755
      %v5044 = vunpack.c.l.b16 %v4756
      %v5045 = vunpack.c.l.b16 %v4757
      %v5046 = vunpack.c.l.b16 %v4758
      %v5047 = vunpack.c.l.b16 %v4759
      %v5048 = vunpack.c.l.b16 %v4760
      %v5049 = vunpack.c.l.b16 %v4761
      %v5050 = vunpack.c.l.b16 %v4762
      %v5051 = vunpack.c.l.b16 %v4763
      %v5052 = vunpack.c.l.b16 %v4764
      %v5053 = vunpack.c.l.b16 %v4765
      %v5054 = vunpack.c.l.b16 %v4766
      %v5055 = vunpack.c.l.b16 %v4767
      %v5056 = vunpack.c.l.b16 %v4768
      %v5057 = vunpack.c.l.b16 %v4769
      %v5058 = vunpack.c.l.b16 %v4770
      %v5059 = vunpack.c.l.b16 %v4771
      %v5060 = vunpack.c.l.b16 %v4772
      %v5061 = vunpack.c.l.b16 %v4773
      %v5062 = vunpack.c.l.b16 %v4774
      %v5063 = vunpack.c.l.b16 %v4775
      %v5064 = vunpack.c.l.b16 %v4776
      %v5065 = vunpack.c.l.b16 %v4777
      %v5066 = vunpack.c.l.b16 %v4778
      %v5067 = vunpack.c.l.b16 %v4779
      %v5068 = vunpack.c.l.b16 %v4780
      %v5069 = vunpack.c.l.b16 %v4781
      %v5070 = vunpack.c.l.b16 %v4782
      %v5071 = vunpack.c.l.b16 %v4783
      %v5072 = vunpack.c.l.b16 %v4784
      %v5073 = vunpack.c.l.b16 %v4785
      %v5074 = vunpack.c.l.b16 %v4786
      %v5075 = vunpack.c.l.b16 %v4787
      %v5076 = vunpack.c.l.b16 %v4788
      %v5077 = vunpack.c.l.b16 %v4789
      %v5078 = vunpack.c.l.b16 %v4790
      %v5079 = vunpack.c.l.b16 %v4791
      %v5080 = vunpack.c.l.b16 %v4792
      %v5081 = vunpack.c.l.b16 %v4793
      %v5082 = vunpack.c.l.b16 %v4794
      %v5083 = vunpack.c.l.b16 %v4795
      %v5084 = vunpack.c.l.b16 %v4796
      %v5085 = vunpack.c.l.b16 %v4797
      %v5086 = vunpack.c.l.b16 %v4798
      %v5087 = vunpack.c.l.b16 %v4799
      %v5088 = vunpack.c.l.b16 %v4800
      %v5089 = vunpack.c.l.b16 %v4801
      %v5090 = vunpack.c.l.b16 %v4802
      %v5091 = vunpack.c.l.b16 %v4803
      %v5092 = vunpack.c.l.b16 %v4804
      %v5093 = vunpack.c.l.b16 %v4805
      %v5094 = vunpack.c.l.b16 %v4806
      %v5095 = vunpack.c.l.b16 %v4807
      %v5096 = vunpack.c.l.b16 %v4808
      %v5097 = vunpack.c.l.b16 %v4809
      %v5098 = vunpack.c.l.b16 %v4810
      %v5099 = vunpack.c.l.b16 %v4811
      %v5100 = vunpack.c.l.b16 %v4812
      %v5101 = vunpack.c.l.b16 %v4813
      %v5102 = vunpack.c.l.b16 %v4814
      %v5103 = vunpack.c.l.b16 %v4815
      %v5104 = vunpack.c.l.b16 %v4816
      %v5105 = vunpack.c.l.b16 %v4817
      %v5106 = vunpack.c.l.b16 %v4818
      %v5107 = vunpack.c.l.b16 %v4819
      %v5108 = vunpack.c.l.b16 %v4820
      %v5109 = vunpack.c.l.b16 %v4821
      %v5110 = vunpack.c.l.b16 %v4822
      %v5111 = vunpack.c.l.b16 %v4823
      %v5112 = vunpack.c.l.b16 %v4824
      %v5113 = vunpack.c.l.b16 %v4825
      %v5114 = vunpack.c.l.b16 %v4826
      %v5115 = vunpack.c.l.b16 %v4827
      %v5116 = vunpack.c.l.b16 %v4828
      %v5117 = vunpack.c.l.b16 %v4829
      %v5118 = vunpack.c.l.b16 %v4830
      %v5119 = vunpack.c.l.b16 %v4831
      %v5120 = vunpack.c.l.b16 %v4832
      %v5121 = vunpack.c.l.b16 %v4833
      %v5122 = vunpack.c.l.b16 %v4834
      %v5123 = vunpack.c.l.b16 %v4835
      %v5124 = vunpack.c.l.b16 %v4836
      %v5125 = vunpack.c.l.b16 %v4837
      %v5126 = vunpack.c.l.b16 %v4838
      %v5127 = vunpack.c.l.b16 %v4839
      %v5128 = vunpack.c.l.b16 %v4840
      %v5129 = vunpack.c.l.b16 %v4841
      %v5130 = vunpack.c.l.b16 %v4842
      %v5131 = vunpack.c.l.b16 %v4843
      %v5132 = vunpack.c.l.b16 %v4844
      %v5133 = vunpack.c.l.b16 %v4845
      %v5134 = vunpack.c.l.b16 %v4846
      %v5135 = vunpack.c.l.b16 %v4847
      %v5136 = vunpack.c.l.b16 %v4848
      %v5137 = vunpack.c.l.b16 %v4849
      %v5138 = vunpack.c.l.b16 %v4850
      %v5139 = vunpack.c.l.b16 %v4851
      %v5140 = vunpack.c.l.b16 %v4852
      %v5141 = vunpack.c.l.b16 %v4853
      %v5142 = vunpack.c.l.b16 %v4854
      %v5143 = vunpack.c.l.b16 %v4855
      %v5144 = vunpack.c.l.b16 %v4856
      %v5145 = vunpack.c.l.b16 %v4857
      %v5146 = vunpack.c.l.b16 %v4858
      %v5147 = vunpack.c.l.b16 %v4859
      %v5148 = vunpack.c.l.b16 %v4860
      %v5149 = vunpack.c.l.b16 %v4861
      %v5150 = vunpack.c.l.b16 %v4862
      %v5151 = vunpack.c.l.b16 %v4863
      %v5152 = vunpack.c.l.b16 %v4864
      %v5153 = vunpack.c.l.b16 %v4865
      %v5154 = vunpack.c.l.b16 %v4866
      %v5155 = vunpack.c.l.b16 %v4867
      %v5156 = vunpack.c.l.b16 %v4868
      %v5157 = vunpack.c.l.b16 %v4869
      %v5158 = vunpack.c.l.b16 %v4870
      %v5159 = vunpack.c.l.b16 %v4871
      %v5160 = vunpack.c.l.b16 %v4872
      %v5161 = vunpack.c.l.b16 %v4873
      %v5162 = vunpack.c.l.b16 %v4874
      %v5163 = vunpack.c.l.b16 %v4875
      %v5164 = vunpack.c.l.b16 %v4876
      %v5165 = vunpack.c.l.b16 %v4877
      %v5166 = vunpack.c.l.b16 %v4878
      %v5167 = vunpack.c.l.b16 %v4879
      %v5168 = vunpack.c.l.b16 %v4880
      %v5169 = vunpack.c.l.b16 %v4881
      %v5170 = vunpack.c.l.b16 %v4882
      %v5171 = vunpack.c.l.b16 %v4883
      %v5172 = vpack.c.b16 %v5029, %v5028
      %v5173 = vpack.c.b16 %v5031, %v5030
      %v5174 = vpack.c.b16 %v5033, %v5032
      %v5175 = vpack.c.b16 %v5035, %v5034
      %v5176 = vpack.c.b16 %v5037, %v5036
      %v5177 = vpack.c.b16 %v5039, %v5038
      %v5178 = vpack.c.b16 %v5041, %v5040
      %v5179 = vpack.c.b16 %v5043, %v5042
      %v5180 = vpack.c.b16 %v5045, %v5044
      %v5181 = vpack.c.b16 %v5047, %v5046
      %v5182 = vpack.c.b16 %v5049, %v5048
      %v5183 = vpack.c.b16 %v5051, %v5050
      %v5184 = vpack.c.b16 %v5053, %v5052
      %v5185 = vpack.c.b16 %v5055, %v5054
      %v5186 = vpack.c.b16 %v5057, %v5056
      %v5187 = vpack.c.b16 %v5059, %v5058
      %v5188 = vpack.c.b16 %v5061, %v5060
      %v5189 = vpack.c.b16 %v5063, %v5062
      %v5190 = vpack.c.b16 %v5065, %v5064
      %v5191 = vpack.c.b16 %v5067, %v5066
      %v5192 = vpack.c.b16 %v5069, %v5068
      %v5193 = vpack.c.b16 %v5071, %v5070
      %v5194 = vpack.c.b16 %v5073, %v5072
      %v5195 = vpack.c.b16 %v5075, %v5074
      %v5196 = vpack.c.b16 %v5077, %v5076
      %v5197 = vpack.c.b16 %v5079, %v5078
      %v5198 = vpack.c.b16 %v5081, %v5080
      %v5199 = vpack.c.b16 %v5083, %v5082
      %v5200 = vpack.c.b16 %v5085, %v5084
      %v5201 = vpack.c.b16 %v5087, %v5086
      %v5202 = vpack.c.b16 %v5089, %v5088
      %v5203 = vpack.c.b16 %v5091, %v5090
      %v5204 = vpack.c.b16 %v5093, %v5092
      %v5205 = vpack.c.b16 %v5095, %v5094
      %v5206 = vpack.c.b16 %v5097, %v5096
      %v5207 = vpack.c.b16 %v5099, %v5098
      %v5208 = vpack.c.b16 %v5101, %v5100
      %v5209 = vpack.c.b16 %v5103, %v5102
      %v5210 = vpack.c.b16 %v5105, %v5104
      %v5211 = vpack.c.b16 %v5107, %v5106
      %v5212 = vpack.c.b16 %v5109, %v5108
      %v5213 = vpack.c.b16 %v5111, %v5110
      %v5214 = vpack.c.b16 %v5113, %v5112
      %v5215 = vpack.c.b16 %v5115, %v5114
      %v5216 = vpack.c.b16 %v5117, %v5116
      %v5217 = vpack.c.b16 %v5119, %v5118
      %v5218 = vpack.c.b16 %v5121, %v5120
      %v5219 = vpack.c.b16 %v5123, %v5122
      %v5220 = vpack.c.b16 %v5125, %v5124
      %v5221 = vpack.c.b16 %v5127, %v5126
      %v5222 = vpack.c.b16 %v5129, %v5128
      %v5223 = vpack.c.b16 %v5131, %v5130
      %v5224 = vpack.c.b16 %v5133, %v5132
      %v5225 = vpack.c.b16 %v5135, %v5134
      %v5226 = vpack.c.b16 %v5137, %v5136
      %v5227 = vpack.c.b16 %v5139, %v5138
      %v5228 = vpack.c.b16 %v5141, %v5140
      %v5229 = vpack.c.b16 %v5143, %v5142
      %v5230 = vpack.c.b16 %v5145, %v5144
      %v5231 = vpack.c.b16 %v5147, %v5146
      %v5232 = vpack.c.b16 %v5149, %v5148
      %v5233 = vpack.c.b16 %v5151, %v5150
      %v5234 = vpack.c.b16 %v5153, %v5152
      %v5235 = vpack.c.b16 %v5155, %v5154
      %v5236 = vpack.c.b16 %v5157, %v5156
      %v5237 = vpack.c.b16 %v5159, %v5158
      %v5238 = vpack.c.b16 %v5161, %v5160
      %v5239 = vpack.c.b16 %v5163, %v5162
      %v5240 = vpack.c.b16 %v5165, %v5164
      %v5241 = vpack.c.b16 %v5167, %v5166
      %v5242 = vpack.c.b16 %v5169, %v5168
      %v5243 = vpack.c.b16 %v5171, %v5170
      %5316 = vmatprep.subr.bf16.mxu0 0
      %5317 = vmatpush1.bf16.msra.mxu0 %v5172
      %5318 = vmatprep.subr.bf16.mxu0 0
      %5319 = vmatpush1.bf16.msra.mxu0 %v5173
      %5320 = vmatprep.subr.bf16.mxu0 0
      %5321 = vmatpush1.bf16.msra.mxu0 %v5174
      %5322 = vmatprep.subr.bf16.mxu0 0
      %5323 = vmatpush1.bf16.msra.mxu0 %v5175
      %5324 = vmatprep.subr.bf16.mxu0 0
      %5325 = vmatpush1.bf16.msra.mxu0 %v5176
      %5326 = vmatprep.subr.bf16.mxu0 0
      %5327 = vmatpush1.bf16.msra.mxu0 %v5177
      %5328 = vmatprep.subr.bf16.mxu0 0
      %5329 = vmatpush1.bf16.msra.mxu0 %v5178
      %5330 = vmatprep.subr.bf16.mxu0 0
      %5331 = vmatpush1.bf16.msra.mxu0 %v5179
      %5332 = vmatprep.subr.bf16.mxu0 0
      %5333 = vmatpush1.bf16.msra.mxu0 %v5180
      %5334 = vmatprep.subr.bf16.mxu0 0
      %5335 = vmatpush1.bf16.msra.mxu0 %v5181
      %5336 = vmatprep.subr.bf16.mxu0 0
      %5337 = vmatpush1.bf16.msra.mxu0 %v5182
      %5338 = vmatprep.subr.bf16.mxu0 0
      %5339 = vmatpush1.bf16.msra.mxu0 %v5183
      %5340 = vmatprep.subr.bf16.mxu0 0
      %5341 = vmatpush1.bf16.msra.mxu0 %v5184
      %5342 = vmatprep.subr.bf16.mxu0 0
      %5343 = vmatpush1.bf16.msra.mxu0 %v5185
      %5344 = vmatprep.subr.bf16.mxu0 0
      %5345 = vmatpush1.bf16.msra.mxu0 %v5186
      %5346 = vmatprep.subr.bf16.mxu0 0
      %5347 = vmatpush1.bf16.msra.mxu0 %v5187
      %5348 = vmatprep.mubr.bf16.mxu0 %v4669
      %5349 = vmatmul.mubr.bf16.gmra.mrb[0].mxu0 %v4668
      %v5350 = vpop.f32.mrb[0].mxu0
      %v5351 = vadd.f32 0.0, %v5350
      %v5352 = vpop.f32.mrb[0].mxu0
      %v5353 = vpop.f32.mrb[0].mxu0
      %v5354 = vadd.f32 0.0, %v5353
      %v5355 = vpop.f32.mrb[0].mxu0
      %5356 = vmatprep.mubr.bf16.mxu0 %v4678
      %5357 = vmatmul.mubr.bf16.gmra.mrb[0].mxu0 %v4677
      %v5358 = vpop.f32.mrb[0].mxu0
      %v5359 = vadd.f32 0.0, %v5358
      %v5360 = vpop.f32.mrb[0].mxu0
      %v5361 = vpop.f32.mrb[0].mxu0
      %v5362 = vadd.f32 0.0, %v5361
      %v5363 = vpop.f32.mrb[0].mxu0
      %5364 = vmatprep.mubr.bf16.mxu0 %v4687
      %5365 = vmatmul.mubr.bf16.gmra.mrb[0].mxu0 %v4686
      %v5366 = vpop.f32.mrb[0].mxu0
      %v5367 = vadd.f32 0.0, %v5366
      %v5368 = vpop.f32.mrb[0].mxu0
      %v5369 = vpop.f32.mrb[0].mxu0
      %v5370 = vadd.f32 0.0, %v5369
      %v5371 = vpop.f32.mrb[0].mxu0
      %5372 = vmatprep.mubr.bf16.mxu0 %v4696
      %5373 = vmatmul.mubr.bf16.gmra.mrb[0].mxu0 %v4695
      %v5374 = vpop.f32.mrb[0].mxu0
      %v5375 = vadd.f32 0.0, %v5374
      %v5376 = vpop.f32.mrb[0].mxu0
      %v5377 = vpop.f32.mrb[0].mxu0
      %v5378 = vadd.f32 0.0, %v5377
      %v5379 = vpop.f32.mrb[0].mxu0
      %5380 = vmatprep.mubr.bf16.mxu0 %v4705
      %5381 = vmatmul.mubr.bf16.gmra.mrb[0].mxu0 %v4704
      %v5382 = vpop.f32.mrb[0].mxu0
      %v5383 = vadd.f32 0.0, %v5382
      %v5384 = vpop.f32.mrb[0].mxu0
      %v5385 = vpop.f32.mrb[0].mxu0
      %v5386 = vadd.f32 0.0, %v5385
      %v5387 = vpop.f32.mrb[0].mxu0
      %5388 = vmatprep.mubr.bf16.mxu0 %v4714
      %5389 = vmatmul.mubr.bf16.gmra.mrb[0].mxu0 %v4713
      %v5390 = vpop.f32.mrb[0].mxu0
      %v5391 = vadd.f32 0.0, %v5390
      %v5392 = vpop.f32.mrb[0].mxu0
      %v5393 = vpop.f32.mrb[0].mxu0
      %v5394 = vadd.f32 0.0, %v5393
      %v5395 = vpop.f32.mrb[0].mxu0
      %5396 = vmatprep.mubr.bf16.mxu0 %v4723
      %5397 = vmatmul.mubr.bf16.gmra.mrb[0].mxu0 %v4722
      %v5398 = vpop.f32.mrb[0].mxu0
      %v5399 = vadd.f32 0.0, %v5398
      %v5400 = vpop.f32.mrb[0].mxu0
      %v5401 = vpop.f32.mrb[0].mxu0
      %v5402 = vadd.f32 0.0, %v5401
      %v5403 = vpop.f32.mrb[0].mxu0
      %5404 = vmatprep.mubr.bf16.mxu0 %v4732
      %5405 = vmatmul.mubr.bf16.gmra.mrb[0].mxu0 %v4731
      %v5406 = vpop.f32.mrb[0].mxu0
      %v5407 = vadd.f32 0.0, %v5406
      %v5408 = vpop.f32.mrb[0].mxu0
      %v5409 = vpop.f32.mrb[0].mxu0
      %v5410 = vadd.f32 0.0, %v5409
      %v5411 = vpop.f32.mrb[0].mxu0
      %5412 = vdwg.mxu0
      %5413 = vmatprep.subr.bf16.mxu0 0
      %5414 = vmatpush1.bf16.msra.mxu0 %v5188
      %5415 = vmatprep.subr.bf16.mxu0 0
      %5416 = vmatpush1.bf16.msra.mxu0 %v5189
      %5417 = vmatprep.subr.bf16.mxu0 0
      %5418 = vmatpush1.bf16.msra.mxu0 %v5190
      %5419 = vmatprep.subr.bf16.mxu0 0
      %5420 = vmatpush1.bf16.msra.mxu0 %v5191
      %5421 = vmatprep.subr.bf16.mxu0 0
      %5422 = vmatpush1.bf16.msra.mxu0 %v5192
      %5423 = vmatprep.subr.bf16.mxu0 0
      %5424 = vmatpush1.bf16.msra.mxu0 %v5193
      %5425 = vmatprep.subr.bf16.mxu0 0
      %5426 = vmatpush1.bf16.msra.mxu0 %v5194
      %5427 = vmatprep.subr.bf16.mxu0 0
      %5428 = vmatpush1.bf16.msra.mxu0 %v5195
      %5429 = vmatprep.subr.bf16.mxu0 0
      %5430 = vmatpush1.bf16.msra.mxu0 %v5196
      %5431 = vmatprep.subr.bf16.mxu0 0
      %5432 = vmatpush1.bf16.msra.mxu0 %v5197
      %5433 = vmatprep.subr.bf16.mxu0 0
      %5434 = vmatpush1.bf16.msra.mxu0 %v5198
      %5435 = vmatprep.subr.bf16.mxu0 0
      %5436 = vmatpush1.bf16.msra.mxu0 %v5199
      %5437 = vmatprep.subr.bf16.mxu0 0
      %5438 = vmatpush1.bf16.msra.mxu0 %v5200
      %5439 = vmatprep.subr.bf16.mxu0 0
      %5440 = vmatpush1.bf16.msra.mxu0 %v5201
      %5441 = vmatprep.subr.bf16.mxu0 0
      %5442 = vmatpush1.bf16.msra.mxu0 %v5202
      %5443 = vmatprep.subr.bf16.mxu0 0
      %5444 = vmatpush1.bf16.msra.mxu0 %v5203
      %5445 = vmatprep.mubr.bf16.mxu0 %v4671
      %5446 = vmatmul.mubr.bf16.gmra.mrb[0].mxu0 %v4670
      %v5447 = vpop.f32.mrb[0].mxu0
      %v5448 = vadd.f32 %v5351, %v5447
      %v5449 = vpop.f32.mrb[0].mxu0
      %v5450 = vpop.f32.mrb[0].mxu0
      %v5451 = vadd.f32 %v5354, %v5450
      %v5452 = vpop.f32.mrb[0].mxu0
      %5453 = vmatprep.mubr.bf16.mxu0 %v4680
      %5454 = vmatmul.mubr.bf16.gmra.mrb[0].mxu0 %v4679
      %v5455 = vpop.f32.mrb[0].mxu0
      %v5456 = vadd.f32 %v5359, %v5455
      %v5457 = vpop.f32.mrb[0].mxu0
      %v5458 = vpop.f32.mrb[0].mxu0
      %v5459 = vadd.f32 %v5362, %v5458
      %v5460 = vpop.f32.mrb[0].mxu0
      %5461 = vmatprep.mubr.bf16.mxu0 %v4689
      %5462 = vmatmul.mubr.bf16.gmra.mrb[0].mxu0 %v4688
      %v5463 = vpop.f32.mrb[0].mxu0
      %v5464 = vadd.f32 %v5367, %v5463
      %v5465 = vpop.f32.mrb[0].mxu0
      %v5466 = vpop.f32.mrb[0].mxu0
      %v5467 = vadd.f32 %v5370, %v5466
      %v5468 = vpop.f32.mrb[0].mxu0
      %5469 = vmatprep.mubr.bf16.mxu0 %v4698
      %5470 = vmatmul.mubr.bf16.gmra.mrb[0].mxu0 %v4697
      %v5471 = vpop.f32.mrb[0].mxu0
      %v5472 = vadd.f32 %v5375, %v5471
      %v5473 = vpop.f32.mrb[0].mxu0
      %v5474 = vpop.f32.mrb[0].mxu0
      %v5475 = vadd.f32 %v5378, %v5474
      %v5476 = vpop.f32.mrb[0].mxu0
      %5477 = vmatprep.mubr.bf16.mxu0 %v4707
      %5478 = vmatmul.mubr.bf16.gmra.mrb[0].mxu0 %v4706
      %v5479 = vpop.f32.mrb[0].mxu0
      %v5480 = vadd.f32 %v5383, %v5479
      %v5481 = vpop.f32.mrb[0].mxu0
      %v5482 = vpop.f32.mrb[0].mxu0
      %v5483 = vadd.f32 %v5386, %v5482
      %v5484 = vpop.f32.mrb[0].mxu0
      %5485 = vmatprep.mubr.bf16.mxu0 %v4716
      %5486 = vmatmul.mubr.bf16.gmra.mrb[0].mxu0 %v4715
      %v5487 = vpop.f32.mrb[0].mxu0
      %v5488 = vadd.f32 %v5391, %v5487
      %v5489 = vpop.f32.mrb[0].mxu0
      %v5490 = vpop.f32.mrb[0].mxu0
      %v5491 = vadd.f32 %v5394, %v5490
      %v5492 = vpop.f32.mrb[0].mxu0
      %5493 = vmatprep.mubr.bf16.mxu0 %v4725
      %5494 = vmatmul.mubr.bf16.gmra.mrb[0].mxu0 %v4724
      %v5495 = vpop.f32.mrb[0].mxu0
      %v5496 = vadd.f32 %v5399, %v5495
      %v5497 = vpop.f32.mrb[0].mxu0
      %v5498 = vpop.f32.mrb[0].mxu0
      %v5499 = vadd.f32 %v5402, %v5498
      %v5500 = vpop.f32.mrb[0].mxu0
      %5501 = vmatprep.mubr.bf16.mxu0 %v4734
      %5502 = vmatmul.mubr.bf16.gmra.mrb[0].mxu0 %v4733
      %v5503 = vpop.f32.mrb[0].mxu0
      %v5504 = vadd.f32 %v5407, %v5503
      %v5505 = vpop.f32.mrb[0].mxu0
      %v5506 = vpop.f32.mrb[0].mxu0
      %v5507 = vadd.f32 %v5410, %v5506
      %v5508 = vpop.f32.mrb[0].mxu0
      %5509 = vdwg.mxu0
      %5510 = vmatprep.subr.bf16.mxu0 0
      %5511 = vmatpush1.bf16.msra.mxu0 %v5204
      %5512 = vmatprep.subr.bf16.mxu0 0
      %5513 = vmatpush1.bf16.msra.mxu0 %v5205
      %5514 = vmatprep.subr.bf16.mxu0 0
      %5515 = vmatpush1.bf16.msra.mxu0 %v5206
      %5516 = vmatprep.subr.bf16.mxu0 0
      %5517 = vmatpush1.bf16.msra.mxu0 %v5207
      %5518 = vmatprep.subr.bf16.mxu0 0
      %5519 = vmatpush1.bf16.msra.mxu0 %v5208
      %5520 = vmatprep.subr.bf16.mxu0 0
      %5521 = vmatpush1.bf16.msra.mxu0 %v5209
      %5522 = vmatprep.subr.bf16.mxu0 0
      %5523 = vmatpush1.bf16.msra.mxu0 %v5210
      %5524 = vmatprep.subr.bf16.mxu0 0
      %5525 = vmatpush1.bf16.msra.mxu0 %v5211
      %5526 = vmatprep.subr.bf16.mxu0 0
      %5527 = vmatpush1.bf16.msra.mxu0 %v5212
      %5528 = vmatprep.subr.bf16.mxu0 0
      %5529 = vmatpush1.bf16.msra.mxu0 %v5213
      %5530 = vmatprep.subr.bf16.mxu0 0
      %5531 = vmatpush1.bf16.msra.mxu0 %v5214
      %5532 = vmatprep.subr.bf16.mxu0 0
      %5533 = vmatpush1.bf16.msra.mxu0 %v5215
      %5534 = vmatprep.subr.bf16.mxu0 0
      %5535 = vmatpush1.bf16.msra.mxu0 %v5216
      %5536 = vmatprep.subr.bf16.mxu0 0
      %5537 = vmatpush1.bf16.msra.mxu0 %v5217
      %5538 = vmatprep.subr.bf16.mxu0 0
      %5539 = vmatpush1.bf16.msra.mxu0 %v5218
      %5540 = vmatprep.subr.bf16.mxu0 0
      %5541 = vmatpush1.bf16.msra.mxu0 %v5219
      %5542 = vmatprep.mubr.bf16.mxu0 %v4673
      %5543 = vmatmul.mubr.bf16.gmra.mrb[0].mxu0 %v4672
      %v5544 = vpop.f32.mrb[0].mxu0
      %v5545 = vadd.f32 %v5448, %v5544
      %v5546 = vpop.f32.mrb[0].mxu0
      %v5547 = vpop.f32.mrb[0].mxu0
      %v5548 = vadd.f32 %v5451, %v5547
      %v5549 = vpop.f32.mrb[0].mxu0
      %5550 = vmatprep.mubr.bf16.mxu0 %v4682
      %5551 = vmatmul.mubr.bf16.gmra.mrb[0].mxu0 %v4681
      %v5552 = vpop.f32.mrb[0].mxu0
      %v5553 = vadd.f32 %v5456, %v5552
      %v5554 = vpop.f32.mrb[0].mxu0
      %v5555 = vpop.f32.mrb[0].mxu0
      %v5556 = vadd.f32 %v5459, %v5555
      %v5557 = vpop.f32.mrb[0].mxu0
      %5558 = vmatprep.mubr.bf16.mxu0 %v4691
      %5559 = vmatmul.mubr.bf16.gmra.mrb[0].mxu0 %v4690
      %v5560 = vpop.f32.mrb[0].mxu0
      %v5561 = vadd.f32 %v5464, %v5560
      %v5562 = vpop.f32.mrb[0].mxu0
      %v5563 = vpop.f32.mrb[0].mxu0
      %v5564 = vadd.f32 %v5467, %v5563
      %v5565 = vpop.f32.mrb[0].mxu0
      %5566 = vmatprep.mubr.bf16.mxu0 %v4700
      %5567 = vmatmul.mubr.bf16.gmra.mrb[0].mxu0 %v4699
      %v5568 = vpop.f32.mrb[0].mxu0
      %v5569 = vadd.f32 %v5472, %v5568
      %v5570 = vpop.f32.mrb[0].mxu0
      %v5571 = vpop.f32.mrb[0].mxu0
      %v5572 = vadd.f32 %v5475, %v5571
      %v5573 = vpop.f32.mrb[0].mxu0
      %5574 = vmatprep.mubr.bf16.mxu0 %v4709
      %5575 = vmatmul.mubr.bf16.gmra.mrb[0].mxu0 %v4708
      %v5576 = vpop.f32.mrb[0].mxu0
      %v5577 = vadd.f32 %v5480, %v5576
      %v5578 = vpop.f32.mrb[0].mxu0
      %v5579 = vpop.f32.mrb[0].mxu0
      %v5580 = vadd.f32 %v5483, %v5579
      %v5581 = vpop.f32.mrb[0].mxu0
      %5582 = vmatprep.mubr.bf16.mxu0 %v4718
      %5583 = vmatmul.mubr.bf16.gmra.mrb[0].mxu0 %v4717
      %v5584 = vpop.f32.mrb[0].mxu0
      %v5585 = vadd.f32 %v5488, %v5584
      %v5586 = vpop.f32.mrb[0].mxu0
      %v5587 = vpop.f32.mrb[0].mxu0
      %v5588 = vadd.f32 %v5491, %v5587
      %v5589 = vpop.f32.mrb[0].mxu0
      %5590 = vmatprep.mubr.bf16.mxu0 %v4727
      %5591 = vmatmul.mubr.bf16.gmra.mrb[0].mxu0 %v4726
      %v5592 = vpop.f32.mrb[0].mxu0
      %v5593 = vadd.f32 %v5496, %v5592
      %v5594 = vpop.f32.mrb[0].mxu0
      %v5595 = vpop.f32.mrb[0].mxu0
      %v5596 = vadd.f32 %v5499, %v5595
      %v5597 = vpop.f32.mrb[0].mxu0
      %5598 = vmatprep.mubr.bf16.mxu0 %v4736
      %5599 = vmatmul.mubr.bf16.gmra.mrb[0].mxu0 %v4735
      %v5600 = vpop.f32.mrb[0].mxu0
      %v5601 = vadd.f32 %v5504, %v5600
      %v5602 = vpop.f32.mrb[0].mxu0
      %v5603 = vpop.f32.mrb[0].mxu0
      %v5604 = vadd.f32 %v5507, %v5603
      %v5605 = vpop.f32.mrb[0].mxu0
      %5606 = vdwg.mxu0
      %5607 = vmatprep.subr.bf16.mxu0 0
      %5608 = vmatpush1.bf16.msra.mxu0 %v5220
      %5609 = vmatprep.subr.bf16.mxu0 0
      %5610 = vmatpush1.bf16.msra.mxu0 %v5221
      %5611 = vmatprep.subr.bf16.mxu0 0
      %5612 = vmatpush1.bf16.msra.mxu0 %v5222
      %5613 = vmatprep.subr.bf16.mxu0 0
      %5614 = vmatpush1.bf16.msra.mxu0 %v5223
      %5615 = vmatprep.subr.bf16.mxu0 0
      %5616 = vmatpush1.bf16.msra.mxu0 %v5224
      %5617 = vmatprep.subr.bf16.mxu0 0
      %5618 = vmatpush1.bf16.msra.mxu0 %v5225
      %5619 = vmatprep.subr.bf16.mxu0 0
      %5620 = vmatpush1.bf16.msra.mxu0 %v5226
      %5621 = vmatprep.subr.bf16.mxu0 0
      %5622 = vmatpush1.bf16.msra.mxu0 %v5227
      %5623 = vmatprep.subr.bf16.mxu0 0
      %5624 = vmatpush1.bf16.msra.mxu0 %v5228
      %5625 = vmatprep.subr.bf16.mxu0 0
      %5626 = vmatpush1.bf16.msra.mxu0 %v5229
      %5627 = vmatprep.subr.bf16.mxu0 0
      %5628 = vmatpush1.bf16.msra.mxu0 %v5230
      %5629 = vmatprep.subr.bf16.mxu0 0
      %5630 = vmatpush1.bf16.msra.mxu0 %v5231
      %5631 = vmatprep.subr.bf16.mxu0 0
      %5632 = vmatpush1.bf16.msra.mxu0 %v5232
      %5633 = vmatprep.subr.bf16.mxu0 0
      %5634 = vmatpush1.bf16.msra.mxu0 %v5233
      %5635 = vmatprep.subr.bf16.mxu0 0
      %5636 = vmatpush1.bf16.msra.mxu0 %v5234
      %5637 = vmatprep.subr.bf16.mxu0 0
      %5638 = vmatpush1.bf16.msra.mxu0 %v5235
      %5639 = vmatprep.mubr.bf16.mxu0 %v4675
      %5640 = vmatmul.mubr.bf16.gmra.mrb[0].mxu0 %v4674
      %v5641 = vpop.f32.mrb[0].mxu0
      %v5642 = vadd.f32 %v5545, %v5641
      %v5643 = vpop.f32.mrb[0].mxu0
      %v5644 = vpop.f32.mrb[0].mxu0
      %v5645 = vadd.f32 %v5548, %v5644
      %v5646 = vpop.f32.mrb[0].mxu0
      %5647 = vmatprep.mubr.bf16.mxu0 %v4684
      %5648 = vmatmul.mubr.bf16.gmra.mrb[0].mxu0 %v4683
      %v5649 = vpop.f32.mrb[0].mxu0
      %v5650 = vadd.f32 %v5553, %v5649
      %v5651 = vpop.f32.mrb[0].mxu0
      %v5652 = vpop.f32.mrb[0].mxu0
      %v5653 = vadd.f32 %v5556, %v5652
      %v5654 = vpop.f32.mrb[0].mxu0
      %5655 = vmatprep.mubr.bf16.mxu0 %v4693
      %5656 = vmatmul.mubr.bf16.gmra.mrb[0].mxu0 %v4692
      %v5657 = vpop.f32.mrb[0].mxu0
      %v5658 = vadd.f32 %v5561, %v5657
      %v5659 = vpop.f32.mrb[0].mxu0
      %v5660 = vpop.f32.mrb[0].mxu0
      %v5661 = vadd.f32 %v5564, %v5660
      %v5662 = vpop.f32.mrb[0].mxu0
      %5663 = vmatprep.mubr.bf16.mxu0 %v4702
      %5664 = vmatmul.mubr.bf16.gmra.mrb[0].mxu0 %v4701
      %v5665 = vpop.f32.mrb[0].mxu0
      %v5666 = vadd.f32 %v5569, %v5665
      %v5667 = vpop.f32.mrb[0].mxu0
      %v5668 = vpop.f32.mrb[0].mxu0
      %v5669 = vadd.f32 %v5572, %v5668
      %v5670 = vpop.f32.mrb[0].mxu0
      %5671 = vmatprep.mubr.bf16.mxu0 %v4711
      %5672 = vmatmul.mubr.bf16.gmra.mrb[0].mxu0 %v4710
      %v5673 = vpop.f32.mrb[0].mxu0
      %v5674 = vadd.f32 %v5577, %v5673
      %v5675 = vpop.f32.mrb[0].mxu0
      %v5676 = vpop.f32.mrb[0].mxu0
      %v5677 = vadd.f32 %v5580, %v5676
      %v5678 = vpop.f32.mrb[0].mxu0
      %5679 = vmatprep.mubr.bf16.mxu0 %v4720
      %5680 = vmatmul.mubr.bf16.gmra.mrb[0].mxu0 %v4719
      %v5681 = vpop.f32.mrb[0].mxu0
      %v5682 = vadd.f32 %v5585, %v5681
      %v5683 = vpop.f32.mrb[0].mxu0
      %v5684 = vpop.f32.mrb[0].mxu0
      %v5685 = vadd.f32 %v5588, %v5684
      %v5686 = vpop.f32.mrb[0].mxu0
      %5687 = vmatprep.mubr.bf16.mxu0 %v4729
      %5688 = vmatmul.mubr.bf16.gmra.mrb[0].mxu0 %v4728
      %v5689 = vpop.f32.mrb[0].mxu0
      %v5690 = vadd.f32 %v5593, %v5689
      %v5691 = vpop.f32.mrb[0].mxu0
      %v5692 = vpop.f32.mrb[0].mxu0
      %v5693 = vadd.f32 %v5596, %v5692
      %v5694 = vpop.f32.mrb[0].mxu0
      %5695 = vmatprep.mubr.bf16.mxu0 %v4738
      %5696 = vmatmul.mubr.bf16.gmra.mrb[0].mxu0 %v4737
      %v5697 = vpop.f32.mrb[0].mxu0
      %v5698 = vadd.f32 %v5601, %v5697
      %v5699 = vpop.f32.mrb[0].mxu0
      %v5700 = vpop.f32.mrb[0].mxu0
      %v5701 = vadd.f32 %v5604, %v5700
      %v5702 = vpop.f32.mrb[0].mxu0
      %5703 = vdwg.mxu0
      %5704 = vmatprep.subr.bf16.mxu0 0
      %5705 = vmatpush1.bf16.msra.mxu0 %v5236
      %5706 = vmatprep.subr.bf16.mxu0 0
      %5707 = vmatpush1.bf16.msra.mxu0 %v5237
      %5708 = vmatprep.subr.bf16.mxu0 0
      %5709 = vmatpush1.bf16.msra.mxu0 %v5238
      %5710 = vmatprep.subr.bf16.mxu0 0
      %5711 = vmatpush1.bf16.msra.mxu0 %v5239
      %5712 = vmatprep.subr.bf16.mxu0 0
      %5713 = vmatpush1.bf16.msra.mxu0 %v5240
      %5714 = vmatprep.subr.bf16.mxu0 0
      %5715 = vmatpush1.bf16.msra.mxu0 %v5241
      %5716 = vmatprep.subr.bf16.mxu0 0
      %5717 = vmatpush1.bf16.msra.mxu0 %v5242
      %5718 = vmatprep.subr.bf16.mxu0 0
      %5719 = vmatpush1.bf16.msra.mxu0 %v5243
      %5720 = vmatprep.subr.bf16.mxu0 0
      %5721 = vmatpush1.bf16.msra.mxu0 0
      %5722 = vmatprep.subr.bf16.mxu0 0
      %5723 = vmatpush1.bf16.msra.mxu0 0
      %5724 = vmatprep.subr.bf16.mxu0 0
      %5725 = vmatpush1.bf16.msra.mxu0 0
      %5726 = vmatprep.subr.bf16.mxu0 0
      %5727 = vmatpush1.bf16.msra.mxu0 0
      %5728 = vmatprep.subr.bf16.mxu0 0
      %5729 = vmatpush1.bf16.msra.mxu0 0
      %5730 = vmatprep.subr.bf16.mxu0 0
      %5731 = vmatpush1.bf16.msra.mxu0 0
      %5732 = vmatprep.subr.bf16.mxu0 0
      %5733 = vmatpush1.bf16.msra.mxu0 0
      %5734 = vmatprep.subr.bf16.mxu0 0
      %5735 = vmatpush1.bf16.msra.mxu0 0
      %5736 = vmatprep.mubr.bf16.mxu0 0
      %5737 = vmatmul.mubr.bf16.gmra.mrb[0].mxu0 %v4676
      %v5738 = vpop.f32.mrb[0].mxu0
      %v5739 = vadd.f32 %v5642, %v5738
      %v5740 = vpop.f32.mrb[0].mxu0
      %v5741 = vpop.f32.mrb[0].mxu0
      %v5742 = vadd.f32 %v5645, %v5741
      %v5743 = vpop.f32.mrb[0].mxu0
      %5744 = vmatprep.mubr.bf16.mxu0 0
      %5745 = vmatmul.mubr.bf16.gmra.mrb[0].mxu0 %v4685
      %v5746 = vpop.f32.mrb[0].mxu0
      %v5747 = vadd.f32 %v5650, %v5746
      %v5748 = vpop.f32.mrb[0].mxu0
      %v5749 = vpop.f32.mrb[0].mxu0
      %v5750 = vadd.f32 %v5653, %v5749
      %v5751 = vpop.f32.mrb[0].mxu0
      %5752 = vmatprep.mubr.bf16.mxu0 0
      %5753 = vmatmul.mubr.bf16.gmra.mrb[0].mxu0 %v4694
      %v5754 = vpop.f32.mrb[0].mxu0
      %v5755 = vadd.f32 %v5658, %v5754
      %v5756 = vpop.f32.mrb[0].mxu0
      %v5757 = vpop.f32.mrb[0].mxu0
      %v5758 = vadd.f32 %v5661, %v5757
      %v5759 = vpop.f32.mrb[0].mxu0
      %5760 = vmatprep.mubr.bf16.mxu0 0
      %5761 = vmatmul.mubr.bf16.gmra.mrb[0].mxu0 %v4703
      %v5762 = vpop.f32.mrb[0].mxu0
      %v5763 = vadd.f32 %v5666, %v5762
      %v5764 = vpop.f32.mrb[0].mxu0
      %v5765 = vpop.f32.mrb[0].mxu0
      %v5766 = vadd.f32 %v5669, %v5765
      %v5767 = vpop.f32.mrb[0].mxu0
      %5768 = vmatprep.mubr.bf16.mxu0 0
      %5769 = vmatmul.mubr.bf16.gmra.mrb[0].mxu0 %v4712
      %v5770 = vpop.f32.mrb[0].mxu0
      %v5771 = vadd.f32 %v5674, %v5770
      %v5772 = vpop.f32.mrb[0].mxu0
      %v5773 = vpop.f32.mrb[0].mxu0
      %v5774 = vadd.f32 %v5677, %v5773
      %v5775 = vpop.f32.mrb[0].mxu0
      %5776 = vmatprep.mubr.bf16.mxu0 0
      %5777 = vmatmul.mubr.bf16.gmra.mrb[0].mxu0 %v4721
      %v5778 = vpop.f32.mrb[0].mxu0
      %v5779 = vadd.f32 %v5682, %v5778
      %v5780 = vpop.f32.mrb[0].mxu0
      %v5781 = vpop.f32.mrb[0].mxu0
      %v5782 = vadd.f32 %v5685, %v5781
      %v5783 = vpop.f32.mrb[0].mxu0
      %5784 = vmatprep.mubr.bf16.mxu0 0
      %5785 = vmatmul.mubr.bf16.gmra.mrb[0].mxu0 %v4730
      %v5786 = vpop.f32.mrb[0].mxu0
      %v5787 = vadd.f32 %v5690, %v5786
      %v5788 = vpop.f32.mrb[0].mxu0
      %v5789 = vpop.f32.mrb[0].mxu0
      %v5790 = vadd.f32 %v5693, %v5789
      %v5791 = vpop.f32.mrb[0].mxu0
      %5792 = vmatprep.mubr.bf16.mxu0 0
      %5793 = vmatmul.mubr.bf16.gmra.mrb[0].mxu0 %v4739
      %v5794 = vpop.f32.mrb[0].mxu0
      %v5795 = vadd.f32 %v5698, %v5794
      %v5796 = vpop.f32.mrb[0].mxu0
      %v5797 = vpop.f32.mrb[0].mxu0
      %v5798 = vadd.f32 %v5701, %v5797
      %v5799 = vpop.f32.mrb[0].mxu0
      %5800 = vdwg.mxu0
      %s5801 = scalar_lea.vmem %s6, 6
      %v5802 = vld [vmem:[%s5801] sm:$0x3]
      %v5803 = vlaneseq
      %v5804 = vshrl.u32 %v5803, 7
      %v5805 = vsub.s32 0, %v5804
      %v5806 = vrot.slane %v5802, %v5805
      %v5807 = vmul.f32 %v5739, %v5806
      %v5808 = vmul.f32 %v5742, %v5806
      %v5809 = vmul.f32 %v5747, %v5806
      %v5810 = vmul.f32 %v5750, %v5806
      %v5811 = vmul.f32 %v5755, %v5806
      %v5812 = vmul.f32 %v5758, %v5806
      %v5813 = vmul.f32 %v5763, %v5806
      %v5814 = vmul.f32 %v5766, %v5806
      %v5815 = vmul.f32 %v5771, %v5806
      %v5816 = vmul.f32 %v5774, %v5806
      %v5817 = vmul.f32 %v5779, %v5806
      %v5818 = vmul.f32 %v5782, %v5806
      %v5819 = vmul.f32 %v5787, %v5806
      %v5820 = vmul.f32 %v5790, %v5806
      %v5821 = vmul.f32 %v5795, %v5806
      %v5822 = vmul.f32 %v5798, %v5806
      %v5823 = vlaneseq
      %v5824 = vshrl.u32 %v5823, 7
      %v5825 = vsub.s32 1, %v5824
      %v5826 = vrot.slane %v5802, %v5825
      %v5827 = vadd.f32 %v5807, %v5826
      %v5828 = vadd.f32 %v5808, %v5826
      %v5829 = vadd.f32 %v5809, %v5826
      %v5830 = vadd.f32 %v5810, %v5826
      %v5831 = vadd.f32 %v5811, %v5826
      %v5832 = vadd.f32 %v5812, %v5826
      %v5833 = vadd.f32 %v5813, %v5826
      %v5834 = vadd.f32 %v5814, %v5826
      %v5835 = vadd.f32 %v5815, %v5826
      %v5836 = vadd.f32 %v5816, %v5826
      %v5837 = vadd.f32 %v5817, %v5826
      %v5838 = vadd.f32 %v5818, %v5826
      %v5839 = vadd.f32 %v5819, %v5826
      %v5840 = vadd.f32 %v5820, %v5826
      %v5841 = vadd.f32 %v5821, %v5826
      %v5842 = vadd.f32 %v5822, %v5826
      %vm5843 = vcmp.gt.f32.partialorder %v5827, 0.0
      %vm5844 = vcmp.gt.f32.partialorder %v5828, 0.0
      %vm5845 = vcmp.gt.f32.partialorder %v5829, 0.0
      %vm5846 = vcmp.gt.f32.partialorder %v5830, 0.0
      %vm5847 = vcmp.gt.f32.partialorder %v5831, 0.0
      %vm5848 = vcmp.gt.f32.partialorder %v5832, 0.0
      %vm5849 = vcmp.gt.f32.partialorder %v5833, 0.0
      %vm5850 = vcmp.gt.f32.partialorder %v5834, 0.0
      %vm5851 = vcmp.gt.f32.partialorder %v5835, 0.0
      %vm5852 = vcmp.gt.f32.partialorder %v5836, 0.0
      %vm5853 = vcmp.gt.f32.partialorder %v5837, 0.0
      %vm5854 = vcmp.gt.f32.partialorder %v5838, 0.0
      %vm5855 = vcmp.gt.f32.partialorder %v5839, 0.0
      %vm5856 = vcmp.gt.f32.partialorder %v5840, 0.0
      %vm5857 = vcmp.gt.f32.partialorder %v5841, 0.0
      %vm5858 = vcmp.gt.f32.partialorder %v5842, 0.0
      %v5859 = vmul.f32 %v5827, 0.01
      %v5860 = vmul.f32 %v5828, 0.01
      %v5861 = vmul.f32 %v5829, 0.01
      %v5862 = vmul.f32 %v5830, 0.01
      %v5863 = vmul.f32 %v5831, 0.01
      %v5864 = vmul.f32 %v5832, 0.01
      %v5865 = vmul.f32 %v5833, 0.01
      %v5866 = vmul.f32 %v5834, 0.01
      %v5867 = vmul.f32 %v5835, 0.01
      %v5868 = vmul.f32 %v5836, 0.01
      %v5869 = vmul.f32 %v5837, 0.01
      %v5870 = vmul.f32 %v5838, 0.01
      %v5871 = vmul.f32 %v5839, 0.01
      %v5872 = vmul.f32 %v5840, 0.01
      %v5873 = vmul.f32 %v5841, 0.01
      %v5874 = vmul.f32 %v5842, 0.01
      %v5875 = vsel %vm5843, %v5827, %v5859
      %v5876 = vsel %vm5844, %v5828, %v5860
      %v5877 = vsel %vm5845, %v5829, %v5861
      %v5878 = vsel %vm5846, %v5830, %v5862
      %v5879 = vsel %vm5847, %v5831, %v5863
      %v5880 = vsel %vm5848, %v5832, %v5864
      %v5881 = vsel %vm5849, %v5833, %v5865
      %v5882 = vsel %vm5850, %v5834, %v5866
      %v5883 = vsel %vm5851, %v5835, %v5867
      %v5884 = vsel %vm5852, %v5836, %v5868
      %v5885 = vsel %vm5853, %v5837, %v5869
      %v5886 = vsel %vm5854, %v5838, %v5870
      %v5887 = vsel %vm5855, %v5839, %v5871
      %v5888 = vsel %vm5856, %v5840, %v5872
      %v5889 = vsel %vm5857, %v5841, %v5873
      %v5890 = vsel %vm5858, %v5842, %v5874
      %5891 = vst [vmem:[%s356 + $0x1] sm:$0xff] %v5875
      %5892 = vst [vmem:[%s356 + $0x9] sm:$0xff] %v5876
      %5893 = vst [vmem:[%s356 + $0x19] sm:$0xff] %v5877
      %5894 = vst [vmem:[%s356 + $0x21] sm:$0xff] %v5878
      %5895 = vst [vmem:[%s356 + $0x31] sm:$0xff] %v5879
      %5896 = vst [vmem:[%s356 + $0x39] sm:$0xff] %v5880
      %5897 = vst [vmem:[%s356 + $0x49] sm:$0xff] %v5881
      %5898 = vst [vmem:[%s356 + $0x51] sm:$0xff] %v5882
      %5899 = vst [vmem:[%s356 + $0x61] sm:$0xff] %v5883
      %5900 = vst [vmem:[%s356 + $0x69] sm:$0xff] %v5884
      %5901 = vst [vmem:[%s356 + $0x79] sm:$0xff] %v5885
      %5902 = vst [vmem:[%s356 + $0x81] sm:$0xff] %v5886
      %5903 = vst [vmem:[%s356 + $0x91] sm:$0xff] %v5887
      %5904 = vst [vmem:[%s356 + $0x99] sm:$0xff] %v5888
      %5905 = vst [vmem:[%s356 + $0xa9] sm:$0xff] %v5889
      %5906 = vst [vmem:[%s356 + $0xb1] sm:$0xff] %v5890
      %v5907 = vld [vmem:[#allocation2] sm:$0xff]
      %v5908 = vld [vmem:[#allocation2 + $0x8] sm:$0xff]
      %v5909 = vld [vmem:[#allocation2 + $0x18] sm:$0xff]
      %v5910 = vld [vmem:[#allocation2 + $0x20] sm:$0xff]
      %v5911 = vld [vmem:[#allocation2 + $0x30] sm:$0xff]
      %v5912 = vld [vmem:[#allocation2 + $0x38] sm:$0xff]
      %v5913 = vld [vmem:[#allocation2 + $0x48] sm:$0xff]
      %v5914 = vld [vmem:[#allocation2 + $0x50] sm:$0xff]
      %v5915 = vld [vmem:[#allocation2 + $0x60] sm:$0xff]
      %v5916 = vld [vmem:[#allocation2 + $0x68] sm:$0xff]
      %v5917 = vld [vmem:[#allocation2 + $0x78] sm:$0xff]
      %v5918 = vld [vmem:[#allocation2 + $0x80] sm:$0xff]
      %v5919 = vld [vmem:[#allocation2 + $0x90] sm:$0xff]
      %v5920 = vld [vmem:[#allocation2 + $0x98] sm:$0xff]
      %v5921 = vld [vmem:[#allocation2 + $0xa8] sm:$0xff]
      %v5922 = vld [vmem:[#allocation2 + $0xb0] sm:$0xff]
      %v5923 = vld [vmem:[#allocation2 + $0x1] sm:$0xff]
      %v5924 = vld [vmem:[#allocation2 + $0x9] sm:$0xff]
      %v5925 = vld [vmem:[#allocation2 + $0x19] sm:$0xff]
      %v5926 = vld [vmem:[#allocation2 + $0x21] sm:$0xff]
      %v5927 = vld [vmem:[#allocation2 + $0x31] sm:$0xff]
      %v5928 = vld [vmem:[#allocation2 + $0x39] sm:$0xff]
      %v5929 = vld [vmem:[#allocation2 + $0x49] sm:$0xff]
      %v5930 = vld [vmem:[#allocation2 + $0x51] sm:$0xff]
      %v5931 = vld [vmem:[#allocation2 + $0x61] sm:$0xff]
      %v5932 = vld [vmem:[#allocation2 + $0x69] sm:$0xff]
      %v5933 = vld [vmem:[#allocation2 + $0x79] sm:$0xff]
      %v5934 = vld [vmem:[#allocation2 + $0x81] sm:$0xff]
      %v5935 = vld [vmem:[#allocation2 + $0x91] sm:$0xff]
      %v5936 = vld [vmem:[#allocation2 + $0x99] sm:$0xff]
      %v5937 = vld [vmem:[#allocation2 + $0xa9] sm:$0xff]
      %v5938 = vld [vmem:[#allocation2 + $0xb1] sm:$0xff]
      %v5939 = vld [vmem:[#allocation2 + $0x2] sm:$0xff]
      %v5940 = vld [vmem:[#allocation2 + $0xa] sm:$0xff]
      %v5941 = vld [vmem:[#allocation2 + $0x1a] sm:$0xff]
      %v5942 = vld [vmem:[#allocation2 + $0x22] sm:$0xff]
      %v5943 = vld [vmem:[#allocation2 + $0x32] sm:$0xff]
      %v5944 = vld [vmem:[#allocation2 + $0x3a] sm:$0xff]
      %v5945 = vld [vmem:[#allocation2 + $0x4a] sm:$0xff]
      %v5946 = vld [vmem:[#allocation2 + $0x52] sm:$0xff]
      %v5947 = vld [vmem:[#allocation2 + $0x62] sm:$0xff]
      %v5948 = vld [vmem:[#allocation2 + $0x6a] sm:$0xff]
      %v5949 = vld [vmem:[#allocation2 + $0x7a] sm:$0xff]
      %v5950 = vld [vmem:[#allocation2 + $0x82] sm:$0xff]
      %v5951 = vld [vmem:[#allocation2 + $0x92] sm:$0xff]
      %v5952 = vld [vmem:[#allocation2 + $0x9a] sm:$0xff]
      %v5953 = vld [vmem:[#allocation2 + $0xaa] sm:$0xff]
      %v5954 = vld [vmem:[#allocation2 + $0xb2] sm:$0xff]
      %v5955 = vld [vmem:[%s356] sm:$0xff]
      %v5956 = vld [vmem:[%s356 + $0x8] sm:$0xff]
      %v5957 = vld [vmem:[%s356 + $0x18] sm:$0xff]
      %v5958 = vld [vmem:[%s356 + $0x20] sm:$0xff]
      %v5959 = vld [vmem:[%s356 + $0x30] sm:$0xff]
      %v5960 = vld [vmem:[%s356 + $0x38] sm:$0xff]
      %v5961 = vld [vmem:[%s356 + $0x48] sm:$0xff]
      %v5962 = vld [vmem:[%s356 + $0x50] sm:$0xff]
      %v5963 = vld [vmem:[%s356 + $0x60] sm:$0xff]
      %v5964 = vld [vmem:[%s356 + $0x68] sm:$0xff]
      %v5965 = vld [vmem:[%s356 + $0x78] sm:$0xff]
      %v5966 = vld [vmem:[%s356 + $0x80] sm:$0xff]
      %v5967 = vld [vmem:[%s356 + $0x90] sm:$0xff]
      %v5968 = vld [vmem:[%s356 + $0x98] sm:$0xff]
      %v5969 = vld [vmem:[%s356 + $0xa8] sm:$0xff]
      %v5970 = vld [vmem:[%s356 + $0xb0] sm:$0xff]
      %v5971 = vld [vmem:[%s356 + $0x1] sm:$0xff]
      %v5972 = vld [vmem:[%s356 + $0x9] sm:$0xff]
      %v5973 = vld [vmem:[%s356 + $0x19] sm:$0xff]
      %v5974 = vld [vmem:[%s356 + $0x21] sm:$0xff]
      %v5975 = vld [vmem:[%s356 + $0x31] sm:$0xff]
      %v5976 = vld [vmem:[%s356 + $0x39] sm:$0xff]
      %v5977 = vld [vmem:[%s356 + $0x49] sm:$0xff]
      %v5978 = vld [vmem:[%s356 + $0x51] sm:$0xff]
      %v5979 = vld [vmem:[%s356 + $0x61] sm:$0xff]
      %v5980 = vld [vmem:[%s356 + $0x69] sm:$0xff]
      %v5981 = vld [vmem:[%s356 + $0x79] sm:$0xff]
      %v5982 = vld [vmem:[%s356 + $0x81] sm:$0xff]
      %v5983 = vld [vmem:[%s356 + $0x91] sm:$0xff]
      %v5984 = vld [vmem:[%s356 + $0x99] sm:$0xff]
      %v5985 = vld [vmem:[%s356 + $0xa9] sm:$0xff]
      %v5986 = vld [vmem:[%s356 + $0xb1] sm:$0xff]
      %v5987 = vld [vmem:[%s356 + $0x2] sm:$0xff]
      %v5988 = vld [vmem:[%s356 + $0xa] sm:$0xff]
      %v5989 = vld [vmem:[%s356 + $0x1a] sm:$0xff]
      %v5990 = vld [vmem:[%s356 + $0x22] sm:$0xff]
      %v5991 = vld [vmem:[%s356 + $0x32] sm:$0xff]
      %v5992 = vld [vmem:[%s356 + $0x3a] sm:$0xff]
      %v5993 = vld [vmem:[%s356 + $0x4a] sm:$0xff]
      %v5994 = vld [vmem:[%s356 + $0x52] sm:$0xff]
      %v5995 = vld [vmem:[%s356 + $0x62] sm:$0xff]
      %v5996 = vld [vmem:[%s356 + $0x6a] sm:$0xff]
      %v5997 = vld [vmem:[%s356 + $0x7a] sm:$0xff]
      %v5998 = vld [vmem:[%s356 + $0x82] sm:$0xff]
      %v5999 = vld [vmem:[%s356 + $0x92] sm:$0xff]
      %v6000 = vld [vmem:[%s356 + $0x9a] sm:$0xff]
      %v6001 = vld [vmem:[%s356 + $0xaa] sm:$0xff]
      %v6002 = vld [vmem:[%s356 + $0xb2] sm:$0xff]
      %v6003 = vld [vmem:[%s469] sm:$0xff]
      %v6004 = vld [vmem:[%s469 + $0x8] sm:$0xff]
      %v6005 = vld [vmem:[%s469 + $0x18] sm:$0xff]
      %v6006 = vld [vmem:[%s469 + $0x20] sm:$0xff]
      %v6007 = vld [vmem:[%s469 + $0x30] sm:$0xff]
      %v6008 = vld [vmem:[%s469 + $0x38] sm:$0xff]
      %v6009 = vld [vmem:[%s469 + $0x48] sm:$0xff]
      %v6010 = vld [vmem:[%s469 + $0x50] sm:$0xff]
      %v6011 = vld [vmem:[%s469 + $0x60] sm:$0xff]
      %v6012 = vld [vmem:[%s469 + $0x68] sm:$0xff]
      %v6013 = vld [vmem:[%s469 + $0x78] sm:$0xff]
      %v6014 = vld [vmem:[%s469 + $0x80] sm:$0xff]
      %v6015 = vld [vmem:[%s469 + $0x90] sm:$0xff]
      %v6016 = vld [vmem:[%s469 + $0x98] sm:$0xff]
      %v6017 = vld [vmem:[%s469 + $0xa8] sm:$0xff]
      %v6018 = vld [vmem:[%s469 + $0xb0] sm:$0xff]
      %v6019 = vld [vmem:[%s469 + $0x1] sm:$0xff]
      %v6020 = vld [vmem:[%s469 + $0x9] sm:$0xff]
      %v6021 = vld [vmem:[%s469 + $0x19] sm:$0xff]
      %v6022 = vld [vmem:[%s469 + $0x21] sm:$0xff]
      %v6023 = vld [vmem:[%s469 + $0x31] sm:$0xff]
      %v6024 = vld [vmem:[%s469 + $0x39] sm:$0xff]
      %v6025 = vld [vmem:[%s469 + $0x49] sm:$0xff]
      %v6026 = vld [vmem:[%s469 + $0x51] sm:$0xff]
      %v6027 = vld [vmem:[%s469 + $0x61] sm:$0xff]
      %v6028 = vld [vmem:[%s469 + $0x69] sm:$0xff]
      %v6029 = vld [vmem:[%s469 + $0x79] sm:$0xff]
      %v6030 = vld [vmem:[%s469 + $0x81] sm:$0xff]
      %v6031 = vld [vmem:[%s469 + $0x91] sm:$0xff]
      %v6032 = vld [vmem:[%s469 + $0x99] sm:$0xff]
      %v6033 = vld [vmem:[%s469 + $0xa9] sm:$0xff]
      %v6034 = vld [vmem:[%s469 + $0xb1] sm:$0xff]
      %v6035 = vld [vmem:[%s469 + $0x2] sm:$0xff]
      %v6036 = vld [vmem:[%s469 + $0xa] sm:$0xff]
      %v6037 = vld [vmem:[%s469 + $0x1a] sm:$0xff]
      %v6038 = vld [vmem:[%s469 + $0x22] sm:$0xff]
      %v6039 = vld [vmem:[%s469 + $0x32] sm:$0xff]
      %v6040 = vld [vmem:[%s469 + $0x3a] sm:$0xff]
      %v6041 = vld [vmem:[%s469 + $0x4a] sm:$0xff]
      %v6042 = vld [vmem:[%s469 + $0x52] sm:$0xff]
      %v6043 = vld [vmem:[%s469 + $0x62] sm:$0xff]
      %v6044 = vld [vmem:[%s469 + $0x6a] sm:$0xff]
      %v6045 = vld [vmem:[%s469 + $0x7a] sm:$0xff]
      %v6046 = vld [vmem:[%s469 + $0x82] sm:$0xff]
      %v6047 = vld [vmem:[%s469 + $0x92] sm:$0xff]
      %v6048 = vld [vmem:[%s469 + $0x9a] sm:$0xff]
      %v6049 = vld [vmem:[%s469 + $0xaa] sm:$0xff]
      %v6050 = vld [vmem:[%s469 + $0xb2] sm:$0xff]
      %v6051 = vpack.c.bf16 %v5908, %v5907
      %v6052 = vpack.c.bf16 %v5924, %v5923
      %v6053 = vpack.c.bf16 %v5940, %v5939
      %v6054 = vpack.c.bf16 %v5956, %v5955
      %v6055 = vpack.c.bf16 %v5972, %v5971
      %v6056 = vpack.c.bf16 %v5988, %v5987
      %v6057 = vpack.c.bf16 %v6004, %v6003
      %v6058 = vpack.c.bf16 %v6020, %v6019
      %v6059 = vpack.c.bf16 %v6036, %v6035
      %v6060 = vpack.c.bf16 %v5910, %v5909
      %v6061 = vpack.c.bf16 %v5926, %v5925
      %v6062 = vpack.c.bf16 %v5942, %v5941
      %v6063 = vpack.c.bf16 %v5958, %v5957
      %v6064 = vpack.c.bf16 %v5974, %v5973
      %v6065 = vpack.c.bf16 %v5990, %v5989
      %v6066 = vpack.c.bf16 %v6006, %v6005
      %v6067 = vpack.c.bf16 %v6022, %v6021
      %v6068 = vpack.c.bf16 %v6038, %v6037
      %v6069 = vpack.c.bf16 %v5912, %v5911
      %v6070 = vpack.c.bf16 %v5928, %v5927
      %v6071 = vpack.c.bf16 %v5944, %v5943
      %v6072 = vpack.c.bf16 %v5960, %v5959
      %v6073 = vpack.c.bf16 %v5976, %v5975
      %v6074 = vpack.c.bf16 %v5992, %v5991
      %v6075 = vpack.c.bf16 %v6008, %v6007
      %v6076 = vpack.c.bf16 %v6024, %v6023
      %v6077 = vpack.c.bf16 %v6040, %v6039
      %v6078 = vpack.c.bf16 %v5914, %v5913
      %v6079 = vpack.c.bf16 %v5930, %v5929
      %v6080 = vpack.c.bf16 %v5946, %v5945
      %v6081 = vpack.c.bf16 %v5962, %v5961
      %v6082 = vpack.c.bf16 %v5978, %v5977
      %v6083 = vpack.c.bf16 %v5994, %v5993
      %v6084 = vpack.c.bf16 %v6010, %v6009
      %v6085 = vpack.c.bf16 %v6026, %v6025
      %v6086 = vpack.c.bf16 %v6042, %v6041
      %v6087 = vpack.c.bf16 %v5916, %v5915
      %v6088 = vpack.c.bf16 %v5932, %v5931
      %v6089 = vpack.c.bf16 %v5948, %v5947
      %v6090 = vpack.c.bf16 %v5964, %v5963
      %v6091 = vpack.c.bf16 %v5980, %v5979
      %v6092 = vpack.c.bf16 %v5996, %v5995
      %v6093 = vpack.c.bf16 %v6012, %v6011
      %v6094 = vpack.c.bf16 %v6028, %v6027
      %v6095 = vpack.c.bf16 %v6044, %v6043
      %v6096 = vpack.c.bf16 %v5918, %v5917
      %v6097 = vpack.c.bf16 %v5934, %v5933
      %v6098 = vpack.c.bf16 %v5950, %v5949
      %v6099 = vpack.c.bf16 %v5966, %v5965
      %v6100 = vpack.c.bf16 %v5982, %v5981
      %v6101 = vpack.c.bf16 %v5998, %v5997
      %v6102 = vpack.c.bf16 %v6014, %v6013
      %v6103 = vpack.c.bf16 %v6030, %v6029
      %v6104 = vpack.c.bf16 %v6046, %v6045
      %v6105 = vpack.c.bf16 %v5920, %v5919
      %v6106 = vpack.c.bf16 %v5936, %v5935
      %v6107 = vpack.c.bf16 %v5952, %v5951
      %v6108 = vpack.c.bf16 %v5968, %v5967
      %v6109 = vpack.c.bf16 %v5984, %v5983
      %v6110 = vpack.c.bf16 %v6000, %v5999
      %v6111 = vpack.c.bf16 %v6016, %v6015
      %v6112 = vpack.c.bf16 %v6032, %v6031
      %v6113 = vpack.c.bf16 %v6048, %v6047
      %v6114 = vpack.c.bf16 %v5922, %v5921
      %v6115 = vpack.c.bf16 %v5938, %v5937
      %v6116 = vpack.c.bf16 %v5954, %v5953
      %v6117 = vpack.c.bf16 %v5970, %v5969
      %v6118 = vpack.c.bf16 %v5986, %v5985
      %v6119 = vpack.c.bf16 %v6002, %v6001
      %v6120 = vpack.c.bf16 %v6018, %v6017
      %v6121 = vpack.c.bf16 %v6034, %v6033
      %v6122 = vpack.c.bf16 %v6050, %v6049
      %v6123 = vld [vmem:[%s5] sm:$0xf]
      %v6124 = vld [vmem:[%s5 + $0x4] sm:$0xf]
      %v6125 = vld [vmem:[%s5 + $0x8] sm:$0xf]
      %v6126 = vld [vmem:[%s5 + $0xc] sm:$0xf]
      %v6127 = vld [vmem:[%s5 + $0x10] sm:$0xf]
      %v6128 = vld [vmem:[%s5 + $0x14] sm:$0xf]
      %v6129 = vld [vmem:[%s5 + $0x18] sm:$0xf]
      %v6130 = vld [vmem:[%s5 + $0x1c] sm:$0xf]
      %v6131 = vld [vmem:[%s5 + $0x20] sm:$0xf]
      %v6132 = vld [vmem:[%s5 + $0x24] sm:$0xf]
      %v6133 = vld [vmem:[%s5 + $0x28] sm:$0xf]
      %v6134 = vld [vmem:[%s5 + $0x2c] sm:$0xf]
      %v6135 = vld [vmem:[%s5 + $0x30] sm:$0xf]
      %v6136 = vld [vmem:[%s5 + $0x34] sm:$0xf]
      %v6137 = vld [vmem:[%s5 + $0x38] sm:$0xf]
      %v6138 = vld [vmem:[%s5 + $0x3c] sm:$0xf]
      %v6139 = vld [vmem:[%s5 + $0x40] sm:$0xf]
      %v6140 = vld [vmem:[%s5 + $0x44] sm:$0xf]
      %v6141 = vld [vmem:[%s5 + $0x48] sm:$0xf]
      %v6142 = vld [vmem:[%s5 + $0x4c] sm:$0xf]
      %v6143 = vld [vmem:[%s5 + $0x50] sm:$0xf]
      %v6144 = vld [vmem:[%s5 + $0x54] sm:$0xf]
      %v6145 = vld [vmem:[%s5 + $0x58] sm:$0xf]
      %v6146 = vld [vmem:[%s5 + $0x5c] sm:$0xf]
      %v6147 = vld [vmem:[%s5 + $0x60] sm:$0xf]
      %v6148 = vld [vmem:[%s5 + $0x64] sm:$0xf]
      %v6149 = vld [vmem:[%s5 + $0x68] sm:$0xf]
      %v6150 = vld [vmem:[%s5 + $0x6c] sm:$0xf]
      %v6151 = vld [vmem:[%s5 + $0x70] sm:$0xf]
      %v6152 = vld [vmem:[%s5 + $0x74] sm:$0xf]
      %v6153 = vld [vmem:[%s5 + $0x78] sm:$0xf]
      %v6154 = vld [vmem:[%s5 + $0x7c] sm:$0xf]
      %v6155 = vld [vmem:[%s5 + $0x80] sm:$0xf]
      %v6156 = vld [vmem:[%s5 + $0x84] sm:$0xf]
      %v6157 = vld [vmem:[%s5 + $0x88] sm:$0xf]
      %v6158 = vld [vmem:[%s5 + $0x8c] sm:$0xf]
      %v6159 = vld [vmem:[%s5 + $0x90] sm:$0xf]
      %v6160 = vld [vmem:[%s5 + $0x94] sm:$0xf]
      %v6161 = vld [vmem:[%s5 + $0x98] sm:$0xf]
      %v6162 = vld [vmem:[%s5 + $0x9c] sm:$0xf]
      %v6163 = vld [vmem:[%s5 + $0xa0] sm:$0xf]
      %v6164 = vld [vmem:[%s5 + $0xa4] sm:$0xf]
      %v6165 = vld [vmem:[%s5 + $0xa8] sm:$0xf]
      %v6166 = vld [vmem:[%s5 + $0xac] sm:$0xf]
      %v6167 = vld [vmem:[%s5 + $0xb0] sm:$0xf]
      %v6168 = vld [vmem:[%s5 + $0xb4] sm:$0xf]
      %v6169 = vld [vmem:[%s5 + $0xb8] sm:$0xf]
      %v6170 = vld [vmem:[%s5 + $0xbc] sm:$0xf]
      %v6171 = vld [vmem:[%s5 + $0xc0] sm:$0xf]
      %v6172 = vld [vmem:[%s5 + $0xc4] sm:$0xf]
      %v6173 = vld [vmem:[%s5 + $0xc8] sm:$0xf]
      %v6174 = vld [vmem:[%s5 + $0xcc] sm:$0xf]
      %v6175 = vld [vmem:[%s5 + $0xd0] sm:$0xf]
      %v6176 = vld [vmem:[%s5 + $0xd4] sm:$0xf]
      %v6177 = vld [vmem:[%s5 + $0xd8] sm:$0xf]
      %v6178 = vld [vmem:[%s5 + $0xdc] sm:$0xf]
      %v6179 = vld [vmem:[%s5 + $0xe0] sm:$0xf]
      %v6180 = vld [vmem:[%s5 + $0xe4] sm:$0xf]
      %v6181 = vld [vmem:[%s5 + $0xe8] sm:$0xf]
      %v6182 = vld [vmem:[%s5 + $0xec] sm:$0xf]
      %v6183 = vld [vmem:[%s5 + $0xf0] sm:$0xf]
      %v6184 = vld [vmem:[%s5 + $0xf4] sm:$0xf]
      %v6185 = vld [vmem:[%s5 + $0xf8] sm:$0xf]
      %v6186 = vld [vmem:[%s5 + $0xfc] sm:$0xf]
      %v6187 = vld [vmem:[%s5 + $0x100] sm:$0xf]
      %v6188 = vld [vmem:[%s5 + $0x104] sm:$0xf]
      %v6189 = vld [vmem:[%s5 + $0x108] sm:$0xf]
      %v6190 = vld [vmem:[%s5 + $0x10c] sm:$0xf]
      %v6191 = vld [vmem:[%s5 + $0x110] sm:$0xf]
      %v6192 = vld [vmem:[%s5 + $0x114] sm:$0xf]
      %v6193 = vld [vmem:[%s5 + $0x118] sm:$0xf]
      %v6194 = vld [vmem:[%s5 + $0x11c] sm:$0xf]
      %v6195 = vld [vmem:[%s5 + $0x120] sm:$0xf]
      %v6196 = vld [vmem:[%s5 + $0x124] sm:$0xf]
      %v6197 = vld [vmem:[%s5 + $0x128] sm:$0xf]
      %v6198 = vld [vmem:[%s5 + $0x12c] sm:$0xf]
      %v6199 = vld [vmem:[%s5 + $0x130] sm:$0xf]
      %v6200 = vld [vmem:[%s5 + $0x134] sm:$0xf]
      %v6201 = vld [vmem:[%s5 + $0x138] sm:$0xf]
      %v6202 = vld [vmem:[%s5 + $0x13c] sm:$0xf]
      %v6203 = vld [vmem:[%s5 + $0x140] sm:$0xf]
      %v6204 = vld [vmem:[%s5 + $0x144] sm:$0xf]
      %v6205 = vld [vmem:[%s5 + $0x148] sm:$0xf]
      %v6206 = vld [vmem:[%s5 + $0x14c] sm:$0xf]
      %v6207 = vld [vmem:[%s5 + $0x150] sm:$0xf]
      %v6208 = vld [vmem:[%s5 + $0x154] sm:$0xf]
      %v6209 = vld [vmem:[%s5 + $0x158] sm:$0xf]
      %v6210 = vld [vmem:[%s5 + $0x15c] sm:$0xf]
      %v6211 = vld [vmem:[%s5 + $0x160] sm:$0xf]
      %v6212 = vld [vmem:[%s5 + $0x164] sm:$0xf]
      %v6213 = vld [vmem:[%s5 + $0x168] sm:$0xf]
      %v6214 = vld [vmem:[%s5 + $0x16c] sm:$0xf]
      %v6215 = vld [vmem:[%s5 + $0x170] sm:$0xf]
      %v6216 = vld [vmem:[%s5 + $0x174] sm:$0xf]
      %v6217 = vld [vmem:[%s5 + $0x178] sm:$0xf]
      %v6218 = vld [vmem:[%s5 + $0x17c] sm:$0xf]
      %v6219 = vld [vmem:[%s5 + $0x180] sm:$0xf]
      %v6220 = vld [vmem:[%s5 + $0x184] sm:$0xf]
      %v6221 = vld [vmem:[%s5 + $0x188] sm:$0xf]
      %v6222 = vld [vmem:[%s5 + $0x18c] sm:$0xf]
      %v6223 = vld [vmem:[%s5 + $0x190] sm:$0xf]
      %v6224 = vld [vmem:[%s5 + $0x194] sm:$0xf]
      %v6225 = vld [vmem:[%s5 + $0x198] sm:$0xf]
      %v6226 = vld [vmem:[%s5 + $0x19c] sm:$0xf]
      %v6227 = vld [vmem:[%s5 + $0x1a0] sm:$0xf]
      %v6228 = vld [vmem:[%s5 + $0x1a4] sm:$0xf]
      %v6229 = vld [vmem:[%s5 + $0x1a8] sm:$0xf]
      %v6230 = vld [vmem:[%s5 + $0x1ac] sm:$0xf]
      %v6231 = vld [vmem:[%s5 + $0x1b0] sm:$0xf]
      %v6232 = vld [vmem:[%s5 + $0x1b4] sm:$0xf]
      %v6233 = vld [vmem:[%s5 + $0x1b8] sm:$0xf]
      %v6234 = vld [vmem:[%s5 + $0x1bc] sm:$0xf]
      %v6235 = vld [vmem:[%s5 + $0x1c0] sm:$0xf]
      %v6236 = vld [vmem:[%s5 + $0x1c4] sm:$0xf]
      %v6237 = vld [vmem:[%s5 + $0x1c8] sm:$0xf]
      %v6238 = vld [vmem:[%s5 + $0x1cc] sm:$0xf]
      %v6239 = vld [vmem:[%s5 + $0x1d0] sm:$0xf]
      %v6240 = vld [vmem:[%s5 + $0x1d4] sm:$0xf]
      %v6241 = vld [vmem:[%s5 + $0x1d8] sm:$0xf]
      %v6242 = vld [vmem:[%s5 + $0x1dc] sm:$0xf]
      %v6243 = vld [vmem:[%s5 + $0x1e0] sm:$0xf]
      %v6244 = vld [vmem:[%s5 + $0x1e4] sm:$0xf]
      %v6245 = vld [vmem:[%s5 + $0x1e8] sm:$0xf]
      %v6246 = vld [vmem:[%s5 + $0x1ec] sm:$0xf]
      %v6247 = vld [vmem:[%s5 + $0x1f0] sm:$0xf]
      %v6248 = vld [vmem:[%s5 + $0x1f4] sm:$0xf]
      %v6249 = vld [vmem:[%s5 + $0x1f8] sm:$0xf]
      %v6250 = vld [vmem:[%s5 + $0x1fc] sm:$0xf]
      %v6251 = vld [vmem:[%s5 + $0x200] sm:$0xf]
      %v6252 = vld [vmem:[%s5 + $0x204] sm:$0xf]
      %v6253 = vld [vmem:[%s5 + $0x208] sm:$0xf]
      %v6254 = vld [vmem:[%s5 + $0x20c] sm:$0xf]
      %v6255 = vld [vmem:[%s5 + $0x210] sm:$0xf]
      %v6256 = vld [vmem:[%s5 + $0x214] sm:$0xf]
      %v6257 = vld [vmem:[%s5 + $0x218] sm:$0xf]
      %v6258 = vld [vmem:[%s5 + $0x21c] sm:$0xf]
      %v6259 = vld [vmem:[%s5 + $0x220] sm:$0xf]
      %v6260 = vld [vmem:[%s5 + $0x224] sm:$0xf]
      %v6261 = vld [vmem:[%s5 + $0x228] sm:$0xf]
      %v6262 = vld [vmem:[%s5 + $0x22c] sm:$0xf]
      %v6263 = vld [vmem:[%s5 + $0x230] sm:$0xf]
      %v6264 = vld [vmem:[%s5 + $0x234] sm:$0xf]
      %v6265 = vld [vmem:[%s5 + $0x238] sm:$0xf]
      %v6266 = vld [vmem:[%s5 + $0x23c] sm:$0xf]
      %v6411 = vunpack.c.l.b16 %v6123
      %v6412 = vunpack.c.l.b16 %v6124
      %v6413 = vunpack.c.l.b16 %v6125
      %v6414 = vunpack.c.l.b16 %v6126
      %v6415 = vunpack.c.l.b16 %v6127
      %v6416 = vunpack.c.l.b16 %v6128
      %v6417 = vunpack.c.l.b16 %v6129
      %v6418 = vunpack.c.l.b16 %v6130
      %v6419 = vunpack.c.l.b16 %v6131
      %v6420 = vunpack.c.l.b16 %v6132
      %v6421 = vunpack.c.l.b16 %v6133
      %v6422 = vunpack.c.l.b16 %v6134
      %v6423 = vunpack.c.l.b16 %v6135
      %v6424 = vunpack.c.l.b16 %v6136
      %v6425 = vunpack.c.l.b16 %v6137
      %v6426 = vunpack.c.l.b16 %v6138
      %v6427 = vunpack.c.l.b16 %v6139
      %v6428 = vunpack.c.l.b16 %v6140
      %v6429 = vunpack.c.l.b16 %v6141
      %v6430 = vunpack.c.l.b16 %v6142
      %v6431 = vunpack.c.l.b16 %v6143
      %v6432 = vunpack.c.l.b16 %v6144
      %v6433 = vunpack.c.l.b16 %v6145
      %v6434 = vunpack.c.l.b16 %v6146
      %v6435 = vunpack.c.l.b16 %v6147
      %v6436 = vunpack.c.l.b16 %v6148
      %v6437 = vunpack.c.l.b16 %v6149
      %v6438 = vunpack.c.l.b16 %v6150
      %v6439 = vunpack.c.l.b16 %v6151
      %v6440 = vunpack.c.l.b16 %v6152
      %v6441 = vunpack.c.l.b16 %v6153
      %v6442 = vunpack.c.l.b16 %v6154
      %v6443 = vunpack.c.l.b16 %v6155
      %v6444 = vunpack.c.l.b16 %v6156
      %v6445 = vunpack.c.l.b16 %v6157
      %v6446 = vunpack.c.l.b16 %v6158
      %v6447 = vunpack.c.l.b16 %v6159
      %v6448 = vunpack.c.l.b16 %v6160
      %v6449 = vunpack.c.l.b16 %v6161
      %v6450 = vunpack.c.l.b16 %v6162
      %v6451 = vunpack.c.l.b16 %v6163
      %v6452 = vunpack.c.l.b16 %v6164
      %v6453 = vunpack.c.l.b16 %v6165
      %v6454 = vunpack.c.l.b16 %v6166
      %v6455 = vunpack.c.l.b16 %v6167
      %v6456 = vunpack.c.l.b16 %v6168
      %v6457 = vunpack.c.l.b16 %v6169
      %v6458 = vunpack.c.l.b16 %v6170
      %v6459 = vunpack.c.l.b16 %v6171
      %v6460 = vunpack.c.l.b16 %v6172
      %v6461 = vunpack.c.l.b16 %v6173
      %v6462 = vunpack.c.l.b16 %v6174
      %v6463 = vunpack.c.l.b16 %v6175
      %v6464 = vunpack.c.l.b16 %v6176
      %v6465 = vunpack.c.l.b16 %v6177
      %v6466 = vunpack.c.l.b16 %v6178
      %v6467 = vunpack.c.l.b16 %v6179
      %v6468 = vunpack.c.l.b16 %v6180
      %v6469 = vunpack.c.l.b16 %v6181
      %v6470 = vunpack.c.l.b16 %v6182
      %v6471 = vunpack.c.l.b16 %v6183
      %v6472 = vunpack.c.l.b16 %v6184
      %v6473 = vunpack.c.l.b16 %v6185
      %v6474 = vunpack.c.l.b16 %v6186
      %v6475 = vunpack.c.l.b16 %v6187
      %v6476 = vunpack.c.l.b16 %v6188
      %v6477 = vunpack.c.l.b16 %v6189
      %v6478 = vunpack.c.l.b16 %v6190
      %v6479 = vunpack.c.l.b16 %v6191
      %v6480 = vunpack.c.l.b16 %v6192
      %v6481 = vunpack.c.l.b16 %v6193
      %v6482 = vunpack.c.l.b16 %v6194
      %v6483 = vunpack.c.l.b16 %v6195
      %v6484 = vunpack.c.l.b16 %v6196
      %v6485 = vunpack.c.l.b16 %v6197
      %v6486 = vunpack.c.l.b16 %v6198
      %v6487 = vunpack.c.l.b16 %v6199
      %v6488 = vunpack.c.l.b16 %v6200
      %v6489 = vunpack.c.l.b16 %v6201
      %v6490 = vunpack.c.l.b16 %v6202
      %v6491 = vunpack.c.l.b16 %v6203
      %v6492 = vunpack.c.l.b16 %v6204
      %v6493 = vunpack.c.l.b16 %v6205
      %v6494 = vunpack.c.l.b16 %v6206
      %v6495 = vunpack.c.l.b16 %v6207
      %v6496 = vunpack.c.l.b16 %v6208
      %v6497 = vunpack.c.l.b16 %v6209
      %v6498 = vunpack.c.l.b16 %v6210
      %v6499 = vunpack.c.l.b16 %v6211
      %v6500 = vunpack.c.l.b16 %v6212
      %v6501 = vunpack.c.l.b16 %v6213
      %v6502 = vunpack.c.l.b16 %v6214
      %v6503 = vunpack.c.l.b16 %v6215
      %v6504 = vunpack.c.l.b16 %v6216
      %v6505 = vunpack.c.l.b16 %v6217
      %v6506 = vunpack.c.l.b16 %v6218
      %v6507 = vunpack.c.l.b16 %v6219
      %v6508 = vunpack.c.l.b16 %v6220
      %v6509 = vunpack.c.l.b16 %v6221
      %v6510 = vunpack.c.l.b16 %v6222
      %v6511 = vunpack.c.l.b16 %v6223
      %v6512 = vunpack.c.l.b16 %v6224
      %v6513 = vunpack.c.l.b16 %v6225
      %v6514 = vunpack.c.l.b16 %v6226
      %v6515 = vunpack.c.l.b16 %v6227
      %v6516 = vunpack.c.l.b16 %v6228
      %v6517 = vunpack.c.l.b16 %v6229
      %v6518 = vunpack.c.l.b16 %v6230
      %v6519 = vunpack.c.l.b16 %v6231
      %v6520 = vunpack.c.l.b16 %v6232
      %v6521 = vunpack.c.l.b16 %v6233
      %v6522 = vunpack.c.l.b16 %v6234
      %v6523 = vunpack.c.l.b16 %v6235
      %v6524 = vunpack.c.l.b16 %v6236
      %v6525 = vunpack.c.l.b16 %v6237
      %v6526 = vunpack.c.l.b16 %v6238
      %v6527 = vunpack.c.l.b16 %v6239
      %v6528 = vunpack.c.l.b16 %v6240
      %v6529 = vunpack.c.l.b16 %v6241
      %v6530 = vunpack.c.l.b16 %v6242
      %v6531 = vunpack.c.l.b16 %v6243
      %v6532 = vunpack.c.l.b16 %v6244
      %v6533 = vunpack.c.l.b16 %v6245
      %v6534 = vunpack.c.l.b16 %v6246
      %v6535 = vunpack.c.l.b16 %v6247
      %v6536 = vunpack.c.l.b16 %v6248
      %v6537 = vunpack.c.l.b16 %v6249
      %v6538 = vunpack.c.l.b16 %v6250
      %v6539 = vunpack.c.l.b16 %v6251
      %v6540 = vunpack.c.l.b16 %v6252
      %v6541 = vunpack.c.l.b16 %v6253
      %v6542 = vunpack.c.l.b16 %v6254
      %v6543 = vunpack.c.l.b16 %v6255
      %v6544 = vunpack.c.l.b16 %v6256
      %v6545 = vunpack.c.l.b16 %v6257
      %v6546 = vunpack.c.l.b16 %v6258
      %v6547 = vunpack.c.l.b16 %v6259
      %v6548 = vunpack.c.l.b16 %v6260
      %v6549 = vunpack.c.l.b16 %v6261
      %v6550 = vunpack.c.l.b16 %v6262
      %v6551 = vunpack.c.l.b16 %v6263
      %v6552 = vunpack.c.l.b16 %v6264
      %v6553 = vunpack.c.l.b16 %v6265
      %v6554 = vunpack.c.l.b16 %v6266
      %v6555 = vpack.c.b16 %v6412, %v6411
      %v6556 = vpack.c.b16 %v6414, %v6413
      %v6557 = vpack.c.b16 %v6416, %v6415
      %v6558 = vpack.c.b16 %v6418, %v6417
      %v6559 = vpack.c.b16 %v6420, %v6419
      %v6560 = vpack.c.b16 %v6422, %v6421
      %v6561 = vpack.c.b16 %v6424, %v6423
      %v6562 = vpack.c.b16 %v6426, %v6425
      %v6563 = vpack.c.b16 %v6428, %v6427
      %v6564 = vpack.c.b16 %v6430, %v6429
      %v6565 = vpack.c.b16 %v6432, %v6431
      %v6566 = vpack.c.b16 %v6434, %v6433
      %v6567 = vpack.c.b16 %v6436, %v6435
      %v6568 = vpack.c.b16 %v6438, %v6437
      %v6569 = vpack.c.b16 %v6440, %v6439
      %v6570 = vpack.c.b16 %v6442, %v6441
      %v6571 = vpack.c.b16 %v6444, %v6443
      %v6572 = vpack.c.b16 %v6446, %v6445
      %v6573 = vpack.c.b16 %v6448, %v6447
      %v6574 = vpack.c.b16 %v6450, %v6449
      %v6575 = vpack.c.b16 %v6452, %v6451
      %v6576 = vpack.c.b16 %v6454, %v6453
      %v6577 = vpack.c.b16 %v6456, %v6455
      %v6578 = vpack.c.b16 %v6458, %v6457
      %v6579 = vpack.c.b16 %v6460, %v6459
      %v6580 = vpack.c.b16 %v6462, %v6461
      %v6581 = vpack.c.b16 %v6464, %v6463
      %v6582 = vpack.c.b16 %v6466, %v6465
      %v6583 = vpack.c.b16 %v6468, %v6467
      %v6584 = vpack.c.b16 %v6470, %v6469
      %v6585 = vpack.c.b16 %v6472, %v6471
      %v6586 = vpack.c.b16 %v6474, %v6473
      %v6587 = vpack.c.b16 %v6476, %v6475
      %v6588 = vpack.c.b16 %v6478, %v6477
      %v6589 = vpack.c.b16 %v6480, %v6479
      %v6590 = vpack.c.b16 %v6482, %v6481
      %v6591 = vpack.c.b16 %v6484, %v6483
      %v6592 = vpack.c.b16 %v6486, %v6485
      %v6593 = vpack.c.b16 %v6488, %v6487
      %v6594 = vpack.c.b16 %v6490, %v6489
      %v6595 = vpack.c.b16 %v6492, %v6491
      %v6596 = vpack.c.b16 %v6494, %v6493
      %v6597 = vpack.c.b16 %v6496, %v6495
      %v6598 = vpack.c.b16 %v6498, %v6497
      %v6599 = vpack.c.b16 %v6500, %v6499
      %v6600 = vpack.c.b16 %v6502, %v6501
      %v6601 = vpack.c.b16 %v6504, %v6503
      %v6602 = vpack.c.b16 %v6506, %v6505
      %v6603 = vpack.c.b16 %v6508, %v6507
      %v6604 = vpack.c.b16 %v6510, %v6509
      %v6605 = vpack.c.b16 %v6512, %v6511
      %v6606 = vpack.c.b16 %v6514, %v6513
      %v6607 = vpack.c.b16 %v6516, %v6515
      %v6608 = vpack.c.b16 %v6518, %v6517
      %v6609 = vpack.c.b16 %v6520, %v6519
      %v6610 = vpack.c.b16 %v6522, %v6521
      %v6611 = vpack.c.b16 %v6524, %v6523
      %v6612 = vpack.c.b16 %v6526, %v6525
      %v6613 = vpack.c.b16 %v6528, %v6527
      %v6614 = vpack.c.b16 %v6530, %v6529
      %v6615 = vpack.c.b16 %v6532, %v6531
      %v6616 = vpack.c.b16 %v6534, %v6533
      %v6617 = vpack.c.b16 %v6536, %v6535
      %v6618 = vpack.c.b16 %v6538, %v6537
      %v6619 = vpack.c.b16 %v6540, %v6539
      %v6620 = vpack.c.b16 %v6542, %v6541
      %v6621 = vpack.c.b16 %v6544, %v6543
      %v6622 = vpack.c.b16 %v6546, %v6545
      %v6623 = vpack.c.b16 %v6548, %v6547
      %v6624 = vpack.c.b16 %v6550, %v6549
      %v6625 = vpack.c.b16 %v6552, %v6551
      %v6626 = vpack.c.b16 %v6554, %v6553
      %6699 = vmatprep.subr.bf16.mxu0 0
      %6700 = vmatpush1.bf16.msra.mxu0 %v6555
      %6701 = vmatprep.subr.bf16.mxu0 0
      %6702 = vmatpush1.bf16.msra.mxu0 %v6556
      %6703 = vmatprep.subr.bf16.mxu0 0
      %6704 = vmatpush1.bf16.msra.mxu0 %v6557
      %6705 = vmatprep.subr.bf16.mxu0 0
      %6706 = vmatpush1.bf16.msra.mxu0 %v6558
      %6707 = vmatprep.subr.bf16.mxu0 0
      %6708 = vmatpush1.bf16.msra.mxu0 %v6559
      %6709 = vmatprep.subr.bf16.mxu0 0
      %6710 = vmatpush1.bf16.msra.mxu0 %v6560
      %6711 = vmatprep.subr.bf16.mxu0 0
      %6712 = vmatpush1.bf16.msra.mxu0 %v6561
      %6713 = vmatprep.subr.bf16.mxu0 0
      %6714 = vmatpush1.bf16.msra.mxu0 %v6562
      %6715 = vmatprep.subr.bf16.mxu0 0
      %6716 = vmatpush1.bf16.msra.mxu0 %v6563
      %6717 = vmatprep.subr.bf16.mxu0 0
      %6718 = vmatpush1.bf16.msra.mxu0 %v6564
      %6719 = vmatprep.subr.bf16.mxu0 0
      %6720 = vmatpush1.bf16.msra.mxu0 %v6565
      %6721 = vmatprep.subr.bf16.mxu0 0
      %6722 = vmatpush1.bf16.msra.mxu0 %v6566
      %6723 = vmatprep.subr.bf16.mxu0 0
      %6724 = vmatpush1.bf16.msra.mxu0 %v6567
      %6725 = vmatprep.subr.bf16.mxu0 0
      %6726 = vmatpush1.bf16.msra.mxu0 %v6568
      %6727 = vmatprep.subr.bf16.mxu0 0
      %6728 = vmatpush1.bf16.msra.mxu0 %v6569
      %6729 = vmatprep.subr.bf16.mxu0 0
      %6730 = vmatpush1.bf16.msra.mxu0 %v6570
      %6731 = vmatprep.mubr.bf16.mxu0 %v6052
      %6732 = vmatmul.mubr.bf16.gmra.mrb[0].mxu0 %v6051
      %v6733 = vpop.f32.mrb[0].mxu0
      %v6734 = vadd.f32 0.0, %v6733
      %v6735 = vpop.f32.mrb[0].mxu0
      %v6736 = vpop.f32.mrb[0].mxu0
      %v6737 = vadd.f32 0.0, %v6736
      %v6738 = vpop.f32.mrb[0].mxu0
      %6739 = vmatprep.mubr.bf16.mxu0 %v6061
      %6740 = vmatmul.mubr.bf16.gmra.mrb[0].mxu0 %v6060
      %v6741 = vpop.f32.mrb[0].mxu0
      %v6742 = vadd.f32 0.0, %v6741
      %v6743 = vpop.f32.mrb[0].mxu0
      %v6744 = vpop.f32.mrb[0].mxu0
      %v6745 = vadd.f32 0.0, %v6744
      %v6746 = vpop.f32.mrb[0].mxu0
      %6747 = vmatprep.mubr.bf16.mxu0 %v6070
      %6748 = vmatmul.mubr.bf16.gmra.mrb[0].mxu0 %v6069
      %v6749 = vpop.f32.mrb[0].mxu0
      %v6750 = vadd.f32 0.0, %v6749
      %v6751 = vpop.f32.mrb[0].mxu0
      %v6752 = vpop.f32.mrb[0].mxu0
      %v6753 = vadd.f32 0.0, %v6752
      %v6754 = vpop.f32.mrb[0].mxu0
      %6755 = vmatprep.mubr.bf16.mxu0 %v6079
      %6756 = vmatmul.mubr.bf16.gmra.mrb[0].mxu0 %v6078
      %v6757 = vpop.f32.mrb[0].mxu0
      %v6758 = vadd.f32 0.0, %v6757
      %v6759 = vpop.f32.mrb[0].mxu0
      %v6760 = vpop.f32.mrb[0].mxu0
      %v6761 = vadd.f32 0.0, %v6760
      %v6762 = vpop.f32.mrb[0].mxu0
      %6763 = vmatprep.mubr.bf16.mxu0 %v6088
      %6764 = vmatmul.mubr.bf16.gmra.mrb[0].mxu0 %v6087
      %v6765 = vpop.f32.mrb[0].mxu0
      %v6766 = vadd.f32 0.0, %v6765
      %v6767 = vpop.f32.mrb[0].mxu0
      %v6768 = vpop.f32.mrb[0].mxu0
      %v6769 = vadd.f32 0.0, %v6768
      %v6770 = vpop.f32.mrb[0].mxu0
      %6771 = vmatprep.mubr.bf16.mxu0 %v6097
      %6772 = vmatmul.mubr.bf16.gmra.mrb[0].mxu0 %v6096
      %v6773 = vpop.f32.mrb[0].mxu0
      %v6774 = vadd.f32 0.0, %v6773
      %v6775 = vpop.f32.mrb[0].mxu0
      %v6776 = vpop.f32.mrb[0].mxu0
      %v6777 = vadd.f32 0.0, %v6776
      %v6778 = vpop.f32.mrb[0].mxu0
      %6779 = vmatprep.mubr.bf16.mxu0 %v6106
      %6780 = vmatmul.mubr.bf16.gmra.mrb[0].mxu0 %v6105
      %v6781 = vpop.f32.mrb[0].mxu0
      %v6782 = vadd.f32 0.0, %v6781
      %v6783 = vpop.f32.mrb[0].mxu0
      %v6784 = vpop.f32.mrb[0].mxu0
      %v6785 = vadd.f32 0.0, %v6784
      %v6786 = vpop.f32.mrb[0].mxu0
      %6787 = vmatprep.mubr.bf16.mxu0 %v6115
      %6788 = vmatmul.mubr.bf16.gmra.mrb[0].mxu0 %v6114
      %v6789 = vpop.f32.mrb[0].mxu0
      %v6790 = vadd.f32 0.0, %v6789
      %v6791 = vpop.f32.mrb[0].mxu0
      %v6792 = vpop.f32.mrb[0].mxu0
      %v6793 = vadd.f32 0.0, %v6792
      %v6794 = vpop.f32.mrb[0].mxu0
      %6795 = vdwg.mxu0
      %6796 = vmatprep.subr.bf16.mxu0 0
      %6797 = vmatpush1.bf16.msra.mxu0 %v6571
      %6798 = vmatprep.subr.bf16.mxu0 0
      %6799 = vmatpush1.bf16.msra.mxu0 %v6572
      %6800 = vmatprep.subr.bf16.mxu0 0
      %6801 = vmatpush1.bf16.msra.mxu0 %v6573
      %6802 = vmatprep.subr.bf16.mxu0 0
      %6803 = vmatpush1.bf16.msra.mxu0 %v6574
      %6804 = vmatprep.subr.bf16.mxu0 0
      %6805 = vmatpush1.bf16.msra.mxu0 %v6575
      %6806 = vmatprep.subr.bf16.mxu0 0
      %6807 = vmatpush1.bf16.msra.mxu0 %v6576
      %6808 = vmatprep.subr.bf16.mxu0 0
      %6809 = vmatpush1.bf16.msra.mxu0 %v6577
      %6810 = vmatprep.subr.bf16.mxu0 0
      %6811 = vmatpush1.bf16.msra.mxu0 %v6578
      %6812 = vmatprep.subr.bf16.mxu0 0
      %6813 = vmatpush1.bf16.msra.mxu0 %v6579
      %6814 = vmatprep.subr.bf16.mxu0 0
      %6815 = vmatpush1.bf16.msra.mxu0 %v6580
      %6816 = vmatprep.subr.bf16.mxu0 0
      %6817 = vmatpush1.bf16.msra.mxu0 %v6581
      %6818 = vmatprep.subr.bf16.mxu0 0
      %6819 = vmatpush1.bf16.msra.mxu0 %v6582
      %6820 = vmatprep.subr.bf16.mxu0 0
      %6821 = vmatpush1.bf16.msra.mxu0 %v6583
      %6822 = vmatprep.subr.bf16.mxu0 0
      %6823 = vmatpush1.bf16.msra.mxu0 %v6584
      %6824 = vmatprep.subr.bf16.mxu0 0
      %6825 = vmatpush1.bf16.msra.mxu0 %v6585
      %6826 = vmatprep.subr.bf16.mxu0 0
      %6827 = vmatpush1.bf16.msra.mxu0 %v6586
      %6828 = vmatprep.mubr.bf16.mxu0 %v6054
      %6829 = vmatmul.mubr.bf16.gmra.mrb[0].mxu0 %v6053
      %v6830 = vpop.f32.mrb[0].mxu0
      %v6831 = vadd.f32 %v6734, %v6830
      %v6832 = vpop.f32.mrb[0].mxu0
      %v6833 = vpop.f32.mrb[0].mxu0
      %v6834 = vadd.f32 %v6737, %v6833
      %v6835 = vpop.f32.mrb[0].mxu0
      %6836 = vmatprep.mubr.bf16.mxu0 %v6063
      %6837 = vmatmul.mubr.bf16.gmra.mrb[0].mxu0 %v6062
      %v6838 = vpop.f32.mrb[0].mxu0
      %v6839 = vadd.f32 %v6742, %v6838
      %v6840 = vpop.f32.mrb[0].mxu0
      %v6841 = vpop.f32.mrb[0].mxu0
      %v6842 = vadd.f32 %v6745, %v6841
      %v6843 = vpop.f32.mrb[0].mxu0
      %6844 = vmatprep.mubr.bf16.mxu0 %v6072
      %6845 = vmatmul.mubr.bf16.gmra.mrb[0].mxu0 %v6071
      %v6846 = vpop.f32.mrb[0].mxu0
      %v6847 = vadd.f32 %v6750, %v6846
      %v6848 = vpop.f32.mrb[0].mxu0
      %v6849 = vpop.f32.mrb[0].mxu0
      %v6850 = vadd.f32 %v6753, %v6849
      %v6851 = vpop.f32.mrb[0].mxu0
      %6852 = vmatprep.mubr.bf16.mxu0 %v6081
      %6853 = vmatmul.mubr.bf16.gmra.mrb[0].mxu0 %v6080
      %v6854 = vpop.f32.mrb[0].mxu0
      %v6855 = vadd.f32 %v6758, %v6854
      %v6856 = vpop.f32.mrb[0].mxu0
      %v6857 = vpop.f32.mrb[0].mxu0
      %v6858 = vadd.f32 %v6761, %v6857
      %v6859 = vpop.f32.mrb[0].mxu0
      %6860 = vmatprep.mubr.bf16.mxu0 %v6090
      %6861 = vmatmul.mubr.bf16.gmra.mrb[0].mxu0 %v6089
      %v6862 = vpop.f32.mrb[0].mxu0
      %v6863 = vadd.f32 %v6766, %v6862
      %v6864 = vpop.f32.mrb[0].mxu0
      %v6865 = vpop.f32.mrb[0].mxu0
      %v6866 = vadd.f32 %v6769, %v6865
      %v6867 = vpop.f32.mrb[0].mxu0
      %6868 = vmatprep.mubr.bf16.mxu0 %v6099
      %6869 = vmatmul.mubr.bf16.gmra.mrb[0].mxu0 %v6098
      %v6870 = vpop.f32.mrb[0].mxu0
      %v6871 = vadd.f32 %v6774, %v6870
      %v6872 = vpop.f32.mrb[0].mxu0
      %v6873 = vpop.f32.mrb[0].mxu0
      %v6874 = vadd.f32 %v6777, %v6873
      %v6875 = vpop.f32.mrb[0].mxu0
      %6876 = vmatprep.mubr.bf16.mxu0 %v6108
      %6877 = vmatmul.mubr.bf16.gmra.mrb[0].mxu0 %v6107
      %v6878 = vpop.f32.mrb[0].mxu0
      %v6879 = vadd.f32 %v6782, %v6878
      %v6880 = vpop.f32.mrb[0].mxu0
      %v6881 = vpop.f32.mrb[0].mxu0
      %v6882 = vadd.f32 %v6785, %v6881
      %v6883 = vpop.f32.mrb[0].mxu0
      %6884 = vmatprep.mubr.bf16.mxu0 %v6117
      %6885 = vmatmul.mubr.bf16.gmra.mrb[0].mxu0 %v6116
      %v6886 = vpop.f32.mrb[0].mxu0
      %v6887 = vadd.f32 %v6790, %v6886
      %v6888 = vpop.f32.mrb[0].mxu0
      %v6889 = vpop.f32.mrb[0].mxu0
      %v6890 = vadd.f32 %v6793, %v6889
      %v6891 = vpop.f32.mrb[0].mxu0
      %6892 = vdwg.mxu0
      %6893 = vmatprep.subr.bf16.mxu0 0
      %6894 = vmatpush1.bf16.msra.mxu0 %v6587
      %6895 = vmatprep.subr.bf16.mxu0 0
      %6896 = vmatpush1.bf16.msra.mxu0 %v6588
      %6897 = vmatprep.subr.bf16.mxu0 0
      %6898 = vmatpush1.bf16.msra.mxu0 %v6589
      %6899 = vmatprep.subr.bf16.mxu0 0
      %6900 = vmatpush1.bf16.msra.mxu0 %v6590
      %6901 = vmatprep.subr.bf16.mxu0 0
      %6902 = vmatpush1.bf16.msra.mxu0 %v6591
      %6903 = vmatprep.subr.bf16.mxu0 0
      %6904 = vmatpush1.bf16.msra.mxu0 %v6592
      %6905 = vmatprep.subr.bf16.mxu0 0
      %6906 = vmatpush1.bf16.msra.mxu0 %v6593
      %6907 = vmatprep.subr.bf16.mxu0 0
      %6908 = vmatpush1.bf16.msra.mxu0 %v6594
      %6909 = vmatprep.subr.bf16.mxu0 0
      %6910 = vmatpush1.bf16.msra.mxu0 %v6595
      %6911 = vmatprep.subr.bf16.mxu0 0
      %6912 = vmatpush1.bf16.msra.mxu0 %v6596
      %6913 = vmatprep.subr.bf16.mxu0 0
      %6914 = vmatpush1.bf16.msra.mxu0 %v6597
      %6915 = vmatprep.subr.bf16.mxu0 0
      %6916 = vmatpush1.bf16.msra.mxu0 %v6598
      %6917 = vmatprep.subr.bf16.mxu0 0
      %6918 = vmatpush1.bf16.msra.mxu0 %v6599
      %6919 = vmatprep.subr.bf16.mxu0 0
      %6920 = vmatpush1.bf16.msra.mxu0 %v6600
      %6921 = vmatprep.subr.bf16.mxu0 0
      %6922 = vmatpush1.bf16.msra.mxu0 %v6601
      %6923 = vmatprep.subr.bf16.mxu0 0
      %6924 = vmatpush1.bf16.msra.mxu0 %v6602
      %6925 = vmatprep.mubr.bf16.mxu0 %v6056
      %6926 = vmatmul.mubr.bf16.gmra.mrb[0].mxu0 %v6055
      %v6927 = vpop.f32.mrb[0].mxu0
      %v6928 = vadd.f32 %v6831, %v6927
      %v6929 = vpop.f32.mrb[0].mxu0
      %v6930 = vpop.f32.mrb[0].mxu0
      %v6931 = vadd.f32 %v6834, %v6930
      %v6932 = vpop.f32.mrb[0].mxu0
      %6933 = vmatprep.mubr.bf16.mxu0 %v6065
      %6934 = vmatmul.mubr.bf16.gmra.mrb[0].mxu0 %v6064
      %v6935 = vpop.f32.mrb[0].mxu0
      %v6936 = vadd.f32 %v6839, %v6935
      %v6937 = vpop.f32.mrb[0].mxu0
      %v6938 = vpop.f32.mrb[0].mxu0
      %v6939 = vadd.f32 %v6842, %v6938
      %v6940 = vpop.f32.mrb[0].mxu0
      %6941 = vmatprep.mubr.bf16.mxu0 %v6074
      %6942 = vmatmul.mubr.bf16.gmra.mrb[0].mxu0 %v6073
      %v6943 = vpop.f32.mrb[0].mxu0
      %v6944 = vadd.f32 %v6847, %v6943
      %v6945 = vpop.f32.mrb[0].mxu0
      %v6946 = vpop.f32.mrb[0].mxu0
      %v6947 = vadd.f32 %v6850, %v6946
      %v6948 = vpop.f32.mrb[0].mxu0
      %6949 = vmatprep.mubr.bf16.mxu0 %v6083
      %6950 = vmatmul.mubr.bf16.gmra.mrb[0].mxu0 %v6082
      %v6951 = vpop.f32.mrb[0].mxu0
      %v6952 = vadd.f32 %v6855, %v6951
      %v6953 = vpop.f32.mrb[0].mxu0
      %v6954 = vpop.f32.mrb[0].mxu0
      %v6955 = vadd.f32 %v6858, %v6954
      %v6956 = vpop.f32.mrb[0].mxu0
      %6957 = vmatprep.mubr.bf16.mxu0 %v6092
      %6958 = vmatmul.mubr.bf16.gmra.mrb[0].mxu0 %v6091
      %v6959 = vpop.f32.mrb[0].mxu0
      %v6960 = vadd.f32 %v6863, %v6959
      %v6961 = vpop.f32.mrb[0].mxu0
      %v6962 = vpop.f32.mrb[0].mxu0
      %v6963 = vadd.f32 %v6866, %v6962
      %v6964 = vpop.f32.mrb[0].mxu0
      %6965 = vmatprep.mubr.bf16.mxu0 %v6101
      %6966 = vmatmul.mubr.bf16.gmra.mrb[0].mxu0 %v6100
      %v6967 = vpop.f32.mrb[0].mxu0
      %v6968 = vadd.f32 %v6871, %v6967
      %v6969 = vpop.f32.mrb[0].mxu0
      %v6970 = vpop.f32.mrb[0].mxu0
      %v6971 = vadd.f32 %v6874, %v6970
      %v6972 = vpop.f32.mrb[0].mxu0
      %6973 = vmatprep.mubr.bf16.mxu0 %v6110
      %6974 = vmatmul.mubr.bf16.gmra.mrb[0].mxu0 %v6109
      %v6975 = vpop.f32.mrb[0].mxu0
      %v6976 = vadd.f32 %v6879, %v6975
      %v6977 = vpop.f32.mrb[0].mxu0
      %v6978 = vpop.f32.mrb[0].mxu0
      %v6979 = vadd.f32 %v6882, %v6978
      %v6980 = vpop.f32.mrb[0].mxu0
      %6981 = vmatprep.mubr.bf16.mxu0 %v6119
      %6982 = vmatmul.mubr.bf16.gmra.mrb[0].mxu0 %v6118
      %v6983 = vpop.f32.mrb[0].mxu0
      %v6984 = vadd.f32 %v6887, %v6983
      %v6985 = vpop.f32.mrb[0].mxu0
      %v6986 = vpop.f32.mrb[0].mxu0
      %v6987 = vadd.f32 %v6890, %v6986
      %v6988 = vpop.f32.mrb[0].mxu0
      %6989 = vdwg.mxu0
      %6990 = vmatprep.subr.bf16.mxu0 0
      %6991 = vmatpush1.bf16.msra.mxu0 %v6603
      %6992 = vmatprep.subr.bf16.mxu0 0
      %6993 = vmatpush1.bf16.msra.mxu0 %v6604
      %6994 = vmatprep.subr.bf16.mxu0 0
      %6995 = vmatpush1.bf16.msra.mxu0 %v6605
      %6996 = vmatprep.subr.bf16.mxu0 0
      %6997 = vmatpush1.bf16.msra.mxu0 %v6606
      %6998 = vmatprep.subr.bf16.mxu0 0
      %6999 = vmatpush1.bf16.msra.mxu0 %v6607
      %7000 = vmatprep.subr.bf16.mxu0 0
      %7001 = vmatpush1.bf16.msra.mxu0 %v6608
      %7002 = vmatprep.subr.bf16.mxu0 0
      %7003 = vmatpush1.bf16.msra.mxu0 %v6609
      %7004 = vmatprep.subr.bf16.mxu0 0
      %7005 = vmatpush1.bf16.msra.mxu0 %v6610
      %7006 = vmatprep.subr.bf16.mxu0 0
      %7007 = vmatpush1.bf16.msra.mxu0 %v6611
      %7008 = vmatprep.subr.bf16.mxu0 0
      %7009 = vmatpush1.bf16.msra.mxu0 %v6612
      %7010 = vmatprep.subr.bf16.mxu0 0
      %7011 = vmatpush1.bf16.msra.mxu0 %v6613
      %7012 = vmatprep.subr.bf16.mxu0 0
      %7013 = vmatpush1.bf16.msra.mxu0 %v6614
      %7014 = vmatprep.subr.bf16.mxu0 0
      %7015 = vmatpush1.bf16.msra.mxu0 %v6615
      %7016 = vmatprep.subr.bf16.mxu0 0
      %7017 = vmatpush1.bf16.msra.mxu0 %v6616
      %7018 = vmatprep.subr.bf16.mxu0 0
      %7019 = vmatpush1.bf16.msra.mxu0 %v6617
      %7020 = vmatprep.subr.bf16.mxu0 0
      %7021 = vmatpush1.bf16.msra.mxu0 %v6618
      %7022 = vmatprep.mubr.bf16.mxu0 %v6058
      %7023 = vmatmul.mubr.bf16.gmra.mrb[0].mxu0 %v6057
      %v7024 = vpop.f32.mrb[0].mxu0
      %v7025 = vadd.f32 %v6928, %v7024
      %v7026 = vpop.f32.mrb[0].mxu0
      %v7027 = vpop.f32.mrb[0].mxu0
      %v7028 = vadd.f32 %v6931, %v7027
      %v7029 = vpop.f32.mrb[0].mxu0
      %7030 = vmatprep.mubr.bf16.mxu0 %v6067
      %7031 = vmatmul.mubr.bf16.gmra.mrb[0].mxu0 %v6066
      %v7032 = vpop.f32.mrb[0].mxu0
      %v7033 = vadd.f32 %v6936, %v7032
      %v7034 = vpop.f32.mrb[0].mxu0
      %v7035 = vpop.f32.mrb[0].mxu0
      %v7036 = vadd.f32 %v6939, %v7035
      %v7037 = vpop.f32.mrb[0].mxu0
      %7038 = vmatprep.mubr.bf16.mxu0 %v6076
      %7039 = vmatmul.mubr.bf16.gmra.mrb[0].mxu0 %v6075
      %v7040 = vpop.f32.mrb[0].mxu0
      %v7041 = vadd.f32 %v6944, %v7040
      %v7042 = vpop.f32.mrb[0].mxu0
      %v7043 = vpop.f32.mrb[0].mxu0
      %v7044 = vadd.f32 %v6947, %v7043
      %v7045 = vpop.f32.mrb[0].mxu0
      %7046 = vmatprep.mubr.bf16.mxu0 %v6085
      %7047 = vmatmul.mubr.bf16.gmra.mrb[0].mxu0 %v6084
      %v7048 = vpop.f32.mrb[0].mxu0
      %v7049 = vadd.f32 %v6952, %v7048
      %v7050 = vpop.f32.mrb[0].mxu0
      %v7051 = vpop.f32.mrb[0].mxu0
      %v7052 = vadd.f32 %v6955, %v7051
      %v7053 = vpop.f32.mrb[0].mxu0
      %7054 = vmatprep.mubr.bf16.mxu0 %v6094
      %7055 = vmatmul.mubr.bf16.gmra.mrb[0].mxu0 %v6093
      %v7056 = vpop.f32.mrb[0].mxu0
      %v7057 = vadd.f32 %v6960, %v7056
      %v7058 = vpop.f32.mrb[0].mxu0
      %v7059 = vpop.f32.mrb[0].mxu0
      %v7060 = vadd.f32 %v6963, %v7059
      %v7061 = vpop.f32.mrb[0].mxu0
      %7062 = vmatprep.mubr.bf16.mxu0 %v6103
      %7063 = vmatmul.mubr.bf16.gmra.mrb[0].mxu0 %v6102
      %v7064 = vpop.f32.mrb[0].mxu0
      %v7065 = vadd.f32 %v6968, %v7064
      %v7066 = vpop.f32.mrb[0].mxu0
      %v7067 = vpop.f32.mrb[0].mxu0
      %v7068 = vadd.f32 %v6971, %v7067
      %v7069 = vpop.f32.mrb[0].mxu0
      %7070 = vmatprep.mubr.bf16.mxu0 %v6112
      %7071 = vmatmul.mubr.bf16.gmra.mrb[0].mxu0 %v6111
      %v7072 = vpop.f32.mrb[0].mxu0
      %v7073 = vadd.f32 %v6976, %v7072
      %v7074 = vpop.f32.mrb[0].mxu0
      %v7075 = vpop.f32.mrb[0].mxu0
      %v7076 = vadd.f32 %v6979, %v7075
      %v7077 = vpop.f32.mrb[0].mxu0
      %7078 = vmatprep.mubr.bf16.mxu0 %v6121
      %7079 = vmatmul.mubr.bf16.gmra.mrb[0].mxu0 %v6120
      %v7080 = vpop.f32.mrb[0].mxu0
      %v7081 = vadd.f32 %v6984, %v7080
      %v7082 = vpop.f32.mrb[0].mxu0
      %v7083 = vpop.f32.mrb[0].mxu0
      %v7084 = vadd.f32 %v6987, %v7083
      %v7085 = vpop.f32.mrb[0].mxu0
      %7086 = vdwg.mxu0
      %7087 = vmatprep.subr.bf16.mxu0 0
      %7088 = vmatpush1.bf16.msra.mxu0 %v6619
      %7089 = vmatprep.subr.bf16.mxu0 0
      %7090 = vmatpush1.bf16.msra.mxu0 %v6620
      %7091 = vmatprep.subr.bf16.mxu0 0
      %7092 = vmatpush1.bf16.msra.mxu0 %v6621
      %7093 = vmatprep.subr.bf16.mxu0 0
      %7094 = vmatpush1.bf16.msra.mxu0 %v6622
      %7095 = vmatprep.subr.bf16.mxu0 0
      %7096 = vmatpush1.bf16.msra.mxu0 %v6623
      %7097 = vmatprep.subr.bf16.mxu0 0
      %7098 = vmatpush1.bf16.msra.mxu0 %v6624
      %7099 = vmatprep.subr.bf16.mxu0 0
      %7100 = vmatpush1.bf16.msra.mxu0 %v6625
      %7101 = vmatprep.subr.bf16.mxu0 0
      %7102 = vmatpush1.bf16.msra.mxu0 %v6626
      %7103 = vmatprep.subr.bf16.mxu0 0
      %7104 = vmatpush1.bf16.msra.mxu0 0
      %7105 = vmatprep.subr.bf16.mxu0 0
      %7106 = vmatpush1.bf16.msra.mxu0 0
      %7107 = vmatprep.subr.bf16.mxu0 0
      %7108 = vmatpush1.bf16.msra.mxu0 0
      %7109 = vmatprep.subr.bf16.mxu0 0
      %7110 = vmatpush1.bf16.msra.mxu0 0
      %7111 = vmatprep.subr.bf16.mxu0 0
      %7112 = vmatpush1.bf16.msra.mxu0 0
      %7113 = vmatprep.subr.bf16.mxu0 0
      %7114 = vmatpush1.bf16.msra.mxu0 0
      %7115 = vmatprep.subr.bf16.mxu0 0
      %7116 = vmatpush1.bf16.msra.mxu0 0
      %7117 = vmatprep.subr.bf16.mxu0 0
      %7118 = vmatpush1.bf16.msra.mxu0 0
      %7119 = vmatprep.mubr.bf16.mxu0 0
      %7120 = vmatmul.mubr.bf16.gmra.mrb[0].mxu0 %v6059
      %v7121 = vpop.f32.mrb[0].mxu0
      %v7122 = vadd.f32 %v7025, %v7121
      %v7123 = vpop.f32.mrb[0].mxu0
      %v7124 = vpop.f32.mrb[0].mxu0
      %v7125 = vadd.f32 %v7028, %v7124
      %v7126 = vpop.f32.mrb[0].mxu0
      %7127 = vmatprep.mubr.bf16.mxu0 0
      %7128 = vmatmul.mubr.bf16.gmra.mrb[0].mxu0 %v6068
      %v7129 = vpop.f32.mrb[0].mxu0
      %v7130 = vadd.f32 %v7033, %v7129
      %v7131 = vpop.f32.mrb[0].mxu0
      %v7132 = vpop.f32.mrb[0].mxu0
      %v7133 = vadd.f32 %v7036, %v7132
      %v7134 = vpop.f32.mrb[0].mxu0
      %7135 = vmatprep.mubr.bf16.mxu0 0
      %7136 = vmatmul.mubr.bf16.gmra.mrb[0].mxu0 %v6077
      %v7137 = vpop.f32.mrb[0].mxu0
      %v7138 = vadd.f32 %v7041, %v7137
      %v7139 = vpop.f32.mrb[0].mxu0
      %v7140 = vpop.f32.mrb[0].mxu0
      %v7141 = vadd.f32 %v7044, %v7140
      %v7142 = vpop.f32.mrb[0].mxu0
      %7143 = vmatprep.mubr.bf16.mxu0 0
      %7144 = vmatmul.mubr.bf16.gmra.mrb[0].mxu0 %v6086
      %v7145 = vpop.f32.mrb[0].mxu0
      %v7146 = vadd.f32 %v7049, %v7145
      %v7147 = vpop.f32.mrb[0].mxu0
      %v7148 = vpop.f32.mrb[0].mxu0
      %v7149 = vadd.f32 %v7052, %v7148
      %v7150 = vpop.f32.mrb[0].mxu0
      %7151 = vmatprep.mubr.bf16.mxu0 0
      %7152 = vmatmul.mubr.bf16.gmra.mrb[0].mxu0 %v6095
      %v7153 = vpop.f32.mrb[0].mxu0
      %v7154 = vadd.f32 %v7057, %v7153
      %v7155 = vpop.f32.mrb[0].mxu0
      %v7156 = vpop.f32.mrb[0].mxu0
      %v7157 = vadd.f32 %v7060, %v7156
      %v7158 = vpop.f32.mrb[0].mxu0
      %7159 = vmatprep.mubr.bf16.mxu0 0
      %7160 = vmatmul.mubr.bf16.gmra.mrb[0].mxu0 %v6104
      %v7161 = vpop.f32.mrb[0].mxu0
      %v7162 = vadd.f32 %v7065, %v7161
      %v7163 = vpop.f32.mrb[0].mxu0
      %v7164 = vpop.f32.mrb[0].mxu0
      %v7165 = vadd.f32 %v7068, %v7164
      %v7166 = vpop.f32.mrb[0].mxu0
      %7167 = vmatprep.mubr.bf16.mxu0 0
      %7168 = vmatmul.mubr.bf16.gmra.mrb[0].mxu0 %v6113
      %v7169 = vpop.f32.mrb[0].mxu0
      %v7170 = vadd.f32 %v7073, %v7169
      %v7171 = vpop.f32.mrb[0].mxu0
      %v7172 = vpop.f32.mrb[0].mxu0
      %v7173 = vadd.f32 %v7076, %v7172
      %v7174 = vpop.f32.mrb[0].mxu0
      %7175 = vmatprep.mubr.bf16.mxu0 0
      %7176 = vmatmul.mubr.bf16.gmra.mrb[0].mxu0 %v6122
      %v7177 = vpop.f32.mrb[0].mxu0
      %v7178 = vadd.f32 %v7081, %v7177
      %v7179 = vpop.f32.mrb[0].mxu0
      %v7180 = vpop.f32.mrb[0].mxu0
      %v7181 = vadd.f32 %v7084, %v7180
      %v7182 = vpop.f32.mrb[0].mxu0
      %7183 = vdwg.mxu0
      %s7184 = scalar_lea.vmem %s6, 8
      %v7185 = vld [vmem:[%s7184] sm:$0x3]
      %v7186 = vlaneseq
      %v7187 = vshrl.u32 %v7186, 7
      %v7188 = vsub.s32 0, %v7187
      %v7189 = vrot.slane %v7185, %v7188
      %v7190 = vmul.f32 %v7122, %v7189
      %v7191 = vmul.f32 %v7125, %v7189
      %v7192 = vmul.f32 %v7130, %v7189
      %v7193 = vmul.f32 %v7133, %v7189
      %v7194 = vmul.f32 %v7138, %v7189
      %v7195 = vmul.f32 %v7141, %v7189
      %v7196 = vmul.f32 %v7146, %v7189
      %v7197 = vmul.f32 %v7149, %v7189
      %v7198 = vmul.f32 %v7154, %v7189
      %v7199 = vmul.f32 %v7157, %v7189
      %v7200 = vmul.f32 %v7162, %v7189
      %v7201 = vmul.f32 %v7165, %v7189
      %v7202 = vmul.f32 %v7170, %v7189
      %v7203 = vmul.f32 %v7173, %v7189
      %v7204 = vmul.f32 %v7178, %v7189
      %v7205 = vmul.f32 %v7181, %v7189
      %v7206 = vlaneseq
      %v7207 = vshrl.u32 %v7206, 7
      %v7208 = vsub.s32 1, %v7207
      %v7209 = vrot.slane %v7185, %v7208
      %v7210 = vadd.f32 %v7190, %v7209
      %v7211 = vadd.f32 %v7191, %v7209
      %v7212 = vadd.f32 %v7192, %v7209
      %v7213 = vadd.f32 %v7193, %v7209
      %v7214 = vadd.f32 %v7194, %v7209
      %v7215 = vadd.f32 %v7195, %v7209
      %v7216 = vadd.f32 %v7196, %v7209
      %v7217 = vadd.f32 %v7197, %v7209
      %v7218 = vadd.f32 %v7198, %v7209
      %v7219 = vadd.f32 %v7199, %v7209
      %v7220 = vadd.f32 %v7200, %v7209
      %v7221 = vadd.f32 %v7201, %v7209
      %v7222 = vadd.f32 %v7202, %v7209
      %v7223 = vadd.f32 %v7203, %v7209
      %v7224 = vadd.f32 %v7204, %v7209
      %v7225 = vadd.f32 %v7205, %v7209
      %7226 = vst [vmem:[%s278] sm:$0xff] %v7210
      %7227 = vst [vmem:[%s278 + $0x8] sm:$0xff] %v7211
      %7228 = vst [vmem:[%s278 + $0x10] sm:$0xff] %v7212
      %7229 = vst [vmem:[%s278 + $0x18] sm:$0xff] %v7213
      %7230 = vst [vmem:[%s278 + $0x20] sm:$0xff] %v7214
      %7231 = vst [vmem:[%s278 + $0x28] sm:$0xff] %v7215
      %7232 = vst [vmem:[%s278 + $0x30] sm:$0xff] %v7216
      %7233 = vst [vmem:[%s278 + $0x38] sm:$0xff] %v7217
      %7234 = vst [vmem:[%s278 + $0x40] sm:$0xff] %v7218
      %7235 = vst [vmem:[%s278 + $0x48] sm:$0xff] %v7219
      %7236 = vst [vmem:[%s278 + $0x50] sm:$0xff] %v7220
      %7237 = vst [vmem:[%s278 + $0x58] sm:$0xff] %v7221
      %7238 = vst [vmem:[%s278 + $0x60] sm:$0xff] %v7222
      %7239 = vst [vmem:[%s278 + $0x68] sm:$0xff] %v7223
      %7240 = vst [vmem:[%s278 + $0x70] sm:$0xff] %v7224
      %7241 = vst [vmem:[%s278 + $0x78] sm:$0xff] %v7225
      %p7242 = scmp.lt.s32.totalorder %s18, 1
      %s7243 = scalar_select %p7242, %s18, 1
      %s7244 = smul.addr %s7243, 16
      %s7245 = smul.addr %s7244, 8
      %s7246 = scalar_lea.vmem %s7, %s7245
      // Predicated region
      $region49: #{depth_regression_forward.1} parent=47 // pred_check
        %p7247 = pneg %p188
      $region50: #{depth_regression_forward.1} parent=47 // pred_check_branch
        %7249 = sbr.rel (%p7247) target = $region52
      $region51: #{depth_regression_forward.1} parent=47 // pred_region
        _
      $region52: #{depth_regression_forward.1} parent=47 // pred_fallthru
        _
    $region48: #{depth_regression_forward.1} parent=5 // pred_fallthru
      _
    %p7250 = scmp.le.s32.totalorder 2, %s13
    // Predicated region
    $region53: #{depth_regression_forward.1} parent=5 // pred_check
      %p7251 = pneg %p7250
    $region54: #{depth_regression_forward.1} parent=5 // pred_check_branch
      %7253 = sbr.rel (%p7251) target = $region56
    $region55: #{depth_regression_forward.1} parent=5 // pred_region
      %s7254 = ssub.s32 %s13, 2
      // Predicated region
      $region57: #{depth_regression_forward.1} parent=55 // pred_check
        %p7255 = pneg %p194
      $region58: #{depth_regression_forward.1} parent=55 // pred_check_branch
        %7257 = sbr.rel (%p7255) target = $region60
      $region59: #{depth_regression_forward.1} parent=55 // pred_region
        %p7258 = scmp.lt.s32.totalorder %s19, 1
        %s7259 = scalar_select %p7258, %s19, 1
        %s7260 = smul.addr %s7259, 16
        %s7261 = smul.addr %s7260, 8
        %s7262 = scalar_lea.vmem %s7, %s7261
      $region60: #{depth_regression_forward.1} parent=55 // pred_fallthru
        _
    $region56: #{depth_regression_forward.1} parent=5 // pred_fallthru
      _
  $region6: #{depth_regression_forward.1} parent=0 // loop_footer
    %s17 = sadd.s32 1, %s13
  $region7: #{depth_regression_forward.1} parent=0 // loop_footer_branch
    %12 = sbr.rel target = $region3
  $region8: #{depth_regression_forward.1} parent=0 // loop_exit
    _

</llo_original>
